<compile_context>
chip_gen: v7x
topology: tpu7x:2x2x1
jax: 0.10.0
libtpu: 0.0.40
codegen_flags: <defaults>
</compile_context>

<pallas_src>
import functools
import math

import jax
import jax.numpy as jnp
from jax.experimental import pallas as pl
from jax.experimental.pallas import tpu as pltpu


# ------------------------------ tiling config --------------------------------

_TM = 128          # row tile (sublane axis); >=2 row tiles => both v7x TCs used
_TN = 256          # output-feature tile (lane axis), 256-multiple for v6e/v7x MXU
_TK = 512          # contraction tile for the accumulator kernel
_LN_EPS = 1e-5
# Tiles are budgeted far below v7x's 64 MiB physical VMEM; raise the scoped
# limit explicitly so larger configs don't trip the 16/32 MiB defaults.
_VMEM_LIMIT = 48 * 1024 * 1024


def _pick_tile(dim, pref, align):
    """Largest tile <= pref that divides `dim` and is a multiple of `align`;
    falls back to the full dim (a full-extent block is always legal)."""
    t = min(pref, dim)
    t -= t % align
    while t >= align:
        if dim % t == 0:
            return t
        t -= align
    return dim


def _cparams(*sem):
    return pltpu.CompilerParams(dimension_semantics=sem,
                                vmem_limit_bytes=_VMEM_LIMIT)


# ----------------------------- Pallas kernels --------------------------------

def _ln_matmul_kernel(x_ref, g_ref, b_ref, w_ref, bias_ref, o_ref, *, eps):
    # Fused row-wise LayerNorm (f32) + matmul (bf16 operands, f32 accumulate).
    x = x_ref[...].astype(jnp.float32)
    mu = jnp.mean(x, axis=-1, keepdims=True)
    var = jnp.mean(jnp.square(x - mu), axis=-1, keepdims=True)
    xn = (x - mu) * jax.lax.rsqrt(var + eps)
    xn = xn * g_ref[...] + b_ref[...]
    acc = jnp.dot(xn.astype(w_ref.dtype), w_ref[...],
                  preferred_element_type=jnp.float32)
    o_ref[...] = (acc + bias_ref[...]).astype(o_ref.dtype)


def ln_matmul(x2d, gamma, beta, w, bias, out_dtype=None, eps=_LN_EPS):
    """out = LayerNorm(x2d) @ w + bias.  x2d:[M,K], w:[K,N].

    Tiled over (rows, out-features); K is kept whole per block because the
    LayerNorm needs full rows (K = n_embd fits VMEM comfortably at these sizes).
    """
    M, K = x2d.shape
    N = w.shape[1]
    out_dtype = jnp.dtype(out_dtype or x2d.dtype)
    tm = _pick_tile(M, _TM, 8)
    tn = _pick_tile(N, _TN, 128)
    grid = (M // tm, N // tn)
    kern = functools.partial(_ln_matmul_kernel, eps=eps)
    cost = pl.CostEstimate(
        flops=2 * M * K * N + 8 * M * K,
        transcendentals=M,
        bytes_accessed=(M * K + K * N) * x2d.dtype.itemsize
        + M * N * out_dtype.itemsize)
    return pl.pallas_call(
        kern,
        out_shape=jax.ShapeDtypeStruct((M, N), out_dtype),
        grid=grid,
        in_specs=[
            pl.BlockSpec((tm, K), lambda i, j: (i, 0)),
            pl.BlockSpec((1, K), lambda i, j: (0, 0)),
            pl.BlockSpec((1, K), lambda i, j: (0, 0)),
            pl.BlockSpec((K, tn), lambda i, j: (0, j)),
            pl.BlockSpec((1, tn), lambda i, j: (0, j)),
        ],
        out_specs=pl.BlockSpec((tm, tn), lambda i, j: (i, j)),
        compiler_params=_cparams("parallel", "parallel"),
        cost_estimate=cost,
    )(x2d, gamma.reshape(1, K), beta.reshape(1, K), w, bias.reshape(1, N))


def _matmul_res_kernel(x_ref, w_ref, bias_ref, res_ref, o_ref, acc_ref):
    @pl.when(pl.program_id(2) == 0)
    def _():
        acc_ref[...] = jnp.zeros_like(acc_ref)

    acc_ref[...] += jnp.dot(x_ref[...], w_ref[...],
                            preferred_element_type=jnp.float32)

    @pl.when(pl.program_id(2) == pl.num_programs(2) - 1)
    def _():
        o_ref[...] = (acc_ref[...] + bias_ref[...]
                      + res_ref[...].astype(jnp.float32)).astype(o_ref.dtype)


def matmul_bias_residual(x2d, w, bias, residual):
    """out = x2d @ w + bias + residual, tiled (M, N, K) with f32 accumulator."""
    M, K = x2d.shape
    N = w.shape[1]
    tm = _pick_tile(M, _TM, 8)
    tn = _pick_tile(N, _TN, 128)
    tk = _pick_tile(K, _TK, 128)
    grid = (M // tm, N // tn, K // tk)
    cost = pl.CostEstimate(
        flops=2 * M * K * N,
        transcendentals=0,
        bytes_accessed=(M * K + K * N + 2 * M * N) * x2d.dtype.itemsize)
    return pl.pallas_call(
        _matmul_res_kernel,
        out_shape=jax.ShapeDtypeStruct((M, N), residual.dtype),
        grid=grid,
        in_specs=[
            pl.BlockSpec((tm, tk), lambda i, j, k: (i, k)),
            pl.BlockSpec((tk, tn), lambda i, j, k: (k, j)),
            pl.BlockSpec((1, tn), lambda i, j, k: (0, j)),
            pl.BlockSpec((tm, tn), lambda i, j, k: (i, j)),
        ],
        out_specs=pl.BlockSpec((tm, tn), lambda i, j, k: (i, j)),
        scratch_shapes=[pltpu.VMEM((tm, tn), jnp.float32)],
        compiler_params=_cparams("parallel", "parallel", "arbitrary"),
        cost_estimate=cost,
    )(x2d, w, bias.reshape(1, N), residual)


def _ln_mlp_kernel(x_ref, g_ref, b_ref, w1_ref, b1_ref, w2_ref, b2_ref, o_ref,
                   *, eps):
    # Fused: out = x + W2 @ relu(W1 @ LayerNorm(x) + b1) + b2  (per row tile).
    x = x_ref[...].astype(jnp.float32)
    mu = jnp.mean(x, axis=-1, keepdims=True)
    var = jnp.mean(jnp.square(x - mu), axis=-1, keepdims=True)
    xn = (x - mu) * jax.lax.rsqrt(var + eps)
    xn = xn * g_ref[...] + b_ref[...]
    h = jnp.dot(xn.astype(w1_ref.dtype), w1_ref[...],
                preferred_element_type=jnp.float32) + b1_ref[...]
    # TODO(synk): Decoder MLP activation unspecified in the reference; ReLU used.
    h = jnp.maximum(h, 0.0)
    y = jnp.dot(h.astype(w2_ref.dtype), w2_ref[...],
                preferred_element_type=jnp.float32) + b2_ref[...]
    o_ref[...] = (y + x).astype(o_ref.dtype)          # residual fused in-kernel


def ln_mlp_residual(x2d, gamma, beta, w1, b1, w2, b2, eps=_LN_EPS):
    M, D = x2d.shape
    Dh = w1.shape[1]
    tm = _pick_tile(M, _TM, 8)
    grid = (M // tm,)
    kern = functools.partial(_ln_mlp_kernel, eps=eps)
    cost = pl.CostEstimate(
        flops=4 * M * D * Dh,
        transcendentals=M,
        bytes_accessed=(2 * M * D + 2 * D * Dh) * x2d.dtype.itemsize)
    return pl.pallas_call(
        kern,
        out_shape=jax.ShapeDtypeStruct((M, D), x2d.dtype),
        grid=grid,
        in_specs=[
            pl.BlockSpec((tm, D), lambda i: (i, 0)),
            pl.BlockSpec((1, D), lambda i: (0, 0)),
            pl.BlockSpec((1, D), lambda i: (0, 0)),
            pl.BlockSpec((D, Dh), lambda i: (0, 0)),
            pl.BlockSpec((1, Dh), lambda i: (0, 0)),
            pl.BlockSpec((Dh, D), lambda i: (0, 0)),
            pl.BlockSpec((1, D), lambda i: (0, 0)),
        ],
        out_specs=pl.BlockSpec((tm, D), lambda i: (i, 0)),
        compiler_params=_cparams("parallel"),
        cost_estimate=cost,
    )(x2d, gamma.reshape(1, D), beta.reshape(1, D), w1, b1.reshape(1, Dh),
      w2, b2.reshape(1, D))


def _attn_kernel(qkv_ref, o_ref, *, n_heads, d_head, scale):
    T = o_ref.shape[0]
    D = n_heads * d_head
    # Causal additive mask computed once per grid step, shared by all heads.
    row = jax.lax.broadcasted_iota(jnp.int32, (T, T), 0)
    col = jax.lax.broadcasted_iota(jnp.int32, (T, T), 1)
    neg = jnp.where(col <= row, 0.0, -1e30).astype(jnp.float32)
    outs = []
    for h in range(n_heads):                      # static unroll over heads
        lo = h * d_head
        q = qkv_ref[:, lo:lo + d_head]
        k = qkv_ref[:, D + lo:D + lo + d_head]
        v = qkv_ref[:, 2 * D + lo:2 * D + lo + d_head]
        s = jnp.dot(q, k.T, preferred_element_type=jnp.float32) * scale + neg
        s = s - jnp.max(s, axis=-1, keepdims=True)
        p = jnp.exp(s)
        p = p * pl.reciprocal(jnp.sum(p, axis=-1, keepdims=True), approx=True)
        outs.append(jnp.dot(p.astype(v.dtype), v,
                            preferred_element_type=jnp.float32))
    # Single lane-dense [T, D] store (avoids per-head sub-128-lane masked stores).
    o_ref[...] = jnp.concatenate(outs, axis=-1).astype(o_ref.dtype)


def causal_attention(qkv, n_heads):
    """qkv: [B, T, 3D] packed [q|k|v] along the lane axis -> attn out [B, T, D].

    All heads of one batch element are processed in a single grid step.
    # TODO(synk): for block_size >> 1k convert to flash-style KV tiling with
    # online softmax; dense T x T scores are fine at the reference block_size.
    """
    B, T, threeD = qkv.shape
    D = threeD // 3
    d_head = D // n_heads
    scale = 1.0 / math.sqrt(d_head)
    kern = functools.partial(_attn_kernel, n_heads=n_heads, d_head=d_head,
                             scale=scale)
    cost = pl.CostEstimate(
        flops=4 * B * T * T * D,
        transcendentals=B * n_heads * T * T,
        bytes_accessed=(B * T * threeD + B * T * D) * qkv.dtype.itemsize)
    return pl.pallas_call(
        kern,
        out_shape=jax.ShapeDtypeStruct((B, T, D), qkv.dtype),
        grid=(B,),
        in_specs=[pl.BlockSpec((None, T, threeD), lambda b: (b, 0, 0))],
        out_specs=pl.BlockSpec((None, T, D), lambda b: (b, 0, 0)),
        compiler_params=_cparams("parallel"),
        cost_estimate=cost,
    )(qkv)


# ------------------------------ Model (glue) ---------------------------------

def init_params(key, vocab_size, n_embd, n_heads, block_size, n_layers,
                dtype=jnp.bfloat16):
    del n_heads  # head count is passed separately (static) to the forward fn
    keys = iter(jax.random.split(key, 3 + 4 * n_layers))

    def nrm(shape, std=0.02):
        return (jax.random.normal(next(keys), shape, dtype=jnp.float32)
                * std).astype(dtype)

    params = {
        "token_emb": nrm((vocab_size, n_embd)),
        "pos_emb": nrm((block_size, n_embd)),
        "ln_g": jnp.ones((n_embd,), jnp.float32),
        "ln_b": jnp.zeros((n_embd,), jnp.float32),
        "fc_w": nrm((n_embd, vocab_size)),
        "fc_b": jnp.zeros((vocab_size,), jnp.float32),
        "layers": [],
    }
    for _ in range(n_layers):
        params["layers"].append({
            "ln1_g": jnp.ones((n_embd,), jnp.float32),
            "ln1_b": jnp.zeros((n_embd,), jnp.float32),
            "ln2_g": jnp.ones((n_embd,), jnp.float32),
            "ln2_b": jnp.zeros((n_embd,), jnp.float32),
            "wqkv": nrm((n_embd, 3 * n_embd)),
            "bqkv": jnp.zeros((3 * n_embd,), jnp.float32),
            "wo": nrm((n_embd, n_embd)),
            "bo": jnp.zeros((n_embd,), jnp.float32),
            "w1": nrm((n_embd, 4 * n_embd)),
            "b1": jnp.zeros((4 * n_embd,), jnp.float32),
            "w2": nrm((4 * n_embd, n_embd)),
            "b2": jnp.zeros((n_embd,), jnp.float32),
        })
    return params


def decoder_layer(p, n_heads, x, k_in, v_in):
    """Pre-LN causal self-attention block.  Returns (x, k, v, ak, av)."""
    # TODO(synk): incoming cross-layer k/v memory (seg/top_k retrieval) semantics
    # unspecified in the reference; k_in/v_in are not consumed here.
    del k_in, v_in
    B, T, D = x.shape
    H = n_heads
    Dh = D // H
    x2d = x.reshape(B * T, D)

    # Fused LayerNorm1 + QKV projection (packed lane-dense [N, 3D]).
    qkv = ln_matmul(x2d, p["ln1_g"], p["ln1_b"], p["wqkv"], p["bqkv"])
    qkv3 = qkv.reshape(B, T, 3 * D)

    # Attention: all heads per grid step, lane-dense [B, T, D] output.
    attn = causal_attention(qkv3, H)

    # Output projection with bias + residual fused (K-tiled accumulator kernel).
    x2d = matmul_bias_residual(attn.reshape(B * T, D), p["wo"], p["bo"], x2d)

    # Fused LayerNorm2 + MLP + residual.
    x2d = ln_mlp_residual(x2d, p["ln2_g"], p["ln2_b"],
                          p["w1"], p["b1"], p["w2"], p["b2"])

    x = x2d.reshape(B, T, D)
    # Keys/values returned in the conventional [B, H, T, Dh] cache layout
    # (unused intermediate layers are DCE'd under jit).
    ak = qkv3[:, :, D:2 * D].reshape(B, T, H, Dh).transpose(0, 2, 1, 3)
    av = qkv3[:, :, 2 * D:].reshape(B, T, H, Dh).transpose(0, 2, 1, 3)
    return x, ak, av, ak, av


@functools.partial(jax.jit, static_argnames=("n_heads",))
def mindvault_forward(params, tokens, n_heads, targets=None, ki=None, vi=None):
    """Mirrors MindVaultGPT.forward.  tokens: [B, T] int32."""
    B, T = tokens.shape
    D = params["token_emb"].shape[1]

    x = jnp.take(params["token_emb"], tokens, axis=0)      # [B, T, D]
    pos = params["pos_emb"][:T]                             # [T, D]
    x = (x + pos[None, :, :]).astype(params["token_emb"].dtype)

    k, v = ki, vi
    ak = av = None
    for layer in params["layers"]:
        x, k, v, ak, av = decoder_layer(layer, n_heads, x, k, v)

    # Final fused LayerNorm + vocab projection (tiled over rows and vocab).
    logits = ln_matmul(x.reshape(B * T, D), params["ln_g"], params["ln_b"],
                       params["fc_w"], params["fc_b"],
                       out_dtype=jnp.float32).reshape(B, T, -1)

    loss = None
    if targets is not None:
        # TODO(synk): F.cross_entropy training path not exercised (targets=None).
        flat = logits.reshape(B * T, -1)
        logp = jax.nn.log_softmax(flat, axis=-1)
        loss = -jnp.mean(jnp.take_along_axis(
            logp, targets.reshape(-1, 1), axis=-1))

    if ki is not None:
        k = jnp.concatenate([ki, ak], axis=-2)
    if vi is not None:
        v = jnp.concatenate([vi, av], axis=-2)
    return logits, k, v, loss


# ---------------------------------- main --------------------------------------

if __name__ == "__main__":
    # Small but tiling-meaningful config (module defaults use n_embd=256,
    # block_size=128, n_heads=4).
    vocab_size = 512
    n_embd = 256
    n_heads = 4
    block_size = 128
    n_layers = 2
    B, T = 2, 128

    key = jax.random.PRNGKey(0)
    pkey, xkey = jax.random.split(key)
    params = init_params(pkey, vocab_size, n_embd, n_heads, block_size, n_layers)
    tokens = jax.random.randint(xkey, (B, T), 0, vocab_size, dtype=jnp.int32)

    logits, k, v, loss = mindvault_forward(params, tokens, n_heads=n_heads)
    jax.block_until_ready(logits)
    jax.block_until_ready(k)
    jax.block_until_ready(v)

    assert logits.shape == (B, T, vocab_size), logits.shape
    assert k.shape == (B, n_heads, T, n_embd // n_heads), k.shape
    assert v.shape == (B, n_heads, T, n_embd // n_heads), v.shape
    assert loss is None
    assert bool(jnp.all(jnp.isfinite(logits)))

    print("KERNEL_OK")
</pallas_src>

<mosaic_0001>
module attributes {stable_mosaic.version = 11 : i64} {
  func.func @_ln_matmul_kernel(%arg0: i32, %arg1: i32, %arg2: memref<128x256xbf16, #tpu.memory_space<vmem>>, %arg3: memref<1x256xf32, #tpu.memory_space<vmem>>, %arg4: memref<1x256xf32, #tpu.memory_space<vmem>>, %arg5: memref<256x256xbf16, #tpu.memory_space<vmem>>, %arg6: memref<1x256xf32, #tpu.memory_space<vmem>>, %arg7: memref<128x256xbf16, #tpu.memory_space<vmem>>) attributes {dimension_semantics = [#tpu.dimension_semantics<parallel>, #tpu.dimension_semantics<parallel>], iteration_bounds = array<i64: 2, 3>, scalar_prefetch = 0 : i64, scratch_operands = 0 : i64, tpu.core_type = #tpu.core_type<tc>, window_params = [{transform_indices = @transform_0, window_bounds = array<i64: 128, 256>}, {pipeline_mode = #tpu.pipeline_mode<synchronous>, transform_indices = @transform_1, window_bounds = array<i64: 1, 256>}, {pipeline_mode = #tpu.pipeline_mode<synchronous>, transform_indices = @transform_2, window_bounds = array<i64: 1, 256>}, {transform_indices = @transform_3, window_bounds = array<i64: 256, 256>}, {transform_indices = @transform_4, window_bounds = array<i64: 1, 256>}, {transform_indices = @transform_5, window_bounds = array<i64: 128, 256>}]} {
    %c0 = arith.constant 0 : index
    %c0_0 = arith.constant 0 : index
    %0 = vector.load %arg2[%c0, %c0_0] : memref<128x256xbf16, #tpu.memory_space<vmem>>, vector<128x256xbf16>
    %1 = arith.extf %0 : vector<128x256xbf16> to vector<128x256xf32>
    %cst = arith.constant dense<0.000000e+00> : vector<128xf32>
    %2 = vector.multi_reduction <add>, %1, %cst [1] : vector<128x256xf32> to vector<128xf32>
    %3 = vector.shape_cast %2 : vector<128xf32> to vector<128x1xf32>
    %cst_1 = arith.constant 2.560000e+02 : f32
    %4 = vector.broadcast %cst_1 : f32 to vector<128x1xf32>
    %5 = arith.divf %3, %4 : vector<128x1xf32>
    %6 = vector.broadcast %5 : vector<128x1xf32> to vector<128x256xf32>
    %7 = arith.subf %1, %6 : vector<128x256xf32>
    %8 = arith.mulf %7, %7 : vector<128x256xf32>
    %cst_2 = arith.constant dense<0.000000e+00> : vector<128xf32>
    %9 = vector.multi_reduction <add>, %8, %cst_2 [1] : vector<128x256xf32> to vector<128xf32>
    %10 = vector.shape_cast %9 : vector<128xf32> to vector<128x1xf32>
    %cst_3 = arith.constant 2.560000e+02 : f32
    %11 = vector.broadcast %cst_3 : f32 to vector<128x1xf32>
    %12 = arith.divf %10, %11 : vector<128x1xf32>
    %13 = vector.broadcast %5 : vector<128x1xf32> to vector<128x256xf32>
    %14 = arith.subf %1, %13 : vector<128x256xf32>
    %cst_4 = arith.constant 9.99999974E-6 : f32
    %15 = vector.broadcast %cst_4 : f32 to vector<128x1xf32>
    %16 = arith.addf %12, %15 : vector<128x1xf32>
    %17 = math.rsqrt %16 : vector<128x1xf32>
    %18 = vector.broadcast %17 : vector<128x1xf32> to vector<128x256xf32>
    %19 = arith.mulf %14, %18 : vector<128x256xf32>
    %c0_5 = arith.constant 0 : index
    %c0_6 = arith.constant 0 : index
    %20 = vector.load %arg3[%c0_5, %c0_6] : memref<1x256xf32, #tpu.memory_space<vmem>>, vector<1x256xf32>
    %21 = vector.broadcast %20 : vector<1x256xf32> to vector<128x256xf32>
    %22 = arith.mulf %19, %21 : vector<128x256xf32>
    %c0_7 = arith.constant 0 : index
    %c0_8 = arith.constant 0 : index
    %23 = vector.load %arg4[%c0_7, %c0_8] : memref<1x256xf32, #tpu.memory_space<vmem>>, vector<1x256xf32>
    %24 = vector.broadcast %23 : vector<1x256xf32> to vector<128x256xf32>
    %25 = arith.addf %22, %24 : vector<128x256xf32>
    %26 = arith.truncf %25 : vector<128x256xf32> to vector<128x256xbf16>
    %c0_9 = arith.constant 0 : index
    %c0_10 = arith.constant 0 : index
    %27 = vector.load %arg5[%c0_9, %c0_10] : memref<256x256xbf16, #tpu.memory_space<vmem>>, vector<256x256xbf16>
    %cst_11 = arith.constant dense<0.000000e+00> : vector<128x256xf32>
    %28 = tpu.matmul %26, %27, %cst_11 {dimension_numbers = #tpu.dot_dimension_numbers<[1], [0], [0], [1], [0, 0, 1, 1], [], []>} : vector<128x256xbf16>, vector<256x256xbf16>, vector<128x256xf32> -> vector<128x256xf32>
    %c0_12 = arith.constant 0 : index
    %c0_13 = arith.constant 0 : index
    %29 = vector.load %arg6[%c0_12, %c0_13] : memref<1x256xf32, #tpu.memory_space<vmem>>, vector<1x256xf32>
    %30 = vector.broadcast %29 : vector<1x256xf32> to vector<128x256xf32>
    %31 = arith.addf %28, %30 : vector<128x256xf32>
    %32 = arith.truncf %31 : vector<128x256xf32> to vector<128x256xbf16>
    %c0_14 = arith.constant 0 : index
    %c0_15 = arith.constant 0 : index
    %33 = vector.load %arg7[%c0_14, %c0_15] : memref<128x256xbf16, #tpu.memory_space<vmem>>, vector<128x256xbf16>
    tpu.vector_store %arg7[%c0_14, %c0_15], %32 {strides = array<i32>} : memref<128x256xbf16, #tpu.memory_space<vmem>>, vector<128x256xbf16>,
    return
  }
  func.func @transform_0(%arg0: i32, %arg1: i32) -> (i32, i32) {
    %c0_i32 = arith.constant 0 : i32
    %c0_i32_0 = arith.constant 0 : i32
    return %arg0, %c0_i32 : i32, i32
  }
  func.func @transform_1(%arg0: i32, %arg1: i32) -> (i32, i32) {
    %c0_i32 = arith.constant 0 : i32
    %c0_i32_0 = arith.constant 0 : i32
    %c0_i32_1 = arith.constant 0 : i32
    return %c0_i32, %c0_i32_0 : i32, i32
  }
  func.func @transform_2(%arg0: i32, %arg1: i32) -> (i32, i32) {
    %c0_i32 = arith.constant 0 : i32
    %c0_i32_0 = arith.constant 0 : i32
    %c0_i32_1 = arith.constant 0 : i32
    return %c0_i32, %c0_i32_0 : i32, i32
  }
  func.func @transform_3(%arg0: i32, %arg1: i32) -> (i32, i32) {
    %c0_i32 = arith.constant 0 : i32
    %c0_i32_0 = arith.constant 0 : i32
    return %c0_i32, %arg1 : i32, i32
  }
  func.func @transform_4(%arg0: i32, %arg1: i32) -> (i32, i32) {
    %c0_i32 = arith.constant 0 : i32
    %c0_i32_0 = arith.constant 0 : i32
    return %c0_i32, %arg1 : i32, i32
  }
  func.func @transform_5(%arg0: i32, %arg1: i32) -> (i32, i32) {
    %c0_i32 = arith.constant 0 : i32
    return %arg0, %arg1 : i32, i32
  }
}

module attributes {stable_mosaic.version = 11 : i64} {
  func.func @_attn_kernel(%arg0: i32, %arg1: memref<1x128x768xbf16, #tpu.memory_space<vmem>>, %arg2: memref<1x128x256xbf16, #tpu.memory_space<vmem>>) attributes {dimension_semantics = [#tpu.dimension_semantics<parallel>], iteration_bounds = array<i64: 2>, scalar_prefetch = 0 : i64, scratch_operands = 0 : i64, tpu.core_type = #tpu.core_type<tc>, window_params = [{transform_indices = @transform_0, window_bounds = array<i64: 1, 128, 768>}, {transform_indices = @transform_1, window_bounds = array<i64: 1, 128, 256>}]} {
    %0 = tpu.iota {dimensions = array<i32: 0>} : vector<128x128xi32>
    %1 = tpu.iota {dimensions = array<i32: 1>} : vector<128x128xi32>
    %2 = arith.cmpi sle, %1, %0 : vector<128x128xi32>
    %cst = arith.constant 0.000000e+00 : f32
    %cst_0 = arith.constant -1.000000e+30 : f32
    %3 = vector.broadcast %cst : f32 to vector<128x128xf32>
    %4 = vector.broadcast %cst_0 : f32 to vector<128x128xf32>
    %5 = arith.select %2, %3, %4 : vector<128x128xi1>, vector<128x128xf32>
    %c0 = arith.constant 0 : index
    %c0_1 = arith.constant 0 : index
    %c0_2 = arith.constant 0 : index
    %6 = vector.load %arg1[%c0, %c0_1, %c0_2] : memref<1x128x768xbf16, #tpu.memory_space<vmem>>, vector<1x128x64xbf16>
    %7 = vector.shape_cast %6 : vector<1x128x64xbf16> to vector<128x64xbf16>
    %c0_3 = arith.constant 0 : index
    %c0_4 = arith.constant 0 : index
    %c256 = arith.constant 256 : index
    %8 = vector.load %arg1[%c0_3, %c0_4, %c256] : memref<1x128x768xbf16, #tpu.memory_space<vmem>>, vector<1x128x64xbf16>
    %9 = vector.shape_cast %8 : vector<1x128x64xbf16> to vector<128x64xbf16>
    %c0_5 = arith.constant 0 : index
    %c0_6 = arith.constant 0 : index
    %c512 = arith.constant 512 : index
    %10 = vector.load %arg1[%c0_5, %c0_6, %c512] : memref<1x128x768xbf16, #tpu.memory_space<vmem>>, vector<1x128x64xbf16>
    %11 = vector.shape_cast %10 : vector<1x128x64xbf16> to vector<128x64xbf16>
    %12 = tpu.transpose %9, [1, 0] : vector<128x64xbf16> -> vector<64x128xbf16>
    %cst_7 = arith.constant dense<0.000000e+00> : vector<128x128xf32>
    %13 = tpu.matmul %7, %12, %cst_7 {dimension_numbers = #tpu.dot_dimension_numbers<[1], [0], [0], [1], [0, 0, 1, 1], [], []>} : vector<128x64xbf16>, vector<64x128xbf16>, vector<128x128xf32> -> vector<128x128xf32>
    %cst_8 = arith.constant 1.250000e-01 : f32
    %14 = vector.broadcast %cst_8 : f32 to vector<128x128xf32>
    %15 = arith.mulf %13, %14 : vector<128x128xf32>
    %16 = arith.addf %15, %5 : vector<128x128xf32>
    %cst_9 = arith.constant dense<0xFF800000> : vector<128xf32>
    %17 = vector.multi_reduction <maximumf>, %16, %cst_9 [1] : vector<128x128xf32> to vector<128xf32>
    %18 = vector.shape_cast %17 : vector<128xf32> to vector<128x1xf32>
    %19 = vector.broadcast %18 : vector<128x1xf32> to vector<128x128xf32>
    %20 = arith.subf %16, %19 : vector<128x128xf32>
    %21 = math.exp %20 : vector<128x128xf32>
    %cst_10 = arith.constant dense<0.000000e+00> : vector<128xf32>
    %22 = vector.multi_reduction <add>, %21, %cst_10 [1] : vector<128x128xf32> to vector<128xf32>
    %23 = vector.shape_cast %22 : vector<128xf32> to vector<128x1xf32>
    %24 = tpu.reciprocal %23 {approx = true} : vector<128x1xf32> -> vector<128x1xf32>
    %25 = vector.broadcast %24 : vector<128x1xf32> to vector<128x128xf32>
    %26 = arith.mulf %21, %25 : vector<128x128xf32>
    %27 = arith.truncf %26 : vector<128x128xf32> to vector<128x128xbf16>
    %cst_11 = arith.constant dense<0.000000e+00> : vector<128x64xf32>
    %28 = tpu.matmul %27, %11, %cst_11 {dimension_numbers = #tpu.dot_dimension_numbers<[1], [0], [0], [1], [0, 0, 1, 1], [], []>} : vector<128x128xbf16>, vector<128x64xbf16>, vector<128x64xf32> -> vector<128x64xf32>
    %c0_12 = arith.constant 0 : index
    %c0_13 = arith.constant 0 : index
    %c64 = arith.constant 64 : index
    %29 = vector.load %arg1[%c0_12, %c0_13, %c64] : memref<1x128x768xbf16, #tpu.memory_space<vmem>>, vector<1x128x64xbf16>
    %30 = vector.shape_cast %29 : vector<1x128x64xbf16> to vector<128x64xbf16>
    %c0_14 = arith.constant 0 : index
    %c0_15 = arith.constant 0 : index
    %c320 = arith.constant 320 : index
    %31 = vector.load %arg1[%c0_14, %c0_15, %c320] : memref<1x128x768xbf16, #tpu.memory_space<vmem>>, vector<1x128x64xbf16>
    %32 = vector.shape_cast %31 : vector<1x128x64xbf16> to vector<128x64xbf16>
    %c0_16 = arith.constant 0 : index
    %c0_17 = arith.constant 0 : index
    %c576 = arith.constant 576 : index
    %33 = vector.load %arg1[%c0_16, %c0_17, %c576] : memref<1x128x768xbf16, #tpu.memory_space<vmem>>, vector<1x128x64xbf16>
    %34 = vector.shape_cast %33 : vector<1x128x64xbf16> to vector<128x64xbf16>
    %35 = tpu.transpose %32, [1, 0] : vector<128x64xbf16> -> vector<64x128xbf16>
    %cst_18 = arith.constant dense<0.000000e+00> : vector<128x128xf32>
    %36 = tpu.matmul %30, %35, %cst_18 {dimension_numbers = #tpu.dot_dimension_numbers<[1], [0], [0], [1], [0, 0, 1, 1], [], []>} : vector<128x64xbf16>, vector<64x128xbf16>, vector<128x128xf32> -> vector<128x128xf32>
    %cst_19 = arith.constant 1.250000e-01 : f32
    %37 = vector.broadcast %cst_19 : f32 to vector<128x128xf32>
    %38 = arith.mulf %36, %37 : vector<128x128xf32>
    %39 = arith.addf %38, %5 : vector<128x128xf32>
    %cst_20 = arith.constant dense<0xFF800000> : vector<128xf32>
    %40 = vector.multi_reduction <maximumf>, %39, %cst_20 [1] : vector<128x128xf32> to vector<128xf32>
    %41 = vector.shape_cast %40 : vector<128xf32> to vector<128x1xf32>
    %42 = vector.broadcast %41 : vector<128x1xf32> to vector<128x128xf32>
    %43 = arith.subf %39, %42 : vector<128x128xf32>
    %44 = math.exp %43 : vector<128x128xf32>
    %cst_21 = arith.constant dense<0.000000e+00> : vector<128xf32>
    %45 = vector.multi_reduction <add>, %44, %cst_21 [1] : vector<128x128xf32> to vector<128xf32>
    %46 = vector.shape_cast %45 : vector<128xf32> to vector<128x1xf32>
    %47 = tpu.reciprocal %46 {approx = true} : vector<128x1xf32> -> vector<128x1xf32>
    %48 = vector.broadcast %47 : vector<128x1xf32> to vector<128x128xf32>
    %49 = arith.mulf %44, %48 : vector<128x128xf32>
    %50 = arith.truncf %49 : vector<128x128xf32> to vector<128x128xbf16>
    %cst_22 = arith.constant dense<0.000000e+00> : vector<128x64xf32>
    %51 = tpu.matmul %50, %34, %cst_22 {dimension_numbers = #tpu.dot_dimension_numbers<[1], [0], [0], [1], [0, 0, 1, 1], [], []>} : vector<128x128xbf16>, vector<128x64xbf16>, vector<128x64xf32> -> vector<128x64xf32>
    %c0_23 = arith.constant 0 : index
    %c0_24 = arith.constant 0 : index
    %c128 = arith.constant 128 : index
    %52 = vector.load %arg1[%c0_23, %c0_24, %c128] : memref<1x128x768xbf16, #tpu.memory_space<vmem>>, vector<1x128x64xbf16>
    %53 = vector.shape_cast %52 : vector<1x128x64xbf16> to vector<128x64xbf16>
    %c0_25 = arith.constant 0 : index
    %c0_26 = arith.constant 0 : index
    %c384 = arith.constant 384 : index
    %54 = vector.load %arg1[%c0_25, %c0_26, %c384] : memref<1x128x768xbf16, #tpu.memory_space<vmem>>, vector<1x128x64xbf16>
    %55 = vector.shape_cast %54 : vector<1x128x64xbf16> to vector<128x64xbf16>
    %c0_27 = arith.constant 0 : index
    %c0_28 = arith.constant 0 : index
    %c640 = arith.constant 640 : index
    %56 = vector.load %arg1[%c0_27, %c0_28, %c640] : memref<1x128x768xbf16, #tpu.memory_space<vmem>>, vector<1x128x64xbf16>
    %57 = vector.shape_cast %56 : vector<1x128x64xbf16> to vector<128x64xbf16>
    %58 = tpu.transpose %55, [1, 0] : vector<128x64xbf16> -> vector<64x128xbf16>
    %cst_29 = arith.constant dense<0.000000e+00> : vector<128x128xf32>
    %59 = tpu.matmul %53, %58, %cst_29 {dimension_numbers = #tpu.dot_dimension_numbers<[1], [0], [0], [1], [0, 0, 1, 1], [], []>} : vector<128x64xbf16>, vector<64x128xbf16>, vector<128x128xf32> -> vector<128x128xf32>
    %cst_30 = arith.constant 1.250000e-01 : f32
    %60 = vector.broadcast %cst_30 : f32 to vector<128x128xf32>
    %61 = arith.mulf %59, %60 : vector<128x128xf32>
    %62 = arith.addf %61, %5 : vector<128x128xf32>
    %cst_31 = arith.constant dense<0xFF800000> : vector<128xf32>
    %63 = vector.multi_reduction <maximumf>, %62, %cst_31 [1] : vector<128x128xf32> to vector<128xf32>
    %64 = vector.shape_cast %63 : vector<128xf32> to vector<128x1xf32>
    %65 = vector.broadcast %64 : vector<128x1xf32> to vector<128x128xf32>
    %66 = arith.subf %62, %65 : vector<128x128xf32>
    %67 = math.exp %66 : vector<128x128xf32>
    %cst_32 = arith.constant dense<0.000000e+00> : vector<128xf32>
    %68 = vector.multi_reduction <add>, %67, %cst_32 [1] : vector<128x128xf32> to vector<128xf32>
    %69 = vector.shape_cast %68 : vector<128xf32> to vector<128x1xf32>
    %70 = tpu.reciprocal %69 {approx = true} : vector<128x1xf32> -> vector<128x1xf32>
    %71 = vector.broadcast %70 : vector<128x1xf32> to vector<128x128xf32>
    %72 = arith.mulf %67, %71 : vector<128x128xf32>
    %73 = arith.truncf %72 : vector<128x128xf32> to vector<128x128xbf16>
    %cst_33 = arith.constant dense<0.000000e+00> : vector<128x64xf32>
    %74 = tpu.matmul %73, %57, %cst_33 {dimension_numbers = #tpu.dot_dimension_numbers<[1], [0], [0], [1], [0, 0, 1, 1], [], []>} : vector<128x128xbf16>, vector<128x64xbf16>, vector<128x64xf32> -> vector<128x64xf32>
    %c0_34 = arith.constant 0 : index
    %c0_35 = arith.constant 0 : index
    %c192 = arith.constant 192 : index
    %75 = vector.load %arg1[%c0_34, %c0_35, %c192] : memref<1x128x768xbf16, #tpu.memory_space<vmem>>, vector<1x128x64xbf16>
    %76 = vector.shape_cast %75 : vector<1x128x64xbf16> to vector<128x64xbf16>
    %c0_36 = arith.constant 0 : index
    %c0_37 = arith.constant 0 : index
    %c448 = arith.constant 448 : index
    %77 = vector.load %arg1[%c0_36, %c0_37, %c448] : memref<1x128x768xbf16, #tpu.memory_space<vmem>>, vector<1x128x64xbf16>
    %78 = vector.shape_cast %77 : vector<1x128x64xbf16> to vector<128x64xbf16>
    %c0_38 = arith.constant 0 : index
    %c0_39 = arith.constant 0 : index
    %c704 = arith.constant 704 : index
    %79 = vector.load %arg1[%c0_38, %c0_39, %c704] : memref<1x128x768xbf16, #tpu.memory_space<vmem>>, vector<1x128x64xbf16>
    %80 = vector.shape_cast %79 : vector<1x128x64xbf16> to vector<128x64xbf16>
    %81 = tpu.transpose %78, [1, 0] : vector<128x64xbf16> -> vector<64x128xbf16>
    %cst_40 = arith.constant dense<0.000000e+00> : vector<128x128xf32>
    %82 = tpu.matmul %76, %81, %cst_40 {dimension_numbers = #tpu.dot_dimension_numbers<[1], [0], [0], [1], [0, 0, 1, 1], [], []>} : vector<128x64xbf16>, vector<64x128xbf16>, vector<128x128xf32> -> vector<128x128xf32>
    %cst_41 = arith.constant 1.250000e-01 : f32
    %83 = vector.broadcast %cst_41 : f32 to vector<128x128xf32>
    %84 = arith.mulf %82, %83 : vector<128x128xf32>
    %85 = arith.addf %84, %5 : vector<128x128xf32>
    %cst_42 = arith.constant dense<0xFF800000> : vector<128xf32>
    %86 = vector.multi_reduction <maximumf>, %85, %cst_42 [1] : vector<128x128xf32> to vector<128xf32>
    %87 = vector.shape_cast %86 : vector<128xf32> to vector<128x1xf32>
    %88 = vector.broadcast %87 : vector<128x1xf32> to vector<128x128xf32>
    %89 = arith.subf %85, %88 : vector<128x128xf32>
    %90 = math.exp %89 : vector<128x128xf32>
    %cst_43 = arith.constant dense<0.000000e+00> : vector<128xf32>
    %91 = vector.multi_reduction <add>, %90, %cst_43 [1] : vector<128x128xf32> to vector<128xf32>
    %92 = vector.shape_cast %91 : vector<128xf32> to vector<128x1xf32>
    %93 = tpu.reciprocal %92 {approx = true} : vector<128x1xf32> -> vector<128x1xf32>
    %94 = vector.broadcast %93 : vector<128x1xf32> to vector<128x128xf32>
    %95 = arith.mulf %90, %94 : vector<128x128xf32>
    %96 = arith.truncf %95 : vector<128x128xf32> to vector<128x128xbf16>
    %cst_44 = arith.constant dense<0.000000e+00> : vector<128x64xf32>
    %97 = tpu.matmul %96, %80, %cst_44 {dimension_numbers = #tpu.dot_dimension_numbers<[1], [0], [0], [1], [0, 0, 1, 1], [], []>} : vector<128x128xbf16>, vector<128x64xbf16>, vector<128x64xf32> -> vector<128x64xf32>
    %98 = tpu.concatenate %28, %51, %74, %97 in 1 : vector<128x64xf32>, vector<128x64xf32>, vector<128x64xf32>, vector<128x64xf32> -> vector<128x256xf32>
    %99 = arith.truncf %98 : vector<128x256xf32> to vector<128x256xbf16>
    %c0_45 = arith.constant 0 : index
    %c0_46 = arith.constant 0 : index
    %c0_47 = arith.constant 0 : index
    %100 = vector.load %arg2[%c0_45, %c0_46, %c0_47] : memref<1x128x256xbf16, #tpu.memory_space<vmem>>, vector<1x128x256xbf16>
    %101 = vector.shape_cast %100 : vector<1x128x256xbf16> to vector<128x256xbf16>
    %102 = vector.shape_cast %99 : vector<128x256xbf16> to vector<1x128x256xbf16>
    tpu.vector_store %arg2[%c0_45, %c0_46, %c0_47], %102 {strides = array<i32>} : memref<1x128x256xbf16, #tpu.memory_space<vmem>>, vector<1x128x256xbf16>,
    return
  }
  func.func @transform_0(%arg0: i32) -> (i32, i32, i32) {
    %c0_i32 = arith.constant 0 : i32
    %c0_i32_0 = arith.constant 0 : i32
    %c0_i32_1 = arith.constant 0 : i32
    return %arg0, %c0_i32, %c0_i32_0 : i32, i32, i32
  }
  func.func @transform_1(%arg0: i32) -> (i32, i32, i32) {
    %c0_i32 = arith.constant 0 : i32
    %c0_i32_0 = arith.constant 0 : i32
    %c0_i32_1 = arith.constant 0 : i32
    return %arg0, %c0_i32, %c0_i32_0 : i32, i32, i32
  }
}

module attributes {stable_mosaic.version = 11 : i64} {
  func.func @_matmul_res_kernel(%arg0: i32, %arg1: i32, %arg2: i32, %arg3: memref<128x256xbf16, #tpu.memory_space<vmem>>, %arg4: memref<256x256xbf16, #tpu.memory_space<vmem>>, %arg5: memref<1x256xf32, #tpu.memory_space<vmem>>, %arg6: memref<128x256xbf16, #tpu.memory_space<vmem>>, %arg7: memref<128x256xbf16, #tpu.memory_space<vmem>>, %arg8: memref<128x256xf32, #tpu.memory_space<vmem>>) attributes {dimension_semantics = [#tpu.dimension_semantics<parallel>, #tpu.dimension_semantics<parallel>, #tpu.dimension_semantics<arbitrary>], iteration_bounds = array<i64: 2, 1, 1>, scalar_prefetch = 0 : i64, scratch_operands = 1 : i64, tpu.core_type = #tpu.core_type<tc>, window_params = [{transform_indices = @transform_0, window_bounds = array<i64: 128, 256>}, {transform_indices = @transform_1, window_bounds = array<i64: 256, 256>}, {transform_indices = @transform_2, window_bounds = array<i64: 1, 256>}, {transform_indices = @transform_3, window_bounds = array<i64: 128, 256>}, {transform_indices = @transform_4, window_bounds = array<i64: 128, 256>}]} {
    %c0_i32 = arith.constant 0 : i32
    %0 = arith.cmpi eq, %arg2, %c0_i32 : i32
    %1 = arith.extui %0 : i1 to i32
    %c0_i32_0 = arith.constant 0 : i32
    %2 = arith.cmpi ne, %1, %c0_i32_0 : i32
    scf.if %2 {
      %cst_10 = arith.constant 0.000000e+00 : f32
      %12 = vector.broadcast %cst_10 : f32 to vector<128x256xf32>
      %c0_11 = arith.constant 0 : index
      %c0_12 = arith.constant 0 : index
      %13 = vector.load %arg8[%c0_11, %c0_12] : memref<128x256xf32, #tpu.memory_space<vmem>>, vector<128x256xf32>
      tpu.vector_store %arg8[%c0_11, %c0_12], %12 {strides = array<i32>} : memref<128x256xf32, #tpu.memory_space<vmem>>, vector<128x256xf32>,
    } else {
    }
    %c0 = arith.constant 0 : index
    %c0_1 = arith.constant 0 : index
    %3 = vector.load %arg8[%c0, %c0_1] : memref<128x256xf32, #tpu.memory_space<vmem>>, vector<128x256xf32>
    %c0_2 = arith.constant 0 : index
    %c0_3 = arith.constant 0 : index
    %4 = vector.load %arg3[%c0_2, %c0_3] : memref<128x256xbf16, #tpu.memory_space<vmem>>, vector<128x256xbf16>
    %c0_4 = arith.constant 0 : index
    %c0_5 = arith.constant 0 : index
    %5 = vector.load %arg4[%c0_4, %c0_5] : memref<256x256xbf16, #tpu.memory_space<vmem>>, vector<256x256xbf16>
    %cst = arith.constant dense<0.000000e+00> : vector<128x256xf32>
    %6 = tpu.matmul %4, %5, %cst {dimension_numbers = #tpu.dot_dimension_numbers<[1], [0], [0], [1], [0, 0, 1, 1], [], []>} : vector<128x256xbf16>, vector<256x256xbf16>, vector<128x256xf32> -> vector<128x256xf32>
    %7 = arith.addf %3, %6 : vector<128x256xf32>
    %c0_6 = arith.constant 0 : index
    %c0_7 = arith.constant 0 : index
    %8 = vector.load %arg8[%c0_6, %c0_7] : memref<128x256xf32, #tpu.memory_space<vmem>>, vector<128x256xf32>
    tpu.vector_store %arg8[%c0_6, %c0_7], %7 {strides = array<i32>} : memref<128x256xf32, #tpu.memory_space<vmem>>, vector<128x256xf32>,
    %c0_i32_8 = arith.constant 0 : i32
    %9 = arith.cmpi eq, %arg2, %c0_i32_8 : i32
    %10 = arith.extui %9 : i1 to i32
    %c0_i32_9 = arith.constant 0 : i32
    %11 = arith.cmpi ne, %10, %c0_i32_9 : i32
    scf.if %11 {
      %c0_10 = arith.constant 0 : index
      %c0_11 = arith.constant 0 : index
      %12 = vector.load %arg8[%c0_10, %c0_11] : memref<128x256xf32, #tpu.memory_space<vmem>>, vector<128x256xf32>
      %c0_12 = arith.constant 0 : index
      %c0_13 = arith.constant 0 : index
      %13 = vector.load %arg5[%c0_12, %c0_13] : memref<1x256xf32, #tpu.memory_space<vmem>>, vector<1x256xf32>
      %14 = vector.broadcast %13 : vector<1x256xf32> to vector<128x256xf32>
      %15 = arith.addf %12, %14 : vector<128x256xf32>
      %c0_14 = arith.constant 0 : index
      %c0_15 = arith.constant 0 : index
      %16 = vector.load %arg6[%c0_14, %c0_15] : memref<128x256xbf16, #tpu.memory_space<vmem>>, vector<128x256xbf16>
      %17 = arith.extf %16 : vector<128x256xbf16> to vector<128x256xf32>
      %18 = arith.addf %15, %17 : vector<128x256xf32>
      %19 = arith.truncf %18 : vector<128x256xf32> to vector<128x256xbf16>
      %c0_16 = arith.constant 0 : index
      %c0_17 = arith.constant 0 : index
      %20 = vector.load %arg7[%c0_16, %c0_17] : memref<128x256xbf16, #tpu.memory_space<vmem>>, vector<128x256xbf16>
      tpu.vector_store %arg7[%c0_16, %c0_17], %19 {strides = array<i32>} : memref<128x256xbf16, #tpu.memory_space<vmem>>, vector<128x256xbf16>,
    } else {
    }
    return
  }
  func.func @transform_0(%arg0: i32, %arg1: i32, %arg2: i32) -> (i32, i32) {
    %c0_i32 = arith.constant 0 : i32
    return %arg0, %arg2 : i32, i32
  }
  func.func @transform_1(%arg0: i32, %arg1: i32, %arg2: i32) -> (i32, i32) {
    %c0_i32 = arith.constant 0 : i32
    return %arg2, %arg1 : i32, i32
  }
  func.func @transform_2(%arg0: i32, %arg1: i32, %arg2: i32) -> (i32, i32) {
    %c0_i32 = arith.constant 0 : i32
    %c0_i32_0 = arith.constant 0 : i32
    return %c0_i32, %arg1 : i32, i32
  }
  func.func @transform_3(%arg0: i32, %arg1: i32, %arg2: i32) -> (i32, i32) {
    %c0_i32 = arith.constant 0 : i32
    return %arg0, %arg1 : i32, i32
  }
  func.func @transform_4(%arg0: i32, %arg1: i32, %arg2: i32) -> (i32, i32) {
    %c0_i32 = arith.constant 0 : i32
    return %arg0, %arg1 : i32, i32
  }
}

module attributes {stable_mosaic.version = 11 : i64} {
  func.func @_ln_mlp_kernel(%arg0: i32, %arg1: memref<128x256xbf16, #tpu.memory_space<vmem>>, %arg2: memref<1x256xf32, #tpu.memory_space<vmem>>, %arg3: memref<1x256xf32, #tpu.memory_space<vmem>>, %arg4: memref<256x1024xbf16, #tpu.memory_space<vmem>>, %arg5: memref<1x1024xf32, #tpu.memory_space<vmem>>, %arg6: memref<1024x256xbf16, #tpu.memory_space<vmem>>, %arg7: memref<1x256xf32, #tpu.memory_space<vmem>>, %arg8: memref<128x256xbf16, #tpu.memory_space<vmem>>) attributes {dimension_semantics = [#tpu.dimension_semantics<parallel>], iteration_bounds = array<i64: 2>, scalar_prefetch = 0 : i64, scratch_operands = 0 : i64, tpu.core_type = #tpu.core_type<tc>, window_params = [{transform_indices = @transform_0, window_bounds = array<i64: 128, 256>}, {pipeline_mode = #tpu.pipeline_mode<synchronous>, transform_indices = @transform_1, window_bounds = array<i64: 1, 256>}, {pipeline_mode = #tpu.pipeline_mode<synchronous>, transform_indices = @transform_2, window_bounds = array<i64: 1, 256>}, {pipeline_mode = #tpu.pipeline_mode<synchronous>, transform_indices = @transform_3, window_bounds = array<i64: 256, 1024>}, {pipeline_mode = #tpu.pipeline_mode<synchronous>, transform_indices = @transform_4, window_bounds = array<i64: 1, 1024>}, {pipeline_mode = #tpu.pipeline_mode<synchronous>, transform_indices = @transform_5, window_bounds = array<i64: 1024, 256>}, {pipeline_mode = #tpu.pipeline_mode<synchronous>, transform_indices = @transform_6, window_bounds = array<i64: 1, 256>}, {transform_indices = @transform_7, window_bounds = array<i64: 128, 256>}]} {
    %c0 = arith.constant 0 : index
    %c0_0 = arith.constant 0 : index
    %0 = vector.load %arg1[%c0, %c0_0] : memref<128x256xbf16, #tpu.memory_space<vmem>>, vector<128x256xbf16>
    %1 = arith.extf %0 : vector<128x256xbf16> to vector<128x256xf32>
    %cst = arith.constant dense<0.000000e+00> : vector<128xf32>
    %2 = vector.multi_reduction <add>, %1, %cst [1] : vector<128x256xf32> to vector<128xf32>
    %3 = vector.shape_cast %2 : vector<128xf32> to vector<128x1xf32>
    %cst_1 = arith.constant 2.560000e+02 : f32
    %4 = vector.broadcast %cst_1 : f32 to vector<128x1xf32>
    %5 = arith.divf %3, %4 : vector<128x1xf32>
    %6 = vector.broadcast %5 : vector<128x1xf32> to vector<128x256xf32>
    %7 = arith.subf %1, %6 : vector<128x256xf32>
    %8 = arith.mulf %7, %7 : vector<128x256xf32>
    %cst_2 = arith.constant dense<0.000000e+00> : vector<128xf32>
    %9 = vector.multi_reduction <add>, %8, %cst_2 [1] : vector<128x256xf32> to vector<128xf32>
    %10 = vector.shape_cast %9 : vector<128xf32> to vector<128x1xf32>
    %cst_3 = arith.constant 2.560000e+02 : f32
    %11 = vector.broadcast %cst_3 : f32 to vector<128x1xf32>
    %12 = arith.divf %10, %11 : vector<128x1xf32>
    %13 = vector.broadcast %5 : vector<128x1xf32> to vector<128x256xf32>
    %14 = arith.subf %1, %13 : vector<128x256xf32>
    %cst_4 = arith.constant 9.99999974E-6 : f32
    %15 = vector.broadcast %cst_4 : f32 to vector<128x1xf32>
    %16 = arith.addf %12, %15 : vector<128x1xf32>
    %17 = math.rsqrt %16 : vector<128x1xf32>
    %18 = vector.broadcast %17 : vector<128x1xf32> to vector<128x256xf32>
    %19 = arith.mulf %14, %18 : vector<128x256xf32>
    %c0_5 = arith.constant 0 : index
    %c0_6 = arith.constant 0 : index
    %20 = vector.load %arg2[%c0_5, %c0_6] : memref<1x256xf32, #tpu.memory_space<vmem>>, vector<1x256xf32>
    %21 = vector.broadcast %20 : vector<1x256xf32> to vector<128x256xf32>
    %22 = arith.mulf %19, %21 : vector<128x256xf32>
    %c0_7 = arith.constant 0 : index
    %c0_8 = arith.constant 0 : index
    %23 = vector.load %arg3[%c0_7, %c0_8] : memref<1x256xf32, #tpu.memory_space<vmem>>, vector<1x256xf32>
    %24 = vector.broadcast %23 : vector<1x256xf32> to vector<128x256xf32>
    %25 = arith.addf %22, %24 : vector<128x256xf32>
    %26 = arith.truncf %25 : vector<128x256xf32> to vector<128x256xbf16>
    %c0_9 = arith.constant 0 : index
    %c0_10 = arith.constant 0 : index
    %27 = vector.load %arg4[%c0_9, %c0_10] : memref<256x1024xbf16, #tpu.memory_space<vmem>>, vector<256x1024xbf16>
    %cst_11 = arith.constant dense<0.000000e+00> : vector<128x1024xf32>
    %28 = tpu.matmul %26, %27, %cst_11 {dimension_numbers = #tpu.dot_dimension_numbers<[1], [0], [0], [1], [0, 0, 1, 1], [], []>} : vector<128x256xbf16>, vector<256x1024xbf16>, vector<128x1024xf32> -> vector<128x1024xf32>
    %c0_12 = arith.constant 0 : index
    %c0_13 = arith.constant 0 : index
    %29 = vector.load %arg5[%c0_12, %c0_13] : memref<1x1024xf32, #tpu.memory_space<vmem>>, vector<1x1024xf32>
    %30 = vector.broadcast %29 : vector<1x1024xf32> to vector<128x1024xf32>
    %31 = arith.addf %28, %30 : vector<128x1024xf32>
    %cst_14 = arith.constant 0.000000e+00 : f32
    %32 = vector.broadcast %cst_14 : f32 to vector<128x1024xf32>
    %33 = arith.maximumf %31, %32 : vector<128x1024xf32>
    %34 = arith.truncf %33 : vector<128x1024xf32> to vector<128x1024xbf16>
    %c0_15 = arith.constant 0 : index
    %c0_16 = arith.constant 0 : index
    %35 = vector.load %arg6[%c0_15, %c0_16] : memref<1024x256xbf16, #tpu.memory_space<vmem>>, vector<1024x256xbf16>
    %cst_17 = arith.constant dense<0.000000e+00> : vector<128x256xf32>
    %36 = tpu.matmul %34, %35, %cst_17 {dimension_numbers = #tpu.dot_dimension_numbers<[1], [0], [0], [1], [0, 0, 1, 1], [], []>} : vector<128x1024xbf16>, vector<1024x256xbf16>, vector<128x256xf32> -> vector<128x256xf32>
    %c0_18 = arith.constant 0 : index
    %c0_19 = arith.constant 0 : index
    %37 = vector.load %arg7[%c0_18, %c0_19] : memref<1x256xf32, #tpu.memory_space<vmem>>, vector<1x256xf32>
    %38 = vector.broadcast %37 : vector<1x256xf32> to vector<128x256xf32>
    %39 = arith.addf %36, %38 : vector<128x256xf32>
    %40 = arith.addf %39, %1 : vector<128x256xf32>
    %41 = arith.truncf %40 : vector<128x256xf32> to vector<128x256xbf16>
    %c0_20 = arith.constant 0 : index
    %c0_21 = arith.constant 0 : index
    %42 = vector.load %arg8[%c0_20, %c0_21] : memref<128x256xbf16, #tpu.memory_space<vmem>>, vector<128x256xbf16>
    tpu.vector_store %arg8[%c0_20, %c0_21], %41 {strides = array<i32>} : memref<128x256xbf16, #tpu.memory_space<vmem>>, vector<128x256xbf16>,
    return
  }
  func.func @transform_0(%arg0: i32) -> (i32, i32) {
    %c0_i32 = arith.constant 0 : i32
    %c0_i32_0 = arith.constant 0 : i32
    return %arg0, %c0_i32 : i32, i32
  }
  func.func @transform_1(%arg0: i32) -> (i32, i32) {
    %c0_i32 = arith.constant 0 : i32
    %c0_i32_0 = arith.constant 0 : i32
    %c0_i32_1 = arith.constant 0 : i32
    return %c0_i32, %c0_i32_0 : i32, i32
  }
  func.func @transform_2(%arg0: i32) -> (i32, i32) {
    %c0_i32 = arith.constant 0 : i32
    %c0_i32_0 = arith.constant 0 : i32
    %c0_i32_1 = arith.constant 0 : i32
    return %c0_i32, %c0_i32_0 : i32, i32
  }
  func.func @transform_3(%arg0: i32) -> (i32, i32) {
    %c0_i32 = arith.constant 0 : i32
    %c0_i32_0 = arith.constant 0 : i32
    %c0_i32_1 = arith.constant 0 : i32
    return %c0_i32, %c0_i32_0 : i32, i32
  }
  func.func @transform_4(%arg0: i32) -> (i32, i32) {
    %c0_i32 = arith.constant 0 : i32
    %c0_i32_0 = arith.constant 0 : i32
    %c0_i32_1 = arith.constant 0 : i32
    return %c0_i32, %c0_i32_0 : i32, i32
  }
  func.func @transform_5(%arg0: i32) -> (i32, i32) {
    %c0_i32 = arith.constant 0 : i32
    %c0_i32_0 = arith.constant 0 : i32
    %c0_i32_1 = arith.constant 0 : i32
    return %c0_i32, %c0_i32_0 : i32, i32
  }
  func.func @transform_6(%arg0: i32) -> (i32, i32) {
    %c0_i32 = arith.constant 0 : i32
    %c0_i32_0 = arith.constant 0 : i32
    %c0_i32_1 = arith.constant 0 : i32
    return %c0_i32, %c0_i32_0 : i32, i32
  }
  func.func @transform_7(%arg0: i32) -> (i32, i32) {
    %c0_i32 = arith.constant 0 : i32
    %c0_i32_0 = arith.constant 0 : i32
    return %arg0, %c0_i32 : i32, i32
  }
}

module attributes {stable_mosaic.version = 11 : i64} {
  func.func @_ln_matmul_kernel(%arg0: i32, %arg1: i32, %arg2: memref<128x256xbf16, #tpu.memory_space<vmem>>, %arg3: memref<1x256xf32, #tpu.memory_space<vmem>>, %arg4: memref<1x256xf32, #tpu.memory_space<vmem>>, %arg5: memref<256x256xbf16, #tpu.memory_space<vmem>>, %arg6: memref<1x256xf32, #tpu.memory_space<vmem>>, %arg7: memref<128x256xf32, #tpu.memory_space<vmem>>) attributes {dimension_semantics = [#tpu.dimension_semantics<parallel>, #tpu.dimension_semantics<parallel>], iteration_bounds = array<i64: 2, 2>, scalar_prefetch = 0 : i64, scratch_operands = 0 : i64, tpu.core_type = #tpu.core_type<tc>, window_params = [{transform_indices = @transform_0, window_bounds = array<i64: 128, 256>}, {pipeline_mode = #tpu.pipeline_mode<synchronous>, transform_indices = @transform_1, window_bounds = array<i64: 1, 256>}, {pipeline_mode = #tpu.pipeline_mode<synchronous>, transform_indices = @transform_2, window_bounds = array<i64: 1, 256>}, {transform_indices = @transform_3, window_bounds = array<i64: 256, 256>}, {transform_indices = @transform_4, window_bounds = array<i64: 1, 256>}, {transform_indices = @transform_5, window_bounds = array<i64: 128, 256>}]} {
    %c0 = arith.constant 0 : index
    %c0_0 = arith.constant 0 : index
    %0 = vector.load %arg2[%c0, %c0_0] : memref<128x256xbf16, #tpu.memory_space<vmem>>, vector<128x256xbf16>
    %1 = arith.extf %0 : vector<128x256xbf16> to vector<128x256xf32>
    %cst = arith.constant dense<0.000000e+00> : vector<128xf32>
    %2 = vector.multi_reduction <add>, %1, %cst [1] : vector<128x256xf32> to vector<128xf32>
    %3 = vector.shape_cast %2 : vector<128xf32> to vector<128x1xf32>
    %cst_1 = arith.constant 2.560000e+02 : f32
    %4 = vector.broadcast %cst_1 : f32 to vector<128x1xf32>
    %5 = arith.divf %3, %4 : vector<128x1xf32>
    %6 = vector.broadcast %5 : vector<128x1xf32> to vector<128x256xf32>
    %7 = arith.subf %1, %6 : vector<128x256xf32>
    %8 = arith.mulf %7, %7 : vector<128x256xf32>
    %cst_2 = arith.constant dense<0.000000e+00> : vector<128xf32>
    %9 = vector.multi_reduction <add>, %8, %cst_2 [1] : vector<128x256xf32> to vector<128xf32>
    %10 = vector.shape_cast %9 : vector<128xf32> to vector<128x1xf32>
    %cst_3 = arith.constant 2.560000e+02 : f32
    %11 = vector.broadcast %cst_3 : f32 to vector<128x1xf32>
    %12 = arith.divf %10, %11 : vector<128x1xf32>
    %13 = vector.broadcast %5 : vector<128x1xf32> to vector<128x256xf32>
    %14 = arith.subf %1, %13 : vector<128x256xf32>
    %cst_4 = arith.constant 9.99999974E-6 : f32
    %15 = vector.broadcast %cst_4 : f32 to vector<128x1xf32>
    %16 = arith.addf %12, %15 : vector<128x1xf32>
    %17 = math.rsqrt %16 : vector<128x1xf32>
    %18 = vector.broadcast %17 : vector<128x1xf32> to vector<128x256xf32>
    %19 = arith.mulf %14, %18 : vector<128x256xf32>
    %c0_5 = arith.constant 0 : index
    %c0_6 = arith.constant 0 : index
    %20 = vector.load %arg3[%c0_5, %c0_6] : memref<1x256xf32, #tpu.memory_space<vmem>>, vector<1x256xf32>
    %21 = vector.broadcast %20 : vector<1x256xf32> to vector<128x256xf32>
    %22 = arith.mulf %19, %21 : vector<128x256xf32>
    %c0_7 = arith.constant 0 : index
    %c0_8 = arith.constant 0 : index
    %23 = vector.load %arg4[%c0_7, %c0_8] : memref<1x256xf32, #tpu.memory_space<vmem>>, vector<1x256xf32>
    %24 = vector.broadcast %23 : vector<1x256xf32> to vector<128x256xf32>
    %25 = arith.addf %22, %24 : vector<128x256xf32>
    %26 = arith.truncf %25 : vector<128x256xf32> to vector<128x256xbf16>
    %c0_9 = arith.constant 0 : index
    %c0_10 = arith.constant 0 : index
    %27 = vector.load %arg5[%c0_9, %c0_10] : memref<256x256xbf16, #tpu.memory_space<vmem>>, vector<256x256xbf16>
    %cst_11 = arith.constant dense<0.000000e+00> : vector<128x256xf32>
    %28 = tpu.matmul %26, %27, %cst_11 {dimension_numbers = #tpu.dot_dimension_numbers<[1], [0], [0], [1], [0, 0, 1, 1], [], []>} : vector<128x256xbf16>, vector<256x256xbf16>, vector<128x256xf32> -> vector<128x256xf32>
    %c0_12 = arith.constant 0 : index
    %c0_13 = arith.constant 0 : index
    %29 = vector.load %arg6[%c0_12, %c0_13] : memref<1x256xf32, #tpu.memory_space<vmem>>, vector<1x256xf32>
    %30 = vector.broadcast %29 : vector<1x256xf32> to vector<128x256xf32>
    %31 = arith.addf %28, %30 : vector<128x256xf32>
    %c0_14 = arith.constant 0 : index
    %c0_15 = arith.constant 0 : index
    %32 = vector.load %arg7[%c0_14, %c0_15] : memref<128x256xf32, #tpu.memory_space<vmem>>, vector<128x256xf32>
    tpu.vector_store %arg7[%c0_14, %c0_15], %31 {strides = array<i32>} : memref<128x256xf32, #tpu.memory_space<vmem>>, vector<128x256xf32>,
    return
  }
  func.func @transform_0(%arg0: i32, %arg1: i32) -> (i32, i32) {
    %c0_i32 = arith.constant 0 : i32
    %c0_i32_0 = arith.constant 0 : i32
    return %arg0, %c0_i32 : i32, i32
  }
  func.func @transform_1(%arg0: i32, %arg1: i32) -> (i32, i32) {
    %c0_i32 = arith.constant 0 : i32
    %c0_i32_0 = arith.constant 0 : i32
    %c0_i32_1 = arith.constant 0 : i32
    return %c0_i32, %c0_i32_0 : i32, i32
  }
  func.func @transform_2(%arg0: i32, %arg1: i32) -> (i32, i32) {
    %c0_i32 = arith.constant 0 : i32
    %c0_i32_0 = arith.constant 0 : i32
    %c0_i32_1 = arith.constant 0 : i32
    return %c0_i32, %c0_i32_0 : i32, i32
  }
  func.func @transform_3(%arg0: i32, %arg1: i32) -> (i32, i32) {
    %c0_i32 = arith.constant 0 : i32
    %c0_i32_0 = arith.constant 0 : i32
    return %c0_i32, %arg1 : i32, i32
  }
  func.func @transform_4(%arg0: i32, %arg1: i32) -> (i32, i32) {
    %c0_i32 = arith.constant 0 : i32
    %c0_i32_0 = arith.constant 0 : i32
    return %c0_i32, %arg1 : i32, i32
  }
  func.func @transform_5(%arg0: i32, %arg1: i32) -> (i32, i32) {
    %c0_i32 = arith.constant 0 : i32
    return %arg0, %arg1 : i32, i32
  }
}

</mosaic_0001>

<llo_original>
// kernel: mindvault_forward.9
$region0: #{mindvault_forward.9}
  #allocation0 [shape = 'u32[]', space=smem, size = 0x4, offset = 0x4, fixed_abs, tag = 'smem constant byte address 0x4 - core index']
  #allocation1 [shape = 'u32[144,128]{1,0:T(1,128)}', space=vmem, size = 0x12000, scoped, tag = 'internal scratch']
  %s0 = inlined_call_operand.vmem [shape: bf16[256,256], index: 0, kind: input, shape index: {}]
  %s1 = inlined_call_operand.vmem [shape: f32[1,256], index: 1, kind: input, shape index: {}]
  %s2 = inlined_call_operand.vmem [shape: f32[1,256], index: 2, kind: input, shape index: {}]
  %s3 = inlined_call_operand.vmem [shape: bf16[256,768], index: 3, kind: input, shape index: {}]
  %s4 = inlined_call_operand.vmem [shape: f32[1,768], index: 4, kind: input, shape index: {}]
  %s5 = inlined_call_operand.vmem [shape: bf16[256,768], index: 5, kind: output, shape index: {}]
  %s6 = sld [smem:[#allocation0]]
  $region125: #{mindvault_forward.9} parent=0
    _
  %s8 = ssub.s32 1, %s6
  %s9 = scalar_select 0, %s8, %s6
  $region1: #{mindvault_forward.9} parent=0
    #allocation2 [shape = 'u8[262144]{0}', space=vmem, size = 0x40000, scoped, tag = 'input window, operand 3']
    #allocation3 [shape = 'u8[131072]{0}', space=vmem, size = 0x20000, scoped, tag = 'output window, operand 0']
    loop: start=0, step=1, limit=8
    $region2: #{mindvault_forward.9} parent=1 // loop_pre_header
      _
    $region3: #{mindvault_forward.9} parent=1 // loop_header
      %s11 = sphi 0, %s15
      %p12 = scmp.ge.s32.totalorder %s11, 8
      %s18 = sphi 0, %s30
      %s19 = sphi 0, %s26
      %s20 = sphi 0, %s18
      %s21 = sphi 0, %s19
      %s22 = sphi 0, %s20
      %s23 = sphi 0, %s21
      %s33 = sphi 0, %s35
      %s36 = sphi 0, %s33
      %s37 = sphi 0, %s36
      %s53 = sphi 0, %s37
      %s57 = sphi 0, %s57
      %s59 = sphi 0, %s57
      %s60 = sphi 0, %s59
      %s74 = sphi 0, %s60
      %s78 = sphi 0, %s78
      %s80 = sphi 0, %s78
      %s81 = sphi 0, %s80
      %s95 = sphi 0, %s81
      %s101 = sphi 0, %s103
      %s104 = sphi 0, %s101
      %s105 = sphi 0, %s104
      %s121 = sphi 0, %s105
      %s127 = sphi 0, %s129
      %s130 = sphi 0, %s127
      %s131 = sphi 0, %s130
      %s147 = sphi 0, %s131
      %s155 = sphi 0, %s157
      %s158 = sphi 0, %s155
      %s159 = sphi 0, %s158
      %s175 = sphi 0, %s159
    $region4: #{mindvault_forward.9} parent=1 // loop_header_branch
      %14 = sbr.rel (%p12) target = $region8
    $region5: #{mindvault_forward.9} parent=1 // loop_body
      %s16 = ssub.s32 %s11, 1
      %s17 = ssub.s32 %s11, 2
      %s24 = sadd.s32 1, %s19
      %p25 = scmp.ge.s32.totalorder %s24, 3
      %s26 = scalar_select %p25, 0, %s24
      %s27 = sadd.s32 1, %s18
      %s28 = scalar_select %p25, %s27, %s18
      %p29 = scmp.ge.s32.totalorder %s28, 2
      %s30 = scalar_select %p29, 0, %s28
      %s31 = ssub.s32 %s18, %s30
      %p32 = scmp.eq.s32.totalorder %s31, 0
      %s34 = sadd.s32 %s33, 1
      %s35 = scalar_select %p32, %s33, %s34
      %p38 = pneg %p32
      %p39 = scmp.eq.s32.totalorder %s11, 5
      %p40 = por %p38, %p39
      %p41 = scmp.ne.s32.totalorder %s33, %s36
      %p42 = scmp.eq.s32.totalorder %s11, 0
      %p43 = por %p41, %p42
      %p44 = scmp.ne.s32.totalorder %s33, %s36
      %p45 = scmp.eq.s32.totalorder %s16, 5
      %p46 = por %p44, %p45
      %p47 = scmp.ne.s32.totalorder %s36, %s37
      %p48 = scmp.eq.s32.totalorder %s16, 0
      %p49 = por %p47, %p48
      %p50 = scmp.ne.s32.totalorder %s36, %s37
      %p51 = scmp.eq.s32.totalorder %s17, 5
      %p52 = por %p50, %p51
      %p54 = scmp.ne.s32.totalorder %s37, %s53
      %p55 = scmp.eq.s32.totalorder %s17, 0
      %p56 = por %p54, %p55
      %s58 = sadd.s32 %s57, 1
      %p61 = scmp.eq.s32.totalorder %s11, 5
      %p62 = scmp.ne.s32.totalorder %s57, %s59
      %p63 = scmp.eq.s32.totalorder %s11, 0
      %p64 = por %p62, %p63
      %p65 = scmp.ne.s32.totalorder %s57, %s59
      %p66 = scmp.eq.s32.totalorder %s16, 5
      %p67 = por %p65, %p66
      %p68 = scmp.ne.s32.totalorder %s59, %s60
      %p69 = scmp.eq.s32.totalorder %s16, 0
      %p70 = por %p68, %p69
      %p71 = scmp.ne.s32.totalorder %s59, %s60
      %p72 = scmp.eq.s32.totalorder %s17, 5
      %p73 = por %p71, %p72
      %p75 = scmp.ne.s32.totalorder %s60, %s74
      %p76 = scmp.eq.s32.totalorder %s17, 0
      %p77 = por %p75, %p76
      %s79 = sadd.s32 %s78, 1
      %p82 = scmp.eq.s32.totalorder %s11, 5
      %p83 = scmp.ne.s32.totalorder %s78, %s80
      %p84 = scmp.eq.s32.totalorder %s11, 0
      %p85 = por %p83, %p84
      %p86 = scmp.ne.s32.totalorder %s78, %s80
      %p87 = scmp.eq.s32.totalorder %s16, 5
      %p88 = por %p86, %p87
      %p89 = scmp.ne.s32.totalorder %s80, %s81
      %p90 = scmp.eq.s32.totalorder %s16, 0
      %p91 = por %p89, %p90
      %p92 = scmp.ne.s32.totalorder %s80, %s81
      %p93 = scmp.eq.s32.totalorder %s17, 5
      %p94 = por %p92, %p93
      %p96 = scmp.ne.s32.totalorder %s81, %s95
      %p97 = scmp.eq.s32.totalorder %s17, 0
      %p98 = por %p96, %p97
      %s99 = ssub.s32 %s19, %s26
      %p100 = scmp.eq.s32.totalorder %s99, 0
      %s102 = sadd.s32 %s101, 1
      %s103 = scalar_select %p100, %s101, %s102
      %p106 = pneg %p100
      %p107 = scmp.eq.s32.totalorder %s11, 5
      %p108 = por %p106, %p107
      %p109 = scmp.ne.s32.totalorder %s101, %s104
      %p110 = scmp.eq.s32.totalorder %s11, 0
      %p111 = por %p109, %p110
      %p112 = scmp.ne.s32.totalorder %s101, %s104
      %p113 = scmp.eq.s32.totalorder %s16, 5
      %p114 = por %p112, %p113
      %p115 = scmp.ne.s32.totalorder %s104, %s105
      %p116 = scmp.eq.s32.totalorder %s16, 0
      %p117 = por %p115, %p116
      %p118 = scmp.ne.s32.totalorder %s104, %s105
      %p119 = scmp.eq.s32.totalorder %s17, 5
      %p120 = por %p118, %p119
      %p122 = scmp.ne.s32.totalorder %s105, %s121
      %p123 = scmp.eq.s32.totalorder %s17, 0
      %p124 = por %p122, %p123
      %s125 = ssub.s32 %s19, %s26
      %p126 = scmp.eq.s32.totalorder %s125, 0
      %s128 = sadd.s32 %s127, 1
      %s129 = scalar_select %p126, %s127, %s128
      %p132 = pneg %p126
      %p133 = scmp.eq.s32.totalorder %s11, 5
      %p134 = por %p132, %p133
      %p135 = scmp.ne.s32.totalorder %s127, %s130
      %p136 = scmp.eq.s32.totalorder %s11, 0
      %p137 = por %p135, %p136
      %p138 = scmp.ne.s32.totalorder %s127, %s130
      %p139 = scmp.eq.s32.totalorder %s16, 5
      %p140 = por %p138, %p139
      %p141 = scmp.ne.s32.totalorder %s130, %s131
      %p142 = scmp.eq.s32.totalorder %s16, 0
      %p143 = por %p141, %p142
      %p144 = scmp.ne.s32.totalorder %s130, %s131
      %p145 = scmp.eq.s32.totalorder %s17, 5
      %p146 = por %p144, %p145
      %p148 = scmp.ne.s32.totalorder %s131, %s147
      %p149 = scmp.eq.s32.totalorder %s17, 0
      %p150 = por %p148, %p149
      %s151 = ssub.s32 %s18, %s30
      %s152 = ssub.s32 %s19, %s26
      %s153 = sor.u32 %s151, %s152
      %p154 = scmp.eq.s32.totalorder %s153, 0
      %s156 = sadd.s32 %s155, 1
      %s157 = scalar_select %p154, %s155, %s156
      %p160 = pneg %p154
      %p161 = scmp.eq.s32.totalorder %s11, 5
      %p162 = por %p160, %p161
      %p163 = scmp.ne.s32.totalorder %s155, %s158
      %p164 = scmp.eq.s32.totalorder %s11, 0
      %p165 = por %p163, %p164
      %p166 = scmp.ne.s32.totalorder %s155, %s158
      %p167 = scmp.eq.s32.totalorder %s16, 5
      %p168 = por %p166, %p167
      %p169 = scmp.ne.s32.totalorder %s158, %s159
      %p170 = scmp.eq.s32.totalorder %s16, 0
      %p171 = por %p169, %p170
      %p172 = scmp.ne.s32.totalorder %s158, %s159
      %p173 = scmp.eq.s32.totalorder %s17, 5
      %p174 = por %p172, %p173
      %p176 = scmp.ne.s32.totalorder %s159, %s175
      %p177 = scmp.eq.s32.totalorder %s17, 0
      %p178 = por %p176, %p177
      %p179 = scmp.le.s32.totalorder 1, %s11
      %p180 = scmp.lt.s32.totalorder %s11, 7
      %p181 = pnand %p179, %p180
      %p182 = pneg %p181
      // Predicated region
      $region9: #{mindvault_forward.9} parent=5 // pred_check
        _
      $region10: #{mindvault_forward.9} parent=5 // pred_check_branch
        %184 = sbr.rel (%p181) target = $region12
      $region11: #{mindvault_forward.9} parent=5 // pred_region
        %s185 = ssub.s32 %s11, 1
        // Predicated region
        $region13: #{mindvault_forward.9} parent=11 // pred_check
          %p186 = pneg %p70
        $region14: #{mindvault_forward.9} parent=11 // pred_check_branch
          %188 = sbr.rel (%p186) target = $region16
        $region15: #{mindvault_forward.9} parent=11 // pred_region
          _
        $region16: #{mindvault_forward.9} parent=11 // pred_fallthru
          _
        // Predicated region
        $region17: #{mindvault_forward.9} parent=11 // pred_check
          %p189 = pneg %p91
        $region18: #{mindvault_forward.9} parent=11 // pred_check_branch
          %191 = sbr.rel (%p189) target = $region20
        $region19: #{mindvault_forward.9} parent=11 // pred_region
          _
        $region20: #{mindvault_forward.9} parent=11 // pred_fallthru
          _
      $region12: #{mindvault_forward.9} parent=5 // pred_fallthru
        _
      %p192 = scmp.lt.s32.totalorder %s11, 6
      // Predicated region
      $region21: #{mindvault_forward.9} parent=5 // pred_check
        %p193 = pneg %p192
      $region22: #{mindvault_forward.9} parent=5 // pred_check_branch
        %195 = sbr.rel (%p193) target = $region24
      $region23: #{mindvault_forward.9} parent=5 // pred_region
        // Predicated region
        $region25: #{mindvault_forward.9} parent=23 // pred_check
          %p196 = pneg %p43
        $region26: #{mindvault_forward.9} parent=23 // pred_check_branch
          %198 = sbr.rel (%p196) target = $region28
        $region27: #{mindvault_forward.9} parent=23 // pred_region
          %s199 = smul.u32 16, %s18
          %p200 = scmp.lt.s32.totalorder %s199, 31
          %s201 = scalar_select %p200, %s199, 31
          %s202 = smul.addr %s201, 2
          %s203 = smul.addr %s202, 4
          %s204 = scalar_lea.vmem %s0, %s203
          %s205 = smul.u32 16, %s18
        $region28: #{mindvault_forward.9} parent=23 // pred_fallthru
          _
        // Predicated region
        $region29: #{mindvault_forward.9} parent=23 // pred_check
          %p206 = pneg %p111
        $region30: #{mindvault_forward.9} parent=23 // pred_check_branch
          %208 = sbr.rel (%p206) target = $region32
        $region31: #{mindvault_forward.9} parent=23 // pred_region
          %s209 = sand.u32 %s101, 1
          %s210 = sand.u32 %s101, 1
          %s211 = smul.addr %s210, 256
          %s212 = scalar_lea.vmem [#allocation2], %s211
          %s213 = smul.u32 2, %s19
          %s214 = smul.addr %s213, 4
          %s215 = scalar_lea.vmem %s3, %s214
          // Predicated region
          $region33: #{mindvault_forward.9} parent=31 // pred_check
            _
          $region34: #{mindvault_forward.9} parent=31 // pred_check_branch
            %217 = sbr.rel (0) target = $region36
          $region35: #{mindvault_forward.9} parent=31 // pred_region
            // Predicated region
            $region37: #{mindvault_forward.9} parent=35 // pred_check
              _
            $region38: #{mindvault_forward.9} parent=35 // pred_check_branch
              %219 = sbr.rel (0) target = $region40
            $region39: #{mindvault_forward.9} parent=35 // pred_region
              // Predicated region
              $region52: #{mindvault_forward.9} parent=39 // pred_check
                _
              $region53: #{mindvault_forward.9} parent=39 // pred_check_branch
                %296 = sbr.rel (0) target = $region55
              $region54: #{mindvault_forward.9} parent=39 // pred_region
                loop: start=0, step=1, limit=1
                $region56: #{mindvault_forward.9} parent=54 // loop_pre_header
                  _
                $region57: #{mindvault_forward.9} parent=54 // loop_header
                  %s298 = sphi 0, %s302
                  %p299 = scmp.ge.s32.totalorder %s298, 1
                  %s303 = sphi %s215, %s215
                  %s304 = sphi %s212, %s212
                $region58: #{mindvault_forward.9} parent=54 // loop_header_branch
                  %301 = sbr.rel (%p299) target = $region62
                $region59: #{mindvault_forward.9} parent=54 // loop_body
                  %v305 = vld [vmem:[%s303] sm:$0xff]
                  %306 = vst [vmem:[%s304] sm:$0xff] %v305
                  %v307 = vld [vmem:[%s303 + $0x18] sm:$0xff]
                  %308 = vst [vmem:[%s304 + $0x8] sm:$0xff] %v307
                  %v309 = vld [vmem:[%s303 + $0x30] sm:$0xff]
                  %310 = vst [vmem:[%s304 + $0x10] sm:$0xff] %v309
                  %v311 = vld [vmem:[%s303 + $0x48] sm:$0xff]
                  %312 = vst [vmem:[%s304 + $0x18] sm:$0xff] %v311
                  %v313 = vld [vmem:[%s303 + $0x60] sm:$0xff]
                  %314 = vst [vmem:[%s304 + $0x20] sm:$0xff] %v313
                  %v315 = vld [vmem:[%s303 + $0x78] sm:$0xff]
                  %316 = vst [vmem:[%s304 + $0x28] sm:$0xff] %v315
                  %v317 = vld [vmem:[%s303 + $0x90] sm:$0xff]
                  %318 = vst [vmem:[%s304 + $0x30] sm:$0xff] %v317
                  %v319 = vld [vmem:[%s303 + $0xa8] sm:$0xff]
                  %320 = vst [vmem:[%s304 + $0x38] sm:$0xff] %v319
                  %v321 = vld [vmem:[%s303 + $0xc0] sm:$0xff]
                  %322 = vst [vmem:[%s304 + $0x40] sm:$0xff] %v321
                  %v323 = vld [vmem:[%s303 + $0xd8] sm:$0xff]
                  %324 = vst [vmem:[%s304 + $0x48] sm:$0xff] %v323
                  %v325 = vld [vmem:[%s303 + $0xf0] sm:$0xff]
                  %326 = vst [vmem:[%s304 + $0x50] sm:$0xff] %v325
                  %v327 = vld [vmem:[%s303 + $0x108] sm:$0xff]
                  %328 = vst [vmem:[%s304 + $0x58] sm:$0xff] %v327
                  %v329 = vld [vmem:[%s303 + $0x120] sm:$0xff]
                  %330 = vst [vmem:[%s304 + $0x60] sm:$0xff] %v329
                  %v331 = vld [vmem:[%s303 + $0x138] sm:$0xff]
                  %332 = vst [vmem:[%s304 + $0x68] sm:$0xff] %v331
                  %v333 = vld [vmem:[%s303 + $0x150] sm:$0xff]
                  %334 = vst [vmem:[%s304 + $0x70] sm:$0xff] %v333
                  %v335 = vld [vmem:[%s303 + $0x168] sm:$0xff]
                  %336 = vst [vmem:[%s304 + $0x78] sm:$0xff] %v335
                  %v337 = vld [vmem:[%s303 + $0x180] sm:$0xff]
                  %338 = vst [vmem:[%s304 + $0x80] sm:$0xff] %v337
                  %v339 = vld [vmem:[%s303 + $0x198] sm:$0xff]
                  %340 = vst [vmem:[%s304 + $0x88] sm:$0xff] %v339
                  %v341 = vld [vmem:[%s303 + $0x1b0] sm:$0xff]
                  %342 = vst [vmem:[%s304 + $0x90] sm:$0xff] %v341
                  %v343 = vld [vmem:[%s303 + $0x1c8] sm:$0xff]
                  %344 = vst [vmem:[%s304 + $0x98] sm:$0xff] %v343
                  %v345 = vld [vmem:[%s303 + $0x1e0] sm:$0xff]
                  %346 = vst [vmem:[%s304 + $0xa0] sm:$0xff] %v345
                  %v347 = vld [vmem:[%s303 + $0x1f8] sm:$0xff]
                  %348 = vst [vmem:[%s304 + $0xa8] sm:$0xff] %v347
                  %v349 = vld [vmem:[%s303 + $0x210] sm:$0xff]
                  %350 = vst [vmem:[%s304 + $0xb0] sm:$0xff] %v349
                  %v351 = vld [vmem:[%s303 + $0x228] sm:$0xff]
                  %352 = vst [vmem:[%s304 + $0xb8] sm:$0xff] %v351
                  %v353 = vld [vmem:[%s303 + $0x240] sm:$0xff]
                  %354 = vst [vmem:[%s304 + $0xc0] sm:$0xff] %v353
                  %v355 = vld [vmem:[%s303 + $0x258] sm:$0xff]
                  %356 = vst [vmem:[%s304 + $0xc8] sm:$0xff] %v355
                  %v357 = vld [vmem:[%s303 + $0x270] sm:$0xff]
                  %358 = vst [vmem:[%s304 + $0xd0] sm:$0xff] %v357
                  %v359 = vld [vmem:[%s303 + $0x288] sm:$0xff]
                  %360 = vst [vmem:[%s304 + $0xd8] sm:$0xff] %v359
                  %v361 = vld [vmem:[%s303 + $0x2a0] sm:$0xff]
                  %362 = vst [vmem:[%s304 + $0xe0] sm:$0xff] %v361
                  %v363 = vld [vmem:[%s303 + $0x2b8] sm:$0xff]
                  %364 = vst [vmem:[%s304 + $0xe8] sm:$0xff] %v363
                  %v365 = vld [vmem:[%s303 + $0x2d0] sm:$0xff]
                  %366 = vst [vmem:[%s304 + $0xf0] sm:$0xff] %v365
                  %v367 = vld [vmem:[%s303 + $0x2e8] sm:$0xff]
                  %368 = vst [vmem:[%s304 + $0xf8] sm:$0xff] %v367
                $region60: #{mindvault_forward.9} parent=54 // loop_footer
                  %s302 = sadd.s32 1, %s298
                $region61: #{mindvault_forward.9} parent=54 // loop_footer_branch
                  %297 = sbr.rel target = $region57
                $region62: #{mindvault_forward.9} parent=54 // loop_exit
                  _
              $region55: #{mindvault_forward.9} parent=39 // pred_fallthru
                _
              // Predicated region
              $region63: #{mindvault_forward.9} parent=39 // pred_check
                _
              $region64: #{mindvault_forward.9} parent=39 // pred_check_branch
                %370 = sbr.rel target = $region66
              $region65: #{mindvault_forward.9} parent=39 // pred_region
                _
              $region66: #{mindvault_forward.9} parent=39 // pred_fallthru
                _
            $region40: #{mindvault_forward.9} parent=35 // pred_fallthru
              _
            // Predicated region
            $region41: #{mindvault_forward.9} parent=35 // pred_check
              _
            $region42: #{mindvault_forward.9} parent=35 // pred_check_branch
              %221 = sbr.rel target = $region44
            $region43: #{mindvault_forward.9} parent=35 // pred_region
              loop: start=0, step=1, limit=1
              $region45: #{mindvault_forward.9} parent=43 // loop_pre_header
                _
              $region46: #{mindvault_forward.9} parent=43 // loop_header
                %s224 = sphi 0, %s228
                %p225 = scmp.ge.s32.totalorder %s224, 1
                %s229 = sphi %s215, %s215
                %s230 = sphi %s212, %s212
              $region47: #{mindvault_forward.9} parent=43 // loop_header_branch
                %227 = sbr.rel (%p225) target = $region51
              $region48: #{mindvault_forward.9} parent=43 // loop_body
                %v231 = vld [vmem:[%s229] sm:$0xff]
                %232 = vst [vmem:[%s230] sm:$0xff] %v231
                %v233 = vld [vmem:[%s229 + $0x18] sm:$0xff]
                %234 = vst [vmem:[%s230 + $0x8] sm:$0xff] %v233
                %v235 = vld [vmem:[%s229 + $0x30] sm:$0xff]
                %236 = vst [vmem:[%s230 + $0x10] sm:$0xff] %v235
                %v237 = vld [vmem:[%s229 + $0x48] sm:$0xff]
                %238 = vst [vmem:[%s230 + $0x18] sm:$0xff] %v237
                %v239 = vld [vmem:[%s229 + $0x60] sm:$0xff]
                %240 = vst [vmem:[%s230 + $0x20] sm:$0xff] %v239
                %v241 = vld [vmem:[%s229 + $0x78] sm:$0xff]
                %242 = vst [vmem:[%s230 + $0x28] sm:$0xff] %v241
                %v243 = vld [vmem:[%s229 + $0x90] sm:$0xff]
                %244 = vst [vmem:[%s230 + $0x30] sm:$0xff] %v243
                %v245 = vld [vmem:[%s229 + $0xa8] sm:$0xff]
                %246 = vst [vmem:[%s230 + $0x38] sm:$0xff] %v245
                %v247 = vld [vmem:[%s229 + $0xc0] sm:$0xff]
                %248 = vst [vmem:[%s230 + $0x40] sm:$0xff] %v247
                %v249 = vld [vmem:[%s229 + $0xd8] sm:$0xff]
                %250 = vst [vmem:[%s230 + $0x48] sm:$0xff] %v249
                %v251 = vld [vmem:[%s229 + $0xf0] sm:$0xff]
                %252 = vst [vmem:[%s230 + $0x50] sm:$0xff] %v251
                %v253 = vld [vmem:[%s229 + $0x108] sm:$0xff]
                %254 = vst [vmem:[%s230 + $0x58] sm:$0xff] %v253
                %v255 = vld [vmem:[%s229 + $0x120] sm:$0xff]
                %256 = vst [vmem:[%s230 + $0x60] sm:$0xff] %v255
                %v257 = vld [vmem:[%s229 + $0x138] sm:$0xff]
                %258 = vst [vmem:[%s230 + $0x68] sm:$0xff] %v257
                %v259 = vld [vmem:[%s229 + $0x150] sm:$0xff]
                %260 = vst [vmem:[%s230 + $0x70] sm:$0xff] %v259
                %v261 = vld [vmem:[%s229 + $0x168] sm:$0xff]
                %262 = vst [vmem:[%s230 + $0x78] sm:$0xff] %v261
                %v263 = vld [vmem:[%s229 + $0x180] sm:$0xff]
                %264 = vst [vmem:[%s230 + $0x80] sm:$0xff] %v263
                %v265 = vld [vmem:[%s229 + $0x198] sm:$0xff]
                %266 = vst [vmem:[%s230 + $0x88] sm:$0xff] %v265
                %v267 = vld [vmem:[%s229 + $0x1b0] sm:$0xff]
                %268 = vst [vmem:[%s230 + $0x90] sm:$0xff] %v267
                %v269 = vld [vmem:[%s229 + $0x1c8] sm:$0xff]
                %270 = vst [vmem:[%s230 + $0x98] sm:$0xff] %v269
                %v271 = vld [vmem:[%s229 + $0x1e0] sm:$0xff]
                %272 = vst [vmem:[%s230 + $0xa0] sm:$0xff] %v271
                %v273 = vld [vmem:[%s229 + $0x1f8] sm:$0xff]
                %274 = vst [vmem:[%s230 + $0xa8] sm:$0xff] %v273
                %v275 = vld [vmem:[%s229 + $0x210] sm:$0xff]
                %276 = vst [vmem:[%s230 + $0xb0] sm:$0xff] %v275
                %v277 = vld [vmem:[%s229 + $0x228] sm:$0xff]
                %278 = vst [vmem:[%s230 + $0xb8] sm:$0xff] %v277
                %v279 = vld [vmem:[%s229 + $0x240] sm:$0xff]
                %280 = vst [vmem:[%s230 + $0xc0] sm:$0xff] %v279
                %v281 = vld [vmem:[%s229 + $0x258] sm:$0xff]
                %282 = vst [vmem:[%s230 + $0xc8] sm:$0xff] %v281
                %v283 = vld [vmem:[%s229 + $0x270] sm:$0xff]
                %284 = vst [vmem:[%s230 + $0xd0] sm:$0xff] %v283
                %v285 = vld [vmem:[%s229 + $0x288] sm:$0xff]
                %286 = vst [vmem:[%s230 + $0xd8] sm:$0xff] %v285
                %v287 = vld [vmem:[%s229 + $0x2a0] sm:$0xff]
                %288 = vst [vmem:[%s230 + $0xe0] sm:$0xff] %v287
                %v289 = vld [vmem:[%s229 + $0x2b8] sm:$0xff]
                %290 = vst [vmem:[%s230 + $0xe8] sm:$0xff] %v289
                %v291 = vld [vmem:[%s229 + $0x2d0] sm:$0xff]
                %292 = vst [vmem:[%s230 + $0xf0] sm:$0xff] %v291
                %v293 = vld [vmem:[%s229 + $0x2e8] sm:$0xff]
                %294 = vst [vmem:[%s230 + $0xf8] sm:$0xff] %v293
              $region49: #{mindvault_forward.9} parent=43 // loop_footer
                %s228 = sadd.s32 1, %s224
              $region50: #{mindvault_forward.9} parent=43 // loop_footer_branch
                %223 = sbr.rel target = $region46
              $region51: #{mindvault_forward.9} parent=43 // loop_exit
                _
            $region44: #{mindvault_forward.9} parent=35 // pred_fallthru
              _
          $region36: #{mindvault_forward.9} parent=31 // pred_fallthru
            _
          %371 = vnop
        $region32: #{mindvault_forward.9} parent=23 // pred_fallthru
          _
        // Predicated region
        $region67: #{mindvault_forward.9} parent=23 // pred_check
          %p372 = pneg %p137
        $region68: #{mindvault_forward.9} parent=23 // pred_check_branch
          %374 = sbr.rel (%p372) target = $region70
        $region69: #{mindvault_forward.9} parent=23 // pred_region
          %s375 = smul.u32 2, %s19
          %p376 = scmp.lt.s32.totalorder %s375, 5
          %s377 = scalar_select %p376, %s375, 5
          %s378 = scalar_lea.vmem %s4, %s377
          %s379 = smul.u32 2, %s19
        $region70: #{mindvault_forward.9} parent=23 // pred_fallthru
          _
      $region24: #{mindvault_forward.9} parent=5 // pred_fallthru
        _
      %p380 = scmp.le.s32.totalorder 1, %s11
      %p381 = scmp.lt.s32.totalorder %s11, 7
      %p382 = pnand %p380, %p381
      %p383 = pneg %p382
      // Predicated region
      $region71: #{mindvault_forward.9} parent=5 // pred_check
        _
      $region72: #{mindvault_forward.9} parent=5 // pred_check_branch
        %385 = sbr.rel (%p382) target = $region74
      $region73: #{mindvault_forward.9} parent=5 // pred_region
        %s386 = ssub.s32 %s11, 1
        %s387 = sand.u32 %s104, 1
        %s388 = sand.u32 %s104, 1
        %s389 = smul.addr %s388, 256
        %s390 = scalar_lea.vmem [#allocation2], %s389
        // Predicated region
        $region75: #{mindvault_forward.9} parent=73 // pred_check
          %p391 = pneg %p117
        $region76: #{mindvault_forward.9} parent=73 // pred_check_branch
          %393 = sbr.rel (%p391) target = $region78
        $region77: #{mindvault_forward.9} parent=73 // pred_region
          _
        $region78: #{mindvault_forward.9} parent=73 // pred_fallthru
          _
        %s394 = smul.u32 16, %s20
        %p395 = scmp.lt.s32.totalorder %s394, 31
        %s396 = scalar_select %p395, %s394, 31
        %s397 = smul.addr %s396, 2
        %s398 = smul.addr %s397, 4
        %s399 = scalar_lea.vmem %s0, %s398
        %p400 = pneg %p49
        %p401 = pneg %p46
        %p402 = pneg %p70
        %p403 = pneg %p67
        %p404 = pneg %p91
        %p405 = pneg %p88
        %s406 = sand.u32 %s104, 1
        %s407 = sand.u32 %s104, 1
        %s408 = smul.addr %s407, 256
        %s409 = scalar_lea.vmem [#allocation2], %s408
        %p410 = pneg %p117
        %p411 = pneg %p114
        %s412 = smul.u32 2, %s21
        %p413 = scmp.lt.s32.totalorder %s412, 5
        %s414 = scalar_select %p413, %s412, 5
        %s415 = scalar_lea.vmem %s4, %s414
        %p416 = pneg %p143
        %p417 = pneg %p140
        %p418 = pneg %p171
        %p419 = pneg %p168
        %s420 = sand.u32 %s158, 1
        %s421 = sand.u32 %s158, 1
        %s422 = smul.addr %s421, 128
        %s423 = scalar_lea.vmem [#allocation3], %s422
        %s424 = smul.u32 16, %s20
        %p425 = scmp.lt.s32.totalorder %s424, 31
        %s426 = scalar_select %p425, %s424, 31
        %s427 = smul.addr %s426, 2
        %s428 = smul.addr %s427, 4
        %s429 = scalar_lea.vmem %s0, %s428
        %s430 = smul.u32 16, %s20
        %s431 = smul.u32 2, %s21
        %s432 = smul.u32 2, %s21
        %p433 = scmp.lt.s32.totalorder %s432, 5
        %s434 = scalar_select %p433, %s432, 5
        %s435 = scalar_lea.vmem %s4, %s434
        %s436 = smul.u32 2, %s21
        %s437 = smul.u32 16, %s20
        %s438 = smul.u32 2, %s21
        %v439 = vld [vmem:[%s429] sm:$0xff]
        %v440 = vld [vmem:[%s429 + $0x8] sm:$0xff]
        %v441 = vld [vmem:[%s429 + $0x10] sm:$0xff]
        %v442 = vld [vmem:[%s429 + $0x18] sm:$0xff]
        %v443 = vld [vmem:[%s429 + $0x20] sm:$0xff]
        %v444 = vld [vmem:[%s429 + $0x28] sm:$0xff]
        %v445 = vld [vmem:[%s429 + $0x30] sm:$0xff]
        %v446 = vld [vmem:[%s429 + $0x38] sm:$0xff]
        %v447 = vld [vmem:[%s429 + $0x40] sm:$0xff]
        %v448 = vld [vmem:[%s429 + $0x48] sm:$0xff]
        %v449 = vld [vmem:[%s429 + $0x50] sm:$0xff]
        %v450 = vld [vmem:[%s429 + $0x58] sm:$0xff]
        %v451 = vld [vmem:[%s429 + $0x60] sm:$0xff]
        %v452 = vld [vmem:[%s429 + $0x68] sm:$0xff]
        %v453 = vld [vmem:[%s429 + $0x70] sm:$0xff]
        %v454 = vld [vmem:[%s429 + $0x78] sm:$0xff]
        %v455 = vunpack.c.l.bf16 %v439
        %v456 = vunpack.c.h.bf16 %v439
        %v457 = vunpack.c.l.bf16 %v440
        %v458 = vunpack.c.h.bf16 %v440
        %v459 = vunpack.c.l.bf16 %v441
        %v460 = vunpack.c.h.bf16 %v441
        %v461 = vunpack.c.l.bf16 %v442
        %v462 = vunpack.c.h.bf16 %v442
        %v463 = vunpack.c.l.bf16 %v443
        %v464 = vunpack.c.h.bf16 %v443
        %v465 = vunpack.c.l.bf16 %v444
        %v466 = vunpack.c.h.bf16 %v444
        %v467 = vunpack.c.l.bf16 %v445
        %v468 = vunpack.c.h.bf16 %v445
        %v469 = vunpack.c.l.bf16 %v446
        %v470 = vunpack.c.h.bf16 %v446
        %v471 = vunpack.c.l.bf16 %v447
        %v472 = vunpack.c.h.bf16 %v447
        %v473 = vunpack.c.l.bf16 %v448
        %v474 = vunpack.c.h.bf16 %v448
        %v475 = vunpack.c.l.bf16 %v449
        %v476 = vunpack.c.h.bf16 %v449
        %v477 = vunpack.c.l.bf16 %v450
        %v478 = vunpack.c.h.bf16 %v450
        %v479 = vunpack.c.l.bf16 %v451
        %v480 = vunpack.c.h.bf16 %v451
        %v481 = vunpack.c.l.bf16 %v452
        %v482 = vunpack.c.h.bf16 %v452
        %v483 = vunpack.c.l.bf16 %v453
        %v484 = vunpack.c.h.bf16 %v453
        %v485 = vunpack.c.l.bf16 %v454
        %v486 = vunpack.c.h.bf16 %v454
        %v487 = vadd.f32 %v455, %v456
        %488 = vadd.xlane.f32.xlu0 %v487
        %v489 = vpop.xlane.xlu0 %488
        %v490 = vadd.f32 %v457, %v458
        %491 = vadd.xlane.f32.xlu0 %v490
        %v492 = vpop.xlane.xlu0 %491
        %v493 = vadd.f32 %v459, %v460
        %494 = vadd.xlane.f32.xlu0 %v493
        %v495 = vpop.xlane.xlu0 %494
        %v496 = vadd.f32 %v461, %v462
        %497 = vadd.xlane.f32.xlu0 %v496
        %v498 = vpop.xlane.xlu0 %497
        %v499 = vadd.f32 %v463, %v464
        %500 = vadd.xlane.f32.xlu0 %v499
        %v501 = vpop.xlane.xlu0 %500
        %v502 = vadd.f32 %v465, %v466
        %503 = vadd.xlane.f32.xlu0 %v502
        %v504 = vpop.xlane.xlu0 %503
        %v505 = vadd.f32 %v467, %v468
        %506 = vadd.xlane.f32.xlu0 %v505
        %v507 = vpop.xlane.xlu0 %506
        %v508 = vadd.f32 %v469, %v470
        %509 = vadd.xlane.f32.xlu0 %v508
        %v510 = vpop.xlane.xlu0 %509
        %v511 = vadd.f32 %v471, %v472
        %512 = vadd.xlane.f32.xlu0 %v511
        %v513 = vpop.xlane.xlu0 %512
        %v514 = vadd.f32 %v473, %v474
        %515 = vadd.xlane.f32.xlu0 %v514
        %v516 = vpop.xlane.xlu0 %515
        %v517 = vadd.f32 %v475, %v476
        %518 = vadd.xlane.f32.xlu0 %v517
        %v519 = vpop.xlane.xlu0 %518
        %v520 = vadd.f32 %v477, %v478
        %521 = vadd.xlane.f32.xlu0 %v520
        %v522 = vpop.xlane.xlu0 %521
        %v523 = vadd.f32 %v479, %v480
        %524 = vadd.xlane.f32.xlu0 %v523
        %v525 = vpop.xlane.xlu0 %524
        %v526 = vadd.f32 %v481, %v482
        %527 = vadd.xlane.f32.xlu0 %v526
        %v528 = vpop.xlane.xlu0 %527
        %v529 = vadd.f32 %v483, %v484
        %530 = vadd.xlane.f32.xlu0 %v529
        %v531 = vpop.xlane.xlu0 %530
        %v532 = vadd.f32 %v485, %v486
        %533 = vadd.xlane.f32.xlu0 %v532
        %v534 = vpop.xlane.xlu0 %533
        %v535 = vrcp.pop 256.0
        %v536 = vmul.f32 %v489, %v535
        %v537 = vmul.f32 %v492, %v535
        %v538 = vmul.f32 %v495, %v535
        %v539 = vmul.f32 %v498, %v535
        %v540 = vmul.f32 %v501, %v535
        %v541 = vmul.f32 %v504, %v535
        %v542 = vmul.f32 %v507, %v535
        %v543 = vmul.f32 %v510, %v535
        %v544 = vmul.f32 %v513, %v535
        %v545 = vmul.f32 %v516, %v535
        %v546 = vmul.f32 %v519, %v535
        %v547 = vmul.f32 %v522, %v535
        %v548 = vmul.f32 %v525, %v535
        %v549 = vmul.f32 %v528, %v535
        %v550 = vmul.f32 %v531, %v535
        %v551 = vmul.f32 %v534, %v535
        %v552 = vsub.f32 %v455, %v536
        %v553 = vsub.f32 %v456, %v536
        %v554 = vsub.f32 %v457, %v537
        %v555 = vsub.f32 %v458, %v537
        %v556 = vsub.f32 %v459, %v538
        %v557 = vsub.f32 %v460, %v538
        %v558 = vsub.f32 %v461, %v539
        %v559 = vsub.f32 %v462, %v539
        %v560 = vsub.f32 %v463, %v540
        %v561 = vsub.f32 %v464, %v540
        %v562 = vsub.f32 %v465, %v541
        %v563 = vsub.f32 %v466, %v541
        %v564 = vsub.f32 %v467, %v542
        %v565 = vsub.f32 %v468, %v542
        %v566 = vsub.f32 %v469, %v543
        %v567 = vsub.f32 %v470, %v543
        %v568 = vsub.f32 %v471, %v544
        %v569 = vsub.f32 %v472, %v544
        %v570 = vsub.f32 %v473, %v545
        %v571 = vsub.f32 %v474, %v545
        %v572 = vsub.f32 %v475, %v546
        %v573 = vsub.f32 %v476, %v546
        %v574 = vsub.f32 %v477, %v547
        %v575 = vsub.f32 %v478, %v547
        %v576 = vsub.f32 %v479, %v548
        %v577 = vsub.f32 %v480, %v548
        %v578 = vsub.f32 %v481, %v549
        %v579 = vsub.f32 %v482, %v549
        %v580 = vsub.f32 %v483, %v550
        %v581 = vsub.f32 %v484, %v550
        %v582 = vsub.f32 %v485, %v551
        %v583 = vsub.f32 %v486, %v551
        %v584 = vmul.f32 %v552, %v552
        %v585 = vmul.f32 %v553, %v553
        %v586 = vmul.f32 %v554, %v554
        %v587 = vmul.f32 %v555, %v555
        %v588 = vmul.f32 %v556, %v556
        %v589 = vmul.f32 %v557, %v557
        %v590 = vmul.f32 %v558, %v558
        %v591 = vmul.f32 %v559, %v559
        %v592 = vmul.f32 %v560, %v560
        %v593 = vmul.f32 %v561, %v561
        %v594 = vmul.f32 %v562, %v562
        %v595 = vmul.f32 %v563, %v563
        %v596 = vmul.f32 %v564, %v564
        %v597 = vmul.f32 %v565, %v565
        %v598 = vmul.f32 %v566, %v566
        %v599 = vmul.f32 %v567, %v567
        %v600 = vmul.f32 %v568, %v568
        %v601 = vmul.f32 %v569, %v569
        %v602 = vmul.f32 %v570, %v570
        %v603 = vmul.f32 %v571, %v571
        %v604 = vmul.f32 %v572, %v572
        %v605 = vmul.f32 %v573, %v573
        %v606 = vmul.f32 %v574, %v574
        %v607 = vmul.f32 %v575, %v575
        %v608 = vmul.f32 %v576, %v576
        %v609 = vmul.f32 %v577, %v577
        %v610 = vmul.f32 %v578, %v578
        %v611 = vmul.f32 %v579, %v579
        %v612 = vmul.f32 %v580, %v580
        %v613 = vmul.f32 %v581, %v581
        %v614 = vmul.f32 %v582, %v582
        %v615 = vmul.f32 %v583, %v583
        %v616 = vadd.f32 %v584, %v585
        %617 = vadd.xlane.f32.xlu0 %v616
        %v618 = vpop.xlane.xlu0 %617
        %v619 = vadd.f32 %v586, %v587
        %620 = vadd.xlane.f32.xlu0 %v619
        %v621 = vpop.xlane.xlu0 %620
        %v622 = vadd.f32 %v588, %v589
        %623 = vadd.xlane.f32.xlu0 %v622
        %v624 = vpop.xlane.xlu0 %623
        %v625 = vadd.f32 %v590, %v591
        %626 = vadd.xlane.f32.xlu0 %v625
        %v627 = vpop.xlane.xlu0 %626
        %v628 = vadd.f32 %v592, %v593
        %629 = vadd.xlane.f32.xlu0 %v628
        %v630 = vpop.xlane.xlu0 %629
        %v631 = vadd.f32 %v594, %v595
        %632 = vadd.xlane.f32.xlu0 %v631
        %v633 = vpop.xlane.xlu0 %632
        %v634 = vadd.f32 %v596, %v597
        %635 = vadd.xlane.f32.xlu0 %v634
        %v636 = vpop.xlane.xlu0 %635
        %v637 = vadd.f32 %v598, %v599
        %638 = vadd.xlane.f32.xlu0 %v637
        %v639 = vpop.xlane.xlu0 %638
        %v640 = vadd.f32 %v600, %v601
        %641 = vadd.xlane.f32.xlu0 %v640
        %v642 = vpop.xlane.xlu0 %641
        %v643 = vadd.f32 %v602, %v603
        %644 = vadd.xlane.f32.xlu0 %v643
        %v645 = vpop.xlane.xlu0 %644
        %v646 = vadd.f32 %v604, %v605
        %647 = vadd.xlane.f32.xlu0 %v646
        %v648 = vpop.xlane.xlu0 %647
        %v649 = vadd.f32 %v606, %v607
        %650 = vadd.xlane.f32.xlu0 %v649
        %v651 = vpop.xlane.xlu0 %650
        %v652 = vadd.f32 %v608, %v609
        %653 = vadd.xlane.f32.xlu0 %v652
        %v654 = vpop.xlane.xlu0 %653
        %v655 = vadd.f32 %v610, %v611
        %656 = vadd.xlane.f32.xlu0 %v655
        %v657 = vpop.xlane.xlu0 %656
        %v658 = vadd.f32 %v612, %v613
        %659 = vadd.xlane.f32.xlu0 %v658
        %v660 = vpop.xlane.xlu0 %659
        %v661 = vadd.f32 %v614, %v615
        %662 = vadd.xlane.f32.xlu0 %v661
        %v663 = vpop.xlane.xlu0 %662
        %v664 = vmul.f32 %v618, %v535
        %v665 = vmul.f32 %v621, %v535
        %v666 = vmul.f32 %v624, %v535
        %v667 = vmul.f32 %v627, %v535
        %v668 = vmul.f32 %v630, %v535
        %v669 = vmul.f32 %v633, %v535
        %v670 = vmul.f32 %v636, %v535
        %v671 = vmul.f32 %v639, %v535
        %v672 = vmul.f32 %v642, %v535
        %v673 = vmul.f32 %v645, %v535
        %v674 = vmul.f32 %v648, %v535
        %v675 = vmul.f32 %v651, %v535
        %v676 = vmul.f32 %v654, %v535
        %v677 = vmul.f32 %v657, %v535
        %v678 = vmul.f32 %v660, %v535
        %v679 = vmul.f32 %v663, %v535
        %v680 = vadd.f32 %v664, 1e-05
        %v681 = vadd.f32 %v665, 1e-05
        %v682 = vadd.f32 %v666, 1e-05
        %v683 = vadd.f32 %v667, 1e-05
        %v684 = vadd.f32 %v668, 1e-05
        %v685 = vadd.f32 %v669, 1e-05
        %v686 = vadd.f32 %v670, 1e-05
        %v687 = vadd.f32 %v671, 1e-05
        %v688 = vadd.f32 %v672, 1e-05
        %v689 = vadd.f32 %v673, 1e-05
        %v690 = vadd.f32 %v674, 1e-05
        %v691 = vadd.f32 %v675, 1e-05
        %v692 = vadd.f32 %v676, 1e-05
        %v693 = vadd.f32 %v677, 1e-05
        %v694 = vadd.f32 %v678, 1e-05
        %v695 = vadd.f32 %v679, 1e-05
        %v696 = vrsqrt.pop %v680
        %v697 = vrsqrt.pop %v681
        %v698 = vrsqrt.pop %v682
        %v699 = vrsqrt.pop %v683
        %v700 = vrsqrt.pop %v684
        %v701 = vrsqrt.pop %v685
        %v702 = vrsqrt.pop %v686
        %v703 = vrsqrt.pop %v687
        %v704 = vrsqrt.pop %v688
        %v705 = vrsqrt.pop %v689
        %v706 = vrsqrt.pop %v690
        %v707 = vrsqrt.pop %v691
        %v708 = vrsqrt.pop %v692
        %v709 = vrsqrt.pop %v693
        %v710 = vrsqrt.pop %v694
        %v711 = vrsqrt.pop %v695
        %v712 = vmul.f32 %v552, %v696
        %v713 = vmul.f32 %v553, %v696
        %v714 = vmul.f32 %v554, %v697
        %v715 = vmul.f32 %v555, %v697
        %v716 = vmul.f32 %v556, %v698
        %v717 = vmul.f32 %v557, %v698
        %v718 = vmul.f32 %v558, %v699
        %v719 = vmul.f32 %v559, %v699
        %v720 = vmul.f32 %v560, %v700
        %v721 = vmul.f32 %v561, %v700
        %v722 = vmul.f32 %v562, %v701
        %v723 = vmul.f32 %v563, %v701
        %v724 = vmul.f32 %v564, %v702
        %v725 = vmul.f32 %v565, %v702
        %v726 = vmul.f32 %v566, %v703
        %v727 = vmul.f32 %v567, %v703
        %v728 = vmul.f32 %v568, %v704
        %v729 = vmul.f32 %v569, %v704
        %v730 = vmul.f32 %v570, %v705
        %v731 = vmul.f32 %v571, %v705
        %v732 = vmul.f32 %v572, %v706
        %v733 = vmul.f32 %v573, %v706
        %v734 = vmul.f32 %v574, %v707
        %v735 = vmul.f32 %v575, %v707
        %v736 = vmul.f32 %v576, %v708
        %v737 = vmul.f32 %v577, %v708
        %v738 = vmul.f32 %v578, %v709
        %v739 = vmul.f32 %v579, %v709
        %v740 = vmul.f32 %v580, %v710
        %v741 = vmul.f32 %v581, %v710
        %v742 = vmul.f32 %v582, %v711
        %v743 = vmul.f32 %v583, %v711
        %v744 = vld [vmem:[%s1] sm:$0x3]
        %v746 = vlaneseq
        %v747 = vshrl.u32 %v746, 7
        %v748 = vsub.s32 0, %v747
        %v749 = vrot.slane %v744, %v748
        %v750 = vlaneseq
        %v751 = vshrl.u32 %v750, 7
        %v752 = vsub.s32 1, %v751
        %v753 = vrot.slane %v744, %v752
        %v756 = vmul.f32 %v712, %v749
        %v757 = vmul.f32 %v713, %v753
        %v758 = vmul.f32 %v714, %v749
        %v759 = vmul.f32 %v715, %v753
        %v760 = vmul.f32 %v716, %v749
        %v761 = vmul.f32 %v717, %v753
        %v762 = vmul.f32 %v718, %v749
        %v763 = vmul.f32 %v719, %v753
        %v764 = vmul.f32 %v720, %v749
        %v765 = vmul.f32 %v721, %v753
        %v766 = vmul.f32 %v722, %v749
        %v767 = vmul.f32 %v723, %v753
        %v768 = vmul.f32 %v724, %v749
        %v769 = vmul.f32 %v725, %v753
        %v770 = vmul.f32 %v726, %v749
        %v771 = vmul.f32 %v727, %v753
        %v772 = vmul.f32 %v728, %v749
        %v773 = vmul.f32 %v729, %v753
        %v774 = vmul.f32 %v730, %v749
        %v775 = vmul.f32 %v731, %v753
        %v776 = vmul.f32 %v732, %v749
        %v777 = vmul.f32 %v733, %v753
        %v778 = vmul.f32 %v734, %v749
        %v779 = vmul.f32 %v735, %v753
        %v780 = vmul.f32 %v736, %v749
        %v781 = vmul.f32 %v737, %v753
        %v782 = vmul.f32 %v738, %v749
        %v783 = vmul.f32 %v739, %v753
        %v784 = vmul.f32 %v740, %v749
        %v785 = vmul.f32 %v741, %v753
        %v786 = vmul.f32 %v742, %v749
        %v787 = vmul.f32 %v743, %v753
        %v788 = vld [vmem:[%s2] sm:$0x3]
        %v790 = vlaneseq
        %v791 = vshrl.u32 %v790, 7
        %v792 = vsub.s32 0, %v791
        %v793 = vrot.slane %v788, %v792
        %v794 = vlaneseq
        %v795 = vshrl.u32 %v794, 7
        %v796 = vsub.s32 1, %v795
        %v797 = vrot.slane %v788, %v796
        %v800 = vadd.f32 %v756, %v793
        %v801 = vadd.f32 %v757, %v797
        %v802 = vadd.f32 %v758, %v793
        %v803 = vadd.f32 %v759, %v797
        %v804 = vadd.f32 %v760, %v793
        %v805 = vadd.f32 %v761, %v797
        %v806 = vadd.f32 %v762, %v793
        %v807 = vadd.f32 %v763, %v797
        %v808 = vadd.f32 %v764, %v793
        %v809 = vadd.f32 %v765, %v797
        %v810 = vadd.f32 %v766, %v793
        %v811 = vadd.f32 %v767, %v797
        %v812 = vadd.f32 %v768, %v793
        %v813 = vadd.f32 %v769, %v797
        %v814 = vadd.f32 %v770, %v793
        %v815 = vadd.f32 %v771, %v797
        %v816 = vadd.f32 %v772, %v793
        %v817 = vadd.f32 %v773, %v797
        %v818 = vadd.f32 %v774, %v793
        %v819 = vadd.f32 %v775, %v797
        %v820 = vadd.f32 %v776, %v793
        %v821 = vadd.f32 %v777, %v797
        %v822 = vadd.f32 %v778, %v793
        %v823 = vadd.f32 %v779, %v797
        %v824 = vadd.f32 %v780, %v793
        %v825 = vadd.f32 %v781, %v797
        %v826 = vadd.f32 %v782, %v793
        %v827 = vadd.f32 %v783, %v797
        %v828 = vadd.f32 %v784, %v793
        %v829 = vadd.f32 %v785, %v797
        %v830 = vadd.f32 %v786, %v793
        %v831 = vadd.f32 %v787, %v797
        %v832 = vpack.c.bf16 %v802, %v800
        %v833 = vpack.c.bf16 %v803, %v801
        %v834 = vpack.c.bf16 %v806, %v804
        %v835 = vpack.c.bf16 %v807, %v805
        %v836 = vpack.c.bf16 %v810, %v808
        %v837 = vpack.c.bf16 %v811, %v809
        %v838 = vpack.c.bf16 %v814, %v812
        %v839 = vpack.c.bf16 %v815, %v813
        %v840 = vpack.c.bf16 %v818, %v816
        %v841 = vpack.c.bf16 %v819, %v817
        %v842 = vpack.c.bf16 %v822, %v820
        %v843 = vpack.c.bf16 %v823, %v821
        %v844 = vpack.c.bf16 %v826, %v824
        %v845 = vpack.c.bf16 %v827, %v825
        %v846 = vpack.c.bf16 %v830, %v828
        %v847 = vpack.c.bf16 %v831, %v829
        %v848 = vld [vmem:[%s390] sm:$0xff]
        %v849 = vld [vmem:[%s390 + $0x8] sm:$0xff]
        %v850 = vld [vmem:[%s390 + $0x10] sm:$0xff]
        %v851 = vld [vmem:[%s390 + $0x18] sm:$0xff]
        %v852 = vld [vmem:[%s390 + $0x20] sm:$0xff]
        %v853 = vld [vmem:[%s390 + $0x28] sm:$0xff]
        %v854 = vld [vmem:[%s390 + $0x30] sm:$0xff]
        %v855 = vld [vmem:[%s390 + $0x38] sm:$0xff]
        %v856 = vld [vmem:[%s390 + $0x40] sm:$0xff]
        %v857 = vld [vmem:[%s390 + $0x48] sm:$0xff]
        %v858 = vld [vmem:[%s390 + $0x50] sm:$0xff]
        %v859 = vld [vmem:[%s390 + $0x58] sm:$0xff]
        %v860 = vld [vmem:[%s390 + $0x60] sm:$0xff]
        %v861 = vld [vmem:[%s390 + $0x68] sm:$0xff]
        %v862 = vld [vmem:[%s390 + $0x70] sm:$0xff]
        %v863 = vld [vmem:[%s390 + $0x78] sm:$0xff]
        %v864 = vld [vmem:[%s390 + $0x80] sm:$0xff]
        %v865 = vld [vmem:[%s390 + $0x88] sm:$0xff]
        %v866 = vld [vmem:[%s390 + $0x90] sm:$0xff]
        %v867 = vld [vmem:[%s390 + $0x98] sm:$0xff]
        %v868 = vld [vmem:[%s390 + $0xa0] sm:$0xff]
        %v869 = vld [vmem:[%s390 + $0xa8] sm:$0xff]
        %v870 = vld [vmem:[%s390 + $0xb0] sm:$0xff]
        %v871 = vld [vmem:[%s390 + $0xb8] sm:$0xff]
        %v872 = vld [vmem:[%s390 + $0xc0] sm:$0xff]
        %v873 = vld [vmem:[%s390 + $0xc8] sm:$0xff]
        %v874 = vld [vmem:[%s390 + $0xd0] sm:$0xff]
        %v875 = vld [vmem:[%s390 + $0xd8] sm:$0xff]
        %v876 = vld [vmem:[%s390 + $0xe0] sm:$0xff]
        %v877 = vld [vmem:[%s390 + $0xe8] sm:$0xff]
        %v878 = vld [vmem:[%s390 + $0xf0] sm:$0xff]
        %v879 = vld [vmem:[%s390 + $0xf8] sm:$0xff]
        %v880 = vld [vmem:[%s435] sm:$0x3]
        %v882 = vlaneseq
        %v883 = vshrl.u32 %v882, 7
        %v884 = vsub.s32 0, %v883
        %v885 = vrot.slane %v880, %v884
        %v886 = vlaneseq
        %v887 = vshrl.u32 %v886, 7
        %v888 = vsub.s32 1, %v887
        %v889 = vrot.slane %v880, %v888
        %v924 = vunpack.c.l.b16 %v848
        %v925 = vunpack.c.h.b16 %v848
        %v926 = vunpack.c.l.b16 %v849
        %v927 = vunpack.c.h.b16 %v849
        %v928 = vunpack.c.l.b16 %v850
        %v929 = vunpack.c.h.b16 %v850
        %v930 = vunpack.c.l.b16 %v851
        %v931 = vunpack.c.h.b16 %v851
        %v932 = vunpack.c.l.b16 %v852
        %v933 = vunpack.c.h.b16 %v852
        %v934 = vunpack.c.l.b16 %v853
        %v935 = vunpack.c.h.b16 %v853
        %v936 = vunpack.c.l.b16 %v854
        %v937 = vunpack.c.h.b16 %v854
        %v938 = vunpack.c.l.b16 %v855
        %v939 = vunpack.c.h.b16 %v855
        %v940 = vunpack.c.l.b16 %v856
        %v941 = vunpack.c.h.b16 %v856
        %v942 = vunpack.c.l.b16 %v857
        %v943 = vunpack.c.h.b16 %v857
        %v944 = vunpack.c.l.b16 %v858
        %v945 = vunpack.c.h.b16 %v858
        %v946 = vunpack.c.l.b16 %v859
        %v947 = vunpack.c.h.b16 %v859
        %v948 = vunpack.c.l.b16 %v860
        %v949 = vunpack.c.h.b16 %v860
        %v950 = vunpack.c.l.b16 %v861
        %v951 = vunpack.c.h.b16 %v861
        %v952 = vunpack.c.l.b16 %v862
        %v953 = vunpack.c.h.b16 %v862
        %v954 = vunpack.c.l.b16 %v863
        %v955 = vunpack.c.h.b16 %v863
        %v956 = vunpack.c.l.b16 %v864
        %v957 = vunpack.c.h.b16 %v864
        %v958 = vunpack.c.l.b16 %v865
        %v959 = vunpack.c.h.b16 %v865
        %v960 = vunpack.c.l.b16 %v866
        %v961 = vunpack.c.h.b16 %v866
        %v962 = vunpack.c.l.b16 %v867
        %v963 = vunpack.c.h.b16 %v867
        %v964 = vunpack.c.l.b16 %v868
        %v965 = vunpack.c.h.b16 %v868
        %v966 = vunpack.c.l.b16 %v869
        %v967 = vunpack.c.h.b16 %v869
        %v968 = vunpack.c.l.b16 %v870
        %v969 = vunpack.c.h.b16 %v870
        %v970 = vunpack.c.l.b16 %v871
        %v971 = vunpack.c.h.b16 %v871
        %v972 = vunpack.c.l.b16 %v872
        %v973 = vunpack.c.h.b16 %v872
        %v974 = vunpack.c.l.b16 %v873
        %v975 = vunpack.c.h.b16 %v873
        %v976 = vunpack.c.l.b16 %v874
        %v977 = vunpack.c.h.b16 %v874
        %v978 = vunpack.c.l.b16 %v875
        %v979 = vunpack.c.h.b16 %v875
        %v980 = vunpack.c.l.b16 %v876
        %v981 = vunpack.c.h.b16 %v876
        %v982 = vunpack.c.l.b16 %v877
        %v983 = vunpack.c.h.b16 %v877
        %v984 = vunpack.c.l.b16 %v878
        %v985 = vunpack.c.h.b16 %v878
        %v986 = vunpack.c.l.b16 %v879
        %v987 = vunpack.c.h.b16 %v879
        %v988 = vpack.c.b16 %v926, %v924
        %v989 = vpack.c.b16 %v927, %v925
        %v990 = vpack.c.b16 %v930, %v928
        %v991 = vpack.c.b16 %v931, %v929
        %v992 = vpack.c.b16 %v934, %v932
        %v993 = vpack.c.b16 %v935, %v933
        %v994 = vpack.c.b16 %v938, %v936
        %v995 = vpack.c.b16 %v939, %v937
        %v996 = vpack.c.b16 %v942, %v940
        %v997 = vpack.c.b16 %v943, %v941
        %v998 = vpack.c.b16 %v946, %v944
        %v999 = vpack.c.b16 %v947, %v945
        %v1000 = vpack.c.b16 %v950, %v948
        %v1001 = vpack.c.b16 %v951, %v949
        %v1002 = vpack.c.b16 %v954, %v952
        %v1003 = vpack.c.b16 %v955, %v953
        %v1004 = vpack.c.b16 %v958, %v956
        %v1005 = vpack.c.b16 %v959, %v957
        %v1006 = vpack.c.b16 %v962, %v960
        %v1007 = vpack.c.b16 %v963, %v961
        %v1008 = vpack.c.b16 %v966, %v964
        %v1009 = vpack.c.b16 %v967, %v965
        %v1010 = vpack.c.b16 %v970, %v968
        %v1011 = vpack.c.b16 %v971, %v969
        %v1012 = vpack.c.b16 %v974, %v972
        %v1013 = vpack.c.b16 %v975, %v973
        %v1014 = vpack.c.b16 %v978, %v976
        %v1015 = vpack.c.b16 %v979, %v977
        %v1016 = vpack.c.b16 %v982, %v980
        %v1017 = vpack.c.b16 %v983, %v981
        %v1018 = vpack.c.b16 %v986, %v984
        %v1019 = vpack.c.b16 %v987, %v985
        %1052 = vmatprep.subr.bf16.mxu0 %v989
        %1053 = vmatpush1.bf16.msra.mxu0 %v988
        %1054 = vmatprep.subr.bf16.mxu0 %v991
        %1055 = vmatpush1.bf16.msra.mxu0 %v990
        %1056 = vmatprep.subr.bf16.mxu0 %v993
        %1057 = vmatpush1.bf16.msra.mxu0 %v992
        %1058 = vmatprep.subr.bf16.mxu0 %v995
        %1059 = vmatpush1.bf16.msra.mxu0 %v994
        %1060 = vmatprep.subr.bf16.mxu0 %v997
        %1061 = vmatpush1.bf16.msra.mxu0 %v996
        %1062 = vmatprep.subr.bf16.mxu0 %v999
        %1063 = vmatpush1.bf16.msra.mxu0 %v998
        %1064 = vmatprep.subr.bf16.mxu0 %v1001
        %1065 = vmatpush1.bf16.msra.mxu0 %v1000
        %1066 = vmatprep.subr.bf16.mxu0 %v1003
        %1067 = vmatpush1.bf16.msra.mxu0 %v1002
        %1068 = vmatprep.subr.bf16.mxu0 %v1005
        %1069 = vmatpush1.bf16.msra.mxu0 %v1004
        %1070 = vmatprep.subr.bf16.mxu0 %v1007
        %1071 = vmatpush1.bf16.msra.mxu0 %v1006
        %1072 = vmatprep.subr.bf16.mxu0 %v1009
        %1073 = vmatpush1.bf16.msra.mxu0 %v1008
        %1074 = vmatprep.subr.bf16.mxu0 %v1011
        %1075 = vmatpush1.bf16.msra.mxu0 %v1010
        %1076 = vmatprep.subr.bf16.mxu0 %v1013
        %1077 = vmatpush1.bf16.msra.mxu0 %v1012
        %1078 = vmatprep.subr.bf16.mxu0 %v1015
        %1079 = vmatpush1.bf16.msra.mxu0 %v1014
        %1080 = vmatprep.subr.bf16.mxu0 %v1017
        %1081 = vmatpush1.bf16.msra.mxu0 %v1016
        %1082 = vmatprep.subr.bf16.mxu0 %v1019
        %1083 = vmatpush1.bf16.msra.mxu0 %v1018
        %1084 = vmatprep.mubr.bf16.mxu0 %v833
        %1085 = vmatmul.mubr.bf16.gmra.mrb[0].mxu0 %v832
        %v1086 = vpop.f32.mrb[0].mxu0
        %v1087 = vadd.f32 %v885, %v1086
        %v1088 = vpop.f32.mrb[0].mxu0
        %v1089 = vadd.f32 %v889, %v1088
        %v1090 = vpop.f32.mrb[0].mxu0
        %v1091 = vadd.f32 %v885, %v1090
        %v1092 = vpop.f32.mrb[0].mxu0
        %v1093 = vadd.f32 %v889, %v1092
        %1094 = vmatprep.mubr.bf16.mxu0 %v835
        %1095 = vmatmul.mubr.bf16.gmra.mrb[0].mxu0 %v834
        %v1096 = vpop.f32.mrb[0].mxu0
        %v1097 = vadd.f32 %v885, %v1096
        %v1098 = vpop.f32.mrb[0].mxu0
        %v1099 = vadd.f32 %v889, %v1098
        %v1100 = vpop.f32.mrb[0].mxu0
        %v1101 = vadd.f32 %v885, %v1100
        %v1102 = vpop.f32.mrb[0].mxu0
        %v1103 = vadd.f32 %v889, %v1102
        %1104 = vmatprep.mubr.bf16.mxu0 %v837
        %1105 = vmatmul.mubr.bf16.gmra.mrb[0].mxu0 %v836
        %v1106 = vpop.f32.mrb[0].mxu0
        %v1107 = vadd.f32 %v885, %v1106
        %v1108 = vpop.f32.mrb[0].mxu0
        %v1109 = vadd.f32 %v889, %v1108
        %v1110 = vpop.f32.mrb[0].mxu0
        %v1111 = vadd.f32 %v885, %v1110
        %v1112 = vpop.f32.mrb[0].mxu0
        %v1113 = vadd.f32 %v889, %v1112
        %1114 = vmatprep.mubr.bf16.mxu0 %v839
        %1115 = vmatmul.mubr.bf16.gmra.mrb[0].mxu0 %v838
        %v1116 = vpop.f32.mrb[0].mxu0
        %v1117 = vadd.f32 %v885, %v1116
        %v1118 = vpop.f32.mrb[0].mxu0
        %v1119 = vadd.f32 %v889, %v1118
        %v1120 = vpop.f32.mrb[0].mxu0
        %v1121 = vadd.f32 %v885, %v1120
        %v1122 = vpop.f32.mrb[0].mxu0
        %v1123 = vadd.f32 %v889, %v1122
        %1124 = vmatprep.mubr.bf16.mxu0 %v841
        %1125 = vmatmul.mubr.bf16.gmra.mrb[0].mxu0 %v840
        %v1126 = vpop.f32.mrb[0].mxu0
        %v1127 = vadd.f32 %v885, %v1126
        %v1128 = vpop.f32.mrb[0].mxu0
        %v1129 = vadd.f32 %v889, %v1128
        %v1130 = vpop.f32.mrb[0].mxu0
        %v1131 = vadd.f32 %v885, %v1130
        %v1132 = vpop.f32.mrb[0].mxu0
        %v1133 = vadd.f32 %v889, %v1132
        %1134 = vmatprep.mubr.bf16.mxu0 %v843
        %1135 = vmatmul.mubr.bf16.gmra.mrb[0].mxu0 %v842
        %v1136 = vpop.f32.mrb[0].mxu0
        %v1137 = vadd.f32 %v885, %v1136
        %v1138 = vpop.f32.mrb[0].mxu0
        %v1139 = vadd.f32 %v889, %v1138
        %v1140 = vpop.f32.mrb[0].mxu0
        %v1141 = vadd.f32 %v885, %v1140
        %v1142 = vpop.f32.mrb[0].mxu0
        %v1143 = vadd.f32 %v889, %v1142
        %1144 = vmatprep.mubr.bf16.mxu0 %v845
        %1145 = vmatmul.mubr.bf16.gmra.mrb[0].mxu0 %v844
        %v1146 = vpop.f32.mrb[0].mxu0
        %v1147 = vadd.f32 %v885, %v1146
        %v1148 = vpop.f32.mrb[0].mxu0
        %v1149 = vadd.f32 %v889, %v1148
        %v1150 = vpop.f32.mrb[0].mxu0
        %v1151 = vadd.f32 %v885, %v1150
        %v1152 = vpop.f32.mrb[0].mxu0
        %v1153 = vadd.f32 %v889, %v1152
        %1154 = vmatprep.mubr.bf16.mxu0 %v847
        %1155 = vmatmul.mubr.bf16.gmra.mrb[0].mxu0 %v846
        %v1156 = vpop.f32.mrb[0].mxu0
        %v1157 = vadd.f32 %v885, %v1156
        %v1158 = vpop.f32.mrb[0].mxu0
        %v1159 = vadd.f32 %v889, %v1158
        %v1160 = vpop.f32.mrb[0].mxu0
        %v1161 = vadd.f32 %v885, %v1160
        %v1162 = vpop.f32.mrb[0].mxu0
        %v1163 = vadd.f32 %v889, %v1162
        %1164 = vdwg.mxu0
        %v1165 = vpack.c.bf16 %v1091, %v1087
        %v1166 = vpack.c.bf16 %v1093, %v1089
        %v1167 = vpack.c.bf16 %v1101, %v1097
        %v1168 = vpack.c.bf16 %v1103, %v1099
        %v1169 = vpack.c.bf16 %v1111, %v1107
        %v1170 = vpack.c.bf16 %v1113, %v1109
        %v1171 = vpack.c.bf16 %v1121, %v1117
        %v1172 = vpack.c.bf16 %v1123, %v1119
        %v1173 = vpack.c.bf16 %v1131, %v1127
        %v1174 = vpack.c.bf16 %v1133, %v1129
        %v1175 = vpack.c.bf16 %v1141, %v1137
        %v1176 = vpack.c.bf16 %v1143, %v1139
        %v1177 = vpack.c.bf16 %v1151, %v1147
        %v1178 = vpack.c.bf16 %v1153, %v1149
        %v1179 = vpack.c.bf16 %v1161, %v1157
        %v1180 = vpack.c.bf16 %v1163, %v1159
        %v1197 = vunpack.c.l.b16 %v1165
        %v1198 = vunpack.c.l.b16 %v1166
        %v1199 = vunpack.c.h.b16 %v1165
        %v1200 = vunpack.c.h.b16 %v1166
        %v1201 = vunpack.c.l.b16 %v1167
        %v1202 = vunpack.c.l.b16 %v1168
        %v1203 = vunpack.c.h.b16 %v1167
        %v1204 = vunpack.c.h.b16 %v1168
        %v1205 = vunpack.c.l.b16 %v1169
        %v1206 = vunpack.c.l.b16 %v1170
        %v1207 = vunpack.c.h.b16 %v1169
        %v1208 = vunpack.c.h.b16 %v1170
        %v1209 = vunpack.c.l.b16 %v1171
        %v1210 = vunpack.c.l.b16 %v1172
        %v1211 = vunpack.c.h.b16 %v1171
        %v1212 = vunpack.c.h.b16 %v1172
        %v1213 = vunpack.c.l.b16 %v1173
        %v1214 = vunpack.c.l.b16 %v1174
        %v1215 = vunpack.c.h.b16 %v1173
        %v1216 = vunpack.c.h.b16 %v1174
        %v1217 = vunpack.c.l.b16 %v1175
        %v1218 = vunpack.c.l.b16 %v1176
        %v1219 = vunpack.c.h.b16 %v1175
        %v1220 = vunpack.c.h.b16 %v1176
        %v1221 = vunpack.c.l.b16 %v1177
        %v1222 = vunpack.c.l.b16 %v1178
        %v1223 = vunpack.c.h.b16 %v1177
        %v1224 = vunpack.c.h.b16 %v1178
        %v1225 = vunpack.c.l.b16 %v1179
        %v1226 = vunpack.c.l.b16 %v1180
        %v1227 = vunpack.c.h.b16 %v1179
        %v1228 = vunpack.c.h.b16 %v1180
        %v1229 = vpack.c.b16 %v1198, %v1197
        %v1230 = vpack.c.b16 %v1200, %v1199
        %v1231 = vpack.c.b16 %v1202, %v1201
        %v1232 = vpack.c.b16 %v1204, %v1203
        %v1233 = vpack.c.b16 %v1206, %v1205
        %v1234 = vpack.c.b16 %v1208, %v1207
        %v1235 = vpack.c.b16 %v1210, %v1209
        %v1236 = vpack.c.b16 %v1212, %v1211
        %v1237 = vpack.c.b16 %v1214, %v1213
        %v1238 = vpack.c.b16 %v1216, %v1215
        %v1239 = vpack.c.b16 %v1218, %v1217
        %v1240 = vpack.c.b16 %v1220, %v1219
        %v1241 = vpack.c.b16 %v1222, %v1221
        %v1242 = vpack.c.b16 %v1224, %v1223
        %v1243 = vpack.c.b16 %v1226, %v1225
        %v1244 = vpack.c.b16 %v1228, %v1227
        %1261 = vst [vmem:[%s423] sm:$0xff] %v1229
        %1262 = vst [vmem:[%s423 + $0x8] sm:$0xff] %v1230
        %1263 = vst [vmem:[%s423 + $0x10] sm:$0xff] %v1231
        %1264 = vst [vmem:[%s423 + $0x18] sm:$0xff] %v1232
        %1265 = vst [vmem:[%s423 + $0x20] sm:$0xff] %v1233
        %1266 = vst [vmem:[%s423 + $0x28] sm:$0xff] %v1234
        %1267 = vst [vmem:[%s423 + $0x30] sm:$0xff] %v1235
        %1268 = vst [vmem:[%s423 + $0x38] sm:$0xff] %v1236
        %1269 = vst [vmem:[%s423 + $0x40] sm:$0xff] %v1237
        %1270 = vst [vmem:[%s423 + $0x48] sm:$0xff] %v1238
        %1271 = vst [vmem:[%s423 + $0x50] sm:$0xff] %v1239
        %1272 = vst [vmem:[%s423 + $0x58] sm:$0xff] %v1240
        %1273 = vst [vmem:[%s423 + $0x60] sm:$0xff] %v1241
        %1274 = vst [vmem:[%s423 + $0x68] sm:$0xff] %v1242
        %1275 = vst [vmem:[%s423 + $0x70] sm:$0xff] %v1243
        %1276 = vst [vmem:[%s423 + $0x78] sm:$0xff] %v1244
        %s1277 = sand.u32 %s158, 1
        %s1278 = sand.u32 %s158, 1
        %s1279 = smul.addr %s1278, 128
        %s1280 = scalar_lea.vmem [#allocation3], %s1279
        // Predicated region
        $region79: #{mindvault_forward.9} parent=73 // pred_check
          %p1281 = pneg %p168
        $region80: #{mindvault_forward.9} parent=73 // pred_check_branch
          %1283 = sbr.rel (%p1281) target = $region82
        $region81: #{mindvault_forward.9} parent=73 // pred_region
          %s1284 = smul.u32 16, %s20
          %s1285 = smul.u32 2, %s21
          %s1286 = smul.addr %s1284, 6
          %s1287 = sadd.s32 %s1285, %s1286
          %s1288 = smul.addr %s1287, 4
          %s1289 = scalar_lea.vmem %s5, %s1288
          // Predicated region
          $region83: #{mindvault_forward.9} parent=81 // pred_check
            _
          $region84: #{mindvault_forward.9} parent=81 // pred_check_branch
            %1291 = sbr.rel (0) target = $region86
          $region85: #{mindvault_forward.9} parent=81 // pred_region
            // Predicated region
            $region87: #{mindvault_forward.9} parent=85 // pred_check
              _
            $region88: #{mindvault_forward.9} parent=85 // pred_check_branch
              %1293 = sbr.rel (0) target = $region90
            $region89: #{mindvault_forward.9} parent=85 // pred_region
              // Predicated region
              $region102: #{mindvault_forward.9} parent=89 // pred_check
                _
              $region103: #{mindvault_forward.9} parent=89 // pred_check_branch
                %1338 = sbr.rel (0) target = $region105
              $region104: #{mindvault_forward.9} parent=89 // pred_region
                loop: start=0, step=1, limit=1
                $region106: #{mindvault_forward.9} parent=104 // loop_pre_header
                  _
                $region107: #{mindvault_forward.9} parent=104 // loop_header
                  %s1340 = sphi 0, %s1344
                  %p1341 = scmp.ge.s32.totalorder %s1340, 1
                  %s1345 = sphi %s1280, %s1280
                  %s1346 = sphi %s1289, %s1289
                $region108: #{mindvault_forward.9} parent=104 // loop_header_branch
                  %1343 = sbr.rel (%p1341) target = $region112
                $region109: #{mindvault_forward.9} parent=104 // loop_body
                  %v1347 = vld [vmem:[%s1345] sm:$0xff]
                  %1348 = vst [vmem:[%s1346] sm:$0xff] %v1347
                  %v1349 = vld [vmem:[%s1345 + $0x8] sm:$0xff]
                  %1350 = vst [vmem:[%s1346 + $0x18] sm:$0xff] %v1349
                  %v1351 = vld [vmem:[%s1345 + $0x10] sm:$0xff]
                  %1352 = vst [vmem:[%s1346 + $0x30] sm:$0xff] %v1351
                  %v1353 = vld [vmem:[%s1345 + $0x18] sm:$0xff]
                  %1354 = vst [vmem:[%s1346 + $0x48] sm:$0xff] %v1353
                  %v1355 = vld [vmem:[%s1345 + $0x20] sm:$0xff]
                  %1356 = vst [vmem:[%s1346 + $0x60] sm:$0xff] %v1355
                  %v1357 = vld [vmem:[%s1345 + $0x28] sm:$0xff]
                  %1358 = vst [vmem:[%s1346 + $0x78] sm:$0xff] %v1357
                  %v1359 = vld [vmem:[%s1345 + $0x30] sm:$0xff]
                  %1360 = vst [vmem:[%s1346 + $0x90] sm:$0xff] %v1359
                  %v1361 = vld [vmem:[%s1345 + $0x38] sm:$0xff]
                  %1362 = vst [vmem:[%s1346 + $0xa8] sm:$0xff] %v1361
                  %v1363 = vld [vmem:[%s1345 + $0x40] sm:$0xff]
                  %1364 = vst [vmem:[%s1346 + $0xc0] sm:$0xff] %v1363
                  %v1365 = vld [vmem:[%s1345 + $0x48] sm:$0xff]
                  %1366 = vst [vmem:[%s1346 + $0xd8] sm:$0xff] %v1365
                  %v1367 = vld [vmem:[%s1345 + $0x50] sm:$0xff]
                  %1368 = vst [vmem:[%s1346 + $0xf0] sm:$0xff] %v1367
                  %v1369 = vld [vmem:[%s1345 + $0x58] sm:$0xff]
                  %1370 = vst [vmem:[%s1346 + $0x108] sm:$0xff] %v1369
                  %v1371 = vld [vmem:[%s1345 + $0x60] sm:$0xff]
                  %1372 = vst [vmem:[%s1346 + $0x120] sm:$0xff] %v1371
                  %v1373 = vld [vmem:[%s1345 + $0x68] sm:$0xff]
                  %1374 = vst [vmem:[%s1346 + $0x138] sm:$0xff] %v1373
                  %v1375 = vld [vmem:[%s1345 + $0x70] sm:$0xff]
                  %1376 = vst [vmem:[%s1346 + $0x150] sm:$0xff] %v1375
                  %v1377 = vld [vmem:[%s1345 + $0x78] sm:$0xff]
                  %1378 = vst [vmem:[%s1346 + $0x168] sm:$0xff] %v1377
                $region110: #{mindvault_forward.9} parent=104 // loop_footer
                  %s1344 = sadd.s32 1, %s1340
                $region111: #{mindvault_forward.9} parent=104 // loop_footer_branch
                  %1339 = sbr.rel target = $region107
                $region112: #{mindvault_forward.9} parent=104 // loop_exit
                  _
              $region105: #{mindvault_forward.9} parent=89 // pred_fallthru
                _
              // Predicated region
              $region113: #{mindvault_forward.9} parent=89 // pred_check
                _
              $region114: #{mindvault_forward.9} parent=89 // pred_check_branch
                %1380 = sbr.rel target = $region116
              $region115: #{mindvault_forward.9} parent=89 // pred_region
                _
              $region116: #{mindvault_forward.9} parent=89 // pred_fallthru
                _
            $region90: #{mindvault_forward.9} parent=85 // pred_fallthru
              _
            // Predicated region
            $region91: #{mindvault_forward.9} parent=85 // pred_check
              _
            $region92: #{mindvault_forward.9} parent=85 // pred_check_branch
              %1295 = sbr.rel target = $region94
            $region93: #{mindvault_forward.9} parent=85 // pred_region
              loop: start=0, step=1, limit=1
              $region95: #{mindvault_forward.9} parent=93 // loop_pre_header
                _
              $region96: #{mindvault_forward.9} parent=93 // loop_header
                %s1298 = sphi 0, %s1302
                %p1299 = scmp.ge.s32.totalorder %s1298, 1
                %s1303 = sphi %s1280, %s1280
                %s1304 = sphi %s1289, %s1289
              $region97: #{mindvault_forward.9} parent=93 // loop_header_branch
                %1301 = sbr.rel (%p1299) target = $region101
              $region98: #{mindvault_forward.9} parent=93 // loop_body
                %v1305 = vld [vmem:[%s1303] sm:$0xff]
                %1306 = vst [vmem:[%s1304] sm:$0xff] %v1305
                %v1307 = vld [vmem:[%s1303 + $0x8] sm:$0xff]
                %1308 = vst [vmem:[%s1304 + $0x18] sm:$0xff] %v1307
                %v1309 = vld [vmem:[%s1303 + $0x10] sm:$0xff]
                %1310 = vst [vmem:[%s1304 + $0x30] sm:$0xff] %v1309
                %v1311 = vld [vmem:[%s1303 + $0x18] sm:$0xff]
                %1312 = vst [vmem:[%s1304 + $0x48] sm:$0xff] %v1311
                %v1313 = vld [vmem:[%s1303 + $0x20] sm:$0xff]
                %1314 = vst [vmem:[%s1304 + $0x60] sm:$0xff] %v1313
                %v1315 = vld [vmem:[%s1303 + $0x28] sm:$0xff]
                %1316 = vst [vmem:[%s1304 + $0x78] sm:$0xff] %v1315
                %v1317 = vld [vmem:[%s1303 + $0x30] sm:$0xff]
                %1318 = vst [vmem:[%s1304 + $0x90] sm:$0xff] %v1317
                %v1319 = vld [vmem:[%s1303 + $0x38] sm:$0xff]
                %1320 = vst [vmem:[%s1304 + $0xa8] sm:$0xff] %v1319
                %v1321 = vld [vmem:[%s1303 + $0x40] sm:$0xff]
                %1322 = vst [vmem:[%s1304 + $0xc0] sm:$0xff] %v1321
                %v1323 = vld [vmem:[%s1303 + $0x48] sm:$0xff]
                %1324 = vst [vmem:[%s1304 + $0xd8] sm:$0xff] %v1323
                %v1325 = vld [vmem:[%s1303 + $0x50] sm:$0xff]
                %1326 = vst [vmem:[%s1304 + $0xf0] sm:$0xff] %v1325
                %v1327 = vld [vmem:[%s1303 + $0x58] sm:$0xff]
                %1328 = vst [vmem:[%s1304 + $0x108] sm:$0xff] %v1327
                %v1329 = vld [vmem:[%s1303 + $0x60] sm:$0xff]
                %1330 = vst [vmem:[%s1304 + $0x120] sm:$0xff] %v1329
                %v1331 = vld [vmem:[%s1303 + $0x68] sm:$0xff]
                %1332 = vst [vmem:[%s1304 + $0x138] sm:$0xff] %v1331
                %v1333 = vld [vmem:[%s1303 + $0x70] sm:$0xff]
                %1334 = vst [vmem:[%s1304 + $0x150] sm:$0xff] %v1333
                %v1335 = vld [vmem:[%s1303 + $0x78] sm:$0xff]
                %1336 = vst [vmem:[%s1304 + $0x168] sm:$0xff] %v1335
              $region99: #{mindvault_forward.9} parent=93 // loop_footer
                %s1302 = sadd.s32 1, %s1298
              $region100: #{mindvault_forward.9} parent=93 // loop_footer_branch
                %1297 = sbr.rel target = $region96
              $region101: #{mindvault_forward.9} parent=93 // loop_exit
                _
            $region94: #{mindvault_forward.9} parent=85 // pred_fallthru
              _
          $region86: #{mindvault_forward.9} parent=81 // pred_fallthru
            _
          %1381 = vnop
        $region82: #{mindvault_forward.9} parent=73 // pred_fallthru
          _
      $region74: #{mindvault_forward.9} parent=5 // pred_fallthru
        _
      %p1382 = scmp.le.s32.totalorder 2, %s11
      // Predicated region
      $region117: #{mindvault_forward.9} parent=5 // pred_check
        %p1383 = pneg %p1382
      $region118: #{mindvault_forward.9} parent=5 // pred_check_branch
        %1385 = sbr.rel (%p1383) target = $region120
      $region119: #{mindvault_forward.9} parent=5 // pred_region
        %s1386 = ssub.s32 %s11, 2
        // Predicated region
        $region121: #{mindvault_forward.9} parent=119 // pred_check
          %p1387 = pneg %p174
        $region122: #{mindvault_forward.9} parent=119 // pred_check_branch
          %1389 = sbr.rel (%p1387) target = $region124
        $region123: #{mindvault_forward.9} parent=119 // pred_region
          %s1390 = sand.u32 %s159, 1
          %s1391 = sand.u32 %s159, 1
          %s1392 = smul.addr %s1391, 128
          %s1393 = scalar_lea.vmem [#allocation3], %s1392
        $region124: #{mindvault_forward.9} parent=119 // pred_fallthru
          _
      $region120: #{mindvault_forward.9} parent=5 // pred_fallthru
        _
    $region6: #{mindvault_forward.9} parent=1 // loop_footer
      %s15 = sadd.s32 1, %s11
    $region7: #{mindvault_forward.9} parent=1 // loop_footer_branch
      %10 = sbr.rel target = $region3
    $region8: #{mindvault_forward.9} parent=1 // loop_exit
      _

// kernel: mindvault_forward.11
$region0: #{mindvault_forward.11}
  #allocation0 [shape = 'u32[]', space=smem, size = 0x4, offset = 0x4, fixed_abs, tag = 'smem constant byte address 0x4 - core index']
  #allocation1 [shape = 'u32[144,128]{1,0:T(1,128)}', space=vmem, size = 0x12000, scoped, tag = 'internal scratch']
  #allocation2 [shape = 'f32[128,256]{1,0:T(8,128)}', space=vmem, size = 0x20000, scoped, tag = 'scratch operand']
  %s0 = inlined_call_operand.vmem [shape: bf16[256,256], index: 0, kind: input, shape index: {}]
  %s1 = inlined_call_operand.vmem [shape: bf16[256,256], index: 1, kind: input, shape index: {}]
  %s2 = inlined_call_operand.vmem [shape: f32[1,256], index: 2, kind: input, shape index: {}]
  %s3 = inlined_call_operand.vmem [shape: bf16[256,256], index: 3, kind: input, shape index: {}]
  %s4 = inlined_call_operand.vmem [shape: bf16[256,256], index: 4, kind: output, shape index: {}]
  %s5 = sld [smem:[#allocation0]]
  $region57: #{mindvault_forward.11} parent=0
    _
  %s7 = ssub.s32 1, %s5
  %s8 = scalar_select 0, %s7, %s5
  loop: start=0, step=1, limit=4
  $region2: #{mindvault_forward.11} parent=0 // loop_pre_header
    _
  $region3: #{mindvault_forward.11} parent=0 // loop_header
    %s10 = sphi 0, %s14
    %p11 = scmp.ge.s32.totalorder %s10, 4
    %s17 = sphi 0, %s36
    %s18 = sphi 0, %s32
    %s19 = sphi 0, %s28
    %s20 = sphi 0, %s17
    %s21 = sphi 0, %s18
    %s22 = sphi 0, %s19
    %s23 = sphi 0, %s20
    %s24 = sphi 0, %s21
    %s25 = sphi 0, %s22
    %s41 = sphi 0, %s43
    %s44 = sphi 0, %s41
    %s45 = sphi 0, %s44
    %s61 = sphi 0, %s45
    %s69 = sphi 0, %s71
    %s72 = sphi 0, %s69
    %s73 = sphi 0, %s72
    %s89 = sphi 0, %s73
    %s95 = sphi 0, %s97
    %s98 = sphi 0, %s95
    %s99 = sphi 0, %s98
    %s115 = sphi 0, %s99
    %s123 = sphi 0, %s125
    %s126 = sphi 0, %s123
    %s127 = sphi 0, %s126
    %s143 = sphi 0, %s127
    %s151 = sphi 0, %s153
    %s154 = sphi 0, %s151
    %s155 = sphi 0, %s154
    %s171 = sphi 0, %s155
  $region4: #{mindvault_forward.11} parent=0 // loop_header_branch
    %13 = sbr.rel (%p11) target = $region8
  $region5: #{mindvault_forward.11} parent=0 // loop_body
    %s15 = ssub.s32 %s10, 1
    %s16 = ssub.s32 %s10, 2
    %s26 = sadd.s32 1, %s19
    %p27 = scmp.ge.s32.totalorder %s26, 1
    %s28 = scalar_select %p27, 0, %s26
    %s29 = sadd.s32 1, %s18
    %s30 = scalar_select %p27, %s29, %s18
    %p31 = scmp.ge.s32.totalorder %s30, 1
    %s32 = scalar_select %p31, 0, %s30
    %s33 = sadd.s32 1, %s17
    %s34 = scalar_select %p31, %s33, %s17
    %p35 = scmp.ge.s32.totalorder %s34, 2
    %s36 = scalar_select %p35, 0, %s34
    %s37 = ssub.s32 %s17, %s36
    %s38 = ssub.s32 %s19, %s28
    %s39 = sor.u32 %s37, %s38
    %p40 = scmp.eq.s32.totalorder %s39, 0
    %s42 = sadd.s32 %s41, 1
    %s43 = scalar_select %p40, %s41, %s42
    %p46 = pneg %p40
    %p47 = scmp.eq.s32.totalorder %s10, 1
    %p48 = por %p46, %p47
    %p49 = scmp.ne.s32.totalorder %s41, %s44
    %p50 = scmp.eq.s32.totalorder %s10, 0
    %p51 = por %p49, %p50
    %p52 = scmp.ne.s32.totalorder %s41, %s44
    %p53 = scmp.eq.s32.totalorder %s15, 1
    %p54 = por %p52, %p53
    %p55 = scmp.ne.s32.totalorder %s44, %s45
    %p56 = scmp.eq.s32.totalorder %s15, 0
    %p57 = por %p55, %p56
    %p58 = scmp.ne.s32.totalorder %s44, %s45
    %p59 = scmp.eq.s32.totalorder %s16, 1
    %p60 = por %p58, %p59
    %p62 = scmp.ne.s32.totalorder %s45, %s61
    %p63 = scmp.eq.s32.totalorder %s16, 0
    %p64 = por %p62, %p63
    %s65 = ssub.s32 %s19, %s28
    %s66 = ssub.s32 %s18, %s32
    %s67 = sor.u32 %s65, %s66
    %p68 = scmp.eq.s32.totalorder %s67, 0
    %s70 = sadd.s32 %s69, 1
    %s71 = scalar_select %p68, %s69, %s70
    %p74 = pneg %p68
    %p75 = scmp.eq.s32.totalorder %s10, 1
    %p76 = por %p74, %p75
    %p77 = scmp.ne.s32.totalorder %s69, %s72
    %p78 = scmp.eq.s32.totalorder %s10, 0
    %p79 = por %p77, %p78
    %p80 = scmp.ne.s32.totalorder %s69, %s72
    %p81 = scmp.eq.s32.totalorder %s15, 1
    %p82 = por %p80, %p81
    %p83 = scmp.ne.s32.totalorder %s72, %s73
    %p84 = scmp.eq.s32.totalorder %s15, 0
    %p85 = por %p83, %p84
    %p86 = scmp.ne.s32.totalorder %s72, %s73
    %p87 = scmp.eq.s32.totalorder %s16, 1
    %p88 = por %p86, %p87
    %p90 = scmp.ne.s32.totalorder %s73, %s89
    %p91 = scmp.eq.s32.totalorder %s16, 0
    %p92 = por %p90, %p91
    %s93 = ssub.s32 %s18, %s32
    %p94 = scmp.eq.s32.totalorder %s93, 0
    %s96 = sadd.s32 %s95, 1
    %s97 = scalar_select %p94, %s95, %s96
    %p100 = pneg %p94
    %p101 = scmp.eq.s32.totalorder %s10, 1
    %p102 = por %p100, %p101
    %p103 = scmp.ne.s32.totalorder %s95, %s98
    %p104 = scmp.eq.s32.totalorder %s10, 0
    %p105 = por %p103, %p104
    %p106 = scmp.ne.s32.totalorder %s95, %s98
    %p107 = scmp.eq.s32.totalorder %s15, 1
    %p108 = por %p106, %p107
    %p109 = scmp.ne.s32.totalorder %s98, %s99
    %p110 = scmp.eq.s32.totalorder %s15, 0
    %p111 = por %p109, %p110
    %p112 = scmp.ne.s32.totalorder %s98, %s99
    %p113 = scmp.eq.s32.totalorder %s16, 1
    %p114 = por %p112, %p113
    %p116 = scmp.ne.s32.totalorder %s99, %s115
    %p117 = scmp.eq.s32.totalorder %s16, 0
    %p118 = por %p116, %p117
    %s119 = ssub.s32 %s17, %s36
    %s120 = ssub.s32 %s18, %s32
    %s121 = sor.u32 %s119, %s120
    %p122 = scmp.eq.s32.totalorder %s121, 0
    %s124 = sadd.s32 %s123, 1
    %s125 = scalar_select %p122, %s123, %s124
    %p128 = pneg %p122
    %p129 = scmp.eq.s32.totalorder %s10, 1
    %p130 = por %p128, %p129
    %p131 = scmp.ne.s32.totalorder %s123, %s126
    %p132 = scmp.eq.s32.totalorder %s10, 0
    %p133 = por %p131, %p132
    %p134 = scmp.ne.s32.totalorder %s123, %s126
    %p135 = scmp.eq.s32.totalorder %s15, 1
    %p136 = por %p134, %p135
    %p137 = scmp.ne.s32.totalorder %s126, %s127
    %p138 = scmp.eq.s32.totalorder %s15, 0
    %p139 = por %p137, %p138
    %p140 = scmp.ne.s32.totalorder %s126, %s127
    %p141 = scmp.eq.s32.totalorder %s16, 1
    %p142 = por %p140, %p141
    %p144 = scmp.ne.s32.totalorder %s127, %s143
    %p145 = scmp.eq.s32.totalorder %s16, 0
    %p146 = por %p144, %p145
    %s147 = ssub.s32 %s17, %s36
    %s148 = ssub.s32 %s18, %s32
    %s149 = sor.u32 %s147, %s148
    %p150 = scmp.eq.s32.totalorder %s149, 0
    %s152 = sadd.s32 %s151, 1
    %s153 = scalar_select %p150, %s151, %s152
    %p156 = pneg %p150
    %p157 = scmp.eq.s32.totalorder %s10, 1
    %p158 = por %p156, %p157
    %p159 = scmp.ne.s32.totalorder %s151, %s154
    %p160 = scmp.eq.s32.totalorder %s10, 0
    %p161 = por %p159, %p160
    %p162 = scmp.ne.s32.totalorder %s151, %s154
    %p163 = scmp.eq.s32.totalorder %s15, 1
    %p164 = por %p162, %p163
    %p165 = scmp.ne.s32.totalorder %s154, %s155
    %p166 = scmp.eq.s32.totalorder %s15, 0
    %p167 = por %p165, %p166
    %p168 = scmp.ne.s32.totalorder %s154, %s155
    %p169 = scmp.eq.s32.totalorder %s16, 1
    %p170 = por %p168, %p169
    %p172 = scmp.ne.s32.totalorder %s155, %s171
    %p173 = scmp.eq.s32.totalorder %s16, 0
    %p174 = por %p172, %p173
    %p175 = scmp.le.s32.totalorder 1, %s10
    %p176 = scmp.lt.s32.totalorder %s10, 3
    %p177 = pnand %p175, %p176
    %p178 = pneg %p177
    // Predicated region
    $region9: #{mindvault_forward.11} parent=5 // pred_check
      _
    $region10: #{mindvault_forward.11} parent=5 // pred_check_branch
      %180 = sbr.rel (%p177) target = $region12
    $region11: #{mindvault_forward.11} parent=5 // pred_region
      %s181 = ssub.s32 %s10, 1
      // Predicated region
      $region13: #{mindvault_forward.11} parent=11 // pred_check
        %p182 = pneg %p85
      $region14: #{mindvault_forward.11} parent=11 // pred_check_branch
        %184 = sbr.rel (%p182) target = $region16
      $region15: #{mindvault_forward.11} parent=11 // pred_region
        %s185 = smul.u32 32, %s22
        %s186 = smul.u32 2, %s21
        %p187 = scmp.lt.s32.totalorder %s185, 31
        %s188 = scalar_select %p187, %s185, 31
        %p189 = scmp.lt.s32.totalorder %s186, 1
        %s190 = scalar_select %p189, %s186, 1
        %s191 = smul.addr %s188, 2
        %s192 = sadd.s32 %s190, %s191
        %s193 = smul.addr %s192, 4
        %s194 = scalar_lea.vmem %s1, %s193
        %s195 = smul.u32 32, %s22
        %s196 = smul.u32 2, %s21
      $region16: #{mindvault_forward.11} parent=11 // pred_fallthru
        _
      // Predicated region
      $region17: #{mindvault_forward.11} parent=11 // pred_check
        %p197 = pneg %p111
      $region18: #{mindvault_forward.11} parent=11 // pred_check_branch
        %199 = sbr.rel (%p197) target = $region20
      $region19: #{mindvault_forward.11} parent=11 // pred_region
        %s200 = smul.u32 2, %s21
        %p201 = scmp.lt.s32.totalorder %s200, 1
        %s202 = scalar_select %p201, %s200, 1
        %s203 = scalar_lea.vmem %s2, %s202
        %s204 = smul.u32 2, %s21
      $region20: #{mindvault_forward.11} parent=11 // pred_fallthru
        _
    $region12: #{mindvault_forward.11} parent=5 // pred_fallthru
      _
    %p205 = scmp.lt.s32.totalorder %s10, 2
    // Predicated region
    $region21: #{mindvault_forward.11} parent=5 // pred_check
      %p206 = pneg %p205
    $region22: #{mindvault_forward.11} parent=5 // pred_check_branch
      %208 = sbr.rel (%p206) target = $region24
    $region23: #{mindvault_forward.11} parent=5 // pred_region
      // Predicated region
      $region25: #{mindvault_forward.11} parent=23 // pred_check
        %p209 = pneg %p51
      $region26: #{mindvault_forward.11} parent=23 // pred_check_branch
        %211 = sbr.rel (%p209) target = $region28
      $region27: #{mindvault_forward.11} parent=23 // pred_region
        %s212 = smul.u32 16, %s17
        %s213 = smul.u32 2, %s19
        %p214 = scmp.lt.s32.totalorder %s212, 31
        %s215 = scalar_select %p214, %s212, 31
        %p216 = scmp.lt.s32.totalorder %s213, 1
        %s217 = scalar_select %p216, %s213, 1
        %s218 = smul.addr %s215, 2
        %s219 = sadd.s32 %s217, %s218
        %s220 = smul.addr %s219, 4
        %s221 = scalar_lea.vmem %s0, %s220
        %s222 = smul.u32 16, %s17
        %s223 = smul.u32 2, %s19
      $region28: #{mindvault_forward.11} parent=23 // pred_fallthru
        _
      // Predicated region
      $region29: #{mindvault_forward.11} parent=23 // pred_check
        %p224 = pneg %p133
      $region30: #{mindvault_forward.11} parent=23 // pred_check_branch
        %226 = sbr.rel (%p224) target = $region32
      $region31: #{mindvault_forward.11} parent=23 // pred_region
        %s227 = smul.u32 16, %s17
        %s228 = smul.u32 2, %s18
        %p229 = scmp.lt.s32.totalorder %s227, 31
        %s230 = scalar_select %p229, %s227, 31
        %p231 = scmp.lt.s32.totalorder %s228, 1
        %s232 = scalar_select %p231, %s228, 1
        %s233 = smul.addr %s230, 2
        %s234 = sadd.s32 %s232, %s233
        %s235 = smul.addr %s234, 4
        %s236 = scalar_lea.vmem %s3, %s235
        %s237 = smul.u32 16, %s17
        %s238 = smul.u32 2, %s18
      $region32: #{mindvault_forward.11} parent=23 // pred_fallthru
        _
    $region24: #{mindvault_forward.11} parent=5 // pred_fallthru
      _
    %p239 = scmp.le.s32.totalorder 1, %s10
    %p240 = scmp.lt.s32.totalorder %s10, 3
    %p241 = pnand %p239, %p240
    %p242 = pneg %p241
    // Predicated region
    $region33: #{mindvault_forward.11} parent=5 // pred_check
      _
    $region34: #{mindvault_forward.11} parent=5 // pred_check_branch
      %244 = sbr.rel (%p241) target = $region36
    $region35: #{mindvault_forward.11} parent=5 // pred_region
      %s245 = ssub.s32 %s10, 1
      %s246 = smul.u32 16, %s20
      %s247 = smul.u32 2, %s22
      %p248 = scmp.lt.s32.totalorder %s246, 31
      %s249 = scalar_select %p248, %s246, 31
      %p250 = scmp.lt.s32.totalorder %s247, 1
      %s251 = scalar_select %p250, %s247, 1
      %s252 = smul.addr %s249, 2
      %s253 = sadd.s32 %s251, %s252
      %s254 = smul.addr %s253, 4
      %s255 = scalar_lea.vmem %s0, %s254
      %p256 = pneg %p57
      %p257 = pneg %p54
      %s258 = smul.u32 32, %s22
      %s259 = smul.u32 2, %s21
      %p260 = scmp.lt.s32.totalorder %s258, 31
      %s261 = scalar_select %p260, %s258, 31
      %p262 = scmp.lt.s32.totalorder %s259, 1
      %s263 = scalar_select %p262, %s259, 1
      %s264 = smul.addr %s261, 2
      %s265 = sadd.s32 %s263, %s264
      %s266 = smul.addr %s265, 4
      %s267 = scalar_lea.vmem %s1, %s266
      %p268 = pneg %p85
      %p269 = pneg %p82
      %s270 = smul.u32 2, %s21
      %p271 = scmp.lt.s32.totalorder %s270, 1
      %s272 = scalar_select %p271, %s270, 1
      %s273 = scalar_lea.vmem %s2, %s272
      %p274 = pneg %p111
      %p275 = pneg %p108
      %s276 = smul.u32 16, %s20
      %s277 = smul.u32 2, %s21
      %p278 = scmp.lt.s32.totalorder %s276, 31
      %s279 = scalar_select %p278, %s276, 31
      %p280 = scmp.lt.s32.totalorder %s277, 1
      %s281 = scalar_select %p280, %s277, 1
      %s282 = smul.addr %s279, 2
      %s283 = sadd.s32 %s281, %s282
      %s284 = smul.addr %s283, 4
      %s285 = scalar_lea.vmem %s3, %s284
      %p286 = pneg %p139
      %p287 = pneg %p136
      %p288 = pneg %p167
      %p289 = pneg %p164
      %s290 = smul.u32 16, %s20
      %s291 = smul.u32 2, %s21
      %p292 = scmp.lt.s32.totalorder %s290, 31
      %s293 = scalar_select %p292, %s290, 31
      %p294 = scmp.lt.s32.totalorder %s291, 1
      %s295 = scalar_select %p294, %s291, 1
      %s296 = smul.addr %s293, 2
      %s297 = sadd.s32 %s295, %s296
      %s298 = smul.addr %s297, 4
      %s299 = scalar_lea.vmem %s4, %s298
      %s300 = smul.u32 16, %s20
      %s301 = smul.u32 2, %s22
      %p302 = scmp.lt.s32.totalorder %s300, 31
      %s303 = scalar_select %p302, %s300, 31
      %p304 = scmp.lt.s32.totalorder %s301, 1
      %s305 = scalar_select %p304, %s301, 1
      %s306 = smul.addr %s303, 2
      %s307 = sadd.s32 %s305, %s306
      %s308 = smul.addr %s307, 4
      %s309 = scalar_lea.vmem %s0, %s308
      %s310 = smul.u32 16, %s20
      %s311 = smul.u32 2, %s22
      %s312 = smul.u32 32, %s22
      %s313 = smul.u32 2, %s21
      %p314 = scmp.lt.s32.totalorder %s312, 31
      %s315 = scalar_select %p314, %s312, 31
      %p316 = scmp.lt.s32.totalorder %s313, 1
      %s317 = scalar_select %p316, %s313, 1
      %s318 = smul.addr %s315, 2
      %s319 = sadd.s32 %s317, %s318
      %s320 = smul.addr %s319, 4
      %s321 = scalar_lea.vmem %s1, %s320
      %s322 = smul.u32 32, %s22
      %s323 = smul.u32 2, %s21
      %s324 = smul.u32 2, %s21
      %p325 = scmp.lt.s32.totalorder %s324, 1
      %s326 = scalar_select %p325, %s324, 1
      %s327 = scalar_lea.vmem %s2, %s326
      %s328 = smul.u32 2, %s21
      %s329 = smul.u32 16, %s20
      %s330 = smul.u32 2, %s21
      %p331 = scmp.lt.s32.totalorder %s329, 31
      %s332 = scalar_select %p331, %s329, 31
      %p333 = scmp.lt.s32.totalorder %s330, 1
      %s334 = scalar_select %p333, %s330, 1
      %s335 = smul.addr %s332, 2
      %s336 = sadd.s32 %s334, %s335
      %s337 = smul.addr %s336, 4
      %s338 = scalar_lea.vmem %s3, %s337
      %s339 = smul.u32 16, %s20
      %s340 = smul.u32 2, %s21
      %s341 = smul.u32 16, %s20
      %s342 = smul.u32 2, %s21
      %p343 = scmp.lt.s32.totalorder %s341, 31
      %s344 = scalar_select %p343, %s341, 31
      %p345 = scmp.lt.s32.totalorder %s342, 1
      %s346 = scalar_select %p345, %s342, 1
      %s347 = smul.addr %s344, 2
      %s348 = sadd.s32 %s346, %s347
      %s349 = smul.addr %s348, 4
      %s350 = scalar_lea.vmem %s4, %s349
      %s351 = smul.u32 16, %s20
      %s352 = smul.u32 2, %s21
      %p353 = scmp.eq.s32.totalorder %s22, 0
      // Predicated region
      $region37: #{mindvault_forward.11} parent=35 // pred_check
        %p354 = pneg %p353
      $region38: #{mindvault_forward.11} parent=35 // pred_check_branch
        %356 = sbr.rel (%p354) target = $region40
      $region39: #{mindvault_forward.11} parent=35 // pred_region
        %357 = vst [vmem:[#allocation2] sm:$0xff] 0.0
        %358 = vst [vmem:[#allocation2 + $0x8] sm:$0xff] 0.0
        %359 = vst [vmem:[#allocation2 + $0x10] sm:$0xff] 0.0
        %360 = vst [vmem:[#allocation2 + $0x18] sm:$0xff] 0.0
        %361 = vst [vmem:[#allocation2 + $0x20] sm:$0xff] 0.0
        %362 = vst [vmem:[#allocation2 + $0x28] sm:$0xff] 0.0
        %363 = vst [vmem:[#allocation2 + $0x30] sm:$0xff] 0.0
        %364 = vst [vmem:[#allocation2 + $0x38] sm:$0xff] 0.0
        %365 = vst [vmem:[#allocation2 + $0x40] sm:$0xff] 0.0
        %366 = vst [vmem:[#allocation2 + $0x48] sm:$0xff] 0.0
        %367 = vst [vmem:[#allocation2 + $0x50] sm:$0xff] 0.0
        %368 = vst [vmem:[#allocation2 + $0x58] sm:$0xff] 0.0
        %369 = vst [vmem:[#allocation2 + $0x60] sm:$0xff] 0.0
        %370 = vst [vmem:[#allocation2 + $0x68] sm:$0xff] 0.0
        %371 = vst [vmem:[#allocation2 + $0x70] sm:$0xff] 0.0
        %372 = vst [vmem:[#allocation2 + $0x78] sm:$0xff] 0.0
        %373 = vst [vmem:[#allocation2 + $0x80] sm:$0xff] 0.0
        %374 = vst [vmem:[#allocation2 + $0x88] sm:$0xff] 0.0
        %375 = vst [vmem:[#allocation2 + $0x90] sm:$0xff] 0.0
        %376 = vst [vmem:[#allocation2 + $0x98] sm:$0xff] 0.0
        %377 = vst [vmem:[#allocation2 + $0xa0] sm:$0xff] 0.0
        %378 = vst [vmem:[#allocation2 + $0xa8] sm:$0xff] 0.0
        %379 = vst [vmem:[#allocation2 + $0xb0] sm:$0xff] 0.0
        %380 = vst [vmem:[#allocation2 + $0xb8] sm:$0xff] 0.0
        %381 = vst [vmem:[#allocation2 + $0xc0] sm:$0xff] 0.0
        %382 = vst [vmem:[#allocation2 + $0xc8] sm:$0xff] 0.0
        %383 = vst [vmem:[#allocation2 + $0xd0] sm:$0xff] 0.0
        %384 = vst [vmem:[#allocation2 + $0xd8] sm:$0xff] 0.0
        %385 = vst [vmem:[#allocation2 + $0xe0] sm:$0xff] 0.0
        %386 = vst [vmem:[#allocation2 + $0xe8] sm:$0xff] 0.0
        %387 = vst [vmem:[#allocation2 + $0xf0] sm:$0xff] 0.0
        %388 = vst [vmem:[#allocation2 + $0xf8] sm:$0xff] 0.0
      $region40: #{mindvault_forward.11} parent=35 // pred_fallthru
        _
      %v389 = vld [vmem:[#allocation2] sm:$0xff]
      %v390 = vld [vmem:[#allocation2 + $0x8] sm:$0xff]
      %v391 = vld [vmem:[#allocation2 + $0x10] sm:$0xff]
      %v392 = vld [vmem:[#allocation2 + $0x18] sm:$0xff]
      %v393 = vld [vmem:[#allocation2 + $0x20] sm:$0xff]
      %v394 = vld [vmem:[#allocation2 + $0x28] sm:$0xff]
      %v395 = vld [vmem:[#allocation2 + $0x30] sm:$0xff]
      %v396 = vld [vmem:[#allocation2 + $0x38] sm:$0xff]
      %v397 = vld [vmem:[#allocation2 + $0x40] sm:$0xff]
      %v398 = vld [vmem:[#allocation2 + $0x48] sm:$0xff]
      %v399 = vld [vmem:[#allocation2 + $0x50] sm:$0xff]
      %v400 = vld [vmem:[#allocation2 + $0x58] sm:$0xff]
      %v401 = vld [vmem:[#allocation2 + $0x60] sm:$0xff]
      %v402 = vld [vmem:[#allocation2 + $0x68] sm:$0xff]
      %v403 = vld [vmem:[#allocation2 + $0x70] sm:$0xff]
      %v404 = vld [vmem:[#allocation2 + $0x78] sm:$0xff]
      %v405 = vld [vmem:[#allocation2 + $0x80] sm:$0xff]
      %v406 = vld [vmem:[#allocation2 + $0x88] sm:$0xff]
      %v407 = vld [vmem:[#allocation2 + $0x90] sm:$0xff]
      %v408 = vld [vmem:[#allocation2 + $0x98] sm:$0xff]
      %v409 = vld [vmem:[#allocation2 + $0xa0] sm:$0xff]
      %v410 = vld [vmem:[#allocation2 + $0xa8] sm:$0xff]
      %v411 = vld [vmem:[#allocation2 + $0xb0] sm:$0xff]
      %v412 = vld [vmem:[#allocation2 + $0xb8] sm:$0xff]
      %v413 = vld [vmem:[#allocation2 + $0xc0] sm:$0xff]
      %v414 = vld [vmem:[#allocation2 + $0xc8] sm:$0xff]
      %v415 = vld [vmem:[#allocation2 + $0xd0] sm:$0xff]
      %v416 = vld [vmem:[#allocation2 + $0xd8] sm:$0xff]
      %v417 = vld [vmem:[#allocation2 + $0xe0] sm:$0xff]
      %v418 = vld [vmem:[#allocation2 + $0xe8] sm:$0xff]
      %v419 = vld [vmem:[#allocation2 + $0xf0] sm:$0xff]
      %v420 = vld [vmem:[#allocation2 + $0xf8] sm:$0xff]
      %v421 = vld [vmem:[%s309] sm:$0xff]
      %v422 = vld [vmem:[%s309 + $0x8] sm:$0xff]
      %v423 = vld [vmem:[%s309 + $0x10] sm:$0xff]
      %v424 = vld [vmem:[%s309 + $0x18] sm:$0xff]
      %v425 = vld [vmem:[%s309 + $0x20] sm:$0xff]
      %v426 = vld [vmem:[%s309 + $0x28] sm:$0xff]
      %v427 = vld [vmem:[%s309 + $0x30] sm:$0xff]
      %v428 = vld [vmem:[%s309 + $0x38] sm:$0xff]
      %v429 = vld [vmem:[%s309 + $0x40] sm:$0xff]
      %v430 = vld [vmem:[%s309 + $0x48] sm:$0xff]
      %v431 = vld [vmem:[%s309 + $0x50] sm:$0xff]
      %v432 = vld [vmem:[%s309 + $0x58] sm:$0xff]
      %v433 = vld [vmem:[%s309 + $0x60] sm:$0xff]
      %v434 = vld [vmem:[%s309 + $0x68] sm:$0xff]
      %v435 = vld [vmem:[%s309 + $0x70] sm:$0xff]
      %v436 = vld [vmem:[%s309 + $0x78] sm:$0xff]
      %v437 = vld [vmem:[%s321] sm:$0xff]
      %v438 = vld [vmem:[%s321 + $0x8] sm:$0xff]
      %v439 = vld [vmem:[%s321 + $0x10] sm:$0xff]
      %v440 = vld [vmem:[%s321 + $0x18] sm:$0xff]
      %v441 = vld [vmem:[%s321 + $0x20] sm:$0xff]
      %v442 = vld [vmem:[%s321 + $0x28] sm:$0xff]
      %v443 = vld [vmem:[%s321 + $0x30] sm:$0xff]
      %v444 = vld [vmem:[%s321 + $0x38] sm:$0xff]
      %v445 = vld [vmem:[%s321 + $0x40] sm:$0xff]
      %v446 = vld [vmem:[%s321 + $0x48] sm:$0xff]
      %v447 = vld [vmem:[%s321 + $0x50] sm:$0xff]
      %v448 = vld [vmem:[%s321 + $0x58] sm:$0xff]
      %v449 = vld [vmem:[%s321 + $0x60] sm:$0xff]
      %v450 = vld [vmem:[%s321 + $0x68] sm:$0xff]
      %v451 = vld [vmem:[%s321 + $0x70] sm:$0xff]
      %v452 = vld [vmem:[%s321 + $0x78] sm:$0xff]
      %v453 = vld [vmem:[%s321 + $0x80] sm:$0xff]
      %v454 = vld [vmem:[%s321 + $0x88] sm:$0xff]
      %v455 = vld [vmem:[%s321 + $0x90] sm:$0xff]
      %v456 = vld [vmem:[%s321 + $0x98] sm:$0xff]
      %v457 = vld [vmem:[%s321 + $0xa0] sm:$0xff]
      %v458 = vld [vmem:[%s321 + $0xa8] sm:$0xff]
      %v459 = vld [vmem:[%s321 + $0xb0] sm:$0xff]
      %v460 = vld [vmem:[%s321 + $0xb8] sm:$0xff]
      %v461 = vld [vmem:[%s321 + $0xc0] sm:$0xff]
      %v462 = vld [vmem:[%s321 + $0xc8] sm:$0xff]
      %v463 = vld [vmem:[%s321 + $0xd0] sm:$0xff]
      %v464 = vld [vmem:[%s321 + $0xd8] sm:$0xff]
      %v465 = vld [vmem:[%s321 + $0xe0] sm:$0xff]
      %v466 = vld [vmem:[%s321 + $0xe8] sm:$0xff]
      %v467 = vld [vmem:[%s321 + $0xf0] sm:$0xff]
      %v468 = vld [vmem:[%s321 + $0xf8] sm:$0xff]
      %v485 = vunpack.c.l.b16 %v421
      %v486 = vunpack.c.h.b16 %v421
      %v487 = vunpack.c.l.b16 %v422
      %v488 = vunpack.c.h.b16 %v422
      %v489 = vunpack.c.l.b16 %v423
      %v490 = vunpack.c.h.b16 %v423
      %v491 = vunpack.c.l.b16 %v424
      %v492 = vunpack.c.h.b16 %v424
      %v493 = vunpack.c.l.b16 %v425
      %v494 = vunpack.c.h.b16 %v425
      %v495 = vunpack.c.l.b16 %v426
      %v496 = vunpack.c.h.b16 %v426
      %v497 = vunpack.c.l.b16 %v427
      %v498 = vunpack.c.h.b16 %v427
      %v499 = vunpack.c.l.b16 %v428
      %v500 = vunpack.c.h.b16 %v428
      %v501 = vunpack.c.l.b16 %v429
      %v502 = vunpack.c.h.b16 %v429
      %v503 = vunpack.c.l.b16 %v430
      %v504 = vunpack.c.h.b16 %v430
      %v505 = vunpack.c.l.b16 %v431
      %v506 = vunpack.c.h.b16 %v431
      %v507 = vunpack.c.l.b16 %v432
      %v508 = vunpack.c.h.b16 %v432
      %v509 = vunpack.c.l.b16 %v433
      %v510 = vunpack.c.h.b16 %v433
      %v511 = vunpack.c.l.b16 %v434
      %v512 = vunpack.c.h.b16 %v434
      %v513 = vunpack.c.l.b16 %v435
      %v514 = vunpack.c.h.b16 %v435
      %v515 = vunpack.c.l.b16 %v436
      %v516 = vunpack.c.h.b16 %v436
      %v517 = vpack.c.b16 %v487, %v485
      %v518 = vpack.c.b16 %v488, %v486
      %v519 = vpack.c.b16 %v491, %v489
      %v520 = vpack.c.b16 %v492, %v490
      %v521 = vpack.c.b16 %v495, %v493
      %v522 = vpack.c.b16 %v496, %v494
      %v523 = vpack.c.b16 %v499, %v497
      %v524 = vpack.c.b16 %v500, %v498
      %v525 = vpack.c.b16 %v503, %v501
      %v526 = vpack.c.b16 %v504, %v502
      %v527 = vpack.c.b16 %v507, %v505
      %v528 = vpack.c.b16 %v508, %v506
      %v529 = vpack.c.b16 %v511, %v509
      %v530 = vpack.c.b16 %v512, %v510
      %v531 = vpack.c.b16 %v515, %v513
      %v532 = vpack.c.b16 %v516, %v514
      %v581 = vunpack.c.l.b16 %v437
      %v582 = vunpack.c.h.b16 %v437
      %v583 = vunpack.c.l.b16 %v438
      %v584 = vunpack.c.h.b16 %v438
      %v585 = vunpack.c.l.b16 %v439
      %v586 = vunpack.c.h.b16 %v439
      %v587 = vunpack.c.l.b16 %v440
      %v588 = vunpack.c.h.b16 %v440
      %v589 = vunpack.c.l.b16 %v441
      %v590 = vunpack.c.h.b16 %v441
      %v591 = vunpack.c.l.b16 %v442
      %v592 = vunpack.c.h.b16 %v442
      %v593 = vunpack.c.l.b16 %v443
      %v594 = vunpack.c.h.b16 %v443
      %v595 = vunpack.c.l.b16 %v444
      %v596 = vunpack.c.h.b16 %v444
      %v597 = vunpack.c.l.b16 %v445
      %v598 = vunpack.c.h.b16 %v445
      %v599 = vunpack.c.l.b16 %v446
      %v600 = vunpack.c.h.b16 %v446
      %v601 = vunpack.c.l.b16 %v447
      %v602 = vunpack.c.h.b16 %v447
      %v603 = vunpack.c.l.b16 %v448
      %v604 = vunpack.c.h.b16 %v448
      %v605 = vunpack.c.l.b16 %v449
      %v606 = vunpack.c.h.b16 %v449
      %v607 = vunpack.c.l.b16 %v450
      %v608 = vunpack.c.h.b16 %v450
      %v609 = vunpack.c.l.b16 %v451
      %v610 = vunpack.c.h.b16 %v451
      %v611 = vunpack.c.l.b16 %v452
      %v612 = vunpack.c.h.b16 %v452
      %v613 = vunpack.c.l.b16 %v453
      %v614 = vunpack.c.h.b16 %v453
      %v615 = vunpack.c.l.b16 %v454
      %v616 = vunpack.c.h.b16 %v454
      %v617 = vunpack.c.l.b16 %v455
      %v618 = vunpack.c.h.b16 %v455
      %v619 = vunpack.c.l.b16 %v456
      %v620 = vunpack.c.h.b16 %v456
      %v621 = vunpack.c.l.b16 %v457
      %v622 = vunpack.c.h.b16 %v457
      %v623 = vunpack.c.l.b16 %v458
      %v624 = vunpack.c.h.b16 %v458
      %v625 = vunpack.c.l.b16 %v459
      %v626 = vunpack.c.h.b16 %v459
      %v627 = vunpack.c.l.b16 %v460
      %v628 = vunpack.c.h.b16 %v460
      %v629 = vunpack.c.l.b16 %v461
      %v630 = vunpack.c.h.b16 %v461
      %v631 = vunpack.c.l.b16 %v462
      %v632 = vunpack.c.h.b16 %v462
      %v633 = vunpack.c.l.b16 %v463
      %v634 = vunpack.c.h.b16 %v463
      %v635 = vunpack.c.l.b16 %v464
      %v636 = vunpack.c.h.b16 %v464
      %v637 = vunpack.c.l.b16 %v465
      %v638 = vunpack.c.h.b16 %v465
      %v639 = vunpack.c.l.b16 %v466
      %v640 = vunpack.c.h.b16 %v466
      %v641 = vunpack.c.l.b16 %v467
      %v642 = vunpack.c.h.b16 %v467
      %v643 = vunpack.c.l.b16 %v468
      %v644 = vunpack.c.h.b16 %v468
      %v645 = vpack.c.b16 %v583, %v581
      %v646 = vpack.c.b16 %v584, %v582
      %v647 = vpack.c.b16 %v587, %v585
      %v648 = vpack.c.b16 %v588, %v586
      %v649 = vpack.c.b16 %v591, %v589
      %v650 = vpack.c.b16 %v592, %v590
      %v651 = vpack.c.b16 %v595, %v593
      %v652 = vpack.c.b16 %v596, %v594
      %v653 = vpack.c.b16 %v599, %v597
      %v654 = vpack.c.b16 %v600, %v598
      %v655 = vpack.c.b16 %v603, %v601
      %v656 = vpack.c.b16 %v604, %v602
      %v657 = vpack.c.b16 %v607, %v605
      %v658 = vpack.c.b16 %v608, %v606
      %v659 = vpack.c.b16 %v611, %v609
      %v660 = vpack.c.b16 %v612, %v610
      %v661 = vpack.c.b16 %v615, %v613
      %v662 = vpack.c.b16 %v616, %v614
      %v663 = vpack.c.b16 %v619, %v617
      %v664 = vpack.c.b16 %v620, %v618
      %v665 = vpack.c.b16 %v623, %v621
      %v666 = vpack.c.b16 %v624, %v622
      %v667 = vpack.c.b16 %v627, %v625
      %v668 = vpack.c.b16 %v628, %v626
      %v669 = vpack.c.b16 %v631, %v629
      %v670 = vpack.c.b16 %v632, %v630
      %v671 = vpack.c.b16 %v635, %v633
      %v672 = vpack.c.b16 %v636, %v634
      %v673 = vpack.c.b16 %v639, %v637
      %v674 = vpack.c.b16 %v640, %v638
      %v675 = vpack.c.b16 %v643, %v641
      %v676 = vpack.c.b16 %v644, %v642
      %709 = vmatprep.subr.bf16.mxu0 %v646
      %710 = vmatpush1.bf16.msra.mxu0 %v645
      %711 = vmatprep.subr.bf16.mxu0 %v648
      %712 = vmatpush1.bf16.msra.mxu0 %v647
      %713 = vmatprep.subr.bf16.mxu0 %v650
      %714 = vmatpush1.bf16.msra.mxu0 %v649
      %715 = vmatprep.subr.bf16.mxu0 %v652
      %716 = vmatpush1.bf16.msra.mxu0 %v651
      %717 = vmatprep.subr.bf16.mxu0 %v654
      %718 = vmatpush1.bf16.msra.mxu0 %v653
      %719 = vmatprep.subr.bf16.mxu0 %v656
      %720 = vmatpush1.bf16.msra.mxu0 %v655
      %721 = vmatprep.subr.bf16.mxu0 %v658
      %722 = vmatpush1.bf16.msra.mxu0 %v657
      %723 = vmatprep.subr.bf16.mxu0 %v660
      %724 = vmatpush1.bf16.msra.mxu0 %v659
      %725 = vmatprep.subr.bf16.mxu0 %v662
      %726 = vmatpush1.bf16.msra.mxu0 %v661
      %727 = vmatprep.subr.bf16.mxu0 %v664
      %728 = vmatpush1.bf16.msra.mxu0 %v663
      %729 = vmatprep.subr.bf16.mxu0 %v666
      %730 = vmatpush1.bf16.msra.mxu0 %v665
      %731 = vmatprep.subr.bf16.mxu0 %v668
      %732 = vmatpush1.bf16.msra.mxu0 %v667
      %733 = vmatprep.subr.bf16.mxu0 %v670
      %734 = vmatpush1.bf16.msra.mxu0 %v669
      %735 = vmatprep.subr.bf16.mxu0 %v672
      %736 = vmatpush1.bf16.msra.mxu0 %v671
      %737 = vmatprep.subr.bf16.mxu0 %v674
      %738 = vmatpush1.bf16.msra.mxu0 %v673
      %739 = vmatprep.subr.bf16.mxu0 %v676
      %740 = vmatpush1.bf16.msra.mxu0 %v675
      %741 = vmatprep.mubr.bf16.mxu0 %v518
      %742 = vmatmul.mubr.bf16.gmra.mrb[0].mxu0 %v517
      %v743 = vpop.f32.mrb[0].mxu0
      %v744 = vadd.f32 0.0, %v743
      %v745 = vpop.f32.mrb[0].mxu0
      %v746 = vadd.f32 0.0, %v745
      %v747 = vpop.f32.mrb[0].mxu0
      %v748 = vadd.f32 0.0, %v747
      %v749 = vpop.f32.mrb[0].mxu0
      %v750 = vadd.f32 0.0, %v749
      %751 = vmatprep.mubr.bf16.mxu0 %v520
      %752 = vmatmul.mubr.bf16.gmra.mrb[0].mxu0 %v519
      %v753 = vpop.f32.mrb[0].mxu0
      %v754 = vadd.f32 0.0, %v753
      %v755 = vpop.f32.mrb[0].mxu0
      %v756 = vadd.f32 0.0, %v755
      %v757 = vpop.f32.mrb[0].mxu0
      %v758 = vadd.f32 0.0, %v757
      %v759 = vpop.f32.mrb[0].mxu0
      %v760 = vadd.f32 0.0, %v759
      %761 = vmatprep.mubr.bf16.mxu0 %v522
      %762 = vmatmul.mubr.bf16.gmra.mrb[0].mxu0 %v521
      %v763 = vpop.f32.mrb[0].mxu0
      %v764 = vadd.f32 0.0, %v763
      %v765 = vpop.f32.mrb[0].mxu0
      %v766 = vadd.f32 0.0, %v765
      %v767 = vpop.f32.mrb[0].mxu0
      %v768 = vadd.f32 0.0, %v767
      %v769 = vpop.f32.mrb[0].mxu0
      %v770 = vadd.f32 0.0, %v769
      %771 = vmatprep.mubr.bf16.mxu0 %v524
      %772 = vmatmul.mubr.bf16.gmra.mrb[0].mxu0 %v523
      %v773 = vpop.f32.mrb[0].mxu0
      %v774 = vadd.f32 0.0, %v773
      %v775 = vpop.f32.mrb[0].mxu0
      %v776 = vadd.f32 0.0, %v775
      %v777 = vpop.f32.mrb[0].mxu0
      %v778 = vadd.f32 0.0, %v777
      %v779 = vpop.f32.mrb[0].mxu0
      %v780 = vadd.f32 0.0, %v779
      %781 = vmatprep.mubr.bf16.mxu0 %v526
      %782 = vmatmul.mubr.bf16.gmra.mrb[0].mxu0 %v525
      %v783 = vpop.f32.mrb[0].mxu0
      %v784 = vadd.f32 0.0, %v783
      %v785 = vpop.f32.mrb[0].mxu0
      %v786 = vadd.f32 0.0, %v785
      %v787 = vpop.f32.mrb[0].mxu0
      %v788 = vadd.f32 0.0, %v787
      %v789 = vpop.f32.mrb[0].mxu0
      %v790 = vadd.f32 0.0, %v789
      %791 = vmatprep.mubr.bf16.mxu0 %v528
      %792 = vmatmul.mubr.bf16.gmra.mrb[0].mxu0 %v527
      %v793 = vpop.f32.mrb[0].mxu0
      %v794 = vadd.f32 0.0, %v793
      %v795 = vpop.f32.mrb[0].mxu0
      %v796 = vadd.f32 0.0, %v795
      %v797 = vpop.f32.mrb[0].mxu0
      %v798 = vadd.f32 0.0, %v797
      %v799 = vpop.f32.mrb[0].mxu0
      %v800 = vadd.f32 0.0, %v799
      %801 = vmatprep.mubr.bf16.mxu0 %v530
      %802 = vmatmul.mubr.bf16.gmra.mrb[0].mxu0 %v529
      %v803 = vpop.f32.mrb[0].mxu0
      %v804 = vadd.f32 0.0, %v803
      %v805 = vpop.f32.mrb[0].mxu0
      %v806 = vadd.f32 0.0, %v805
      %v807 = vpop.f32.mrb[0].mxu0
      %v808 = vadd.f32 0.0, %v807
      %v809 = vpop.f32.mrb[0].mxu0
      %v810 = vadd.f32 0.0, %v809
      %811 = vmatprep.mubr.bf16.mxu0 %v532
      %812 = vmatmul.mubr.bf16.gmra.mrb[0].mxu0 %v531
      %v813 = vpop.f32.mrb[0].mxu0
      %v814 = vadd.f32 0.0, %v813
      %v815 = vpop.f32.mrb[0].mxu0
      %v816 = vadd.f32 0.0, %v815
      %v817 = vpop.f32.mrb[0].mxu0
      %v818 = vadd.f32 0.0, %v817
      %v819 = vpop.f32.mrb[0].mxu0
      %v820 = vadd.f32 0.0, %v819
      %821 = vdwg.mxu0
      %v822 = vadd.f32 %v389, %v744
      %v823 = vadd.f32 %v390, %v746
      %v824 = vadd.f32 %v391, %v748
      %v825 = vadd.f32 %v392, %v750
      %v826 = vadd.f32 %v393, %v754
      %v827 = vadd.f32 %v394, %v756
      %v828 = vadd.f32 %v395, %v758
      %v829 = vadd.f32 %v396, %v760
      %v830 = vadd.f32 %v397, %v764
      %v831 = vadd.f32 %v398, %v766
      %v832 = vadd.f32 %v399, %v768
      %v833 = vadd.f32 %v400, %v770
      %v834 = vadd.f32 %v401, %v774
      %v835 = vadd.f32 %v402, %v776
      %v836 = vadd.f32 %v403, %v778
      %v837 = vadd.f32 %v404, %v780
      %v838 = vadd.f32 %v405, %v784
      %v839 = vadd.f32 %v406, %v786
      %v840 = vadd.f32 %v407, %v788
      %v841 = vadd.f32 %v408, %v790
      %v842 = vadd.f32 %v409, %v794
      %v843 = vadd.f32 %v410, %v796
      %v844 = vadd.f32 %v411, %v798
      %v845 = vadd.f32 %v412, %v800
      %v846 = vadd.f32 %v413, %v804
      %v847 = vadd.f32 %v414, %v806
      %v848 = vadd.f32 %v415, %v808
      %v849 = vadd.f32 %v416, %v810
      %v850 = vadd.f32 %v417, %v814
      %v851 = vadd.f32 %v418, %v816
      %v852 = vadd.f32 %v419, %v818
      %v853 = vadd.f32 %v420, %v820
      %854 = vst [vmem:[#allocation2] sm:$0xff] %v822
      %855 = vst [vmem:[#allocation2 + $0x8] sm:$0xff] %v823
      %856 = vst [vmem:[#allocation2 + $0x10] sm:$0xff] %v824
      %857 = vst [vmem:[#allocation2 + $0x18] sm:$0xff] %v825
      %858 = vst [vmem:[#allocation2 + $0x20] sm:$0xff] %v826
      %859 = vst [vmem:[#allocation2 + $0x28] sm:$0xff] %v827
      %860 = vst [vmem:[#allocation2 + $0x30] sm:$0xff] %v828
      %861 = vst [vmem:[#allocation2 + $0x38] sm:$0xff] %v829
      %862 = vst [vmem:[#allocation2 + $0x40] sm:$0xff] %v830
      %863 = vst [vmem:[#allocation2 + $0x48] sm:$0xff] %v831
      %864 = vst [vmem:[#allocation2 + $0x50] sm:$0xff] %v832
      %865 = vst [vmem:[#allocation2 + $0x58] sm:$0xff] %v833
      %866 = vst [vmem:[#allocation2 + $0x60] sm:$0xff] %v834
      %867 = vst [vmem:[#allocation2 + $0x68] sm:$0xff] %v835
      %868 = vst [vmem:[#allocation2 + $0x70] sm:$0xff] %v836
      %869 = vst [vmem:[#allocation2 + $0x78] sm:$0xff] %v837
      %870 = vst [vmem:[#allocation2 + $0x80] sm:$0xff] %v838
      %871 = vst [vmem:[#allocation2 + $0x88] sm:$0xff] %v839
      %872 = vst [vmem:[#allocation2 + $0x90] sm:$0xff] %v840
      %873 = vst [vmem:[#allocation2 + $0x98] sm:$0xff] %v841
      %874 = vst [vmem:[#allocation2 + $0xa0] sm:$0xff] %v842
      %875 = vst [vmem:[#allocation2 + $0xa8] sm:$0xff] %v843
      %876 = vst [vmem:[#allocation2 + $0xb0] sm:$0xff] %v844
      %877 = vst [vmem:[#allocation2 + $0xb8] sm:$0xff] %v845
      %878 = vst [vmem:[#allocation2 + $0xc0] sm:$0xff] %v846
      %879 = vst [vmem:[#allocation2 + $0xc8] sm:$0xff] %v847
      %880 = vst [vmem:[#allocation2 + $0xd0] sm:$0xff] %v848
      %881 = vst [vmem:[#allocation2 + $0xd8] sm:$0xff] %v849
      %882 = vst [vmem:[#allocation2 + $0xe0] sm:$0xff] %v850
      %883 = vst [vmem:[#allocation2 + $0xe8] sm:$0xff] %v851
      %884 = vst [vmem:[#allocation2 + $0xf0] sm:$0xff] %v852
      %885 = vst [vmem:[#allocation2 + $0xf8] sm:$0xff] %v853
      // Predicated region
      $region41: #{mindvault_forward.11} parent=35 // pred_check
        %p886 = pneg %p353
      $region42: #{mindvault_forward.11} parent=35 // pred_check_branch
        %888 = sbr.rel (%p886) target = $region44
      $region43: #{mindvault_forward.11} parent=35 // pred_region
        %v889 = vld [vmem:[#allocation2] sm:$0xff]
        %v890 = vld [vmem:[#allocation2 + $0x8] sm:$0xff]
        %v891 = vld [vmem:[#allocation2 + $0x10] sm:$0xff]
        %v892 = vld [vmem:[#allocation2 + $0x18] sm:$0xff]
        %v893 = vld [vmem:[#allocation2 + $0x20] sm:$0xff]
        %v894 = vld [vmem:[#allocation2 + $0x28] sm:$0xff]
        %v895 = vld [vmem:[#allocation2 + $0x30] sm:$0xff]
        %v896 = vld [vmem:[#allocation2 + $0x38] sm:$0xff]
        %v897 = vld [vmem:[#allocation2 + $0x40] sm:$0xff]
        %v898 = vld [vmem:[#allocation2 + $0x48] sm:$0xff]
        %v899 = vld [vmem:[#allocation2 + $0x50] sm:$0xff]
        %v900 = vld [vmem:[#allocation2 + $0x58] sm:$0xff]
        %v901 = vld [vmem:[#allocation2 + $0x60] sm:$0xff]
        %v902 = vld [vmem:[#allocation2 + $0x68] sm:$0xff]
        %v903 = vld [vmem:[#allocation2 + $0x70] sm:$0xff]
        %v904 = vld [vmem:[#allocation2 + $0x78] sm:$0xff]
        %v905 = vld [vmem:[#allocation2 + $0x80] sm:$0xff]
        %v906 = vld [vmem:[#allocation2 + $0x88] sm:$0xff]
        %v907 = vld [vmem:[#allocation2 + $0x90] sm:$0xff]
        %v908 = vld [vmem:[#allocation2 + $0x98] sm:$0xff]
        %v909 = vld [vmem:[#allocation2 + $0xa0] sm:$0xff]
        %v910 = vld [vmem:[#allocation2 + $0xa8] sm:$0xff]
        %v911 = vld [vmem:[#allocation2 + $0xb0] sm:$0xff]
        %v912 = vld [vmem:[#allocation2 + $0xb8] sm:$0xff]
        %v913 = vld [vmem:[#allocation2 + $0xc0] sm:$0xff]
        %v914 = vld [vmem:[#allocation2 + $0xc8] sm:$0xff]
        %v915 = vld [vmem:[#allocation2 + $0xd0] sm:$0xff]
        %v916 = vld [vmem:[#allocation2 + $0xd8] sm:$0xff]
        %v917 = vld [vmem:[#allocation2 + $0xe0] sm:$0xff]
        %v918 = vld [vmem:[#allocation2 + $0xe8] sm:$0xff]
        %v919 = vld [vmem:[#allocation2 + $0xf0] sm:$0xff]
        %v920 = vld [vmem:[#allocation2 + $0xf8] sm:$0xff]
        %v921 = vld [vmem:[%s327] sm:$0x3]
        %v923 = vlaneseq
        %v924 = vshrl.u32 %v923, 7
        %v925 = vsub.s32 0, %v924
        %v926 = vrot.slane %v921, %v925
        %v927 = vlaneseq
        %v928 = vshrl.u32 %v927, 7
        %v929 = vsub.s32 1, %v928
        %v930 = vrot.slane %v921, %v929
        %v933 = vadd.f32 %v889, %v926
        %v934 = vadd.f32 %v890, %v930
        %v935 = vadd.f32 %v891, %v926
        %v936 = vadd.f32 %v892, %v930
        %v937 = vadd.f32 %v893, %v926
        %v938 = vadd.f32 %v894, %v930
        %v939 = vadd.f32 %v895, %v926
        %v940 = vadd.f32 %v896, %v930
        %v941 = vadd.f32 %v897, %v926
        %v942 = vadd.f32 %v898, %v930
        %v943 = vadd.f32 %v899, %v926
        %v944 = vadd.f32 %v900, %v930
        %v945 = vadd.f32 %v901, %v926
        %v946 = vadd.f32 %v902, %v930
        %v947 = vadd.f32 %v903, %v926
        %v948 = vadd.f32 %v904, %v930
        %v949 = vadd.f32 %v905, %v926
        %v950 = vadd.f32 %v906, %v930
        %v951 = vadd.f32 %v907, %v926
        %v952 = vadd.f32 %v908, %v930
        %v953 = vadd.f32 %v909, %v926
        %v954 = vadd.f32 %v910, %v930
        %v955 = vadd.f32 %v911, %v926
        %v956 = vadd.f32 %v912, %v930
        %v957 = vadd.f32 %v913, %v926
        %v958 = vadd.f32 %v914, %v930
        %v959 = vadd.f32 %v915, %v926
        %v960 = vadd.f32 %v916, %v930
        %v961 = vadd.f32 %v917, %v926
        %v962 = vadd.f32 %v918, %v930
        %v963 = vadd.f32 %v919, %v926
        %v964 = vadd.f32 %v920, %v930
        %v965 = vld [vmem:[%s338] sm:$0xff]
        %v966 = vld [vmem:[%s338 + $0x8] sm:$0xff]
        %v967 = vld [vmem:[%s338 + $0x10] sm:$0xff]
        %v968 = vld [vmem:[%s338 + $0x18] sm:$0xff]
        %v969 = vld [vmem:[%s338 + $0x20] sm:$0xff]
        %v970 = vld [vmem:[%s338 + $0x28] sm:$0xff]
        %v971 = vld [vmem:[%s338 + $0x30] sm:$0xff]
        %v972 = vld [vmem:[%s338 + $0x38] sm:$0xff]
        %v973 = vld [vmem:[%s338 + $0x40] sm:$0xff]
        %v974 = vld [vmem:[%s338 + $0x48] sm:$0xff]
        %v975 = vld [vmem:[%s338 + $0x50] sm:$0xff]
        %v976 = vld [vmem:[%s338 + $0x58] sm:$0xff]
        %v977 = vld [vmem:[%s338 + $0x60] sm:$0xff]
        %v978 = vld [vmem:[%s338 + $0x68] sm:$0xff]
        %v979 = vld [vmem:[%s338 + $0x70] sm:$0xff]
        %v980 = vld [vmem:[%s338 + $0x78] sm:$0xff]
        %v981 = vunpack.c.l.bf16 %v965
        %v982 = vunpack.c.h.bf16 %v965
        %v983 = vunpack.c.l.bf16 %v966
        %v984 = vunpack.c.h.bf16 %v966
        %v985 = vunpack.c.l.bf16 %v967
        %v986 = vunpack.c.h.bf16 %v967
        %v987 = vunpack.c.l.bf16 %v968
        %v988 = vunpack.c.h.bf16 %v968
        %v989 = vunpack.c.l.bf16 %v969
        %v990 = vunpack.c.h.bf16 %v969
        %v991 = vunpack.c.l.bf16 %v970
        %v992 = vunpack.c.h.bf16 %v970
        %v993 = vunpack.c.l.bf16 %v971
        %v994 = vunpack.c.h.bf16 %v971
        %v995 = vunpack.c.l.bf16 %v972
        %v996 = vunpack.c.h.bf16 %v972
        %v997 = vunpack.c.l.bf16 %v973
        %v998 = vunpack.c.h.bf16 %v973
        %v999 = vunpack.c.l.bf16 %v974
        %v1000 = vunpack.c.h.bf16 %v974
        %v1001 = vunpack.c.l.bf16 %v975
        %v1002 = vunpack.c.h.bf16 %v975
        %v1003 = vunpack.c.l.bf16 %v976
        %v1004 = vunpack.c.h.bf16 %v976
        %v1005 = vunpack.c.l.bf16 %v977
        %v1006 = vunpack.c.h.bf16 %v977
        %v1007 = vunpack.c.l.bf16 %v978
        %v1008 = vunpack.c.h.bf16 %v978
        %v1009 = vunpack.c.l.bf16 %v979
        %v1010 = vunpack.c.h.bf16 %v979
        %v1011 = vunpack.c.l.bf16 %v980
        %v1012 = vunpack.c.h.bf16 %v980
        %v1013 = vadd.f32 %v933, %v981
        %v1014 = vadd.f32 %v934, %v982
        %v1015 = vadd.f32 %v935, %v983
        %v1016 = vadd.f32 %v936, %v984
        %v1017 = vadd.f32 %v937, %v985
        %v1018 = vadd.f32 %v938, %v986
        %v1019 = vadd.f32 %v939, %v987
        %v1020 = vadd.f32 %v940, %v988
        %v1021 = vadd.f32 %v941, %v989
        %v1022 = vadd.f32 %v942, %v990
        %v1023 = vadd.f32 %v943, %v991
        %v1024 = vadd.f32 %v944, %v992
        %v1025 = vadd.f32 %v945, %v993
        %v1026 = vadd.f32 %v946, %v994
        %v1027 = vadd.f32 %v947, %v995
        %v1028 = vadd.f32 %v948, %v996
        %v1029 = vadd.f32 %v949, %v997
        %v1030 = vadd.f32 %v950, %v998
        %v1031 = vadd.f32 %v951, %v999
        %v1032 = vadd.f32 %v952, %v1000
        %v1033 = vadd.f32 %v953, %v1001
        %v1034 = vadd.f32 %v954, %v1002
        %v1035 = vadd.f32 %v955, %v1003
        %v1036 = vadd.f32 %v956, %v1004
        %v1037 = vadd.f32 %v957, %v1005
        %v1038 = vadd.f32 %v958, %v1006
        %v1039 = vadd.f32 %v959, %v1007
        %v1040 = vadd.f32 %v960, %v1008
        %v1041 = vadd.f32 %v961, %v1009
        %v1042 = vadd.f32 %v962, %v1010
        %v1043 = vadd.f32 %v963, %v1011
        %v1044 = vadd.f32 %v964, %v1012
        %v1045 = vpack.c.bf16 %v1015, %v1013
        %v1046 = vpack.c.bf16 %v1016, %v1014
        %v1047 = vpack.c.bf16 %v1019, %v1017
        %v1048 = vpack.c.bf16 %v1020, %v1018
        %v1049 = vpack.c.bf16 %v1023, %v1021
        %v1050 = vpack.c.bf16 %v1024, %v1022
        %v1051 = vpack.c.bf16 %v1027, %v1025
        %v1052 = vpack.c.bf16 %v1028, %v1026
        %v1053 = vpack.c.bf16 %v1031, %v1029
        %v1054 = vpack.c.bf16 %v1032, %v1030
        %v1055 = vpack.c.bf16 %v1035, %v1033
        %v1056 = vpack.c.bf16 %v1036, %v1034
        %v1057 = vpack.c.bf16 %v1039, %v1037
        %v1058 = vpack.c.bf16 %v1040, %v1038
        %v1059 = vpack.c.bf16 %v1043, %v1041
        %v1060 = vpack.c.bf16 %v1044, %v1042
        %v1077 = vunpack.c.l.b16 %v1045
        %v1078 = vunpack.c.l.b16 %v1046
        %v1079 = vunpack.c.h.b16 %v1045
        %v1080 = vunpack.c.h.b16 %v1046
        %v1081 = vunpack.c.l.b16 %v1047
        %v1082 = vunpack.c.l.b16 %v1048
        %v1083 = vunpack.c.h.b16 %v1047
        %v1084 = vunpack.c.h.b16 %v1048
        %v1085 = vunpack.c.l.b16 %v1049
        %v1086 = vunpack.c.l.b16 %v1050
        %v1087 = vunpack.c.h.b16 %v1049
        %v1088 = vunpack.c.h.b16 %v1050
        %v1089 = vunpack.c.l.b16 %v1051
        %v1090 = vunpack.c.l.b16 %v1052
        %v1091 = vunpack.c.h.b16 %v1051
        %v1092 = vunpack.c.h.b16 %v1052
        %v1093 = vunpack.c.l.b16 %v1053
        %v1094 = vunpack.c.l.b16 %v1054
        %v1095 = vunpack.c.h.b16 %v1053
        %v1096 = vunpack.c.h.b16 %v1054
        %v1097 = vunpack.c.l.b16 %v1055
        %v1098 = vunpack.c.l.b16 %v1056
        %v1099 = vunpack.c.h.b16 %v1055
        %v1100 = vunpack.c.h.b16 %v1056
        %v1101 = vunpack.c.l.b16 %v1057
        %v1102 = vunpack.c.l.b16 %v1058
        %v1103 = vunpack.c.h.b16 %v1057
        %v1104 = vunpack.c.h.b16 %v1058
        %v1105 = vunpack.c.l.b16 %v1059
        %v1106 = vunpack.c.l.b16 %v1060
        %v1107 = vunpack.c.h.b16 %v1059
        %v1108 = vunpack.c.h.b16 %v1060
        %v1109 = vpack.c.b16 %v1078, %v1077
        %v1110 = vpack.c.b16 %v1080, %v1079
        %v1111 = vpack.c.b16 %v1082, %v1081
        %v1112 = vpack.c.b16 %v1084, %v1083
        %v1113 = vpack.c.b16 %v1086, %v1085
        %v1114 = vpack.c.b16 %v1088, %v1087
        %v1115 = vpack.c.b16 %v1090, %v1089
        %v1116 = vpack.c.b16 %v1092, %v1091
        %v1117 = vpack.c.b16 %v1094, %v1093
        %v1118 = vpack.c.b16 %v1096, %v1095
        %v1119 = vpack.c.b16 %v1098, %v1097
        %v1120 = vpack.c.b16 %v1100, %v1099
        %v1121 = vpack.c.b16 %v1102, %v1101
        %v1122 = vpack.c.b16 %v1104, %v1103
        %v1123 = vpack.c.b16 %v1106, %v1105
        %v1124 = vpack.c.b16 %v1108, %v1107
        %1141 = vst [vmem:[%s350] sm:$0xff] %v1109
        %1142 = vst [vmem:[%s350 + $0x8] sm:$0xff] %v1110
        %1143 = vst [vmem:[%s350 + $0x10] sm:$0xff] %v1111
        %1144 = vst [vmem:[%s350 + $0x18] sm:$0xff] %v1112
        %1145 = vst [vmem:[%s350 + $0x20] sm:$0xff] %v1113
        %1146 = vst [vmem:[%s350 + $0x28] sm:$0xff] %v1114
        %1147 = vst [vmem:[%s350 + $0x30] sm:$0xff] %v1115
        %1148 = vst [vmem:[%s350 + $0x38] sm:$0xff] %v1116
        %1149 = vst [vmem:[%s350 + $0x40] sm:$0xff] %v1117
        %1150 = vst [vmem:[%s350 + $0x48] sm:$0xff] %v1118
        %1151 = vst [vmem:[%s350 + $0x50] sm:$0xff] %v1119
        %1152 = vst [vmem:[%s350 + $0x58] sm:$0xff] %v1120
        %1153 = vst [vmem:[%s350 + $0x60] sm:$0xff] %v1121
        %1154 = vst [vmem:[%s350 + $0x68] sm:$0xff] %v1122
        %1155 = vst [vmem:[%s350 + $0x70] sm:$0xff] %v1123
        %1156 = vst [vmem:[%s350 + $0x78] sm:$0xff] %v1124
      $region44: #{mindvault_forward.11} parent=35 // pred_fallthru
        _
      %s1157 = smul.u32 16, %s20
      %s1158 = smul.u32 2, %s21
      %p1159 = scmp.lt.s32.totalorder %s1157, 31
      %s1160 = scalar_select %p1159, %s1157, 31
      %p1161 = scmp.lt.s32.totalorder %s1158, 1
      %s1162 = scalar_select %p1161, %s1158, 1
      %s1163 = smul.addr %s1160, 2
      %s1164 = sadd.s32 %s1162, %s1163
      %s1165 = smul.addr %s1164, 4
      %s1166 = scalar_lea.vmem %s4, %s1165
      // Predicated region
      $region45: #{mindvault_forward.11} parent=35 // pred_check
        %p1167 = pneg %p164
      $region46: #{mindvault_forward.11} parent=35 // pred_check_branch
        %1169 = sbr.rel (%p1167) target = $region48
      $region47: #{mindvault_forward.11} parent=35 // pred_region
        %s1170 = smul.u32 16, %s20
        %s1171 = smul.u32 2, %s21
      $region48: #{mindvault_forward.11} parent=35 // pred_fallthru
        _
    $region36: #{mindvault_forward.11} parent=5 // pred_fallthru
      _
    %p1172 = scmp.le.s32.totalorder 2, %s10
    // Predicated region
    $region49: #{mindvault_forward.11} parent=5 // pred_check
      %p1173 = pneg %p1172
    $region50: #{mindvault_forward.11} parent=5 // pred_check_branch
      %1175 = sbr.rel (%p1173) target = $region52
    $region51: #{mindvault_forward.11} parent=5 // pred_region
      %s1176 = ssub.s32 %s10, 2
      // Predicated region
      $region53: #{mindvault_forward.11} parent=51 // pred_check
        %p1177 = pneg %p170
      $region54: #{mindvault_forward.11} parent=51 // pred_check_branch
        %1179 = sbr.rel (%p1177) target = $region56
      $region55: #{mindvault_forward.11} parent=51 // pred_region
        %s1180 = smul.u32 16, %s23
        %s1181 = smul.u32 2, %s24
        %p1182 = scmp.lt.s32.totalorder %s1180, 31
        %s1183 = scalar_select %p1182, %s1180, 31
        %p1184 = scmp.lt.s32.totalorder %s1181, 1
        %s1185 = scalar_select %p1184, %s1181, 1
        %s1186 = smul.addr %s1183, 2
        %s1187 = sadd.s32 %s1185, %s1186
        %s1188 = smul.addr %s1187, 4
        %s1189 = scalar_lea.vmem %s4, %s1188
      $region56: #{mindvault_forward.11} parent=51 // pred_fallthru
        _
    $region52: #{mindvault_forward.11} parent=5 // pred_fallthru
      _
  $region6: #{mindvault_forward.11} parent=0 // loop_footer
    %s14 = sadd.s32 1, %s10
  $region7: #{mindvault_forward.11} parent=0 // loop_footer_branch
    %9 = sbr.rel target = $region3
  $region8: #{mindvault_forward.11} parent=0 // loop_exit
    _

// kernel: mindvault_forward.10
$region0: #{mindvault_forward.10}
  #allocation0 [shape = 'u32[]', space=smem, size = 0x4, offset = 0x4, fixed_abs, tag = 'smem constant byte address 0x4 - core index']
  #allocation1 [shape = 'u32[144,128]{1,0:T(1,128)}', space=vmem, size = 0x12000, scoped, tag = 'internal scratch']
  %s0 = inlined_call_operand.vmem [shape: bf16[2,128,768], index: 0, kind: input, shape index: {}]
  %s1 = inlined_call_operand.vmem [shape: bf16[2,128,256], index: 1, kind: output, shape index: {}]
  %s2 = sld [smem:[#allocation0]]
  $region37: #{mindvault_forward.10} parent=0
    _
  %s4 = ssub.s32 1, %s2
  %s5 = scalar_select 0, %s4, %s2
  loop: start=0, step=1, limit=4
  $region2: #{mindvault_forward.10} parent=0 // loop_pre_header
    _
  $region3: #{mindvault_forward.10} parent=0 // loop_header
    %s7 = sphi 0, %s11
    %p8 = scmp.ge.s32.totalorder %s7, 4
    %s17 = sphi 0, %s19
    %s20 = sphi 0, %s17
    %s21 = sphi 0, %s20
    %s37 = sphi 0, %s21
    %s43 = sphi 0, %s45
    %s46 = sphi 0, %s43
    %s47 = sphi 0, %s46
    %s63 = sphi 0, %s47
  $region4: #{mindvault_forward.10} parent=0 // loop_header_branch
    %10 = sbr.rel (%p8) target = $region8
  $region5: #{mindvault_forward.10} parent=0 // loop_body
    %s12 = ssub.s32 %s7, 1
    %s13 = ssub.s32 %s7, 2
    %s14 = sadd.s32 %s7, 1
    %s15 = ssub.s32 %s7, %s14
    %p16 = scmp.eq.s32.totalorder %s15, 0
    %s18 = sadd.s32 %s17, 1
    %s19 = scalar_select %p16, %s17, %s18
    %p22 = pneg %p16
    %p23 = scmp.eq.s32.totalorder %s7, 1
    %p24 = por %p22, %p23
    %p25 = scmp.ne.s32.totalorder %s17, %s20
    %p26 = scmp.eq.s32.totalorder %s7, 0
    %p27 = por %p25, %p26
    %p28 = scmp.ne.s32.totalorder %s17, %s20
    %p29 = scmp.eq.s32.totalorder %s12, 1
    %p30 = por %p28, %p29
    %p31 = scmp.ne.s32.totalorder %s20, %s21
    %p32 = scmp.eq.s32.totalorder %s12, 0
    %p33 = por %p31, %p32
    %p34 = scmp.ne.s32.totalorder %s20, %s21
    %p35 = scmp.eq.s32.totalorder %s13, 1
    %p36 = por %p34, %p35
    %p38 = scmp.ne.s32.totalorder %s21, %s37
    %p39 = scmp.eq.s32.totalorder %s13, 0
    %p40 = por %p38, %p39
    %s41 = ssub.s32 %s7, %s14
    %p42 = scmp.eq.s32.totalorder %s41, 0
    %s44 = sadd.s32 %s43, 1
    %s45 = scalar_select %p42, %s43, %s44
    %p48 = pneg %p42
    %p49 = scmp.eq.s32.totalorder %s7, 1
    %p50 = por %p48, %p49
    %p51 = scmp.ne.s32.totalorder %s43, %s46
    %p52 = scmp.eq.s32.totalorder %s7, 0
    %p53 = por %p51, %p52
    %p54 = scmp.ne.s32.totalorder %s43, %s46
    %p55 = scmp.eq.s32.totalorder %s12, 1
    %p56 = por %p54, %p55
    %p57 = scmp.ne.s32.totalorder %s46, %s47
    %p58 = scmp.eq.s32.totalorder %s12, 0
    %p59 = por %p57, %p58
    %p60 = scmp.ne.s32.totalorder %s46, %s47
    %p61 = scmp.eq.s32.totalorder %s13, 1
    %p62 = por %p60, %p61
    %p64 = scmp.ne.s32.totalorder %s47, %s63
    %p65 = scmp.eq.s32.totalorder %s13, 0
    %p66 = por %p64, %p65
    %p67 = scmp.le.s32.totalorder 1, %s7
    %p68 = scmp.lt.s32.totalorder %s7, 3
    %p69 = pnand %p67, %p68
    %p70 = pneg %p69
    // Predicated region
    $region9: #{mindvault_forward.10} parent=5 // pred_check
      _
    $region10: #{mindvault_forward.10} parent=5 // pred_check_branch
      %72 = sbr.rel (%p69) target = $region12
    $region11: #{mindvault_forward.10} parent=5 // pred_region
      %s73 = ssub.s32 %s7, 1
    $region12: #{mindvault_forward.10} parent=5 // pred_fallthru
      _
    %p74 = scmp.lt.s32.totalorder %s7, 2
    // Predicated region
    $region13: #{mindvault_forward.10} parent=5 // pred_check
      %p75 = pneg %p74
    $region14: #{mindvault_forward.10} parent=5 // pred_check_branch
      %77 = sbr.rel (%p75) target = $region16
    $region15: #{mindvault_forward.10} parent=5 // pred_region
      // Predicated region
      $region17: #{mindvault_forward.10} parent=15 // pred_check
        %p78 = pneg %p27
      $region18: #{mindvault_forward.10} parent=15 // pred_check_branch
        %80 = sbr.rel (%p78) target = $region20
      $region19: #{mindvault_forward.10} parent=15 // pred_region
        %p81 = scmp.lt.s32.totalorder %s7, 1
        %s82 = scalar_select %p81, %s7, 1
        %s83 = smul.addr %s82, 96
        %s84 = smul.addr %s83, 4
        %s85 = scalar_lea.vmem %s0, %s84
      $region20: #{mindvault_forward.10} parent=15 // pred_fallthru
        _
    $region16: #{mindvault_forward.10} parent=5 // pred_fallthru
      _
    %p86 = scmp.le.s32.totalorder 1, %s7
    %p87 = scmp.lt.s32.totalorder %s7, 3
    %p88 = pnand %p86, %p87
    %p89 = pneg %p88
    // Predicated region
    $region21: #{mindvault_forward.10} parent=5 // pred_check
      _
    $region22: #{mindvault_forward.10} parent=5 // pred_check_branch
      %91 = sbr.rel (%p88) target = $region24
    $region23: #{mindvault_forward.10} parent=5 // pred_region
      %s92 = ssub.s32 %s7, 1
      %p93 = scmp.lt.s32.totalorder %s12, 1
      %s94 = scalar_select %p93, %s12, 1
      %s95 = smul.addr %s94, 96
      %s96 = smul.addr %s95, 4
      %s97 = scalar_lea.vmem %s0, %s96
      %p98 = pneg %p33
      %p99 = pneg %p30
      %p100 = pneg %p59
      %p101 = pneg %p56
      %p102 = scmp.lt.s32.totalorder %s12, 1
      %s103 = scalar_select %p102, %s12, 1
      %s104 = smul.addr %s103, 32
      %s105 = smul.addr %s104, 4
      %s106 = scalar_lea.vmem %s1, %s105
      %p107 = scmp.lt.s32.totalorder %s12, 1
      %s108 = scalar_select %p107, %s12, 1
      %s109 = smul.addr %s108, 96
      %s110 = smul.addr %s109, 4
      %s111 = scalar_lea.vmem %s0, %s110
      %p112 = scmp.lt.s32.totalorder %s12, 1
      %s113 = scalar_select %p112, %s12, 1
      %s114 = smul.addr %s113, 32
      %s115 = smul.addr %s114, 4
      %s116 = scalar_lea.vmem %s1, %s115
      %v118 = vlaneseq
      %v119 = vshrl.u32 %v118, 7
      %v120 = vadd.s32 %v119, 8
      %v121 = vadd.s32 %v119, 16
      %v122 = vadd.s32 %v119, 24
      %v123 = vadd.s32 %v119, 32
      %v124 = vadd.s32 %v119, 40
      %v125 = vadd.s32 %v119, 48
      %v126 = vadd.s32 %v119, 56
      %v127 = vadd.s32 %v119, 64
      %v128 = vadd.s32 %v119, 72
      %v129 = vadd.s32 %v119, 80
      %v130 = vadd.s32 %v119, 88
      %v131 = vadd.s32 %v119, 96
      %v132 = vadd.s32 %v119, 104
      %v133 = vadd.s32 %v119, 112
      %v134 = vadd.s32 %v119, 120
      %v135 = vlaneseq
      %v136 = vand.u32 %v135, 127
      %vm137 = vcmp.le.s32.totalorder %v136, %v119
      %vm138 = vcmp.le.s32.totalorder %v136, %v120
      %vm139 = vcmp.le.s32.totalorder %v136, %v121
      %vm140 = vcmp.le.s32.totalorder %v136, %v122
      %vm141 = vcmp.le.s32.totalorder %v136, %v123
      %vm142 = vcmp.le.s32.totalorder %v136, %v124
      %vm143 = vcmp.le.s32.totalorder %v136, %v125
      %vm144 = vcmp.le.s32.totalorder %v136, %v126
      %vm145 = vcmp.le.s32.totalorder %v136, %v127
      %vm146 = vcmp.le.s32.totalorder %v136, %v128
      %vm147 = vcmp.le.s32.totalorder %v136, %v129
      %vm148 = vcmp.le.s32.totalorder %v136, %v130
      %vm149 = vcmp.le.s32.totalorder %v136, %v131
      %vm150 = vcmp.le.s32.totalorder %v136, %v132
      %vm151 = vcmp.le.s32.totalorder %v136, %v133
      %vm152 = vcmp.le.s32.totalorder %v136, %v134
      %v153 = vsel %vm137, 0.0, -1e+30
      %v154 = vsel %vm138, 0.0, -1e+30
      %v155 = vsel %vm139, 0.0, -1e+30
      %v156 = vsel %vm140, 0.0, -1e+30
      %v157 = vsel %vm141, 0.0, -1e+30
      %v158 = vsel %vm142, 0.0, -1e+30
      %v159 = vsel %vm143, 0.0, -1e+30
      %v160 = vsel %vm144, 0.0, -1e+30
      %v161 = vsel %vm145, 0.0, -1e+30
      %v162 = vsel %vm146, 0.0, -1e+30
      %v163 = vsel %vm147, 0.0, -1e+30
      %v164 = vsel %vm148, 0.0, -1e+30
      %v165 = vsel %vm149, 0.0, -1e+30
      %v166 = vsel %vm150, 0.0, -1e+30
      %v167 = vsel %vm151, 0.0, -1e+30
      %v168 = vsel %vm152, 0.0, -1e+30
      %v169 = vld [vmem:[%s111] sm:$0xf]
      %v170 = vld [vmem:[%s111 + $0x18] sm:$0xf]
      %v171 = vld [vmem:[%s111 + $0x30] sm:$0xf]
      %v172 = vld [vmem:[%s111 + $0x48] sm:$0xf]
      %v173 = vld [vmem:[%s111 + $0x60] sm:$0xf]
      %v174 = vld [vmem:[%s111 + $0x78] sm:$0xf]
      %v175 = vld [vmem:[%s111 + $0x90] sm:$0xf]
      %v176 = vld [vmem:[%s111 + $0xa8] sm:$0xf]
      %v177 = vld [vmem:[%s111 + $0xc0] sm:$0xf]
      %v178 = vld [vmem:[%s111 + $0xd8] sm:$0xf]
      %v179 = vld [vmem:[%s111 + $0xf0] sm:$0xf]
      %v180 = vld [vmem:[%s111 + $0x108] sm:$0xf]
      %v181 = vld [vmem:[%s111 + $0x120] sm:$0xf]
      %v182 = vld [vmem:[%s111 + $0x138] sm:$0xf]
      %v183 = vld [vmem:[%s111 + $0x150] sm:$0xf]
      %v184 = vld [vmem:[%s111 + $0x168] sm:$0xf]
      %v185 = vld [vmem:[%s111 + $0x8] sm:$0xf]
      %v186 = vld [vmem:[%s111 + $0x20] sm:$0xf]
      %v187 = vld [vmem:[%s111 + $0x38] sm:$0xf]
      %v188 = vld [vmem:[%s111 + $0x50] sm:$0xf]
      %v189 = vld [vmem:[%s111 + $0x68] sm:$0xf]
      %v190 = vld [vmem:[%s111 + $0x80] sm:$0xf]
      %v191 = vld [vmem:[%s111 + $0x98] sm:$0xf]
      %v192 = vld [vmem:[%s111 + $0xb0] sm:$0xf]
      %v193 = vld [vmem:[%s111 + $0xc8] sm:$0xf]
      %v194 = vld [vmem:[%s111 + $0xe0] sm:$0xf]
      %v195 = vld [vmem:[%s111 + $0xf8] sm:$0xf]
      %v196 = vld [vmem:[%s111 + $0x110] sm:$0xf]
      %v197 = vld [vmem:[%s111 + $0x128] sm:$0xf]
      %v198 = vld [vmem:[%s111 + $0x140] sm:$0xf]
      %v199 = vld [vmem:[%s111 + $0x158] sm:$0xf]
      %v200 = vld [vmem:[%s111 + $0x170] sm:$0xf]
      %v201 = vld [vmem:[%s111 + $0x10] sm:$0xf]
      %v202 = vld [vmem:[%s111 + $0x28] sm:$0xf]
      %v203 = vld [vmem:[%s111 + $0x40] sm:$0xf]
      %v204 = vld [vmem:[%s111 + $0x58] sm:$0xf]
      %v205 = vld [vmem:[%s111 + $0x70] sm:$0xf]
      %v206 = vld [vmem:[%s111 + $0x88] sm:$0xf]
      %v207 = vld [vmem:[%s111 + $0xa0] sm:$0xf]
      %v208 = vld [vmem:[%s111 + $0xb8] sm:$0xf]
      %v209 = vld [vmem:[%s111 + $0xd0] sm:$0xf]
      %v210 = vld [vmem:[%s111 + $0xe8] sm:$0xf]
      %v211 = vld [vmem:[%s111 + $0x100] sm:$0xf]
      %v212 = vld [vmem:[%s111 + $0x118] sm:$0xf]
      %v213 = vld [vmem:[%s111 + $0x130] sm:$0xf]
      %v214 = vld [vmem:[%s111 + $0x148] sm:$0xf]
      %v215 = vld [vmem:[%s111 + $0x160] sm:$0xf]
      %v216 = vld [vmem:[%s111 + $0x178] sm:$0xf]
      %v233 = vunpack.c.l.b16 %v169
      %v234 = vunpack.c.l.b16 %v170
      %v235 = vunpack.c.l.b16 %v171
      %v236 = vunpack.c.l.b16 %v172
      %v237 = vunpack.c.l.b16 %v173
      %v238 = vunpack.c.l.b16 %v174
      %v239 = vunpack.c.l.b16 %v175
      %v240 = vunpack.c.l.b16 %v176
      %v241 = vunpack.c.l.b16 %v177
      %v242 = vunpack.c.l.b16 %v178
      %v243 = vunpack.c.l.b16 %v179
      %v244 = vunpack.c.l.b16 %v180
      %v245 = vunpack.c.l.b16 %v181
      %v246 = vunpack.c.l.b16 %v182
      %v247 = vunpack.c.l.b16 %v183
      %v248 = vunpack.c.l.b16 %v184
      %v249 = vpack.c.b16 %v234, %v233
      %v250 = vpack.c.b16 %v236, %v235
      %v251 = vpack.c.b16 %v238, %v237
      %v252 = vpack.c.b16 %v240, %v239
      %v253 = vpack.c.b16 %v242, %v241
      %v254 = vpack.c.b16 %v244, %v243
      %v255 = vpack.c.b16 %v246, %v245
      %v256 = vpack.c.b16 %v248, %v247
      %v273 = vunpack.c.l.b16 %v185
      %v274 = vunpack.c.l.b16 %v186
      %v275 = vunpack.c.l.b16 %v187
      %v276 = vunpack.c.l.b16 %v188
      %v277 = vunpack.c.l.b16 %v189
      %v278 = vunpack.c.l.b16 %v190
      %v279 = vunpack.c.l.b16 %v191
      %v280 = vunpack.c.l.b16 %v192
      %v281 = vunpack.c.l.b16 %v193
      %v282 = vunpack.c.l.b16 %v194
      %v283 = vunpack.c.l.b16 %v195
      %v284 = vunpack.c.l.b16 %v196
      %v285 = vunpack.c.l.b16 %v197
      %v286 = vunpack.c.l.b16 %v198
      %v287 = vunpack.c.l.b16 %v199
      %v288 = vunpack.c.l.b16 %v200
      %v289 = vpack.c.b16 %v274, %v273
      %v290 = vpack.c.b16 %v276, %v275
      %v291 = vpack.c.b16 %v278, %v277
      %v292 = vpack.c.b16 %v280, %v279
      %v293 = vpack.c.b16 %v282, %v281
      %v294 = vpack.c.b16 %v284, %v283
      %v295 = vpack.c.b16 %v286, %v285
      %v296 = vpack.c.b16 %v288, %v287
      %vm297 = vcmask 523264
      %v299 = vsel %vm297, %v249, 0
      %v302 = vsel %vm297, %v250, 0
      %v305 = vsel %vm297, %v251, 0
      %v308 = vsel %vm297, %v252, 0
      %v311 = vsel %vm297, %v253, 0
      %v314 = vsel %vm297, %v254, 0
      %v317 = vsel %vm297, %v255, 0
      %v320 = vsel %vm297, %v256, 0
      %v323 = vsel %vm297, %v289, 0
      %v326 = vsel %vm297, %v290, 0
      %v329 = vsel %vm297, %v291, 0
      %v332 = vsel %vm297, %v292, 0
      %v335 = vsel %vm297, %v293, 0
      %v338 = vsel %vm297, %v294, 0
      %v341 = vsel %vm297, %v295, 0
      %v344 = vsel %vm297, %v296, 0
      %346 = vmatprep.subr.bf16.mxu0 0
      %347 = vmatpush1.bf16.xpose.msra.mxu0 %v323
      %348 = vmatprep.subr.bf16.mxu0 0
      %349 = vmatpush1.bf16.xpose.msra.mxu0 %v326
      %350 = vmatprep.subr.bf16.mxu0 0
      %351 = vmatpush1.bf16.xpose.msra.mxu0 %v329
      %352 = vmatprep.subr.bf16.mxu0 0
      %353 = vmatpush1.bf16.xpose.msra.mxu0 %v332
      %354 = vmatprep.subr.bf16.mxu0 0
      %355 = vmatpush1.bf16.xpose.msra.mxu0 %v335
      %356 = vmatprep.subr.bf16.mxu0 0
      %357 = vmatpush1.bf16.xpose.msra.mxu0 %v338
      %358 = vmatprep.subr.bf16.mxu0 0
      %359 = vmatpush1.bf16.xpose.msra.mxu0 %v341
      %360 = vmatprep.subr.bf16.mxu0 0
      %361 = vmatpush1.bf16.xpose.msra.mxu0 %v344
      %362 = vmatprep.subr.bf16.mxu0 0
      %363 = vmatpush1.bf16.xpose.msra.mxu0 0
      %364 = vmatprep.subr.bf16.mxu0 0
      %365 = vmatpush1.bf16.xpose.msra.mxu0 0
      %366 = vmatprep.subr.bf16.mxu0 0
      %367 = vmatpush1.bf16.xpose.msra.mxu0 0
      %368 = vmatprep.subr.bf16.mxu0 0
      %369 = vmatpush1.bf16.xpose.msra.mxu0 0
      %370 = vmatprep.subr.bf16.mxu0 0
      %371 = vmatpush1.bf16.xpose.msra.mxu0 0
      %372 = vmatprep.subr.bf16.mxu0 0
      %373 = vmatpush1.bf16.xpose.msra.mxu0 0
      %374 = vmatprep.subr.bf16.mxu0 0
      %375 = vmatpush1.bf16.xpose.msra.mxu0 0
      %376 = vmatprep.subr.bf16.mxu0 0
      %377 = vmatpush1.bf16.xpose.msra.mxu0 0
      %378 = vmatprep.mubr.bf16.mxu0 0
      %379 = vmatmul.mubr.bf16.gmra.mrb[0].mxu0 %v299
      %v380 = vpop.f32.mrb[0].mxu0
      %v381 = vadd.f32 0.0, %v380
      %v382 = vpop.f32.mrb[0].mxu0
      %v383 = vpop.f32.mrb[0].mxu0
      %v384 = vadd.f32 0.0, %v383
      %v385 = vpop.f32.mrb[0].mxu0
      %386 = vmatprep.mubr.bf16.mxu0 0
      %387 = vmatmul.mubr.bf16.gmra.mrb[0].mxu0 %v302
      %v388 = vpop.f32.mrb[0].mxu0
      %v389 = vadd.f32 0.0, %v388
      %v390 = vpop.f32.mrb[0].mxu0
      %v391 = vpop.f32.mrb[0].mxu0
      %v392 = vadd.f32 0.0, %v391
      %v393 = vpop.f32.mrb[0].mxu0
      %394 = vmatprep.mubr.bf16.mxu0 0
      %395 = vmatmul.mubr.bf16.gmra.mrb[0].mxu0 %v305
      %v396 = vpop.f32.mrb[0].mxu0
      %v397 = vadd.f32 0.0, %v396
      %v398 = vpop.f32.mrb[0].mxu0
      %v399 = vpop.f32.mrb[0].mxu0
      %v400 = vadd.f32 0.0, %v399
      %v401 = vpop.f32.mrb[0].mxu0
      %402 = vmatprep.mubr.bf16.mxu0 0
      %403 = vmatmul.mubr.bf16.gmra.mrb[0].mxu0 %v308
      %v404 = vpop.f32.mrb[0].mxu0
      %v405 = vadd.f32 0.0, %v404
      %v406 = vpop.f32.mrb[0].mxu0
      %v407 = vpop.f32.mrb[0].mxu0
      %v408 = vadd.f32 0.0, %v407
      %v409 = vpop.f32.mrb[0].mxu0
      %410 = vmatprep.mubr.bf16.mxu0 0
      %411 = vmatmul.mubr.bf16.gmra.mrb[0].mxu0 %v311
      %v412 = vpop.f32.mrb[0].mxu0
      %v413 = vadd.f32 0.0, %v412
      %v414 = vpop.f32.mrb[0].mxu0
      %v415 = vpop.f32.mrb[0].mxu0
      %v416 = vadd.f32 0.0, %v415
      %v417 = vpop.f32.mrb[0].mxu0
      %418 = vmatprep.mubr.bf16.mxu0 0
      %419 = vmatmul.mubr.bf16.gmra.mrb[0].mxu0 %v314
      %v420 = vpop.f32.mrb[0].mxu0
      %v421 = vadd.f32 0.0, %v420
      %v422 = vpop.f32.mrb[0].mxu0
      %v423 = vpop.f32.mrb[0].mxu0
      %v424 = vadd.f32 0.0, %v423
      %v425 = vpop.f32.mrb[0].mxu0
      %426 = vmatprep.mubr.bf16.mxu0 0
      %427 = vmatmul.mubr.bf16.gmra.mrb[0].mxu0 %v317
      %v428 = vpop.f32.mrb[0].mxu0
      %v429 = vadd.f32 0.0, %v428
      %v430 = vpop.f32.mrb[0].mxu0
      %v431 = vpop.f32.mrb[0].mxu0
      %v432 = vadd.f32 0.0, %v431
      %v433 = vpop.f32.mrb[0].mxu0
      %434 = vmatprep.mubr.bf16.mxu0 0
      %435 = vmatmul.mubr.bf16.gmra.mrb[0].mxu0 %v320
      %v436 = vpop.f32.mrb[0].mxu0
      %v437 = vadd.f32 0.0, %v436
      %v438 = vpop.f32.mrb[0].mxu0
      %v439 = vpop.f32.mrb[0].mxu0
      %v440 = vadd.f32 0.0, %v439
      %v441 = vpop.f32.mrb[0].mxu0
      %442 = vdwg.mxu0
      %v443 = vmul.f32 %v381, 0.125
      %v444 = vmul.f32 %v384, 0.125
      %v445 = vmul.f32 %v389, 0.125
      %v446 = vmul.f32 %v392, 0.125
      %v447 = vmul.f32 %v397, 0.125
      %v448 = vmul.f32 %v400, 0.125
      %v449 = vmul.f32 %v405, 0.125
      %v450 = vmul.f32 %v408, 0.125
      %v451 = vmul.f32 %v413, 0.125
      %v452 = vmul.f32 %v416, 0.125
      %v453 = vmul.f32 %v421, 0.125
      %v454 = vmul.f32 %v424, 0.125
      %v455 = vmul.f32 %v429, 0.125
      %v456 = vmul.f32 %v432, 0.125
      %v457 = vmul.f32 %v437, 0.125
      %v458 = vmul.f32 %v440, 0.125
      %v459 = vadd.f32 %v443, %v153
      %v460 = vadd.f32 %v444, %v154
      %v461 = vadd.f32 %v445, %v155
      %v462 = vadd.f32 %v446, %v156
      %v463 = vadd.f32 %v447, %v157
      %v464 = vadd.f32 %v448, %v158
      %v465 = vadd.f32 %v449, %v159
      %v466 = vadd.f32 %v450, %v160
      %v467 = vadd.f32 %v451, %v161
      %v468 = vadd.f32 %v452, %v162
      %v469 = vadd.f32 %v453, %v163
      %v470 = vadd.f32 %v454, %v164
      %v471 = vadd.f32 %v455, %v165
      %v472 = vadd.f32 %v456, %v166
      %v473 = vadd.f32 %v457, %v167
      %v474 = vadd.f32 %v458, %v168
      %475 = vmax.xlane.f32.xlu0 %v459
      %v476 = vpop.xlane.xlu0 %475
      %477 = vmax.xlane.f32.xlu0 %v460
      %v478 = vpop.xlane.xlu0 %477
      %479 = vmax.xlane.f32.xlu0 %v461
      %v480 = vpop.xlane.xlu0 %479
      %481 = vmax.xlane.f32.xlu0 %v462
      %v482 = vpop.xlane.xlu0 %481
      %483 = vmax.xlane.f32.xlu0 %v463
      %v484 = vpop.xlane.xlu0 %483
      %485 = vmax.xlane.f32.xlu0 %v464
      %v486 = vpop.xlane.xlu0 %485
      %487 = vmax.xlane.f32.xlu0 %v465
      %v488 = vpop.xlane.xlu0 %487
      %489 = vmax.xlane.f32.xlu0 %v466
      %v490 = vpop.xlane.xlu0 %489
      %491 = vmax.xlane.f32.xlu0 %v467
      %v492 = vpop.xlane.xlu0 %491
      %493 = vmax.xlane.f32.xlu0 %v468
      %v494 = vpop.xlane.xlu0 %493
      %495 = vmax.xlane.f32.xlu0 %v469
      %v496 = vpop.xlane.xlu0 %495
      %497 = vmax.xlane.f32.xlu0 %v470
      %v498 = vpop.xlane.xlu0 %497
      %499 = vmax.xlane.f32.xlu0 %v471
      %v500 = vpop.xlane.xlu0 %499
      %501 = vmax.xlane.f32.xlu0 %v472
      %v502 = vpop.xlane.xlu0 %501
      %503 = vmax.xlane.f32.xlu0 %v473
      %v504 = vpop.xlane.xlu0 %503
      %505 = vmax.xlane.f32.xlu0 %v474
      %v506 = vpop.xlane.xlu0 %505
      %v507 = vsub.f32 %v459, %v476
      %v508 = vsub.f32 %v460, %v478
      %v509 = vsub.f32 %v461, %v480
      %v510 = vsub.f32 %v462, %v482
      %v511 = vsub.f32 %v463, %v484
      %v512 = vsub.f32 %v464, %v486
      %v513 = vsub.f32 %v465, %v488
      %v514 = vsub.f32 %v466, %v490
      %v515 = vsub.f32 %v467, %v492
      %v516 = vsub.f32 %v468, %v494
      %v517 = vsub.f32 %v469, %v496
      %v518 = vsub.f32 %v470, %v498
      %v519 = vsub.f32 %v471, %v500
      %v520 = vsub.f32 %v472, %v502
      %v521 = vsub.f32 %v473, %v504
      %v522 = vsub.f32 %v474, %v506
      %v523 = vmul.f32 %v507, 1.442695
      %v524 = vpow.pop %v523
      %v525 = vmul.f32 %v508, 1.442695
      %v526 = vpow.pop %v525
      %v527 = vmul.f32 %v509, 1.442695
      %v528 = vpow.pop %v527
      %v529 = vmul.f32 %v510, 1.442695
      %v530 = vpow.pop %v529
      %v531 = vmul.f32 %v511, 1.442695
      %v532 = vpow.pop %v531
      %v533 = vmul.f32 %v512, 1.442695
      %v534 = vpow.pop %v533
      %v535 = vmul.f32 %v513, 1.442695
      %v536 = vpow.pop %v535
      %v537 = vmul.f32 %v514, 1.442695
      %v538 = vpow.pop %v537
      %v539 = vmul.f32 %v515, 1.442695
      %v540 = vpow.pop %v539
      %v541 = vmul.f32 %v516, 1.442695
      %v542 = vpow.pop %v541
      %v543 = vmul.f32 %v517, 1.442695
      %v544 = vpow.pop %v543
      %v545 = vmul.f32 %v518, 1.442695
      %v546 = vpow.pop %v545
      %v547 = vmul.f32 %v519, 1.442695
      %v548 = vpow.pop %v547
      %v549 = vmul.f32 %v520, 1.442695
      %v550 = vpow.pop %v549
      %v551 = vmul.f32 %v521, 1.442695
      %v552 = vpow.pop %v551
      %v553 = vmul.f32 %v522, 1.442695
      %v554 = vpow.pop %v553
      %555 = vadd.xlane.f32.xlu0 %v524
      %v556 = vpop.xlane.xlu0 %555
      %557 = vadd.xlane.f32.xlu0 %v526
      %v558 = vpop.xlane.xlu0 %557
      %559 = vadd.xlane.f32.xlu0 %v528
      %v560 = vpop.xlane.xlu0 %559
      %561 = vadd.xlane.f32.xlu0 %v530
      %v562 = vpop.xlane.xlu0 %561
      %563 = vadd.xlane.f32.xlu0 %v532
      %v564 = vpop.xlane.xlu0 %563
      %565 = vadd.xlane.f32.xlu0 %v534
      %v566 = vpop.xlane.xlu0 %565
      %567 = vadd.xlane.f32.xlu0 %v536
      %v568 = vpop.xlane.xlu0 %567
      %569 = vadd.xlane.f32.xlu0 %v538
      %v570 = vpop.xlane.xlu0 %569
      %571 = vadd.xlane.f32.xlu0 %v540
      %v572 = vpop.xlane.xlu0 %571
      %573 = vadd.xlane.f32.xlu0 %v542
      %v574 = vpop.xlane.xlu0 %573
      %575 = vadd.xlane.f32.xlu0 %v544
      %v576 = vpop.xlane.xlu0 %575
      %577 = vadd.xlane.f32.xlu0 %v546
      %v578 = vpop.xlane.xlu0 %577
      %579 = vadd.xlane.f32.xlu0 %v548
      %v580 = vpop.xlane.xlu0 %579
      %581 = vadd.xlane.f32.xlu0 %v550
      %v582 = vpop.xlane.xlu0 %581
      %583 = vadd.xlane.f32.xlu0 %v552
      %v584 = vpop.xlane.xlu0 %583
      %585 = vadd.xlane.f32.xlu0 %v554
      %v586 = vpop.xlane.xlu0 %585
      %v587 = vrcp.pop %v556
      %v588 = vrcp.pop %v558
      %v589 = vrcp.pop %v560
      %v590 = vrcp.pop %v562
      %v591 = vrcp.pop %v564
      %v592 = vrcp.pop %v566
      %v593 = vrcp.pop %v568
      %v594 = vrcp.pop %v570
      %v595 = vrcp.pop %v572
      %v596 = vrcp.pop %v574
      %v597 = vrcp.pop %v576
      %v598 = vrcp.pop %v578
      %v599 = vrcp.pop %v580
      %v600 = vrcp.pop %v582
      %v601 = vrcp.pop %v584
      %v602 = vrcp.pop %v586
      %v603 = vmul.f32 %v524, %v587
      %v604 = vmul.f32 %v526, %v588
      %v605 = vmul.f32 %v528, %v589
      %v606 = vmul.f32 %v530, %v590
      %v607 = vmul.f32 %v532, %v591
      %v608 = vmul.f32 %v534, %v592
      %v609 = vmul.f32 %v536, %v593
      %v610 = vmul.f32 %v538, %v594
      %v611 = vmul.f32 %v540, %v595
      %v612 = vmul.f32 %v542, %v596
      %v613 = vmul.f32 %v544, %v597
      %v614 = vmul.f32 %v546, %v598
      %v615 = vmul.f32 %v548, %v599
      %v616 = vmul.f32 %v550, %v600
      %v617 = vmul.f32 %v552, %v601
      %v618 = vmul.f32 %v554, %v602
      %v619 = vpack.c.bf16 %v604, %v603
      %v620 = vpack.c.bf16 %v606, %v605
      %v621 = vpack.c.bf16 %v608, %v607
      %v622 = vpack.c.bf16 %v610, %v609
      %v623 = vpack.c.bf16 %v612, %v611
      %v624 = vpack.c.bf16 %v614, %v613
      %v625 = vpack.c.bf16 %v616, %v615
      %v626 = vpack.c.bf16 %v618, %v617
      %v643 = vunpack.c.l.b16 %v201
      %v644 = vunpack.c.l.b16 %v202
      %v645 = vunpack.c.l.b16 %v203
      %v646 = vunpack.c.l.b16 %v204
      %v647 = vunpack.c.l.b16 %v205
      %v648 = vunpack.c.l.b16 %v206
      %v649 = vunpack.c.l.b16 %v207
      %v650 = vunpack.c.l.b16 %v208
      %v651 = vunpack.c.l.b16 %v209
      %v652 = vunpack.c.l.b16 %v210
      %v653 = vunpack.c.l.b16 %v211
      %v654 = vunpack.c.l.b16 %v212
      %v655 = vunpack.c.l.b16 %v213
      %v656 = vunpack.c.l.b16 %v214
      %v657 = vunpack.c.l.b16 %v215
      %v658 = vunpack.c.l.b16 %v216
      %v659 = vpack.c.b16 %v644, %v643
      %v660 = vpack.c.b16 %v646, %v645
      %v661 = vpack.c.b16 %v648, %v647
      %v662 = vpack.c.b16 %v650, %v649
      %v663 = vpack.c.b16 %v652, %v651
      %v664 = vpack.c.b16 %v654, %v653
      %v665 = vpack.c.b16 %v656, %v655
      %v666 = vpack.c.b16 %v658, %v657
      %675 = vmatprep.subr.bf16.mxu0 0
      %676 = vmatpush1.bf16.msra.mxu0 %v659
      %677 = vmatprep.subr.bf16.mxu0 0
      %678 = vmatpush1.bf16.msra.mxu0 %v660
      %679 = vmatprep.subr.bf16.mxu0 0
      %680 = vmatpush1.bf16.msra.mxu0 %v661
      %681 = vmatprep.subr.bf16.mxu0 0
      %682 = vmatpush1.bf16.msra.mxu0 %v662
      %683 = vmatprep.subr.bf16.mxu0 0
      %684 = vmatpush1.bf16.msra.mxu0 %v663
      %685 = vmatprep.subr.bf16.mxu0 0
      %686 = vmatpush1.bf16.msra.mxu0 %v664
      %687 = vmatprep.subr.bf16.mxu0 0
      %688 = vmatpush1.bf16.msra.mxu0 %v665
      %689 = vmatprep.subr.bf16.mxu0 0
      %690 = vmatpush1.bf16.msra.mxu0 %v666
      %691 = vmatprep.subr.bf16.mxu0 0
      %692 = vmatpush1.bf16.msra.mxu0 0
      %693 = vmatprep.subr.bf16.mxu0 0
      %694 = vmatpush1.bf16.msra.mxu0 0
      %695 = vmatprep.subr.bf16.mxu0 0
      %696 = vmatpush1.bf16.msra.mxu0 0
      %697 = vmatprep.subr.bf16.mxu0 0
      %698 = vmatpush1.bf16.msra.mxu0 0
      %699 = vmatprep.subr.bf16.mxu0 0
      %700 = vmatpush1.bf16.msra.mxu0 0
      %701 = vmatprep.subr.bf16.mxu0 0
      %702 = vmatpush1.bf16.msra.mxu0 0
      %703 = vmatprep.subr.bf16.mxu0 0
      %704 = vmatpush1.bf16.msra.mxu0 0
      %705 = vmatprep.subr.bf16.mxu0 0
      %706 = vmatpush1.bf16.msra.mxu0 0
      %707 = vmatprep.mubr.bf16.mxu0 0
      %708 = vmatmul.mubr.bf16.gmra.mrb[0].mxu0 %v619
      %v709 = vpop.f32.mrb[0].mxu0
      %v710 = vadd.f32 0.0, %v709
      %v711 = vpop.f32.mrb[0].mxu0
      %v712 = vpop.f32.mrb[0].mxu0
      %v713 = vadd.f32 0.0, %v712
      %v714 = vpop.f32.mrb[0].mxu0
      %715 = vmatprep.mubr.bf16.mxu0 0
      %716 = vmatmul.mubr.bf16.gmra.mrb[0].mxu0 %v620
      %v717 = vpop.f32.mrb[0].mxu0
      %v718 = vadd.f32 0.0, %v717
      %v719 = vpop.f32.mrb[0].mxu0
      %v720 = vpop.f32.mrb[0].mxu0
      %v721 = vadd.f32 0.0, %v720
      %v722 = vpop.f32.mrb[0].mxu0
      %723 = vmatprep.mubr.bf16.mxu0 0
      %724 = vmatmul.mubr.bf16.gmra.mrb[0].mxu0 %v621
      %v725 = vpop.f32.mrb[0].mxu0
      %v726 = vadd.f32 0.0, %v725
      %v727 = vpop.f32.mrb[0].mxu0
      %v728 = vpop.f32.mrb[0].mxu0
      %v729 = vadd.f32 0.0, %v728
      %v730 = vpop.f32.mrb[0].mxu0
      %731 = vmatprep.mubr.bf16.mxu0 0
      %732 = vmatmul.mubr.bf16.gmra.mrb[0].mxu0 %v622
      %v733 = vpop.f32.mrb[0].mxu0
      %v734 = vadd.f32 0.0, %v733
      %v735 = vpop.f32.mrb[0].mxu0
      %v736 = vpop.f32.mrb[0].mxu0
      %v737 = vadd.f32 0.0, %v736
      %v738 = vpop.f32.mrb[0].mxu0
      %739 = vmatprep.mubr.bf16.mxu0 0
      %740 = vmatmul.mubr.bf16.gmra.mrb[0].mxu0 %v623
      %v741 = vpop.f32.mrb[0].mxu0
      %v742 = vadd.f32 0.0, %v741
      %v743 = vpop.f32.mrb[0].mxu0
      %v744 = vpop.f32.mrb[0].mxu0
      %v745 = vadd.f32 0.0, %v744
      %v746 = vpop.f32.mrb[0].mxu0
      %747 = vmatprep.mubr.bf16.mxu0 0
      %748 = vmatmul.mubr.bf16.gmra.mrb[0].mxu0 %v624
      %v749 = vpop.f32.mrb[0].mxu0
      %v750 = vadd.f32 0.0, %v749
      %v751 = vpop.f32.mrb[0].mxu0
      %v752 = vpop.f32.mrb[0].mxu0
      %v753 = vadd.f32 0.0, %v752
      %v754 = vpop.f32.mrb[0].mxu0
      %755 = vmatprep.mubr.bf16.mxu0 0
      %756 = vmatmul.mubr.bf16.gmra.mrb[0].mxu0 %v625
      %v757 = vpop.f32.mrb[0].mxu0
      %v758 = vadd.f32 0.0, %v757
      %v759 = vpop.f32.mrb[0].mxu0
      %v760 = vpop.f32.mrb[0].mxu0
      %v761 = vadd.f32 0.0, %v760
      %v762 = vpop.f32.mrb[0].mxu0
      %763 = vmatprep.mubr.bf16.mxu0 0
      %764 = vmatmul.mubr.bf16.gmra.mrb[0].mxu0 %v626
      %v765 = vpop.f32.mrb[0].mxu0
      %v766 = vadd.f32 0.0, %v765
      %v767 = vpop.f32.mrb[0].mxu0
      %v768 = vpop.f32.mrb[0].mxu0
      %v769 = vadd.f32 0.0, %v768
      %v770 = vpop.f32.mrb[0].mxu0
      %771 = vdwg.mxu0
      %772 = vrot.lane.b32.xlu0 %v249, 64
      %v773 = vpop.permute.xlu0 %772
      %774 = vrot.lane.b32.xlu0 %v250, 64
      %v775 = vpop.permute.xlu0 %774
      %776 = vrot.lane.b32.xlu0 %v251, 64
      %v777 = vpop.permute.xlu0 %776
      %778 = vrot.lane.b32.xlu0 %v252, 64
      %v779 = vpop.permute.xlu0 %778
      %780 = vrot.lane.b32.xlu0 %v253, 64
      %v781 = vpop.permute.xlu0 %780
      %782 = vrot.lane.b32.xlu0 %v254, 64
      %v783 = vpop.permute.xlu0 %782
      %784 = vrot.lane.b32.xlu0 %v255, 64
      %v785 = vpop.permute.xlu0 %784
      %786 = vrot.lane.b32.xlu0 %v256, 64
      %v787 = vpop.permute.xlu0 %786
      %788 = vrot.lane.b32.xlu0 %v289, 64
      %v789 = vpop.permute.xlu0 %788
      %790 = vrot.lane.b32.xlu0 %v290, 64
      %v791 = vpop.permute.xlu0 %790
      %792 = vrot.lane.b32.xlu0 %v291, 64
      %v793 = vpop.permute.xlu0 %792
      %794 = vrot.lane.b32.xlu0 %v292, 64
      %v795 = vpop.permute.xlu0 %794
      %796 = vrot.lane.b32.xlu0 %v293, 64
      %v797 = vpop.permute.xlu0 %796
      %798 = vrot.lane.b32.xlu0 %v294, 64
      %v799 = vpop.permute.xlu0 %798
      %800 = vrot.lane.b32.xlu0 %v295, 64
      %v801 = vpop.permute.xlu0 %800
      %802 = vrot.lane.b32.xlu0 %v296, 64
      %v803 = vpop.permute.xlu0 %802
      %v805 = vsel %vm297, %v773, 0
      %v808 = vsel %vm297, %v775, 0
      %v811 = vsel %vm297, %v777, 0
      %v814 = vsel %vm297, %v779, 0
      %v817 = vsel %vm297, %v781, 0
      %v820 = vsel %vm297, %v783, 0
      %v823 = vsel %vm297, %v785, 0
      %v826 = vsel %vm297, %v787, 0
      %v829 = vsel %vm297, %v789, 0
      %v832 = vsel %vm297, %v791, 0
      %v835 = vsel %vm297, %v793, 0
      %v838 = vsel %vm297, %v795, 0
      %v841 = vsel %vm297, %v797, 0
      %v844 = vsel %vm297, %v799, 0
      %v847 = vsel %vm297, %v801, 0
      %v850 = vsel %vm297, %v803, 0
      %852 = vmatprep.subr.bf16.mxu0 0
      %853 = vmatpush1.bf16.xpose.msra.mxu0 %v829
      %854 = vmatprep.subr.bf16.mxu0 0
      %855 = vmatpush1.bf16.xpose.msra.mxu0 %v832
      %856 = vmatprep.subr.bf16.mxu0 0
      %857 = vmatpush1.bf16.xpose.msra.mxu0 %v835
      %858 = vmatprep.subr.bf16.mxu0 0
      %859 = vmatpush1.bf16.xpose.msra.mxu0 %v838
      %860 = vmatprep.subr.bf16.mxu0 0
      %861 = vmatpush1.bf16.xpose.msra.mxu0 %v841
      %862 = vmatprep.subr.bf16.mxu0 0
      %863 = vmatpush1.bf16.xpose.msra.mxu0 %v844
      %864 = vmatprep.subr.bf16.mxu0 0
      %865 = vmatpush1.bf16.xpose.msra.mxu0 %v847
      %866 = vmatprep.subr.bf16.mxu0 0
      %867 = vmatpush1.bf16.xpose.msra.mxu0 %v850
      %868 = vmatprep.subr.bf16.mxu0 0
      %869 = vmatpush1.bf16.xpose.msra.mxu0 0
      %870 = vmatprep.subr.bf16.mxu0 0
      %871 = vmatpush1.bf16.xpose.msra.mxu0 0
      %872 = vmatprep.subr.bf16.mxu0 0
      %873 = vmatpush1.bf16.xpose.msra.mxu0 0
      %874 = vmatprep.subr.bf16.mxu0 0
      %875 = vmatpush1.bf16.xpose.msra.mxu0 0
      %876 = vmatprep.subr.bf16.mxu0 0
      %877 = vmatpush1.bf16.xpose.msra.mxu0 0
      %878 = vmatprep.subr.bf16.mxu0 0
      %879 = vmatpush1.bf16.xpose.msra.mxu0 0
      %880 = vmatprep.subr.bf16.mxu0 0
      %881 = vmatpush1.bf16.xpose.msra.mxu0 0
      %882 = vmatprep.subr.bf16.mxu0 0
      %883 = vmatpush1.bf16.xpose.msra.mxu0 0
      %884 = vmatprep.mubr.bf16.mxu0 0
      %885 = vmatmul.mubr.bf16.gmra.mrb[0].mxu0 %v805
      %v886 = vpop.f32.mrb[0].mxu0
      %v887 = vadd.f32 0.0, %v886
      %v888 = vpop.f32.mrb[0].mxu0
      %v889 = vpop.f32.mrb[0].mxu0
      %v890 = vadd.f32 0.0, %v889
      %v891 = vpop.f32.mrb[0].mxu0
      %892 = vmatprep.mubr.bf16.mxu0 0
      %893 = vmatmul.mubr.bf16.gmra.mrb[0].mxu0 %v808
      %v894 = vpop.f32.mrb[0].mxu0
      %v895 = vadd.f32 0.0, %v894
      %v896 = vpop.f32.mrb[0].mxu0
      %v897 = vpop.f32.mrb[0].mxu0
      %v898 = vadd.f32 0.0, %v897
      %v899 = vpop.f32.mrb[0].mxu0
      %900 = vmatprep.mubr.bf16.mxu0 0
      %901 = vmatmul.mubr.bf16.gmra.mrb[0].mxu0 %v811
      %v902 = vpop.f32.mrb[0].mxu0
      %v903 = vadd.f32 0.0, %v902
      %v904 = vpop.f32.mrb[0].mxu0
      %v905 = vpop.f32.mrb[0].mxu0
      %v906 = vadd.f32 0.0, %v905
      %v907 = vpop.f32.mrb[0].mxu0
      %908 = vmatprep.mubr.bf16.mxu0 0
      %909 = vmatmul.mubr.bf16.gmra.mrb[0].mxu0 %v814
      %v910 = vpop.f32.mrb[0].mxu0
      %v911 = vadd.f32 0.0, %v910
      %v912 = vpop.f32.mrb[0].mxu0
      %v913 = vpop.f32.mrb[0].mxu0
      %v914 = vadd.f32 0.0, %v913
      %v915 = vpop.f32.mrb[0].mxu0
      %916 = vmatprep.mubr.bf16.mxu0 0
      %917 = vmatmul.mubr.bf16.gmra.mrb[0].mxu0 %v817
      %v918 = vpop.f32.mrb[0].mxu0
      %v919 = vadd.f32 0.0, %v918
      %v920 = vpop.f32.mrb[0].mxu0
      %v921 = vpop.f32.mrb[0].mxu0
      %v922 = vadd.f32 0.0, %v921
      %v923 = vpop.f32.mrb[0].mxu0
      %924 = vmatprep.mubr.bf16.mxu0 0
      %925 = vmatmul.mubr.bf16.gmra.mrb[0].mxu0 %v820
      %v926 = vpop.f32.mrb[0].mxu0
      %v927 = vadd.f32 0.0, %v926
      %v928 = vpop.f32.mrb[0].mxu0
      %v929 = vpop.f32.mrb[0].mxu0
      %v930 = vadd.f32 0.0, %v929
      %v931 = vpop.f32.mrb[0].mxu0
      %932 = vmatprep.mubr.bf16.mxu0 0
      %933 = vmatmul.mubr.bf16.gmra.mrb[0].mxu0 %v823
      %v934 = vpop.f32.mrb[0].mxu0
      %v935 = vadd.f32 0.0, %v934
      %v936 = vpop.f32.mrb[0].mxu0
      %v937 = vpop.f32.mrb[0].mxu0
      %v938 = vadd.f32 0.0, %v937
      %v939 = vpop.f32.mrb[0].mxu0
      %940 = vmatprep.mubr.bf16.mxu0 0
      %941 = vmatmul.mubr.bf16.gmra.mrb[0].mxu0 %v826
      %v942 = vpop.f32.mrb[0].mxu0
      %v943 = vadd.f32 0.0, %v942
      %v944 = vpop.f32.mrb[0].mxu0
      %v945 = vpop.f32.mrb[0].mxu0
      %v946 = vadd.f32 0.0, %v945
      %v947 = vpop.f32.mrb[0].mxu0
      %948 = vdwg.mxu0
      %v949 = vmul.f32 %v887, 0.125
      %v950 = vmul.f32 %v890, 0.125
      %v951 = vmul.f32 %v895, 0.125
      %v952 = vmul.f32 %v898, 0.125
      %v953 = vmul.f32 %v903, 0.125
      %v954 = vmul.f32 %v906, 0.125
      %v955 = vmul.f32 %v911, 0.125
      %v956 = vmul.f32 %v914, 0.125
      %v957 = vmul.f32 %v919, 0.125
      %v958 = vmul.f32 %v922, 0.125
      %v959 = vmul.f32 %v927, 0.125
      %v960 = vmul.f32 %v930, 0.125
      %v961 = vmul.f32 %v935, 0.125
      %v962 = vmul.f32 %v938, 0.125
      %v963 = vmul.f32 %v943, 0.125
      %v964 = vmul.f32 %v946, 0.125
      %v965 = vadd.f32 %v949, %v153
      %v966 = vadd.f32 %v950, %v154
      %v967 = vadd.f32 %v951, %v155
      %v968 = vadd.f32 %v952, %v156
      %v969 = vadd.f32 %v953, %v157
      %v970 = vadd.f32 %v954, %v158
      %v971 = vadd.f32 %v955, %v159
      %v972 = vadd.f32 %v956, %v160
      %v973 = vadd.f32 %v957, %v161
      %v974 = vadd.f32 %v958, %v162
      %v975 = vadd.f32 %v959, %v163
      %v976 = vadd.f32 %v960, %v164
      %v977 = vadd.f32 %v961, %v165
      %v978 = vadd.f32 %v962, %v166
      %v979 = vadd.f32 %v963, %v167
      %v980 = vadd.f32 %v964, %v168
      %981 = vmax.xlane.f32.xlu0 %v965
      %v982 = vpop.xlane.xlu0 %981
      %983 = vmax.xlane.f32.xlu0 %v966
      %v984 = vpop.xlane.xlu0 %983
      %985 = vmax.xlane.f32.xlu0 %v967
      %v986 = vpop.xlane.xlu0 %985
      %987 = vmax.xlane.f32.xlu0 %v968
      %v988 = vpop.xlane.xlu0 %987
      %989 = vmax.xlane.f32.xlu0 %v969
      %v990 = vpop.xlane.xlu0 %989
      %991 = vmax.xlane.f32.xlu0 %v970
      %v992 = vpop.xlane.xlu0 %991
      %993 = vmax.xlane.f32.xlu0 %v971
      %v994 = vpop.xlane.xlu0 %993
      %995 = vmax.xlane.f32.xlu0 %v972
      %v996 = vpop.xlane.xlu0 %995
      %997 = vmax.xlane.f32.xlu0 %v973
      %v998 = vpop.xlane.xlu0 %997
      %999 = vmax.xlane.f32.xlu0 %v974
      %v1000 = vpop.xlane.xlu0 %999
      %1001 = vmax.xlane.f32.xlu0 %v975
      %v1002 = vpop.xlane.xlu0 %1001
      %1003 = vmax.xlane.f32.xlu0 %v976
      %v1004 = vpop.xlane.xlu0 %1003
      %1005 = vmax.xlane.f32.xlu0 %v977
      %v1006 = vpop.xlane.xlu0 %1005
      %1007 = vmax.xlane.f32.xlu0 %v978
      %v1008 = vpop.xlane.xlu0 %1007
      %1009 = vmax.xlane.f32.xlu0 %v979
      %v1010 = vpop.xlane.xlu0 %1009
      %1011 = vmax.xlane.f32.xlu0 %v980
      %v1012 = vpop.xlane.xlu0 %1011
      %v1013 = vsub.f32 %v965, %v982
      %v1014 = vsub.f32 %v966, %v984
      %v1015 = vsub.f32 %v967, %v986
      %v1016 = vsub.f32 %v968, %v988
      %v1017 = vsub.f32 %v969, %v990
      %v1018 = vsub.f32 %v970, %v992
      %v1019 = vsub.f32 %v971, %v994
      %v1020 = vsub.f32 %v972, %v996
      %v1021 = vsub.f32 %v973, %v998
      %v1022 = vsub.f32 %v974, %v1000
      %v1023 = vsub.f32 %v975, %v1002
      %v1024 = vsub.f32 %v976, %v1004
      %v1025 = vsub.f32 %v977, %v1006
      %v1026 = vsub.f32 %v978, %v1008
      %v1027 = vsub.f32 %v979, %v1010
      %v1028 = vsub.f32 %v980, %v1012
      %v1029 = vmul.f32 %v1013, 1.442695
      %v1030 = vpow.pop %v1029
      %v1031 = vmul.f32 %v1014, 1.442695
      %v1032 = vpow.pop %v1031
      %v1033 = vmul.f32 %v1015, 1.442695
      %v1034 = vpow.pop %v1033
      %v1035 = vmul.f32 %v1016, 1.442695
      %v1036 = vpow.pop %v1035
      %v1037 = vmul.f32 %v1017, 1.442695
      %v1038 = vpow.pop %v1037
      %v1039 = vmul.f32 %v1018, 1.442695
      %v1040 = vpow.pop %v1039
      %v1041 = vmul.f32 %v1019, 1.442695
      %v1042 = vpow.pop %v1041
      %v1043 = vmul.f32 %v1020, 1.442695
      %v1044 = vpow.pop %v1043
      %v1045 = vmul.f32 %v1021, 1.442695
      %v1046 = vpow.pop %v1045
      %v1047 = vmul.f32 %v1022, 1.442695
      %v1048 = vpow.pop %v1047
      %v1049 = vmul.f32 %v1023, 1.442695
      %v1050 = vpow.pop %v1049
      %v1051 = vmul.f32 %v1024, 1.442695
      %v1052 = vpow.pop %v1051
      %v1053 = vmul.f32 %v1025, 1.442695
      %v1054 = vpow.pop %v1053
      %v1055 = vmul.f32 %v1026, 1.442695
      %v1056 = vpow.pop %v1055
      %v1057 = vmul.f32 %v1027, 1.442695
      %v1058 = vpow.pop %v1057
      %v1059 = vmul.f32 %v1028, 1.442695
      %v1060 = vpow.pop %v1059
      %1061 = vadd.xlane.f32.xlu0 %v1030
      %v1062 = vpop.xlane.xlu0 %1061
      %1063 = vadd.xlane.f32.xlu0 %v1032
      %v1064 = vpop.xlane.xlu0 %1063
      %1065 = vadd.xlane.f32.xlu0 %v1034
      %v1066 = vpop.xlane.xlu0 %1065
      %1067 = vadd.xlane.f32.xlu0 %v1036
      %v1068 = vpop.xlane.xlu0 %1067
      %1069 = vadd.xlane.f32.xlu0 %v1038
      %v1070 = vpop.xlane.xlu0 %1069
      %1071 = vadd.xlane.f32.xlu0 %v1040
      %v1072 = vpop.xlane.xlu0 %1071
      %1073 = vadd.xlane.f32.xlu0 %v1042
      %v1074 = vpop.xlane.xlu0 %1073
      %1075 = vadd.xlane.f32.xlu0 %v1044
      %v1076 = vpop.xlane.xlu0 %1075
      %1077 = vadd.xlane.f32.xlu0 %v1046
      %v1078 = vpop.xlane.xlu0 %1077
      %1079 = vadd.xlane.f32.xlu0 %v1048
      %v1080 = vpop.xlane.xlu0 %1079
      %1081 = vadd.xlane.f32.xlu0 %v1050
      %v1082 = vpop.xlane.xlu0 %1081
      %1083 = vadd.xlane.f32.xlu0 %v1052
      %v1084 = vpop.xlane.xlu0 %1083
      %1085 = vadd.xlane.f32.xlu0 %v1054
      %v1086 = vpop.xlane.xlu0 %1085
      %1087 = vadd.xlane.f32.xlu0 %v1056
      %v1088 = vpop.xlane.xlu0 %1087
      %1089 = vadd.xlane.f32.xlu0 %v1058
      %v1090 = vpop.xlane.xlu0 %1089
      %1091 = vadd.xlane.f32.xlu0 %v1060
      %v1092 = vpop.xlane.xlu0 %1091
      %v1093 = vrcp.pop %v1062
      %v1094 = vrcp.pop %v1064
      %v1095 = vrcp.pop %v1066
      %v1096 = vrcp.pop %v1068
      %v1097 = vrcp.pop %v1070
      %v1098 = vrcp.pop %v1072
      %v1099 = vrcp.pop %v1074
      %v1100 = vrcp.pop %v1076
      %v1101 = vrcp.pop %v1078
      %v1102 = vrcp.pop %v1080
      %v1103 = vrcp.pop %v1082
      %v1104 = vrcp.pop %v1084
      %v1105 = vrcp.pop %v1086
      %v1106 = vrcp.pop %v1088
      %v1107 = vrcp.pop %v1090
      %v1108 = vrcp.pop %v1092
      %v1109 = vmul.f32 %v1030, %v1093
      %v1110 = vmul.f32 %v1032, %v1094
      %v1111 = vmul.f32 %v1034, %v1095
      %v1112 = vmul.f32 %v1036, %v1096
      %v1113 = vmul.f32 %v1038, %v1097
      %v1114 = vmul.f32 %v1040, %v1098
      %v1115 = vmul.f32 %v1042, %v1099
      %v1116 = vmul.f32 %v1044, %v1100
      %v1117 = vmul.f32 %v1046, %v1101
      %v1118 = vmul.f32 %v1048, %v1102
      %v1119 = vmul.f32 %v1050, %v1103
      %v1120 = vmul.f32 %v1052, %v1104
      %v1121 = vmul.f32 %v1054, %v1105
      %v1122 = vmul.f32 %v1056, %v1106
      %v1123 = vmul.f32 %v1058, %v1107
      %v1124 = vmul.f32 %v1060, %v1108
      %v1125 = vpack.c.bf16 %v1110, %v1109
      %v1126 = vpack.c.bf16 %v1112, %v1111
      %v1127 = vpack.c.bf16 %v1114, %v1113
      %v1128 = vpack.c.bf16 %v1116, %v1115
      %v1129 = vpack.c.bf16 %v1118, %v1117
      %v1130 = vpack.c.bf16 %v1120, %v1119
      %v1131 = vpack.c.bf16 %v1122, %v1121
      %v1132 = vpack.c.bf16 %v1124, %v1123
      %1133 = vrot.lane.b32.xlu0 %v659, 64
      %v1134 = vpop.permute.xlu0 %1133
      %1135 = vrot.lane.b32.xlu0 %v660, 64
      %v1136 = vpop.permute.xlu0 %1135
      %1137 = vrot.lane.b32.xlu0 %v661, 64
      %v1138 = vpop.permute.xlu0 %1137
      %1139 = vrot.lane.b32.xlu0 %v662, 64
      %v1140 = vpop.permute.xlu0 %1139
      %1141 = vrot.lane.b32.xlu0 %v663, 64
      %v1142 = vpop.permute.xlu0 %1141
      %1143 = vrot.lane.b32.xlu0 %v664, 64
      %v1144 = vpop.permute.xlu0 %1143
      %1145 = vrot.lane.b32.xlu0 %v665, 64
      %v1146 = vpop.permute.xlu0 %1145
      %1147 = vrot.lane.b32.xlu0 %v666, 64
      %v1148 = vpop.permute.xlu0 %1147
      %1157 = vmatprep.subr.bf16.mxu0 0
      %1158 = vmatpush1.bf16.msra.mxu0 %v1134
      %1159 = vmatprep.subr.bf16.mxu0 0
      %1160 = vmatpush1.bf16.msra.mxu0 %v1136
      %1161 = vmatprep.subr.bf16.mxu0 0
      %1162 = vmatpush1.bf16.msra.mxu0 %v1138
      %1163 = vmatprep.subr.bf16.mxu0 0
      %1164 = vmatpush1.bf16.msra.mxu0 %v1140
      %1165 = vmatprep.subr.bf16.mxu0 0
      %1166 = vmatpush1.bf16.msra.mxu0 %v1142
      %1167 = vmatprep.subr.bf16.mxu0 0
      %1168 = vmatpush1.bf16.msra.mxu0 %v1144
      %1169 = vmatprep.subr.bf16.mxu0 0
      %1170 = vmatpush1.bf16.msra.mxu0 %v1146
      %1171 = vmatprep.subr.bf16.mxu0 0
      %1172 = vmatpush1.bf16.msra.mxu0 %v1148
      %1173 = vmatprep.subr.bf16.mxu0 0
      %1174 = vmatpush1.bf16.msra.mxu0 0
      %1175 = vmatprep.subr.bf16.mxu0 0
      %1176 = vmatpush1.bf16.msra.mxu0 0
      %1177 = vmatprep.subr.bf16.mxu0 0
      %1178 = vmatpush1.bf16.msra.mxu0 0
      %1179 = vmatprep.subr.bf16.mxu0 0
      %1180 = vmatpush1.bf16.msra.mxu0 0
      %1181 = vmatprep.subr.bf16.mxu0 0
      %1182 = vmatpush1.bf16.msra.mxu0 0
      %1183 = vmatprep.subr.bf16.mxu0 0
      %1184 = vmatpush1.bf16.msra.mxu0 0
      %1185 = vmatprep.subr.bf16.mxu0 0
      %1186 = vmatpush1.bf16.msra.mxu0 0
      %1187 = vmatprep.subr.bf16.mxu0 0
      %1188 = vmatpush1.bf16.msra.mxu0 0
      %1189 = vmatprep.mubr.bf16.mxu0 0
      %1190 = vmatmul.mubr.bf16.gmra.mrb[0].mxu0 %v1125
      %v1191 = vpop.f32.mrb[0].mxu0
      %v1192 = vadd.f32 0.0, %v1191
      %v1193 = vpop.f32.mrb[0].mxu0
      %v1194 = vpop.f32.mrb[0].mxu0
      %v1195 = vadd.f32 0.0, %v1194
      %v1196 = vpop.f32.mrb[0].mxu0
      %1197 = vmatprep.mubr.bf16.mxu0 0
      %1198 = vmatmul.mubr.bf16.gmra.mrb[0].mxu0 %v1126
      %v1199 = vpop.f32.mrb[0].mxu0
      %v1200 = vadd.f32 0.0, %v1199
      %v1201 = vpop.f32.mrb[0].mxu0
      %v1202 = vpop.f32.mrb[0].mxu0
      %v1203 = vadd.f32 0.0, %v1202
      %v1204 = vpop.f32.mrb[0].mxu0
      %1205 = vmatprep.mubr.bf16.mxu0 0
      %1206 = vmatmul.mubr.bf16.gmra.mrb[0].mxu0 %v1127
      %v1207 = vpop.f32.mrb[0].mxu0
      %v1208 = vadd.f32 0.0, %v1207
      %v1209 = vpop.f32.mrb[0].mxu0
      %v1210 = vpop.f32.mrb[0].mxu0
      %v1211 = vadd.f32 0.0, %v1210
      %v1212 = vpop.f32.mrb[0].mxu0
      %1213 = vmatprep.mubr.bf16.mxu0 0
      %1214 = vmatmul.mubr.bf16.gmra.mrb[0].mxu0 %v1128
      %v1215 = vpop.f32.mrb[0].mxu0
      %v1216 = vadd.f32 0.0, %v1215
      %v1217 = vpop.f32.mrb[0].mxu0
      %v1218 = vpop.f32.mrb[0].mxu0
      %v1219 = vadd.f32 0.0, %v1218
      %v1220 = vpop.f32.mrb[0].mxu0
      %1221 = vmatprep.mubr.bf16.mxu0 0
      %1222 = vmatmul.mubr.bf16.gmra.mrb[0].mxu0 %v1129
      %v1223 = vpop.f32.mrb[0].mxu0
      %v1224 = vadd.f32 0.0, %v1223
      %v1225 = vpop.f32.mrb[0].mxu0
      %v1226 = vpop.f32.mrb[0].mxu0
      %v1227 = vadd.f32 0.0, %v1226
      %v1228 = vpop.f32.mrb[0].mxu0
      %1229 = vmatprep.mubr.bf16.mxu0 0
      %1230 = vmatmul.mubr.bf16.gmra.mrb[0].mxu0 %v1130
      %v1231 = vpop.f32.mrb[0].mxu0
      %v1232 = vadd.f32 0.0, %v1231
      %v1233 = vpop.f32.mrb[0].mxu0
      %v1234 = vpop.f32.mrb[0].mxu0
      %v1235 = vadd.f32 0.0, %v1234
      %v1236 = vpop.f32.mrb[0].mxu0
      %1237 = vmatprep.mubr.bf16.mxu0 0
      %1238 = vmatmul.mubr.bf16.gmra.mrb[0].mxu0 %v1131
      %v1239 = vpop.f32.mrb[0].mxu0
      %v1240 = vadd.f32 0.0, %v1239
      %v1241 = vpop.f32.mrb[0].mxu0
      %v1242 = vpop.f32.mrb[0].mxu0
      %v1243 = vadd.f32 0.0, %v1242
      %v1244 = vpop.f32.mrb[0].mxu0
      %1245 = vmatprep.mubr.bf16.mxu0 0
      %1246 = vmatmul.mubr.bf16.gmra.mrb[0].mxu0 %v1132
      %v1247 = vpop.f32.mrb[0].mxu0
      %v1248 = vadd.f32 0.0, %v1247
      %v1249 = vpop.f32.mrb[0].mxu0
      %v1250 = vpop.f32.mrb[0].mxu0
      %v1251 = vadd.f32 0.0, %v1250
      %v1252 = vpop.f32.mrb[0].mxu0
      %1253 = vdwg.mxu0
      %v1254 = vld [vmem:[%s111 + $0x4] sm:$0xf]
      %v1255 = vld [vmem:[%s111 + $0x1c] sm:$0xf]
      %v1256 = vld [vmem:[%s111 + $0x34] sm:$0xf]
      %v1257 = vld [vmem:[%s111 + $0x4c] sm:$0xf]
      %v1258 = vld [vmem:[%s111 + $0x64] sm:$0xf]
      %v1259 = vld [vmem:[%s111 + $0x7c] sm:$0xf]
      %v1260 = vld [vmem:[%s111 + $0x94] sm:$0xf]
      %v1261 = vld [vmem:[%s111 + $0xac] sm:$0xf]
      %v1262 = vld [vmem:[%s111 + $0xc4] sm:$0xf]
      %v1263 = vld [vmem:[%s111 + $0xdc] sm:$0xf]
      %v1264 = vld [vmem:[%s111 + $0xf4] sm:$0xf]
      %v1265 = vld [vmem:[%s111 + $0x10c] sm:$0xf]
      %v1266 = vld [vmem:[%s111 + $0x124] sm:$0xf]
      %v1267 = vld [vmem:[%s111 + $0x13c] sm:$0xf]
      %v1268 = vld [vmem:[%s111 + $0x154] sm:$0xf]
      %v1269 = vld [vmem:[%s111 + $0x16c] sm:$0xf]
      %v1270 = vld [vmem:[%s111 + $0xc] sm:$0xf]
      %v1271 = vld [vmem:[%s111 + $0x24] sm:$0xf]
      %v1272 = vld [vmem:[%s111 + $0x3c] sm:$0xf]
      %v1273 = vld [vmem:[%s111 + $0x54] sm:$0xf]
      %v1274 = vld [vmem:[%s111 + $0x6c] sm:$0xf]
      %v1275 = vld [vmem:[%s111 + $0x84] sm:$0xf]
      %v1276 = vld [vmem:[%s111 + $0x9c] sm:$0xf]
      %v1277 = vld [vmem:[%s111 + $0xb4] sm:$0xf]
      %v1278 = vld [vmem:[%s111 + $0xcc] sm:$0xf]
      %v1279 = vld [vmem:[%s111 + $0xe4] sm:$0xf]
      %v1280 = vld [vmem:[%s111 + $0xfc] sm:$0xf]
      %v1281 = vld [vmem:[%s111 + $0x114] sm:$0xf]
      %v1282 = vld [vmem:[%s111 + $0x12c] sm:$0xf]
      %v1283 = vld [vmem:[%s111 + $0x144] sm:$0xf]
      %v1284 = vld [vmem:[%s111 + $0x15c] sm:$0xf]
      %v1285 = vld [vmem:[%s111 + $0x174] sm:$0xf]
      %v1286 = vld [vmem:[%s111 + $0x14] sm:$0xf]
      %v1287 = vld [vmem:[%s111 + $0x2c] sm:$0xf]
      %v1288 = vld [vmem:[%s111 + $0x44] sm:$0xf]
      %v1289 = vld [vmem:[%s111 + $0x5c] sm:$0xf]
      %v1290 = vld [vmem:[%s111 + $0x74] sm:$0xf]
      %v1291 = vld [vmem:[%s111 + $0x8c] sm:$0xf]
      %v1292 = vld [vmem:[%s111 + $0xa4] sm:$0xf]
      %v1293 = vld [vmem:[%s111 + $0xbc] sm:$0xf]
      %v1294 = vld [vmem:[%s111 + $0xd4] sm:$0xf]
      %v1295 = vld [vmem:[%s111 + $0xec] sm:$0xf]
      %v1296 = vld [vmem:[%s111 + $0x104] sm:$0xf]
      %v1297 = vld [vmem:[%s111 + $0x11c] sm:$0xf]
      %v1298 = vld [vmem:[%s111 + $0x134] sm:$0xf]
      %v1299 = vld [vmem:[%s111 + $0x14c] sm:$0xf]
      %v1300 = vld [vmem:[%s111 + $0x164] sm:$0xf]
      %v1301 = vld [vmem:[%s111 + $0x17c] sm:$0xf]
      %v1318 = vunpack.c.l.b16 %v1254
      %v1319 = vunpack.c.l.b16 %v1255
      %v1320 = vunpack.c.l.b16 %v1256
      %v1321 = vunpack.c.l.b16 %v1257
      %v1322 = vunpack.c.l.b16 %v1258
      %v1323 = vunpack.c.l.b16 %v1259
      %v1324 = vunpack.c.l.b16 %v1260
      %v1325 = vunpack.c.l.b16 %v1261
      %v1326 = vunpack.c.l.b16 %v1262
      %v1327 = vunpack.c.l.b16 %v1263
      %v1328 = vunpack.c.l.b16 %v1264
      %v1329 = vunpack.c.l.b16 %v1265
      %v1330 = vunpack.c.l.b16 %v1266
      %v1331 = vunpack.c.l.b16 %v1267
      %v1332 = vunpack.c.l.b16 %v1268
      %v1333 = vunpack.c.l.b16 %v1269
      %v1334 = vpack.c.b16 %v1319, %v1318
      %v1335 = vpack.c.b16 %v1321, %v1320
      %v1336 = vpack.c.b16 %v1323, %v1322
      %v1337 = vpack.c.b16 %v1325, %v1324
      %v1338 = vpack.c.b16 %v1327, %v1326
      %v1339 = vpack.c.b16 %v1329, %v1328
      %v1340 = vpack.c.b16 %v1331, %v1330
      %v1341 = vpack.c.b16 %v1333, %v1332
      %v1358 = vunpack.c.l.b16 %v1270
      %v1359 = vunpack.c.l.b16 %v1271
      %v1360 = vunpack.c.l.b16 %v1272
      %v1361 = vunpack.c.l.b16 %v1273
      %v1362 = vunpack.c.l.b16 %v1274
      %v1363 = vunpack.c.l.b16 %v1275
      %v1364 = vunpack.c.l.b16 %v1276
      %v1365 = vunpack.c.l.b16 %v1277
      %v1366 = vunpack.c.l.b16 %v1278
      %v1367 = vunpack.c.l.b16 %v1279
      %v1368 = vunpack.c.l.b16 %v1280
      %v1369 = vunpack.c.l.b16 %v1281
      %v1370 = vunpack.c.l.b16 %v1282
      %v1371 = vunpack.c.l.b16 %v1283
      %v1372 = vunpack.c.l.b16 %v1284
      %v1373 = vunpack.c.l.b16 %v1285
      %v1374 = vpack.c.b16 %v1359, %v1358
      %v1375 = vpack.c.b16 %v1361, %v1360
      %v1376 = vpack.c.b16 %v1363, %v1362
      %v1377 = vpack.c.b16 %v1365, %v1364
      %v1378 = vpack.c.b16 %v1367, %v1366
      %v1379 = vpack.c.b16 %v1369, %v1368
      %v1380 = vpack.c.b16 %v1371, %v1370
      %v1381 = vpack.c.b16 %v1373, %v1372
      %v1383 = vsel %vm297, %v1334, 0
      %v1386 = vsel %vm297, %v1335, 0
      %v1389 = vsel %vm297, %v1336, 0
      %v1392 = vsel %vm297, %v1337, 0
      %v1395 = vsel %vm297, %v1338, 0
      %v1398 = vsel %vm297, %v1339, 0
      %v1401 = vsel %vm297, %v1340, 0
      %v1404 = vsel %vm297, %v1341, 0
      %v1407 = vsel %vm297, %v1374, 0
      %v1410 = vsel %vm297, %v1375, 0
      %v1413 = vsel %vm297, %v1376, 0
      %v1416 = vsel %vm297, %v1377, 0
      %v1419 = vsel %vm297, %v1378, 0
      %v1422 = vsel %vm297, %v1379, 0
      %v1425 = vsel %vm297, %v1380, 0
      %v1428 = vsel %vm297, %v1381, 0
      %1430 = vmatprep.subr.bf16.mxu0 0
      %1431 = vmatpush1.bf16.xpose.msra.mxu0 %v1407
      %1432 = vmatprep.subr.bf16.mxu0 0
      %1433 = vmatpush1.bf16.xpose.msra.mxu0 %v1410
      %1434 = vmatprep.subr.bf16.mxu0 0
      %1435 = vmatpush1.bf16.xpose.msra.mxu0 %v1413
      %1436 = vmatprep.subr.bf16.mxu0 0
      %1437 = vmatpush1.bf16.xpose.msra.mxu0 %v1416
      %1438 = vmatprep.subr.bf16.mxu0 0
      %1439 = vmatpush1.bf16.xpose.msra.mxu0 %v1419
      %1440 = vmatprep.subr.bf16.mxu0 0
      %1441 = vmatpush1.bf16.xpose.msra.mxu0 %v1422
      %1442 = vmatprep.subr.bf16.mxu0 0
      %1443 = vmatpush1.bf16.xpose.msra.mxu0 %v1425
      %1444 = vmatprep.subr.bf16.mxu0 0
      %1445 = vmatpush1.bf16.xpose.msra.mxu0 %v1428
      %1446 = vmatprep.subr.bf16.mxu0 0
      %1447 = vmatpush1.bf16.xpose.msra.mxu0 0
      %1448 = vmatprep.subr.bf16.mxu0 0
      %1449 = vmatpush1.bf16.xpose.msra.mxu0 0
      %1450 = vmatprep.subr.bf16.mxu0 0
      %1451 = vmatpush1.bf16.xpose.msra.mxu0 0
      %1452 = vmatprep.subr.bf16.mxu0 0
      %1453 = vmatpush1.bf16.xpose.msra.mxu0 0
      %1454 = vmatprep.subr.bf16.mxu0 0
      %1455 = vmatpush1.bf16.xpose.msra.mxu0 0
      %1456 = vmatprep.subr.bf16.mxu0 0
      %1457 = vmatpush1.bf16.xpose.msra.mxu0 0
      %1458 = vmatprep.subr.bf16.mxu0 0
      %1459 = vmatpush1.bf16.xpose.msra.mxu0 0
      %1460 = vmatprep.subr.bf16.mxu0 0
      %1461 = vmatpush1.bf16.xpose.msra.mxu0 0
      %1462 = vmatprep.mubr.bf16.mxu0 0
      %1463 = vmatmul.mubr.bf16.gmra.mrb[0].mxu0 %v1383
      %v1464 = vpop.f32.mrb[0].mxu0
      %v1465 = vadd.f32 0.0, %v1464
      %v1466 = vpop.f32.mrb[0].mxu0
      %v1467 = vpop.f32.mrb[0].mxu0
      %v1468 = vadd.f32 0.0, %v1467
      %v1469 = vpop.f32.mrb[0].mxu0
      %1470 = vmatprep.mubr.bf16.mxu0 0
      %1471 = vmatmul.mubr.bf16.gmra.mrb[0].mxu0 %v1386
      %v1472 = vpop.f32.mrb[0].mxu0
      %v1473 = vadd.f32 0.0, %v1472
      %v1474 = vpop.f32.mrb[0].mxu0
      %v1475 = vpop.f32.mrb[0].mxu0
      %v1476 = vadd.f32 0.0, %v1475
      %v1477 = vpop.f32.mrb[0].mxu0
      %1478 = vmatprep.mubr.bf16.mxu0 0
      %1479 = vmatmul.mubr.bf16.gmra.mrb[0].mxu0 %v1389
      %v1480 = vpop.f32.mrb[0].mxu0
      %v1481 = vadd.f32 0.0, %v1480
      %v1482 = vpop.f32.mrb[0].mxu0
      %v1483 = vpop.f32.mrb[0].mxu0
      %v1484 = vadd.f32 0.0, %v1483
      %v1485 = vpop.f32.mrb[0].mxu0
      %1486 = vmatprep.mubr.bf16.mxu0 0
      %1487 = vmatmul.mubr.bf16.gmra.mrb[0].mxu0 %v1392
      %v1488 = vpop.f32.mrb[0].mxu0
      %v1489 = vadd.f32 0.0, %v1488
      %v1490 = vpop.f32.mrb[0].mxu0
      %v1491 = vpop.f32.mrb[0].mxu0
      %v1492 = vadd.f32 0.0, %v1491
      %v1493 = vpop.f32.mrb[0].mxu0
      %1494 = vmatprep.mubr.bf16.mxu0 0
      %1495 = vmatmul.mubr.bf16.gmra.mrb[0].mxu0 %v1395
      %v1496 = vpop.f32.mrb[0].mxu0
      %v1497 = vadd.f32 0.0, %v1496
      %v1498 = vpop.f32.mrb[0].mxu0
      %v1499 = vpop.f32.mrb[0].mxu0
      %v1500 = vadd.f32 0.0, %v1499
      %v1501 = vpop.f32.mrb[0].mxu0
      %1502 = vmatprep.mubr.bf16.mxu0 0
      %1503 = vmatmul.mubr.bf16.gmra.mrb[0].mxu0 %v1398
      %v1504 = vpop.f32.mrb[0].mxu0
      %v1505 = vadd.f32 0.0, %v1504
      %v1506 = vpop.f32.mrb[0].mxu0
      %v1507 = vpop.f32.mrb[0].mxu0
      %v1508 = vadd.f32 0.0, %v1507
      %v1509 = vpop.f32.mrb[0].mxu0
      %1510 = vmatprep.mubr.bf16.mxu0 0
      %1511 = vmatmul.mubr.bf16.gmra.mrb[0].mxu0 %v1401
      %v1512 = vpop.f32.mrb[0].mxu0
      %v1513 = vadd.f32 0.0, %v1512
      %v1514 = vpop.f32.mrb[0].mxu0
      %v1515 = vpop.f32.mrb[0].mxu0
      %v1516 = vadd.f32 0.0, %v1515
      %v1517 = vpop.f32.mrb[0].mxu0
      %1518 = vmatprep.mubr.bf16.mxu0 0
      %1519 = vmatmul.mubr.bf16.gmra.mrb[0].mxu0 %v1404
      %v1520 = vpop.f32.mrb[0].mxu0
      %v1521 = vadd.f32 0.0, %v1520
      %v1522 = vpop.f32.mrb[0].mxu0
      %v1523 = vpop.f32.mrb[0].mxu0
      %v1524 = vadd.f32 0.0, %v1523
      %v1525 = vpop.f32.mrb[0].mxu0
      %1526 = vdwg.mxu0
      %v1527 = vmul.f32 %v1465, 0.125
      %v1528 = vmul.f32 %v1468, 0.125
      %v1529 = vmul.f32 %v1473, 0.125
      %v1530 = vmul.f32 %v1476, 0.125
      %v1531 = vmul.f32 %v1481, 0.125
      %v1532 = vmul.f32 %v1484, 0.125
      %v1533 = vmul.f32 %v1489, 0.125
      %v1534 = vmul.f32 %v1492, 0.125
      %v1535 = vmul.f32 %v1497, 0.125
      %v1536 = vmul.f32 %v1500, 0.125
      %v1537 = vmul.f32 %v1505, 0.125
      %v1538 = vmul.f32 %v1508, 0.125
      %v1539 = vmul.f32 %v1513, 0.125
      %v1540 = vmul.f32 %v1516, 0.125
      %v1541 = vmul.f32 %v1521, 0.125
      %v1542 = vmul.f32 %v1524, 0.125
      %v1543 = vadd.f32 %v1527, %v153
      %v1544 = vadd.f32 %v1528, %v154
      %v1545 = vadd.f32 %v1529, %v155
      %v1546 = vadd.f32 %v1530, %v156
      %v1547 = vadd.f32 %v1531, %v157
      %v1548 = vadd.f32 %v1532, %v158
      %v1549 = vadd.f32 %v1533, %v159
      %v1550 = vadd.f32 %v1534, %v160
      %v1551 = vadd.f32 %v1535, %v161
      %v1552 = vadd.f32 %v1536, %v162
      %v1553 = vadd.f32 %v1537, %v163
      %v1554 = vadd.f32 %v1538, %v164
      %v1555 = vadd.f32 %v1539, %v165
      %v1556 = vadd.f32 %v1540, %v166
      %v1557 = vadd.f32 %v1541, %v167
      %v1558 = vadd.f32 %v1542, %v168
      %1559 = vmax.xlane.f32.xlu0 %v1543
      %v1560 = vpop.xlane.xlu0 %1559
      %1561 = vmax.xlane.f32.xlu0 %v1544
      %v1562 = vpop.xlane.xlu0 %1561
      %1563 = vmax.xlane.f32.xlu0 %v1545
      %v1564 = vpop.xlane.xlu0 %1563
      %1565 = vmax.xlane.f32.xlu0 %v1546
      %v1566 = vpop.xlane.xlu0 %1565
      %1567 = vmax.xlane.f32.xlu0 %v1547
      %v1568 = vpop.xlane.xlu0 %1567
      %1569 = vmax.xlane.f32.xlu0 %v1548
      %v1570 = vpop.xlane.xlu0 %1569
      %1571 = vmax.xlane.f32.xlu0 %v1549
      %v1572 = vpop.xlane.xlu0 %1571
      %1573 = vmax.xlane.f32.xlu0 %v1550
      %v1574 = vpop.xlane.xlu0 %1573
      %1575 = vmax.xlane.f32.xlu0 %v1551
      %v1576 = vpop.xlane.xlu0 %1575
      %1577 = vmax.xlane.f32.xlu0 %v1552
      %v1578 = vpop.xlane.xlu0 %1577
      %1579 = vmax.xlane.f32.xlu0 %v1553
      %v1580 = vpop.xlane.xlu0 %1579
      %1581 = vmax.xlane.f32.xlu0 %v1554
      %v1582 = vpop.xlane.xlu0 %1581
      %1583 = vmax.xlane.f32.xlu0 %v1555
      %v1584 = vpop.xlane.xlu0 %1583
      %1585 = vmax.xlane.f32.xlu0 %v1556
      %v1586 = vpop.xlane.xlu0 %1585
      %1587 = vmax.xlane.f32.xlu0 %v1557
      %v1588 = vpop.xlane.xlu0 %1587
      %1589 = vmax.xlane.f32.xlu0 %v1558
      %v1590 = vpop.xlane.xlu0 %1589
      %v1591 = vsub.f32 %v1543, %v1560
      %v1592 = vsub.f32 %v1544, %v1562
      %v1593 = vsub.f32 %v1545, %v1564
      %v1594 = vsub.f32 %v1546, %v1566
      %v1595 = vsub.f32 %v1547, %v1568
      %v1596 = vsub.f32 %v1548, %v1570
      %v1597 = vsub.f32 %v1549, %v1572
      %v1598 = vsub.f32 %v1550, %v1574
      %v1599 = vsub.f32 %v1551, %v1576
      %v1600 = vsub.f32 %v1552, %v1578
      %v1601 = vsub.f32 %v1553, %v1580
      %v1602 = vsub.f32 %v1554, %v1582
      %v1603 = vsub.f32 %v1555, %v1584
      %v1604 = vsub.f32 %v1556, %v1586
      %v1605 = vsub.f32 %v1557, %v1588
      %v1606 = vsub.f32 %v1558, %v1590
      %v1607 = vmul.f32 %v1591, 1.442695
      %v1608 = vpow.pop %v1607
      %v1609 = vmul.f32 %v1592, 1.442695
      %v1610 = vpow.pop %v1609
      %v1611 = vmul.f32 %v1593, 1.442695
      %v1612 = vpow.pop %v1611
      %v1613 = vmul.f32 %v1594, 1.442695
      %v1614 = vpow.pop %v1613
      %v1615 = vmul.f32 %v1595, 1.442695
      %v1616 = vpow.pop %v1615
      %v1617 = vmul.f32 %v1596, 1.442695
      %v1618 = vpow.pop %v1617
      %v1619 = vmul.f32 %v1597, 1.442695
      %v1620 = vpow.pop %v1619
      %v1621 = vmul.f32 %v1598, 1.442695
      %v1622 = vpow.pop %v1621
      %v1623 = vmul.f32 %v1599, 1.442695
      %v1624 = vpow.pop %v1623
      %v1625 = vmul.f32 %v1600, 1.442695
      %v1626 = vpow.pop %v1625
      %v1627 = vmul.f32 %v1601, 1.442695
      %v1628 = vpow.pop %v1627
      %v1629 = vmul.f32 %v1602, 1.442695
      %v1630 = vpow.pop %v1629
      %v1631 = vmul.f32 %v1603, 1.442695
      %v1632 = vpow.pop %v1631
      %v1633 = vmul.f32 %v1604, 1.442695
      %v1634 = vpow.pop %v1633
      %v1635 = vmul.f32 %v1605, 1.442695
      %v1636 = vpow.pop %v1635
      %v1637 = vmul.f32 %v1606, 1.442695
      %v1638 = vpow.pop %v1637
      %1639 = vadd.xlane.f32.xlu0 %v1608
      %v1640 = vpop.xlane.xlu0 %1639
      %1641 = vadd.xlane.f32.xlu0 %v1610
      %v1642 = vpop.xlane.xlu0 %1641
      %1643 = vadd.xlane.f32.xlu0 %v1612
      %v1644 = vpop.xlane.xlu0 %1643
      %1645 = vadd.xlane.f32.xlu0 %v1614
      %v1646 = vpop.xlane.xlu0 %1645
      %1647 = vadd.xlane.f32.xlu0 %v1616
      %v1648 = vpop.xlane.xlu0 %1647
      %1649 = vadd.xlane.f32.xlu0 %v1618
      %v1650 = vpop.xlane.xlu0 %1649
      %1651 = vadd.xlane.f32.xlu0 %v1620
      %v1652 = vpop.xlane.xlu0 %1651
      %1653 = vadd.xlane.f32.xlu0 %v1622
      %v1654 = vpop.xlane.xlu0 %1653
      %1655 = vadd.xlane.f32.xlu0 %v1624
      %v1656 = vpop.xlane.xlu0 %1655
      %1657 = vadd.xlane.f32.xlu0 %v1626
      %v1658 = vpop.xlane.xlu0 %1657
      %1659 = vadd.xlane.f32.xlu0 %v1628
      %v1660 = vpop.xlane.xlu0 %1659
      %1661 = vadd.xlane.f32.xlu0 %v1630
      %v1662 = vpop.xlane.xlu0 %1661
      %1663 = vadd.xlane.f32.xlu0 %v1632
      %v1664 = vpop.xlane.xlu0 %1663
      %1665 = vadd.xlane.f32.xlu0 %v1634
      %v1666 = vpop.xlane.xlu0 %1665
      %1667 = vadd.xlane.f32.xlu0 %v1636
      %v1668 = vpop.xlane.xlu0 %1667
      %1669 = vadd.xlane.f32.xlu0 %v1638
      %v1670 = vpop.xlane.xlu0 %1669
      %v1671 = vrcp.pop %v1640
      %v1672 = vrcp.pop %v1642
      %v1673 = vrcp.pop %v1644
      %v1674 = vrcp.pop %v1646
      %v1675 = vrcp.pop %v1648
      %v1676 = vrcp.pop %v1650
      %v1677 = vrcp.pop %v1652
      %v1678 = vrcp.pop %v1654
      %v1679 = vrcp.pop %v1656
      %v1680 = vrcp.pop %v1658
      %v1681 = vrcp.pop %v1660
      %v1682 = vrcp.pop %v1662
      %v1683 = vrcp.pop %v1664
      %v1684 = vrcp.pop %v1666
      %v1685 = vrcp.pop %v1668
      %v1686 = vrcp.pop %v1670
      %v1687 = vmul.f32 %v1608, %v1671
      %v1688 = vmul.f32 %v1610, %v1672
      %v1689 = vmul.f32 %v1612, %v1673
      %v1690 = vmul.f32 %v1614, %v1674
      %v1691 = vmul.f32 %v1616, %v1675
      %v1692 = vmul.f32 %v1618, %v1676
      %v1693 = vmul.f32 %v1620, %v1677
      %v1694 = vmul.f32 %v1622, %v1678
      %v1695 = vmul.f32 %v1624, %v1679
      %v1696 = vmul.f32 %v1626, %v1680
      %v1697 = vmul.f32 %v1628, %v1681
      %v1698 = vmul.f32 %v1630, %v1682
      %v1699 = vmul.f32 %v1632, %v1683
      %v1700 = vmul.f32 %v1634, %v1684
      %v1701 = vmul.f32 %v1636, %v1685
      %v1702 = vmul.f32 %v1638, %v1686
      %v1703 = vpack.c.bf16 %v1688, %v1687
      %v1704 = vpack.c.bf16 %v1690, %v1689
      %v1705 = vpack.c.bf16 %v1692, %v1691
      %v1706 = vpack.c.bf16 %v1694, %v1693
      %v1707 = vpack.c.bf16 %v1696, %v1695
      %v1708 = vpack.c.bf16 %v1698, %v1697
      %v1709 = vpack.c.bf16 %v1700, %v1699
      %v1710 = vpack.c.bf16 %v1702, %v1701
      %v1727 = vunpack.c.l.b16 %v1286
      %v1728 = vunpack.c.l.b16 %v1287
      %v1729 = vunpack.c.l.b16 %v1288
      %v1730 = vunpack.c.l.b16 %v1289
      %v1731 = vunpack.c.l.b16 %v1290
      %v1732 = vunpack.c.l.b16 %v1291
      %v1733 = vunpack.c.l.b16 %v1292
      %v1734 = vunpack.c.l.b16 %v1293
      %v1735 = vunpack.c.l.b16 %v1294
      %v1736 = vunpack.c.l.b16 %v1295
      %v1737 = vunpack.c.l.b16 %v1296
      %v1738 = vunpack.c.l.b16 %v1297
      %v1739 = vunpack.c.l.b16 %v1298
      %v1740 = vunpack.c.l.b16 %v1299
      %v1741 = vunpack.c.l.b16 %v1300
      %v1742 = vunpack.c.l.b16 %v1301
      %v1743 = vpack.c.b16 %v1728, %v1727
      %v1744 = vpack.c.b16 %v1730, %v1729
      %v1745 = vpack.c.b16 %v1732, %v1731
      %v1746 = vpack.c.b16 %v1734, %v1733
      %v1747 = vpack.c.b16 %v1736, %v1735
      %v1748 = vpack.c.b16 %v1738, %v1737
      %v1749 = vpack.c.b16 %v1740, %v1739
      %v1750 = vpack.c.b16 %v1742, %v1741
      %1759 = vmatprep.subr.bf16.mxu0 0
      %1760 = vmatpush1.bf16.msra.mxu0 %v1743
      %1761 = vmatprep.subr.bf16.mxu0 0
      %1762 = vmatpush1.bf16.msra.mxu0 %v1744
      %1763 = vmatprep.subr.bf16.mxu0 0
      %1764 = vmatpush1.bf16.msra.mxu0 %v1745
      %1765 = vmatprep.subr.bf16.mxu0 0
      %1766 = vmatpush1.bf16.msra.mxu0 %v1746
      %1767 = vmatprep.subr.bf16.mxu0 0
      %1768 = vmatpush1.bf16.msra.mxu0 %v1747
      %1769 = vmatprep.subr.bf16.mxu0 0
      %1770 = vmatpush1.bf16.msra.mxu0 %v1748
      %1771 = vmatprep.subr.bf16.mxu0 0
      %1772 = vmatpush1.bf16.msra.mxu0 %v1749
      %1773 = vmatprep.subr.bf16.mxu0 0
      %1774 = vmatpush1.bf16.msra.mxu0 %v1750
      %1775 = vmatprep.subr.bf16.mxu0 0
      %1776 = vmatpush1.bf16.msra.mxu0 0
      %1777 = vmatprep.subr.bf16.mxu0 0
      %1778 = vmatpush1.bf16.msra.mxu0 0
      %1779 = vmatprep.subr.bf16.mxu0 0
      %1780 = vmatpush1.bf16.msra.mxu0 0
      %1781 = vmatprep.subr.bf16.mxu0 0
      %1782 = vmatpush1.bf16.msra.mxu0 0
      %1783 = vmatprep.subr.bf16.mxu0 0
      %1784 = vmatpush1.bf16.msra.mxu0 0
      %1785 = vmatprep.subr.bf16.mxu0 0
      %1786 = vmatpush1.bf16.msra.mxu0 0
      %1787 = vmatprep.subr.bf16.mxu0 0
      %1788 = vmatpush1.bf16.msra.mxu0 0
      %1789 = vmatprep.subr.bf16.mxu0 0
      %1790 = vmatpush1.bf16.msra.mxu0 0
      %1791 = vmatprep.mubr.bf16.mxu0 0
      %1792 = vmatmul.mubr.bf16.gmra.mrb[0].mxu0 %v1703
      %v1793 = vpop.f32.mrb[0].mxu0
      %v1794 = vadd.f32 0.0, %v1793
      %v1795 = vpop.f32.mrb[0].mxu0
      %v1796 = vpop.f32.mrb[0].mxu0
      %v1797 = vadd.f32 0.0, %v1796
      %v1798 = vpop.f32.mrb[0].mxu0
      %1799 = vmatprep.mubr.bf16.mxu0 0
      %1800 = vmatmul.mubr.bf16.gmra.mrb[0].mxu0 %v1704
      %v1801 = vpop.f32.mrb[0].mxu0
      %v1802 = vadd.f32 0.0, %v1801
      %v1803 = vpop.f32.mrb[0].mxu0
      %v1804 = vpop.f32.mrb[0].mxu0
      %v1805 = vadd.f32 0.0, %v1804
      %v1806 = vpop.f32.mrb[0].mxu0
      %1807 = vmatprep.mubr.bf16.mxu0 0
      %1808 = vmatmul.mubr.bf16.gmra.mrb[0].mxu0 %v1705
      %v1809 = vpop.f32.mrb[0].mxu0
      %v1810 = vadd.f32 0.0, %v1809
      %v1811 = vpop.f32.mrb[0].mxu0
      %v1812 = vpop.f32.mrb[0].mxu0
      %v1813 = vadd.f32 0.0, %v1812
      %v1814 = vpop.f32.mrb[0].mxu0
      %1815 = vmatprep.mubr.bf16.mxu0 0
      %1816 = vmatmul.mubr.bf16.gmra.mrb[0].mxu0 %v1706
      %v1817 = vpop.f32.mrb[0].mxu0
      %v1818 = vadd.f32 0.0, %v1817
      %v1819 = vpop.f32.mrb[0].mxu0
      %v1820 = vpop.f32.mrb[0].mxu0
      %v1821 = vadd.f32 0.0, %v1820
      %v1822 = vpop.f32.mrb[0].mxu0
      %1823 = vmatprep.mubr.bf16.mxu0 0
      %1824 = vmatmul.mubr.bf16.gmra.mrb[0].mxu0 %v1707
      %v1825 = vpop.f32.mrb[0].mxu0
      %v1826 = vadd.f32 0.0, %v1825
      %v1827 = vpop.f32.mrb[0].mxu0
      %v1828 = vpop.f32.mrb[0].mxu0
      %v1829 = vadd.f32 0.0, %v1828
      %v1830 = vpop.f32.mrb[0].mxu0
      %1831 = vmatprep.mubr.bf16.mxu0 0
      %1832 = vmatmul.mubr.bf16.gmra.mrb[0].mxu0 %v1708
      %v1833 = vpop.f32.mrb[0].mxu0
      %v1834 = vadd.f32 0.0, %v1833
      %v1835 = vpop.f32.mrb[0].mxu0
      %v1836 = vpop.f32.mrb[0].mxu0
      %v1837 = vadd.f32 0.0, %v1836
      %v1838 = vpop.f32.mrb[0].mxu0
      %1839 = vmatprep.mubr.bf16.mxu0 0
      %1840 = vmatmul.mubr.bf16.gmra.mrb[0].mxu0 %v1709
      %v1841 = vpop.f32.mrb[0].mxu0
      %v1842 = vadd.f32 0.0, %v1841
      %v1843 = vpop.f32.mrb[0].mxu0
      %v1844 = vpop.f32.mrb[0].mxu0
      %v1845 = vadd.f32 0.0, %v1844
      %v1846 = vpop.f32.mrb[0].mxu0
      %1847 = vmatprep.mubr.bf16.mxu0 0
      %1848 = vmatmul.mubr.bf16.gmra.mrb[0].mxu0 %v1710
      %v1849 = vpop.f32.mrb[0].mxu0
      %v1850 = vadd.f32 0.0, %v1849
      %v1851 = vpop.f32.mrb[0].mxu0
      %v1852 = vpop.f32.mrb[0].mxu0
      %v1853 = vadd.f32 0.0, %v1852
      %v1854 = vpop.f32.mrb[0].mxu0
      %1855 = vdwg.mxu0
      %1856 = vrot.lane.b32.xlu0 %v1334, 64
      %v1857 = vpop.permute.xlu0 %1856
      %1858 = vrot.lane.b32.xlu0 %v1335, 64
      %v1859 = vpop.permute.xlu0 %1858
      %1860 = vrot.lane.b32.xlu0 %v1336, 64
      %v1861 = vpop.permute.xlu0 %1860
      %1862 = vrot.lane.b32.xlu0 %v1337, 64
      %v1863 = vpop.permute.xlu0 %1862
      %1864 = vrot.lane.b32.xlu0 %v1338, 64
      %v1865 = vpop.permute.xlu0 %1864
      %1866 = vrot.lane.b32.xlu0 %v1339, 64
      %v1867 = vpop.permute.xlu0 %1866
      %1868 = vrot.lane.b32.xlu0 %v1340, 64
      %v1869 = vpop.permute.xlu0 %1868
      %1870 = vrot.lane.b32.xlu0 %v1341, 64
      %v1871 = vpop.permute.xlu0 %1870
      %1872 = vrot.lane.b32.xlu0 %v1374, 64
      %v1873 = vpop.permute.xlu0 %1872
      %1874 = vrot.lane.b32.xlu0 %v1375, 64
      %v1875 = vpop.permute.xlu0 %1874
      %1876 = vrot.lane.b32.xlu0 %v1376, 64
      %v1877 = vpop.permute.xlu0 %1876
      %1878 = vrot.lane.b32.xlu0 %v1377, 64
      %v1879 = vpop.permute.xlu0 %1878
      %1880 = vrot.lane.b32.xlu0 %v1378, 64
      %v1881 = vpop.permute.xlu0 %1880
      %1882 = vrot.lane.b32.xlu0 %v1379, 64
      %v1883 = vpop.permute.xlu0 %1882
      %1884 = vrot.lane.b32.xlu0 %v1380, 64
      %v1885 = vpop.permute.xlu0 %1884
      %1886 = vrot.lane.b32.xlu0 %v1381, 64
      %v1887 = vpop.permute.xlu0 %1886
      %v1889 = vsel %vm297, %v1857, 0
      %v1892 = vsel %vm297, %v1859, 0
      %v1895 = vsel %vm297, %v1861, 0
      %v1898 = vsel %vm297, %v1863, 0
      %v1901 = vsel %vm297, %v1865, 0
      %v1904 = vsel %vm297, %v1867, 0
      %v1907 = vsel %vm297, %v1869, 0
      %v1910 = vsel %vm297, %v1871, 0
      %v1913 = vsel %vm297, %v1873, 0
      %v1916 = vsel %vm297, %v1875, 0
      %v1919 = vsel %vm297, %v1877, 0
      %v1922 = vsel %vm297, %v1879, 0
      %v1925 = vsel %vm297, %v1881, 0
      %v1928 = vsel %vm297, %v1883, 0
      %v1931 = vsel %vm297, %v1885, 0
      %v1934 = vsel %vm297, %v1887, 0
      %1936 = vmatprep.subr.bf16.mxu0 0
      %1937 = vmatpush1.bf16.xpose.msra.mxu0 %v1913
      %1938 = vmatprep.subr.bf16.mxu0 0
      %1939 = vmatpush1.bf16.xpose.msra.mxu0 %v1916
      %1940 = vmatprep.subr.bf16.mxu0 0
      %1941 = vmatpush1.bf16.xpose.msra.mxu0 %v1919
      %1942 = vmatprep.subr.bf16.mxu0 0
      %1943 = vmatpush1.bf16.xpose.msra.mxu0 %v1922
      %1944 = vmatprep.subr.bf16.mxu0 0
      %1945 = vmatpush1.bf16.xpose.msra.mxu0 %v1925
      %1946 = vmatprep.subr.bf16.mxu0 0
      %1947 = vmatpush1.bf16.xpose.msra.mxu0 %v1928
      %1948 = vmatprep.subr.bf16.mxu0 0
      %1949 = vmatpush1.bf16.xpose.msra.mxu0 %v1931
      %1950 = vmatprep.subr.bf16.mxu0 0
      %1951 = vmatpush1.bf16.xpose.msra.mxu0 %v1934
      %1952 = vmatprep.subr.bf16.mxu0 0
      %1953 = vmatpush1.bf16.xpose.msra.mxu0 0
      %1954 = vmatprep.subr.bf16.mxu0 0
      %1955 = vmatpush1.bf16.xpose.msra.mxu0 0
      %1956 = vmatprep.subr.bf16.mxu0 0
      %1957 = vmatpush1.bf16.xpose.msra.mxu0 0
      %1958 = vmatprep.subr.bf16.mxu0 0
      %1959 = vmatpush1.bf16.xpose.msra.mxu0 0
      %1960 = vmatprep.subr.bf16.mxu0 0
      %1961 = vmatpush1.bf16.xpose.msra.mxu0 0
      %1962 = vmatprep.subr.bf16.mxu0 0
      %1963 = vmatpush1.bf16.xpose.msra.mxu0 0
      %1964 = vmatprep.subr.bf16.mxu0 0
      %1965 = vmatpush1.bf16.xpose.msra.mxu0 0
      %1966 = vmatprep.subr.bf16.mxu0 0
      %1967 = vmatpush1.bf16.xpose.msra.mxu0 0
      %1968 = vmatprep.mubr.bf16.mxu0 0
      %1969 = vmatmul.mubr.bf16.gmra.mrb[0].mxu0 %v1889
      %v1970 = vpop.f32.mrb[0].mxu0
      %v1971 = vadd.f32 0.0, %v1970
      %v1972 = vpop.f32.mrb[0].mxu0
      %v1973 = vpop.f32.mrb[0].mxu0
      %v1974 = vadd.f32 0.0, %v1973
      %v1975 = vpop.f32.mrb[0].mxu0
      %1976 = vmatprep.mubr.bf16.mxu0 0
      %1977 = vmatmul.mubr.bf16.gmra.mrb[0].mxu0 %v1892
      %v1978 = vpop.f32.mrb[0].mxu0
      %v1979 = vadd.f32 0.0, %v1978
      %v1980 = vpop.f32.mrb[0].mxu0
      %v1981 = vpop.f32.mrb[0].mxu0
      %v1982 = vadd.f32 0.0, %v1981
      %v1983 = vpop.f32.mrb[0].mxu0
      %1984 = vmatprep.mubr.bf16.mxu0 0
      %1985 = vmatmul.mubr.bf16.gmra.mrb[0].mxu0 %v1895
      %v1986 = vpop.f32.mrb[0].mxu0
      %v1987 = vadd.f32 0.0, %v1986
      %v1988 = vpop.f32.mrb[0].mxu0
      %v1989 = vpop.f32.mrb[0].mxu0
      %v1990 = vadd.f32 0.0, %v1989
      %v1991 = vpop.f32.mrb[0].mxu0
      %1992 = vmatprep.mubr.bf16.mxu0 0
      %1993 = vmatmul.mubr.bf16.gmra.mrb[0].mxu0 %v1898
      %v1994 = vpop.f32.mrb[0].mxu0
      %v1995 = vadd.f32 0.0, %v1994
      %v1996 = vpop.f32.mrb[0].mxu0
      %v1997 = vpop.f32.mrb[0].mxu0
      %v1998 = vadd.f32 0.0, %v1997
      %v1999 = vpop.f32.mrb[0].mxu0
      %2000 = vmatprep.mubr.bf16.mxu0 0
      %2001 = vmatmul.mubr.bf16.gmra.mrb[0].mxu0 %v1901
      %v2002 = vpop.f32.mrb[0].mxu0
      %v2003 = vadd.f32 0.0, %v2002
      %v2004 = vpop.f32.mrb[0].mxu0
      %v2005 = vpop.f32.mrb[0].mxu0
      %v2006 = vadd.f32 0.0, %v2005
      %v2007 = vpop.f32.mrb[0].mxu0
      %2008 = vmatprep.mubr.bf16.mxu0 0
      %2009 = vmatmul.mubr.bf16.gmra.mrb[0].mxu0 %v1904
      %v2010 = vpop.f32.mrb[0].mxu0
      %v2011 = vadd.f32 0.0, %v2010
      %v2012 = vpop.f32.mrb[0].mxu0
      %v2013 = vpop.f32.mrb[0].mxu0
      %v2014 = vadd.f32 0.0, %v2013
      %v2015 = vpop.f32.mrb[0].mxu0
      %2016 = vmatprep.mubr.bf16.mxu0 0
      %2017 = vmatmul.mubr.bf16.gmra.mrb[0].mxu0 %v1907
      %v2018 = vpop.f32.mrb[0].mxu0
      %v2019 = vadd.f32 0.0, %v2018
      %v2020 = vpop.f32.mrb[0].mxu0
      %v2021 = vpop.f32.mrb[0].mxu0
      %v2022 = vadd.f32 0.0, %v2021
      %v2023 = vpop.f32.mrb[0].mxu0
      %2024 = vmatprep.mubr.bf16.mxu0 0
      %2025 = vmatmul.mubr.bf16.gmra.mrb[0].mxu0 %v1910
      %v2026 = vpop.f32.mrb[0].mxu0
      %v2027 = vadd.f32 0.0, %v2026
      %v2028 = vpop.f32.mrb[0].mxu0
      %v2029 = vpop.f32.mrb[0].mxu0
      %v2030 = vadd.f32 0.0, %v2029
      %v2031 = vpop.f32.mrb[0].mxu0
      %2032 = vdwg.mxu0
      %v2033 = vmul.f32 %v1971, 0.125
      %v2034 = vmul.f32 %v1974, 0.125
      %v2035 = vmul.f32 %v1979, 0.125
      %v2036 = vmul.f32 %v1982, 0.125
      %v2037 = vmul.f32 %v1987, 0.125
      %v2038 = vmul.f32 %v1990, 0.125
      %v2039 = vmul.f32 %v1995, 0.125
      %v2040 = vmul.f32 %v1998, 0.125
      %v2041 = vmul.f32 %v2003, 0.125
      %v2042 = vmul.f32 %v2006, 0.125
      %v2043 = vmul.f32 %v2011, 0.125
      %v2044 = vmul.f32 %v2014, 0.125
      %v2045 = vmul.f32 %v2019, 0.125
      %v2046 = vmul.f32 %v2022, 0.125
      %v2047 = vmul.f32 %v2027, 0.125
      %v2048 = vmul.f32 %v2030, 0.125
      %v2049 = vadd.f32 %v2033, %v153
      %v2050 = vadd.f32 %v2034, %v154
      %v2051 = vadd.f32 %v2035, %v155
      %v2052 = vadd.f32 %v2036, %v156
      %v2053 = vadd.f32 %v2037, %v157
      %v2054 = vadd.f32 %v2038, %v158
      %v2055 = vadd.f32 %v2039, %v159
      %v2056 = vadd.f32 %v2040, %v160
      %v2057 = vadd.f32 %v2041, %v161
      %v2058 = vadd.f32 %v2042, %v162
      %v2059 = vadd.f32 %v2043, %v163
      %v2060 = vadd.f32 %v2044, %v164
      %v2061 = vadd.f32 %v2045, %v165
      %v2062 = vadd.f32 %v2046, %v166
      %v2063 = vadd.f32 %v2047, %v167
      %v2064 = vadd.f32 %v2048, %v168
      %2065 = vmax.xlane.f32.xlu0 %v2049
      %v2066 = vpop.xlane.xlu0 %2065
      %2067 = vmax.xlane.f32.xlu0 %v2050
      %v2068 = vpop.xlane.xlu0 %2067
      %2069 = vmax.xlane.f32.xlu0 %v2051
      %v2070 = vpop.xlane.xlu0 %2069
      %2071 = vmax.xlane.f32.xlu0 %v2052
      %v2072 = vpop.xlane.xlu0 %2071
      %2073 = vmax.xlane.f32.xlu0 %v2053
      %v2074 = vpop.xlane.xlu0 %2073
      %2075 = vmax.xlane.f32.xlu0 %v2054
      %v2076 = vpop.xlane.xlu0 %2075
      %2077 = vmax.xlane.f32.xlu0 %v2055
      %v2078 = vpop.xlane.xlu0 %2077
      %2079 = vmax.xlane.f32.xlu0 %v2056
      %v2080 = vpop.xlane.xlu0 %2079
      %2081 = vmax.xlane.f32.xlu0 %v2057
      %v2082 = vpop.xlane.xlu0 %2081
      %2083 = vmax.xlane.f32.xlu0 %v2058
      %v2084 = vpop.xlane.xlu0 %2083
      %2085 = vmax.xlane.f32.xlu0 %v2059
      %v2086 = vpop.xlane.xlu0 %2085
      %2087 = vmax.xlane.f32.xlu0 %v2060
      %v2088 = vpop.xlane.xlu0 %2087
      %2089 = vmax.xlane.f32.xlu0 %v2061
      %v2090 = vpop.xlane.xlu0 %2089
      %2091 = vmax.xlane.f32.xlu0 %v2062
      %v2092 = vpop.xlane.xlu0 %2091
      %2093 = vmax.xlane.f32.xlu0 %v2063
      %v2094 = vpop.xlane.xlu0 %2093
      %2095 = vmax.xlane.f32.xlu0 %v2064
      %v2096 = vpop.xlane.xlu0 %2095
      %v2097 = vsub.f32 %v2049, %v2066
      %v2098 = vsub.f32 %v2050, %v2068
      %v2099 = vsub.f32 %v2051, %v2070
      %v2100 = vsub.f32 %v2052, %v2072
      %v2101 = vsub.f32 %v2053, %v2074
      %v2102 = vsub.f32 %v2054, %v2076
      %v2103 = vsub.f32 %v2055, %v2078
      %v2104 = vsub.f32 %v2056, %v2080
      %v2105 = vsub.f32 %v2057, %v2082
      %v2106 = vsub.f32 %v2058, %v2084
      %v2107 = vsub.f32 %v2059, %v2086
      %v2108 = vsub.f32 %v2060, %v2088
      %v2109 = vsub.f32 %v2061, %v2090
      %v2110 = vsub.f32 %v2062, %v2092
      %v2111 = vsub.f32 %v2063, %v2094
      %v2112 = vsub.f32 %v2064, %v2096
      %v2113 = vmul.f32 %v2097, 1.442695
      %v2114 = vpow.pop %v2113
      %v2115 = vmul.f32 %v2098, 1.442695
      %v2116 = vpow.pop %v2115
      %v2117 = vmul.f32 %v2099, 1.442695
      %v2118 = vpow.pop %v2117
      %v2119 = vmul.f32 %v2100, 1.442695
      %v2120 = vpow.pop %v2119
      %v2121 = vmul.f32 %v2101, 1.442695
      %v2122 = vpow.pop %v2121
      %v2123 = vmul.f32 %v2102, 1.442695
      %v2124 = vpow.pop %v2123
      %v2125 = vmul.f32 %v2103, 1.442695
      %v2126 = vpow.pop %v2125
      %v2127 = vmul.f32 %v2104, 1.442695
      %v2128 = vpow.pop %v2127
      %v2129 = vmul.f32 %v2105, 1.442695
      %v2130 = vpow.pop %v2129
      %v2131 = vmul.f32 %v2106, 1.442695
      %v2132 = vpow.pop %v2131
      %v2133 = vmul.f32 %v2107, 1.442695
      %v2134 = vpow.pop %v2133
      %v2135 = vmul.f32 %v2108, 1.442695
      %v2136 = vpow.pop %v2135
      %v2137 = vmul.f32 %v2109, 1.442695
      %v2138 = vpow.pop %v2137
      %v2139 = vmul.f32 %v2110, 1.442695
      %v2140 = vpow.pop %v2139
      %v2141 = vmul.f32 %v2111, 1.442695
      %v2142 = vpow.pop %v2141
      %v2143 = vmul.f32 %v2112, 1.442695
      %v2144 = vpow.pop %v2143
      %2145 = vadd.xlane.f32.xlu0 %v2114
      %v2146 = vpop.xlane.xlu0 %2145
      %2147 = vadd.xlane.f32.xlu0 %v2116
      %v2148 = vpop.xlane.xlu0 %2147
      %2149 = vadd.xlane.f32.xlu0 %v2118
      %v2150 = vpop.xlane.xlu0 %2149
      %2151 = vadd.xlane.f32.xlu0 %v2120
      %v2152 = vpop.xlane.xlu0 %2151
      %2153 = vadd.xlane.f32.xlu0 %v2122
      %v2154 = vpop.xlane.xlu0 %2153
      %2155 = vadd.xlane.f32.xlu0 %v2124
      %v2156 = vpop.xlane.xlu0 %2155
      %2157 = vadd.xlane.f32.xlu0 %v2126
      %v2158 = vpop.xlane.xlu0 %2157
      %2159 = vadd.xlane.f32.xlu0 %v2128
      %v2160 = vpop.xlane.xlu0 %2159
      %2161 = vadd.xlane.f32.xlu0 %v2130
      %v2162 = vpop.xlane.xlu0 %2161
      %2163 = vadd.xlane.f32.xlu0 %v2132
      %v2164 = vpop.xlane.xlu0 %2163
      %2165 = vadd.xlane.f32.xlu0 %v2134
      %v2166 = vpop.xlane.xlu0 %2165
      %2167 = vadd.xlane.f32.xlu0 %v2136
      %v2168 = vpop.xlane.xlu0 %2167
      %2169 = vadd.xlane.f32.xlu0 %v2138
      %v2170 = vpop.xlane.xlu0 %2169
      %2171 = vadd.xlane.f32.xlu0 %v2140
      %v2172 = vpop.xlane.xlu0 %2171
      %2173 = vadd.xlane.f32.xlu0 %v2142
      %v2174 = vpop.xlane.xlu0 %2173
      %2175 = vadd.xlane.f32.xlu0 %v2144
      %v2176 = vpop.xlane.xlu0 %2175
      %v2177 = vrcp.pop %v2146
      %v2178 = vrcp.pop %v2148
      %v2179 = vrcp.pop %v2150
      %v2180 = vrcp.pop %v2152
      %v2181 = vrcp.pop %v2154
      %v2182 = vrcp.pop %v2156
      %v2183 = vrcp.pop %v2158
      %v2184 = vrcp.pop %v2160
      %v2185 = vrcp.pop %v2162
      %v2186 = vrcp.pop %v2164
      %v2187 = vrcp.pop %v2166
      %v2188 = vrcp.pop %v2168
      %v2189 = vrcp.pop %v2170
      %v2190 = vrcp.pop %v2172
      %v2191 = vrcp.pop %v2174
      %v2192 = vrcp.pop %v2176
      %v2193 = vmul.f32 %v2114, %v2177
      %v2194 = vmul.f32 %v2116, %v2178
      %v2195 = vmul.f32 %v2118, %v2179
      %v2196 = vmul.f32 %v2120, %v2180
      %v2197 = vmul.f32 %v2122, %v2181
      %v2198 = vmul.f32 %v2124, %v2182
      %v2199 = vmul.f32 %v2126, %v2183
      %v2200 = vmul.f32 %v2128, %v2184
      %v2201 = vmul.f32 %v2130, %v2185
      %v2202 = vmul.f32 %v2132, %v2186
      %v2203 = vmul.f32 %v2134, %v2187
      %v2204 = vmul.f32 %v2136, %v2188
      %v2205 = vmul.f32 %v2138, %v2189
      %v2206 = vmul.f32 %v2140, %v2190
      %v2207 = vmul.f32 %v2142, %v2191
      %v2208 = vmul.f32 %v2144, %v2192
      %v2209 = vpack.c.bf16 %v2194, %v2193
      %v2210 = vpack.c.bf16 %v2196, %v2195
      %v2211 = vpack.c.bf16 %v2198, %v2197
      %v2212 = vpack.c.bf16 %v2200, %v2199
      %v2213 = vpack.c.bf16 %v2202, %v2201
      %v2214 = vpack.c.bf16 %v2204, %v2203
      %v2215 = vpack.c.bf16 %v2206, %v2205
      %v2216 = vpack.c.bf16 %v2208, %v2207
      %2217 = vrot.lane.b32.xlu0 %v1743, 64
      %v2218 = vpop.permute.xlu0 %2217
      %2219 = vrot.lane.b32.xlu0 %v1744, 64
      %v2220 = vpop.permute.xlu0 %2219
      %2221 = vrot.lane.b32.xlu0 %v1745, 64
      %v2222 = vpop.permute.xlu0 %2221
      %2223 = vrot.lane.b32.xlu0 %v1746, 64
      %v2224 = vpop.permute.xlu0 %2223
      %2225 = vrot.lane.b32.xlu0 %v1747, 64
      %v2226 = vpop.permute.xlu0 %2225
      %2227 = vrot.lane.b32.xlu0 %v1748, 64
      %v2228 = vpop.permute.xlu0 %2227
      %2229 = vrot.lane.b32.xlu0 %v1749, 64
      %v2230 = vpop.permute.xlu0 %2229
      %2231 = vrot.lane.b32.xlu0 %v1750, 64
      %v2232 = vpop.permute.xlu0 %2231
      %2241 = vmatprep.subr.bf16.mxu0 0
      %2242 = vmatpush1.bf16.msra.mxu0 %v2218
      %2243 = vmatprep.subr.bf16.mxu0 0
      %2244 = vmatpush1.bf16.msra.mxu0 %v2220
      %2245 = vmatprep.subr.bf16.mxu0 0
      %2246 = vmatpush1.bf16.msra.mxu0 %v2222
      %2247 = vmatprep.subr.bf16.mxu0 0
      %2248 = vmatpush1.bf16.msra.mxu0 %v2224
      %2249 = vmatprep.subr.bf16.mxu0 0
      %2250 = vmatpush1.bf16.msra.mxu0 %v2226
      %2251 = vmatprep.subr.bf16.mxu0 0
      %2252 = vmatpush1.bf16.msra.mxu0 %v2228
      %2253 = vmatprep.subr.bf16.mxu0 0
      %2254 = vmatpush1.bf16.msra.mxu0 %v2230
      %2255 = vmatprep.subr.bf16.mxu0 0
      %2256 = vmatpush1.bf16.msra.mxu0 %v2232
      %2257 = vmatprep.subr.bf16.mxu0 0
      %2258 = vmatpush1.bf16.msra.mxu0 0
      %2259 = vmatprep.subr.bf16.mxu0 0
      %2260 = vmatpush1.bf16.msra.mxu0 0
      %2261 = vmatprep.subr.bf16.mxu0 0
      %2262 = vmatpush1.bf16.msra.mxu0 0
      %2263 = vmatprep.subr.bf16.mxu0 0
      %2264 = vmatpush1.bf16.msra.mxu0 0
      %2265 = vmatprep.subr.bf16.mxu0 0
      %2266 = vmatpush1.bf16.msra.mxu0 0
      %2267 = vmatprep.subr.bf16.mxu0 0
      %2268 = vmatpush1.bf16.msra.mxu0 0
      %2269 = vmatprep.subr.bf16.mxu0 0
      %2270 = vmatpush1.bf16.msra.mxu0 0
      %2271 = vmatprep.subr.bf16.mxu0 0
      %2272 = vmatpush1.bf16.msra.mxu0 0
      %2273 = vmatprep.mubr.bf16.mxu0 0
      %2274 = vmatmul.mubr.bf16.gmra.mrb[0].mxu0 %v2209
      %v2275 = vpop.f32.mrb[0].mxu0
      %v2276 = vadd.f32 0.0, %v2275
      %v2277 = vpop.f32.mrb[0].mxu0
      %v2278 = vpop.f32.mrb[0].mxu0
      %v2279 = vadd.f32 0.0, %v2278
      %v2280 = vpop.f32.mrb[0].mxu0
      %2281 = vmatprep.mubr.bf16.mxu0 0
      %2282 = vmatmul.mubr.bf16.gmra.mrb[0].mxu0 %v2210
      %v2283 = vpop.f32.mrb[0].mxu0
      %v2284 = vadd.f32 0.0, %v2283
      %v2285 = vpop.f32.mrb[0].mxu0
      %v2286 = vpop.f32.mrb[0].mxu0
      %v2287 = vadd.f32 0.0, %v2286
      %v2288 = vpop.f32.mrb[0].mxu0
      %2289 = vmatprep.mubr.bf16.mxu0 0
      %2290 = vmatmul.mubr.bf16.gmra.mrb[0].mxu0 %v2211
      %v2291 = vpop.f32.mrb[0].mxu0
      %v2292 = vadd.f32 0.0, %v2291
      %v2293 = vpop.f32.mrb[0].mxu0
      %v2294 = vpop.f32.mrb[0].mxu0
      %v2295 = vadd.f32 0.0, %v2294
      %v2296 = vpop.f32.mrb[0].mxu0
      %2297 = vmatprep.mubr.bf16.mxu0 0
      %2298 = vmatmul.mubr.bf16.gmra.mrb[0].mxu0 %v2212
      %v2299 = vpop.f32.mrb[0].mxu0
      %v2300 = vadd.f32 0.0, %v2299
      %v2301 = vpop.f32.mrb[0].mxu0
      %v2302 = vpop.f32.mrb[0].mxu0
      %v2303 = vadd.f32 0.0, %v2302
      %v2304 = vpop.f32.mrb[0].mxu0
      %2305 = vmatprep.mubr.bf16.mxu0 0
      %2306 = vmatmul.mubr.bf16.gmra.mrb[0].mxu0 %v2213
      %v2307 = vpop.f32.mrb[0].mxu0
      %v2308 = vadd.f32 0.0, %v2307
      %v2309 = vpop.f32.mrb[0].mxu0
      %v2310 = vpop.f32.mrb[0].mxu0
      %v2311 = vadd.f32 0.0, %v2310
      %v2312 = vpop.f32.mrb[0].mxu0
      %2313 = vmatprep.mubr.bf16.mxu0 0
      %2314 = vmatmul.mubr.bf16.gmra.mrb[0].mxu0 %v2214
      %v2315 = vpop.f32.mrb[0].mxu0
      %v2316 = vadd.f32 0.0, %v2315
      %v2317 = vpop.f32.mrb[0].mxu0
      %v2318 = vpop.f32.mrb[0].mxu0
      %v2319 = vadd.f32 0.0, %v2318
      %v2320 = vpop.f32.mrb[0].mxu0
      %2321 = vmatprep.mubr.bf16.mxu0 0
      %2322 = vmatmul.mubr.bf16.gmra.mrb[0].mxu0 %v2215
      %v2323 = vpop.f32.mrb[0].mxu0
      %v2324 = vadd.f32 0.0, %v2323
      %v2325 = vpop.f32.mrb[0].mxu0
      %v2326 = vpop.f32.mrb[0].mxu0
      %v2327 = vadd.f32 0.0, %v2326
      %v2328 = vpop.f32.mrb[0].mxu0
      %2329 = vmatprep.mubr.bf16.mxu0 0
      %2330 = vmatmul.mubr.bf16.gmra.mrb[0].mxu0 %v2216
      %v2331 = vpop.f32.mrb[0].mxu0
      %v2332 = vadd.f32 0.0, %v2331
      %v2333 = vpop.f32.mrb[0].mxu0
      %v2334 = vpop.f32.mrb[0].mxu0
      %v2335 = vadd.f32 0.0, %v2334
      %v2336 = vpop.f32.mrb[0].mxu0
      %2337 = vdwg.mxu0
      %2354 = vrot.lane.b32.xlu0 %v1192, 64
      %v2355 = vpop.permute.xlu0 %2354
      %2356 = vrot.lane.b32.xlu0 %v1195, 64
      %v2357 = vpop.permute.xlu0 %2356
      %2358 = vrot.lane.b32.xlu0 %v1200, 64
      %v2359 = vpop.permute.xlu0 %2358
      %2360 = vrot.lane.b32.xlu0 %v1203, 64
      %v2361 = vpop.permute.xlu0 %2360
      %2362 = vrot.lane.b32.xlu0 %v1208, 64
      %v2363 = vpop.permute.xlu0 %2362
      %2364 = vrot.lane.b32.xlu0 %v1211, 64
      %v2365 = vpop.permute.xlu0 %2364
      %2366 = vrot.lane.b32.xlu0 %v1216, 64
      %v2367 = vpop.permute.xlu0 %2366
      %2368 = vrot.lane.b32.xlu0 %v1219, 64
      %v2369 = vpop.permute.xlu0 %2368
      %2370 = vrot.lane.b32.xlu0 %v1224, 64
      %v2371 = vpop.permute.xlu0 %2370
      %2372 = vrot.lane.b32.xlu0 %v1227, 64
      %v2373 = vpop.permute.xlu0 %2372
      %2374 = vrot.lane.b32.xlu0 %v1232, 64
      %v2375 = vpop.permute.xlu0 %2374
      %2376 = vrot.lane.b32.xlu0 %v1235, 64
      %v2377 = vpop.permute.xlu0 %2376
      %2378 = vrot.lane.b32.xlu0 %v1240, 64
      %v2379 = vpop.permute.xlu0 %2378
      %2380 = vrot.lane.b32.xlu0 %v1243, 64
      %v2381 = vpop.permute.xlu0 %2380
      %2382 = vrot.lane.b32.xlu0 %v1248, 64
      %v2383 = vpop.permute.xlu0 %2382
      %2384 = vrot.lane.b32.xlu0 %v1251, 64
      %v2385 = vpop.permute.xlu0 %2384
      %2418 = vrot.lane.b32.xlu0 %v2276, 64
      %v2419 = vpop.permute.xlu0 %2418
      %2420 = vrot.lane.b32.xlu0 %v2279, 64
      %v2421 = vpop.permute.xlu0 %2420
      %2422 = vrot.lane.b32.xlu0 %v2284, 64
      %v2423 = vpop.permute.xlu0 %2422
      %2424 = vrot.lane.b32.xlu0 %v2287, 64
      %v2425 = vpop.permute.xlu0 %2424
      %2426 = vrot.lane.b32.xlu0 %v2292, 64
      %v2427 = vpop.permute.xlu0 %2426
      %2428 = vrot.lane.b32.xlu0 %v2295, 64
      %v2429 = vpop.permute.xlu0 %2428
      %2430 = vrot.lane.b32.xlu0 %v2300, 64
      %v2431 = vpop.permute.xlu0 %2430
      %2432 = vrot.lane.b32.xlu0 %v2303, 64
      %v2433 = vpop.permute.xlu0 %2432
      %2434 = vrot.lane.b32.xlu0 %v2308, 64
      %v2435 = vpop.permute.xlu0 %2434
      %2436 = vrot.lane.b32.xlu0 %v2311, 64
      %v2437 = vpop.permute.xlu0 %2436
      %2438 = vrot.lane.b32.xlu0 %v2316, 64
      %v2439 = vpop.permute.xlu0 %2438
      %2440 = vrot.lane.b32.xlu0 %v2319, 64
      %v2441 = vpop.permute.xlu0 %2440
      %2442 = vrot.lane.b32.xlu0 %v2324, 64
      %v2443 = vpop.permute.xlu0 %2442
      %2444 = vrot.lane.b32.xlu0 %v2327, 64
      %v2445 = vpop.permute.xlu0 %2444
      %2446 = vrot.lane.b32.xlu0 %v2332, 64
      %v2447 = vpop.permute.xlu0 %2446
      %2448 = vrot.lane.b32.xlu0 %v2335, 64
      %v2449 = vpop.permute.xlu0 %2448
      %v2466 = vsel %vm297, %v710, %v2355
      %v2467 = vsel %vm297, %v713, %v2357
      %v2468 = vsel %vm297, %v718, %v2359
      %v2469 = vsel %vm297, %v721, %v2361
      %v2470 = vsel %vm297, %v726, %v2363
      %v2471 = vsel %vm297, %v729, %v2365
      %v2472 = vsel %vm297, %v734, %v2367
      %v2473 = vsel %vm297, %v737, %v2369
      %v2474 = vsel %vm297, %v742, %v2371
      %v2475 = vsel %vm297, %v745, %v2373
      %v2476 = vsel %vm297, %v750, %v2375
      %v2477 = vsel %vm297, %v753, %v2377
      %v2478 = vsel %vm297, %v758, %v2379
      %v2479 = vsel %vm297, %v761, %v2381
      %v2480 = vsel %vm297, %v766, %v2383
      %v2481 = vsel %vm297, %v769, %v2385
      %v2482 = vsel %vm297, %v1794, %v2419
      %v2483 = vsel %vm297, %v1797, %v2421
      %v2484 = vsel %vm297, %v1802, %v2423
      %v2485 = vsel %vm297, %v1805, %v2425
      %v2486 = vsel %vm297, %v1810, %v2427
      %v2487 = vsel %vm297, %v1813, %v2429
      %v2488 = vsel %vm297, %v1818, %v2431
      %v2489 = vsel %vm297, %v1821, %v2433
      %v2490 = vsel %vm297, %v1826, %v2435
      %v2491 = vsel %vm297, %v1829, %v2437
      %v2492 = vsel %vm297, %v1834, %v2439
      %v2493 = vsel %vm297, %v1837, %v2441
      %v2494 = vsel %vm297, %v1842, %v2443
      %v2495 = vsel %vm297, %v1845, %v2445
      %v2496 = vsel %vm297, %v1850, %v2447
      %v2497 = vsel %vm297, %v1853, %v2449
      %v2498 = vpack.c.bf16 %v2467, %v2466
      %v2499 = vpack.c.bf16 %v2483, %v2482
      %v2500 = vpack.c.bf16 %v2469, %v2468
      %v2501 = vpack.c.bf16 %v2485, %v2484
      %v2502 = vpack.c.bf16 %v2471, %v2470
      %v2503 = vpack.c.bf16 %v2487, %v2486
      %v2504 = vpack.c.bf16 %v2473, %v2472
      %v2505 = vpack.c.bf16 %v2489, %v2488
      %v2506 = vpack.c.bf16 %v2475, %v2474
      %v2507 = vpack.c.bf16 %v2491, %v2490
      %v2508 = vpack.c.bf16 %v2477, %v2476
      %v2509 = vpack.c.bf16 %v2493, %v2492
      %v2510 = vpack.c.bf16 %v2479, %v2478
      %v2511 = vpack.c.bf16 %v2495, %v2494
      %v2512 = vpack.c.bf16 %v2481, %v2480
      %v2513 = vpack.c.bf16 %v2497, %v2496
      %v2530 = vunpack.c.l.b16 %v2498
      %v2531 = vunpack.c.l.b16 %v2499
      %v2532 = vunpack.c.h.b16 %v2498
      %v2533 = vunpack.c.h.b16 %v2499
      %v2534 = vunpack.c.l.b16 %v2500
      %v2535 = vunpack.c.l.b16 %v2501
      %v2536 = vunpack.c.h.b16 %v2500
      %v2537 = vunpack.c.h.b16 %v2501
      %v2538 = vunpack.c.l.b16 %v2502
      %v2539 = vunpack.c.l.b16 %v2503
      %v2540 = vunpack.c.h.b16 %v2502
      %v2541 = vunpack.c.h.b16 %v2503
      %v2542 = vunpack.c.l.b16 %v2504
      %v2543 = vunpack.c.l.b16 %v2505
      %v2544 = vunpack.c.h.b16 %v2504
      %v2545 = vunpack.c.h.b16 %v2505
      %v2546 = vunpack.c.l.b16 %v2506
      %v2547 = vunpack.c.l.b16 %v2507
      %v2548 = vunpack.c.h.b16 %v2506
      %v2549 = vunpack.c.h.b16 %v2507
      %v2550 = vunpack.c.l.b16 %v2508
      %v2551 = vunpack.c.l.b16 %v2509
      %v2552 = vunpack.c.h.b16 %v2508
      %v2553 = vunpack.c.h.b16 %v2509
      %v2554 = vunpack.c.l.b16 %v2510
      %v2555 = vunpack.c.l.b16 %v2511
      %v2556 = vunpack.c.h.b16 %v2510
      %v2557 = vunpack.c.h.b16 %v2511
      %v2558 = vunpack.c.l.b16 %v2512
      %v2559 = vunpack.c.l.b16 %v2513
      %v2560 = vunpack.c.h.b16 %v2512
      %v2561 = vunpack.c.h.b16 %v2513
      %v2562 = vpack.c.b16 %v2531, %v2530
      %v2563 = vpack.c.b16 %v2533, %v2532
      %v2564 = vpack.c.b16 %v2535, %v2534
      %v2565 = vpack.c.b16 %v2537, %v2536
      %v2566 = vpack.c.b16 %v2539, %v2538
      %v2567 = vpack.c.b16 %v2541, %v2540
      %v2568 = vpack.c.b16 %v2543, %v2542
      %v2569 = vpack.c.b16 %v2545, %v2544
      %v2570 = vpack.c.b16 %v2547, %v2546
      %v2571 = vpack.c.b16 %v2549, %v2548
      %v2572 = vpack.c.b16 %v2551, %v2550
      %v2573 = vpack.c.b16 %v2553, %v2552
      %v2574 = vpack.c.b16 %v2555, %v2554
      %v2575 = vpack.c.b16 %v2557, %v2556
      %v2576 = vpack.c.b16 %v2559, %v2558
      %v2577 = vpack.c.b16 %v2561, %v2560
      %2594 = vst [vmem:[%s116] sm:$0xff] %v2562
      %2595 = vst [vmem:[%s116 + $0x8] sm:$0xff] %v2563
      %2596 = vst [vmem:[%s116 + $0x10] sm:$0xff] %v2564
      %2597 = vst [vmem:[%s116 + $0x18] sm:$0xff] %v2565
      %2598 = vst [vmem:[%s116 + $0x20] sm:$0xff] %v2566
      %2599 = vst [vmem:[%s116 + $0x28] sm:$0xff] %v2567
      %2600 = vst [vmem:[%s116 + $0x30] sm:$0xff] %v2568
      %2601 = vst [vmem:[%s116 + $0x38] sm:$0xff] %v2569
      %2602 = vst [vmem:[%s116 + $0x40] sm:$0xff] %v2570
      %2603 = vst [vmem:[%s116 + $0x48] sm:$0xff] %v2571
      %2604 = vst [vmem:[%s116 + $0x50] sm:$0xff] %v2572
      %2605 = vst [vmem:[%s116 + $0x58] sm:$0xff] %v2573
      %2606 = vst [vmem:[%s116 + $0x60] sm:$0xff] %v2574
      %2607 = vst [vmem:[%s116 + $0x68] sm:$0xff] %v2575
      %2608 = vst [vmem:[%s116 + $0x70] sm:$0xff] %v2576
      %2609 = vst [vmem:[%s116 + $0x78] sm:$0xff] %v2577
      %p2610 = scmp.lt.s32.totalorder %s12, 1
      %s2611 = scalar_select %p2610, %s12, 1
      %s2612 = smul.addr %s2611, 32
      %s2613 = smul.addr %s2612, 4
      %s2614 = scalar_lea.vmem %s1, %s2613
      // Predicated region
      $region25: #{mindvault_forward.10} parent=23 // pred_check
        %p2615 = pneg %p56
      $region26: #{mindvault_forward.10} parent=23 // pred_check_branch
        %2617 = sbr.rel (%p2615) target = $region28
      $region27: #{mindvault_forward.10} parent=23 // pred_region
        _
      $region28: #{mindvault_forward.10} parent=23 // pred_fallthru
        _
    $region24: #{mindvault_forward.10} parent=5 // pred_fallthru
      _
    %p2618 = scmp.le.s32.totalorder 2, %s7
    // Predicated region
    $region29: #{mindvault_forward.10} parent=5 // pred_check
      %p2619 = pneg %p2618
    $region30: #{mindvault_forward.10} parent=5 // pred_check_branch
      %2621 = sbr.rel (%p2619) target = $region32
    $region31: #{mindvault_forward.10} parent=5 // pred_region
      %s2622 = ssub.s32 %s7, 2
      // Predicated region
      $region33: #{mindvault_forward.10} parent=31 // pred_check
        %p2623 = pneg %p62
      $region34: #{mindvault_forward.10} parent=31 // pred_check_branch
        %2625 = sbr.rel (%p2623) target = $region36
      $region35: #{mindvault_forward.10} parent=31 // pred_region
        %p2626 = scmp.lt.s32.totalorder %s13, 1
        %s2627 = scalar_select %p2626, %s13, 1
        %s2628 = smul.addr %s2627, 32
        %s2629 = smul.addr %s2628, 4
        %s2630 = scalar_lea.vmem %s1, %s2629
      $region36: #{mindvault_forward.10} parent=31 // pred_fallthru
        _
    $region32: #{mindvault_forward.10} parent=5 // pred_fallthru
      _
  $region6: #{mindvault_forward.10} parent=0 // loop_footer
    %s11 = sadd.s32 1, %s7
  $region7: #{mindvault_forward.10} parent=0 // loop_footer_branch
    %6 = sbr.rel target = $region3
  $region8: #{mindvault_forward.10} parent=0 // loop_exit
    _

// kernel: mindvault_forward.17
$region0: #{mindvault_forward.17}
  #allocation0 [shape = 'u32[]', space=smem, size = 0x4, offset = 0x4, fixed_abs, tag = 'smem constant byte address 0x4 - core index']
  #allocation1 [shape = 'u32[144,128]{1,0:T(1,128)}', space=vmem, size = 0x12000, scoped, tag = 'internal scratch']
  %s0 = inlined_call_operand.vmem [shape: bf16[256,256], index: 0, kind: input, shape index: {}]
  %s1 = inlined_call_operand.vmem [shape: f32[1,256], index: 1, kind: input, shape index: {}]
  %s2 = inlined_call_operand.vmem [shape: f32[1,256], index: 2, kind: input, shape index: {}]
  %s3 = inlined_call_operand.vmem [shape: bf16[256,512], index: 3, kind: input, shape index: {}]
  %s4 = inlined_call_operand.vmem [shape: f32[1,512], index: 4, kind: input, shape index: {}]
  %s5 = inlined_call_operand.hbm [shape: f32[256,512], index: 5, kind: output, shape index: {}]
  %s6 = sld [smem:[#allocation0]]
  $region91: #{mindvault_forward.17} parent=0
    _
  %s8 = ssub.s32 1, %s6
  %s9 = scalar_select 0, %s8, %s6
  $region1: #{mindvault_forward.17} parent=0
    #allocation2 [shape = 'u8[262144]{0}', space=vmem, size = 0x40000, scoped, tag = 'input window, operand 3']
    #allocation3 [shape = 'u8[262144]{0}', space=vmem, size = 0x40000, scoped, tag = 'output window, operand 0']
    #allocation4 [shape = 's32[2]{0}', space=sflag, size = 0x8, scoped, tag = 'scoped memory for mindvault_forward.17']
    %10 = vsyncpa [#allocation4], 0
    %s11 = scalar_lea.sflag [#allocation4], 1
    %12 = vsyncpa %s11, 0
    loop: start=0, step=1, limit=6
    $region2: #{mindvault_forward.17} parent=1 // loop_pre_header
      _
    $region3: #{mindvault_forward.17} parent=1 // loop_header
      %s14 = sphi 0, %s18
      %p15 = scmp.ge.s32.totalorder %s14, 6
      %s21 = sphi 0, %s33
      %s22 = sphi 0, %s29
      %s23 = sphi 0, %s21
      %s24 = sphi 0, %s22
      %s25 = sphi 0, %s23
      %s26 = sphi 0, %s24
      %s36 = sphi 0, %s38
      %s39 = sphi 0, %s36
      %s40 = sphi 0, %s39
      %s56 = sphi 0, %s40
      %s60 = sphi 0, %s60
      %s62 = sphi 0, %s60
      %s63 = sphi 0, %s62
      %s77 = sphi 0, %s63
      %s81 = sphi 0, %s81
      %s83 = sphi 0, %s81
      %s84 = sphi 0, %s83
      %s98 = sphi 0, %s84
      %s104 = sphi 0, %s106
      %s107 = sphi 0, %s104
      %s108 = sphi 0, %s107
      %s124 = sphi 0, %s108
      %s130 = sphi 0, %s132
      %s133 = sphi 0, %s130
      %s134 = sphi 0, %s133
      %s150 = sphi 0, %s134
      %s158 = sphi 0, %s160
      %s161 = sphi 0, %s158
      %s162 = sphi 0, %s161
      %s178 = sphi 0, %s162
    $region4: #{mindvault_forward.17} parent=1 // loop_header_branch
      %17 = sbr.rel (%p15) target = $region8
    $region5: #{mindvault_forward.17} parent=1 // loop_body
      %s19 = ssub.s32 %s14, 1
      %s20 = ssub.s32 %s14, 2
      %s27 = sadd.s32 1, %s22
      %p28 = scmp.ge.s32.totalorder %s27, 2
      %s29 = scalar_select %p28, 0, %s27
      %s30 = sadd.s32 1, %s21
      %s31 = scalar_select %p28, %s30, %s21
      %p32 = scmp.ge.s32.totalorder %s31, 2
      %s33 = scalar_select %p32, 0, %s31
      %s34 = ssub.s32 %s21, %s33
      %p35 = scmp.eq.s32.totalorder %s34, 0
      %s37 = sadd.s32 %s36, 1
      %s38 = scalar_select %p35, %s36, %s37
      %p41 = pneg %p35
      %p42 = scmp.eq.s32.totalorder %s14, 3
      %p43 = por %p41, %p42
      %p44 = scmp.ne.s32.totalorder %s36, %s39
      %p45 = scmp.eq.s32.totalorder %s14, 0
      %p46 = por %p44, %p45
      %p47 = scmp.ne.s32.totalorder %s36, %s39
      %p48 = scmp.eq.s32.totalorder %s19, 3
      %p49 = por %p47, %p48
      %p50 = scmp.ne.s32.totalorder %s39, %s40
      %p51 = scmp.eq.s32.totalorder %s19, 0
      %p52 = por %p50, %p51
      %p53 = scmp.ne.s32.totalorder %s39, %s40
      %p54 = scmp.eq.s32.totalorder %s20, 3
      %p55 = por %p53, %p54
      %p57 = scmp.ne.s32.totalorder %s40, %s56
      %p58 = scmp.eq.s32.totalorder %s20, 0
      %p59 = por %p57, %p58
      %s61 = sadd.s32 %s60, 1
      %p64 = scmp.eq.s32.totalorder %s14, 3
      %p65 = scmp.ne.s32.totalorder %s60, %s62
      %p66 = scmp.eq.s32.totalorder %s14, 0
      %p67 = por %p65, %p66
      %p68 = scmp.ne.s32.totalorder %s60, %s62
      %p69 = scmp.eq.s32.totalorder %s19, 3
      %p70 = por %p68, %p69
      %p71 = scmp.ne.s32.totalorder %s62, %s63
      %p72 = scmp.eq.s32.totalorder %s19, 0
      %p73 = por %p71, %p72
      %p74 = scmp.ne.s32.totalorder %s62, %s63
      %p75 = scmp.eq.s32.totalorder %s20, 3
      %p76 = por %p74, %p75
      %p78 = scmp.ne.s32.totalorder %s63, %s77
      %p79 = scmp.eq.s32.totalorder %s20, 0
      %p80 = por %p78, %p79
      %s82 = sadd.s32 %s81, 1
      %p85 = scmp.eq.s32.totalorder %s14, 3
      %p86 = scmp.ne.s32.totalorder %s81, %s83
      %p87 = scmp.eq.s32.totalorder %s14, 0
      %p88 = por %p86, %p87
      %p89 = scmp.ne.s32.totalorder %s81, %s83
      %p90 = scmp.eq.s32.totalorder %s19, 3
      %p91 = por %p89, %p90
      %p92 = scmp.ne.s32.totalorder %s83, %s84
      %p93 = scmp.eq.s32.totalorder %s19, 0
      %p94 = por %p92, %p93
      %p95 = scmp.ne.s32.totalorder %s83, %s84
      %p96 = scmp.eq.s32.totalorder %s20, 3
      %p97 = por %p95, %p96
      %p99 = scmp.ne.s32.totalorder %s84, %s98
      %p100 = scmp.eq.s32.totalorder %s20, 0
      %p101 = por %p99, %p100
      %s102 = ssub.s32 %s22, %s29
      %p103 = scmp.eq.s32.totalorder %s102, 0
      %s105 = sadd.s32 %s104, 1
      %s106 = scalar_select %p103, %s104, %s105
      %p109 = pneg %p103
      %p110 = scmp.eq.s32.totalorder %s14, 3
      %p111 = por %p109, %p110
      %p112 = scmp.ne.s32.totalorder %s104, %s107
      %p113 = scmp.eq.s32.totalorder %s14, 0
      %p114 = por %p112, %p113
      %p115 = scmp.ne.s32.totalorder %s104, %s107
      %p116 = scmp.eq.s32.totalorder %s19, 3
      %p117 = por %p115, %p116
      %p118 = scmp.ne.s32.totalorder %s107, %s108
      %p119 = scmp.eq.s32.totalorder %s19, 0
      %p120 = por %p118, %p119
      %p121 = scmp.ne.s32.totalorder %s107, %s108
      %p122 = scmp.eq.s32.totalorder %s20, 3
      %p123 = por %p121, %p122
      %p125 = scmp.ne.s32.totalorder %s108, %s124
      %p126 = scmp.eq.s32.totalorder %s20, 0
      %p127 = por %p125, %p126
      %s128 = ssub.s32 %s22, %s29
      %p129 = scmp.eq.s32.totalorder %s128, 0
      %s131 = sadd.s32 %s130, 1
      %s132 = scalar_select %p129, %s130, %s131
      %p135 = pneg %p129
      %p136 = scmp.eq.s32.totalorder %s14, 3
      %p137 = por %p135, %p136
      %p138 = scmp.ne.s32.totalorder %s130, %s133
      %p139 = scmp.eq.s32.totalorder %s14, 0
      %p140 = por %p138, %p139
      %p141 = scmp.ne.s32.totalorder %s130, %s133
      %p142 = scmp.eq.s32.totalorder %s19, 3
      %p143 = por %p141, %p142
      %p144 = scmp.ne.s32.totalorder %s133, %s134
      %p145 = scmp.eq.s32.totalorder %s19, 0
      %p146 = por %p144, %p145
      %p147 = scmp.ne.s32.totalorder %s133, %s134
      %p148 = scmp.eq.s32.totalorder %s20, 3
      %p149 = por %p147, %p148
      %p151 = scmp.ne.s32.totalorder %s134, %s150
      %p152 = scmp.eq.s32.totalorder %s20, 0
      %p153 = por %p151, %p152
      %s154 = ssub.s32 %s21, %s33
      %s155 = ssub.s32 %s22, %s29
      %s156 = sor.u32 %s154, %s155
      %p157 = scmp.eq.s32.totalorder %s156, 0
      %s159 = sadd.s32 %s158, 1
      %s160 = scalar_select %p157, %s158, %s159
      %p163 = pneg %p157
      %p164 = scmp.eq.s32.totalorder %s14, 3
      %p165 = por %p163, %p164
      %p166 = scmp.ne.s32.totalorder %s158, %s161
      %p167 = scmp.eq.s32.totalorder %s14, 0
      %p168 = por %p166, %p167
      %p169 = scmp.ne.s32.totalorder %s158, %s161
      %p170 = scmp.eq.s32.totalorder %s19, 3
      %p171 = por %p169, %p170
      %p172 = scmp.ne.s32.totalorder %s161, %s162
      %p173 = scmp.eq.s32.totalorder %s19, 0
      %p174 = por %p172, %p173
      %p175 = scmp.ne.s32.totalorder %s161, %s162
      %p176 = scmp.eq.s32.totalorder %s20, 3
      %p177 = por %p175, %p176
      %p179 = scmp.ne.s32.totalorder %s162, %s178
      %p180 = scmp.eq.s32.totalorder %s20, 0
      %p181 = por %p179, %p180
      %p182 = scmp.le.s32.totalorder 1, %s14
      %p183 = scmp.lt.s32.totalorder %s14, 5
      %p184 = pnand %p182, %p183
      %p185 = pneg %p184
      // Predicated region
      $region9: #{mindvault_forward.17} parent=5 // pred_check
        _
      $region10: #{mindvault_forward.17} parent=5 // pred_check_branch
        %187 = sbr.rel (%p184) target = $region12
      $region11: #{mindvault_forward.17} parent=5 // pred_region
        %s188 = ssub.s32 %s14, 1
        // Predicated region
        $region13: #{mindvault_forward.17} parent=11 // pred_check
          %p189 = pneg %p73
        $region14: #{mindvault_forward.17} parent=11 // pred_check_branch
          %191 = sbr.rel (%p189) target = $region16
        $region15: #{mindvault_forward.17} parent=11 // pred_region
          _
        $region16: #{mindvault_forward.17} parent=11 // pred_fallthru
          _
        // Predicated region
        $region17: #{mindvault_forward.17} parent=11 // pred_check
          %p192 = pneg %p94
        $region18: #{mindvault_forward.17} parent=11 // pred_check_branch
          %194 = sbr.rel (%p192) target = $region20
        $region19: #{mindvault_forward.17} parent=11 // pred_region
          _
        $region20: #{mindvault_forward.17} parent=11 // pred_fallthru
          _
      $region12: #{mindvault_forward.17} parent=5 // pred_fallthru
        _
      %p195 = scmp.lt.s32.totalorder %s14, 4
      // Predicated region
      $region21: #{mindvault_forward.17} parent=5 // pred_check
        %p196 = pneg %p195
      $region22: #{mindvault_forward.17} parent=5 // pred_check_branch
        %198 = sbr.rel (%p196) target = $region24
      $region23: #{mindvault_forward.17} parent=5 // pred_region
        // Predicated region
        $region25: #{mindvault_forward.17} parent=23 // pred_check
          %p199 = pneg %p46
        $region26: #{mindvault_forward.17} parent=23 // pred_check_branch
          %201 = sbr.rel (%p199) target = $region28
        $region27: #{mindvault_forward.17} parent=23 // pred_region
          %s202 = smul.u32 16, %s21
          %p203 = scmp.lt.s32.totalorder %s202, 31
          %s204 = scalar_select %p203, %s202, 31
          %s205 = smul.addr %s204, 2
          %s206 = smul.addr %s205, 4
          %s207 = scalar_lea.vmem %s0, %s206
          %s208 = smul.u32 16, %s21
        $region28: #{mindvault_forward.17} parent=23 // pred_fallthru
          _
        // Predicated region
        $region29: #{mindvault_forward.17} parent=23 // pred_check
          %p209 = pneg %p114
        $region30: #{mindvault_forward.17} parent=23 // pred_check_branch
          %211 = sbr.rel (%p209) target = $region32
        $region31: #{mindvault_forward.17} parent=23 // pred_region
          %s212 = sand.u32 %s104, 1
          %s213 = sand.u32 %s104, 1
          %s214 = smul.addr %s213, 256
          %s215 = scalar_lea.vmem [#allocation2], %s214
          %s216 = smul.u32 2, %s22
          %s217 = smul.addr %s216, 4
          %s218 = scalar_lea.vmem %s3, %s217
          // Predicated region
          $region33: #{mindvault_forward.17} parent=31 // pred_check
            _
          $region34: #{mindvault_forward.17} parent=31 // pred_check_branch
            %220 = sbr.rel (0) target = $region36
          $region35: #{mindvault_forward.17} parent=31 // pred_region
            // Predicated region
            $region37: #{mindvault_forward.17} parent=35 // pred_check
              _
            $region38: #{mindvault_forward.17} parent=35 // pred_check_branch
              %222 = sbr.rel (0) target = $region40
            $region39: #{mindvault_forward.17} parent=35 // pred_region
              // Predicated region
              $region52: #{mindvault_forward.17} parent=39 // pred_check
                _
              $region53: #{mindvault_forward.17} parent=39 // pred_check_branch
                %299 = sbr.rel (0) target = $region55
              $region54: #{mindvault_forward.17} parent=39 // pred_region
                loop: start=0, step=1, limit=1
                $region56: #{mindvault_forward.17} parent=54 // loop_pre_header
                  _
                $region57: #{mindvault_forward.17} parent=54 // loop_header
                  %s301 = sphi 0, %s305
                  %p302 = scmp.ge.s32.totalorder %s301, 1
                  %s306 = sphi %s218, %s218
                  %s307 = sphi %s215, %s215
                $region58: #{mindvault_forward.17} parent=54 // loop_header_branch
                  %304 = sbr.rel (%p302) target = $region62
                $region59: #{mindvault_forward.17} parent=54 // loop_body
                  %v308 = vld [vmem:[%s306] sm:$0xff]
                  %309 = vst [vmem:[%s307] sm:$0xff] %v308
                  %v310 = vld [vmem:[%s306 + $0x10] sm:$0xff]
                  %311 = vst [vmem:[%s307 + $0x8] sm:$0xff] %v310
                  %v312 = vld [vmem:[%s306 + $0x20] sm:$0xff]
                  %313 = vst [vmem:[%s307 + $0x10] sm:$0xff] %v312
                  %v314 = vld [vmem:[%s306 + $0x30] sm:$0xff]
                  %315 = vst [vmem:[%s307 + $0x18] sm:$0xff] %v314
                  %v316 = vld [vmem:[%s306 + $0x40] sm:$0xff]
                  %317 = vst [vmem:[%s307 + $0x20] sm:$0xff] %v316
                  %v318 = vld [vmem:[%s306 + $0x50] sm:$0xff]
                  %319 = vst [vmem:[%s307 + $0x28] sm:$0xff] %v318
                  %v320 = vld [vmem:[%s306 + $0x60] sm:$0xff]
                  %321 = vst [vmem:[%s307 + $0x30] sm:$0xff] %v320
                  %v322 = vld [vmem:[%s306 + $0x70] sm:$0xff]
                  %323 = vst [vmem:[%s307 + $0x38] sm:$0xff] %v322
                  %v324 = vld [vmem:[%s306 + $0x80] sm:$0xff]
                  %325 = vst [vmem:[%s307 + $0x40] sm:$0xff] %v324
                  %v326 = vld [vmem:[%s306 + $0x90] sm:$0xff]
                  %327 = vst [vmem:[%s307 + $0x48] sm:$0xff] %v326
                  %v328 = vld [vmem:[%s306 + $0xa0] sm:$0xff]
                  %329 = vst [vmem:[%s307 + $0x50] sm:$0xff] %v328
                  %v330 = vld [vmem:[%s306 + $0xb0] sm:$0xff]
                  %331 = vst [vmem:[%s307 + $0x58] sm:$0xff] %v330
                  %v332 = vld [vmem:[%s306 + $0xc0] sm:$0xff]
                  %333 = vst [vmem:[%s307 + $0x60] sm:$0xff] %v332
                  %v334 = vld [vmem:[%s306 + $0xd0] sm:$0xff]
                  %335 = vst [vmem:[%s307 + $0x68] sm:$0xff] %v334
                  %v336 = vld [vmem:[%s306 + $0xe0] sm:$0xff]
                  %337 = vst [vmem:[%s307 + $0x70] sm:$0xff] %v336
                  %v338 = vld [vmem:[%s306 + $0xf0] sm:$0xff]
                  %339 = vst [vmem:[%s307 + $0x78] sm:$0xff] %v338
                  %v340 = vld [vmem:[%s306 + $0x100] sm:$0xff]
                  %341 = vst [vmem:[%s307 + $0x80] sm:$0xff] %v340
                  %v342 = vld [vmem:[%s306 + $0x110] sm:$0xff]
                  %343 = vst [vmem:[%s307 + $0x88] sm:$0xff] %v342
                  %v344 = vld [vmem:[%s306 + $0x120] sm:$0xff]
                  %345 = vst [vmem:[%s307 + $0x90] sm:$0xff] %v344
                  %v346 = vld [vmem:[%s306 + $0x130] sm:$0xff]
                  %347 = vst [vmem:[%s307 + $0x98] sm:$0xff] %v346
                  %v348 = vld [vmem:[%s306 + $0x140] sm:$0xff]
                  %349 = vst [vmem:[%s307 + $0xa0] sm:$0xff] %v348
                  %v350 = vld [vmem:[%s306 + $0x150] sm:$0xff]
                  %351 = vst [vmem:[%s307 + $0xa8] sm:$0xff] %v350
                  %v352 = vld [vmem:[%s306 + $0x160] sm:$0xff]
                  %353 = vst [vmem:[%s307 + $0xb0] sm:$0xff] %v352
                  %v354 = vld [vmem:[%s306 + $0x170] sm:$0xff]
                  %355 = vst [vmem:[%s307 + $0xb8] sm:$0xff] %v354
                  %v356 = vld [vmem:[%s306 + $0x180] sm:$0xff]
                  %357 = vst [vmem:[%s307 + $0xc0] sm:$0xff] %v356
                  %v358 = vld [vmem:[%s306 + $0x190] sm:$0xff]
                  %359 = vst [vmem:[%s307 + $0xc8] sm:$0xff] %v358
                  %v360 = vld [vmem:[%s306 + $0x1a0] sm:$0xff]
                  %361 = vst [vmem:[%s307 + $0xd0] sm:$0xff] %v360
                  %v362 = vld [vmem:[%s306 + $0x1b0] sm:$0xff]
                  %363 = vst [vmem:[%s307 + $0xd8] sm:$0xff] %v362
                  %v364 = vld [vmem:[%s306 + $0x1c0] sm:$0xff]
                  %365 = vst [vmem:[%s307 + $0xe0] sm:$0xff] %v364
                  %v366 = vld [vmem:[%s306 + $0x1d0] sm:$0xff]
                  %367 = vst [vmem:[%s307 + $0xe8] sm:$0xff] %v366
                  %v368 = vld [vmem:[%s306 + $0x1e0] sm:$0xff]
                  %369 = vst [vmem:[%s307 + $0xf0] sm:$0xff] %v368
                  %v370 = vld [vmem:[%s306 + $0x1f0] sm:$0xff]
                  %371 = vst [vmem:[%s307 + $0xf8] sm:$0xff] %v370
                $region60: #{mindvault_forward.17} parent=54 // loop_footer
                  %s305 = sadd.s32 1, %s301
                $region61: #{mindvault_forward.17} parent=54 // loop_footer_branch
                  %300 = sbr.rel target = $region57
                $region62: #{mindvault_forward.17} parent=54 // loop_exit
                  _
              $region55: #{mindvault_forward.17} parent=39 // pred_fallthru
                _
              // Predicated region
              $region63: #{mindvault_forward.17} parent=39 // pred_check
                _
              $region64: #{mindvault_forward.17} parent=39 // pred_check_branch
                %373 = sbr.rel target = $region66
              $region65: #{mindvault_forward.17} parent=39 // pred_region
                _
              $region66: #{mindvault_forward.17} parent=39 // pred_fallthru
                _
            $region40: #{mindvault_forward.17} parent=35 // pred_fallthru
              _
            // Predicated region
            $region41: #{mindvault_forward.17} parent=35 // pred_check
              _
            $region42: #{mindvault_forward.17} parent=35 // pred_check_branch
              %224 = sbr.rel target = $region44
            $region43: #{mindvault_forward.17} parent=35 // pred_region
              loop: start=0, step=1, limit=1
              $region45: #{mindvault_forward.17} parent=43 // loop_pre_header
                _
              $region46: #{mindvault_forward.17} parent=43 // loop_header
                %s227 = sphi 0, %s231
                %p228 = scmp.ge.s32.totalorder %s227, 1
                %s232 = sphi %s218, %s218
                %s233 = sphi %s215, %s215
              $region47: #{mindvault_forward.17} parent=43 // loop_header_branch
                %230 = sbr.rel (%p228) target = $region51
              $region48: #{mindvault_forward.17} parent=43 // loop_body
                %v234 = vld [vmem:[%s232] sm:$0xff]
                %235 = vst [vmem:[%s233] sm:$0xff] %v234
                %v236 = vld [vmem:[%s232 + $0x10] sm:$0xff]
                %237 = vst [vmem:[%s233 + $0x8] sm:$0xff] %v236
                %v238 = vld [vmem:[%s232 + $0x20] sm:$0xff]
                %239 = vst [vmem:[%s233 + $0x10] sm:$0xff] %v238
                %v240 = vld [vmem:[%s232 + $0x30] sm:$0xff]
                %241 = vst [vmem:[%s233 + $0x18] sm:$0xff] %v240
                %v242 = vld [vmem:[%s232 + $0x40] sm:$0xff]
                %243 = vst [vmem:[%s233 + $0x20] sm:$0xff] %v242
                %v244 = vld [vmem:[%s232 + $0x50] sm:$0xff]
                %245 = vst [vmem:[%s233 + $0x28] sm:$0xff] %v244
                %v246 = vld [vmem:[%s232 + $0x60] sm:$0xff]
                %247 = vst [vmem:[%s233 + $0x30] sm:$0xff] %v246
                %v248 = vld [vmem:[%s232 + $0x70] sm:$0xff]
                %249 = vst [vmem:[%s233 + $0x38] sm:$0xff] %v248
                %v250 = vld [vmem:[%s232 + $0x80] sm:$0xff]
                %251 = vst [vmem:[%s233 + $0x40] sm:$0xff] %v250
                %v252 = vld [vmem:[%s232 + $0x90] sm:$0xff]
                %253 = vst [vmem:[%s233 + $0x48] sm:$0xff] %v252
                %v254 = vld [vmem:[%s232 + $0xa0] sm:$0xff]
                %255 = vst [vmem:[%s233 + $0x50] sm:$0xff] %v254
                %v256 = vld [vmem:[%s232 + $0xb0] sm:$0xff]
                %257 = vst [vmem:[%s233 + $0x58] sm:$0xff] %v256
                %v258 = vld [vmem:[%s232 + $0xc0] sm:$0xff]
                %259 = vst [vmem:[%s233 + $0x60] sm:$0xff] %v258
                %v260 = vld [vmem:[%s232 + $0xd0] sm:$0xff]
                %261 = vst [vmem:[%s233 + $0x68] sm:$0xff] %v260
                %v262 = vld [vmem:[%s232 + $0xe0] sm:$0xff]
                %263 = vst [vmem:[%s233 + $0x70] sm:$0xff] %v262
                %v264 = vld [vmem:[%s232 + $0xf0] sm:$0xff]
                %265 = vst [vmem:[%s233 + $0x78] sm:$0xff] %v264
                %v266 = vld [vmem:[%s232 + $0x100] sm:$0xff]
                %267 = vst [vmem:[%s233 + $0x80] sm:$0xff] %v266
                %v268 = vld [vmem:[%s232 + $0x110] sm:$0xff]
                %269 = vst [vmem:[%s233 + $0x88] sm:$0xff] %v268
                %v270 = vld [vmem:[%s232 + $0x120] sm:$0xff]
                %271 = vst [vmem:[%s233 + $0x90] sm:$0xff] %v270
                %v272 = vld [vmem:[%s232 + $0x130] sm:$0xff]
                %273 = vst [vmem:[%s233 + $0x98] sm:$0xff] %v272
                %v274 = vld [vmem:[%s232 + $0x140] sm:$0xff]
                %275 = vst [vmem:[%s233 + $0xa0] sm:$0xff] %v274
                %v276 = vld [vmem:[%s232 + $0x150] sm:$0xff]
                %277 = vst [vmem:[%s233 + $0xa8] sm:$0xff] %v276
                %v278 = vld [vmem:[%s232 + $0x160] sm:$0xff]
                %279 = vst [vmem:[%s233 + $0xb0] sm:$0xff] %v278
                %v280 = vld [vmem:[%s232 + $0x170] sm:$0xff]
                %281 = vst [vmem:[%s233 + $0xb8] sm:$0xff] %v280
                %v282 = vld [vmem:[%s232 + $0x180] sm:$0xff]
                %283 = vst [vmem:[%s233 + $0xc0] sm:$0xff] %v282
                %v284 = vld [vmem:[%s232 + $0x190] sm:$0xff]
                %285 = vst [vmem:[%s233 + $0xc8] sm:$0xff] %v284
                %v286 = vld [vmem:[%s232 + $0x1a0] sm:$0xff]
                %287 = vst [vmem:[%s233 + $0xd0] sm:$0xff] %v286
                %v288 = vld [vmem:[%s232 + $0x1b0] sm:$0xff]
                %289 = vst [vmem:[%s233 + $0xd8] sm:$0xff] %v288
                %v290 = vld [vmem:[%s232 + $0x1c0] sm:$0xff]
                %291 = vst [vmem:[%s233 + $0xe0] sm:$0xff] %v290
                %v292 = vld [vmem:[%s232 + $0x1d0] sm:$0xff]
                %293 = vst [vmem:[%s233 + $0xe8] sm:$0xff] %v292
                %v294 = vld [vmem:[%s232 + $0x1e0] sm:$0xff]
                %295 = vst [vmem:[%s233 + $0xf0] sm:$0xff] %v294
                %v296 = vld [vmem:[%s232 + $0x1f0] sm:$0xff]
                %297 = vst [vmem:[%s233 + $0xf8] sm:$0xff] %v296
              $region49: #{mindvault_forward.17} parent=43 // loop_footer
                %s231 = sadd.s32 1, %s227
              $region50: #{mindvault_forward.17} parent=43 // loop_footer_branch
                %226 = sbr.rel target = $region46
              $region51: #{mindvault_forward.17} parent=43 // loop_exit
                _
            $region44: #{mindvault_forward.17} parent=35 // pred_fallthru
              _
          $region36: #{mindvault_forward.17} parent=31 // pred_fallthru
            _
          %374 = vnop
        $region32: #{mindvault_forward.17} parent=23 // pred_fallthru
          _
        // Predicated region
        $region67: #{mindvault_forward.17} parent=23 // pred_check
          %p375 = pneg %p140
        $region68: #{mindvault_forward.17} parent=23 // pred_check_branch
          %377 = sbr.rel (%p375) target = $region70
        $region69: #{mindvault_forward.17} parent=23 // pred_region
          %s378 = smul.u32 2, %s22
          %p379 = scmp.lt.s32.totalorder %s378, 3
          %s380 = scalar_select %p379, %s378, 3
          %s381 = scalar_lea.vmem %s4, %s380
          %s382 = smul.u32 2, %s22
        $region70: #{mindvault_forward.17} parent=23 // pred_fallthru
          _
      $region24: #{mindvault_forward.17} parent=5 // pred_fallthru
        _
      %p383 = scmp.le.s32.totalorder 1, %s14
      %p384 = scmp.lt.s32.totalorder %s14, 5
      %p385 = pnand %p383, %p384
      %p386 = pneg %p385
      // Predicated region
      $region71: #{mindvault_forward.17} parent=5 // pred_check
        _
      $region72: #{mindvault_forward.17} parent=5 // pred_check_branch
        %388 = sbr.rel (%p385) target = $region74
      $region73: #{mindvault_forward.17} parent=5 // pred_region
        %s389 = ssub.s32 %s14, 1
        %s390 = sand.u32 %s107, 1
        %s391 = sand.u32 %s107, 1
        %s392 = smul.addr %s391, 256
        %s393 = scalar_lea.vmem [#allocation2], %s392
        // Predicated region
        $region75: #{mindvault_forward.17} parent=73 // pred_check
          %p394 = pneg %p120
        $region76: #{mindvault_forward.17} parent=73 // pred_check_branch
          %396 = sbr.rel (%p394) target = $region78
        $region77: #{mindvault_forward.17} parent=73 // pred_region
          _
        $region78: #{mindvault_forward.17} parent=73 // pred_fallthru
          _
        %s397 = smul.u32 16, %s23
        %p398 = scmp.lt.s32.totalorder %s397, 31
        %s399 = scalar_select %p398, %s397, 31
        %s400 = smul.addr %s399, 2
        %s401 = smul.addr %s400, 4
        %s402 = scalar_lea.vmem %s0, %s401
        %p403 = pneg %p52
        %p404 = pneg %p49
        %p405 = pneg %p73
        %p406 = pneg %p70
        %p407 = pneg %p94
        %p408 = pneg %p91
        %s409 = sand.u32 %s107, 1
        %s410 = sand.u32 %s107, 1
        %s411 = smul.addr %s410, 256
        %s412 = scalar_lea.vmem [#allocation2], %s411
        %p413 = pneg %p120
        %p414 = pneg %p117
        %s415 = smul.u32 2, %s24
        %p416 = scmp.lt.s32.totalorder %s415, 3
        %s417 = scalar_select %p416, %s415, 3
        %s418 = scalar_lea.vmem %s4, %s417
        %p419 = pneg %p146
        %p420 = pneg %p143
        %p421 = pneg %p174
        %p422 = pneg %p171
        %s423 = sand.u32 %s161, 1
        %s424 = scalar_lea.sflag [#allocation4], %s423
        %s425 = sand.u32 %s161, 1
        %s426 = smul.addr %s425, 256
        %s427 = scalar_lea.vmem [#allocation3], %s426
        %s428 = smul.u32 16, %s23
        %p429 = scmp.lt.s32.totalorder %s428, 31
        %s430 = scalar_select %p429, %s428, 31
        %s431 = smul.addr %s430, 2
        %s432 = smul.addr %s431, 4
        %s433 = scalar_lea.vmem %s0, %s432
        %s434 = smul.u32 16, %s23
        %s435 = smul.u32 2, %s24
        %s436 = smul.u32 2, %s24
        %p437 = scmp.lt.s32.totalorder %s436, 3
        %s438 = scalar_select %p437, %s436, 3
        %s439 = scalar_lea.vmem %s4, %s438
        %s440 = smul.u32 2, %s24
        %s441 = smul.u32 16, %s23
        %s442 = smul.u32 2, %s24
        %v443 = vld [vmem:[%s433] sm:$0xff]
        %v444 = vld [vmem:[%s433 + $0x8] sm:$0xff]
        %v445 = vld [vmem:[%s433 + $0x10] sm:$0xff]
        %v446 = vld [vmem:[%s433 + $0x18] sm:$0xff]
        %v447 = vld [vmem:[%s433 + $0x20] sm:$0xff]
        %v448 = vld [vmem:[%s433 + $0x28] sm:$0xff]
        %v449 = vld [vmem:[%s433 + $0x30] sm:$0xff]
        %v450 = vld [vmem:[%s433 + $0x38] sm:$0xff]
        %v451 = vld [vmem:[%s433 + $0x40] sm:$0xff]
        %v452 = vld [vmem:[%s433 + $0x48] sm:$0xff]
        %v453 = vld [vmem:[%s433 + $0x50] sm:$0xff]
        %v454 = vld [vmem:[%s433 + $0x58] sm:$0xff]
        %v455 = vld [vmem:[%s433 + $0x60] sm:$0xff]
        %v456 = vld [vmem:[%s433 + $0x68] sm:$0xff]
        %v457 = vld [vmem:[%s433 + $0x70] sm:$0xff]
        %v458 = vld [vmem:[%s433 + $0x78] sm:$0xff]
        %v459 = vunpack.c.l.bf16 %v443
        %v460 = vunpack.c.h.bf16 %v443
        %v461 = vunpack.c.l.bf16 %v444
        %v462 = vunpack.c.h.bf16 %v444
        %v463 = vunpack.c.l.bf16 %v445
        %v464 = vunpack.c.h.bf16 %v445
        %v465 = vunpack.c.l.bf16 %v446
        %v466 = vunpack.c.h.bf16 %v446
        %v467 = vunpack.c.l.bf16 %v447
        %v468 = vunpack.c.h.bf16 %v447
        %v469 = vunpack.c.l.bf16 %v448
        %v470 = vunpack.c.h.bf16 %v448
        %v471 = vunpack.c.l.bf16 %v449
        %v472 = vunpack.c.h.bf16 %v449
        %v473 = vunpack.c.l.bf16 %v450
        %v474 = vunpack.c.h.bf16 %v450
        %v475 = vunpack.c.l.bf16 %v451
        %v476 = vunpack.c.h.bf16 %v451
        %v477 = vunpack.c.l.bf16 %v452
        %v478 = vunpack.c.h.bf16 %v452
        %v479 = vunpack.c.l.bf16 %v453
        %v480 = vunpack.c.h.bf16 %v453
        %v481 = vunpack.c.l.bf16 %v454
        %v482 = vunpack.c.h.bf16 %v454
        %v483 = vunpack.c.l.bf16 %v455
        %v484 = vunpack.c.h.bf16 %v455
        %v485 = vunpack.c.l.bf16 %v456
        %v486 = vunpack.c.h.bf16 %v456
        %v487 = vunpack.c.l.bf16 %v457
        %v488 = vunpack.c.h.bf16 %v457
        %v489 = vunpack.c.l.bf16 %v458
        %v490 = vunpack.c.h.bf16 %v458
        %v491 = vadd.f32 %v459, %v460
        %492 = vadd.xlane.f32.xlu0 %v491
        %v493 = vpop.xlane.xlu0 %492
        %v494 = vadd.f32 %v461, %v462
        %495 = vadd.xlane.f32.xlu0 %v494
        %v496 = vpop.xlane.xlu0 %495
        %v497 = vadd.f32 %v463, %v464
        %498 = vadd.xlane.f32.xlu0 %v497
        %v499 = vpop.xlane.xlu0 %498
        %v500 = vadd.f32 %v465, %v466
        %501 = vadd.xlane.f32.xlu0 %v500
        %v502 = vpop.xlane.xlu0 %501
        %v503 = vadd.f32 %v467, %v468
        %504 = vadd.xlane.f32.xlu0 %v503
        %v505 = vpop.xlane.xlu0 %504
        %v506 = vadd.f32 %v469, %v470
        %507 = vadd.xlane.f32.xlu0 %v506
        %v508 = vpop.xlane.xlu0 %507
        %v509 = vadd.f32 %v471, %v472
        %510 = vadd.xlane.f32.xlu0 %v509
        %v511 = vpop.xlane.xlu0 %510
        %v512 = vadd.f32 %v473, %v474
        %513 = vadd.xlane.f32.xlu0 %v512
        %v514 = vpop.xlane.xlu0 %513
        %v515 = vadd.f32 %v475, %v476
        %516 = vadd.xlane.f32.xlu0 %v515
        %v517 = vpop.xlane.xlu0 %516
        %v518 = vadd.f32 %v477, %v478
        %519 = vadd.xlane.f32.xlu0 %v518
        %v520 = vpop.xlane.xlu0 %519
        %v521 = vadd.f32 %v479, %v480
        %522 = vadd.xlane.f32.xlu0 %v521
        %v523 = vpop.xlane.xlu0 %522
        %v524 = vadd.f32 %v481, %v482
        %525 = vadd.xlane.f32.xlu0 %v524
        %v526 = vpop.xlane.xlu0 %525
        %v527 = vadd.f32 %v483, %v484
        %528 = vadd.xlane.f32.xlu0 %v527
        %v529 = vpop.xlane.xlu0 %528
        %v530 = vadd.f32 %v485, %v486
        %531 = vadd.xlane.f32.xlu0 %v530
        %v532 = vpop.xlane.xlu0 %531
        %v533 = vadd.f32 %v487, %v488
        %534 = vadd.xlane.f32.xlu0 %v533
        %v535 = vpop.xlane.xlu0 %534
        %v536 = vadd.f32 %v489, %v490
        %537 = vadd.xlane.f32.xlu0 %v536
        %v538 = vpop.xlane.xlu0 %537
        %v539 = vrcp.pop 256.0
        %v540 = vmul.f32 %v493, %v539
        %v541 = vmul.f32 %v496, %v539
        %v542 = vmul.f32 %v499, %v539
        %v543 = vmul.f32 %v502, %v539
        %v544 = vmul.f32 %v505, %v539
        %v545 = vmul.f32 %v508, %v539
        %v546 = vmul.f32 %v511, %v539
        %v547 = vmul.f32 %v514, %v539
        %v548 = vmul.f32 %v517, %v539
        %v549 = vmul.f32 %v520, %v539
        %v550 = vmul.f32 %v523, %v539
        %v551 = vmul.f32 %v526, %v539
        %v552 = vmul.f32 %v529, %v539
        %v553 = vmul.f32 %v532, %v539
        %v554 = vmul.f32 %v535, %v539
        %v555 = vmul.f32 %v538, %v539
        %v556 = vsub.f32 %v459, %v540
        %v557 = vsub.f32 %v460, %v540
        %v558 = vsub.f32 %v461, %v541
        %v559 = vsub.f32 %v462, %v541
        %v560 = vsub.f32 %v463, %v542
        %v561 = vsub.f32 %v464, %v542
        %v562 = vsub.f32 %v465, %v543
        %v563 = vsub.f32 %v466, %v543
        %v564 = vsub.f32 %v467, %v544
        %v565 = vsub.f32 %v468, %v544
        %v566 = vsub.f32 %v469, %v545
        %v567 = vsub.f32 %v470, %v545
        %v568 = vsub.f32 %v471, %v546
        %v569 = vsub.f32 %v472, %v546
        %v570 = vsub.f32 %v473, %v547
        %v571 = vsub.f32 %v474, %v547
        %v572 = vsub.f32 %v475, %v548
        %v573 = vsub.f32 %v476, %v548
        %v574 = vsub.f32 %v477, %v549
        %v575 = vsub.f32 %v478, %v549
        %v576 = vsub.f32 %v479, %v550
        %v577 = vsub.f32 %v480, %v550
        %v578 = vsub.f32 %v481, %v551
        %v579 = vsub.f32 %v482, %v551
        %v580 = vsub.f32 %v483, %v552
        %v581 = vsub.f32 %v484, %v552
        %v582 = vsub.f32 %v485, %v553
        %v583 = vsub.f32 %v486, %v553
        %v584 = vsub.f32 %v487, %v554
        %v585 = vsub.f32 %v488, %v554
        %v586 = vsub.f32 %v489, %v555
        %v587 = vsub.f32 %v490, %v555
        %v588 = vmul.f32 %v556, %v556
        %v589 = vmul.f32 %v557, %v557
        %v590 = vmul.f32 %v558, %v558
        %v591 = vmul.f32 %v559, %v559
        %v592 = vmul.f32 %v560, %v560
        %v593 = vmul.f32 %v561, %v561
        %v594 = vmul.f32 %v562, %v562
        %v595 = vmul.f32 %v563, %v563
        %v596 = vmul.f32 %v564, %v564
        %v597 = vmul.f32 %v565, %v565
        %v598 = vmul.f32 %v566, %v566
        %v599 = vmul.f32 %v567, %v567
        %v600 = vmul.f32 %v568, %v568
        %v601 = vmul.f32 %v569, %v569
        %v602 = vmul.f32 %v570, %v570
        %v603 = vmul.f32 %v571, %v571
        %v604 = vmul.f32 %v572, %v572
        %v605 = vmul.f32 %v573, %v573
        %v606 = vmul.f32 %v574, %v574
        %v607 = vmul.f32 %v575, %v575
        %v608 = vmul.f32 %v576, %v576
        %v609 = vmul.f32 %v577, %v577
        %v610 = vmul.f32 %v578, %v578
        %v611 = vmul.f32 %v579, %v579
        %v612 = vmul.f32 %v580, %v580
        %v613 = vmul.f32 %v581, %v581
        %v614 = vmul.f32 %v582, %v582
        %v615 = vmul.f32 %v583, %v583
        %v616 = vmul.f32 %v584, %v584
        %v617 = vmul.f32 %v585, %v585
        %v618 = vmul.f32 %v586, %v586
        %v619 = vmul.f32 %v587, %v587
        %v620 = vadd.f32 %v588, %v589
        %621 = vadd.xlane.f32.xlu0 %v620
        %v622 = vpop.xlane.xlu0 %621
        %v623 = vadd.f32 %v590, %v591
        %624 = vadd.xlane.f32.xlu0 %v623
        %v625 = vpop.xlane.xlu0 %624
        %v626 = vadd.f32 %v592, %v593
        %627 = vadd.xlane.f32.xlu0 %v626
        %v628 = vpop.xlane.xlu0 %627
        %v629 = vadd.f32 %v594, %v595
        %630 = vadd.xlane.f32.xlu0 %v629
        %v631 = vpop.xlane.xlu0 %630
        %v632 = vadd.f32 %v596, %v597
        %633 = vadd.xlane.f32.xlu0 %v632
        %v634 = vpop.xlane.xlu0 %633
        %v635 = vadd.f32 %v598, %v599
        %636 = vadd.xlane.f32.xlu0 %v635
        %v637 = vpop.xlane.xlu0 %636
        %v638 = vadd.f32 %v600, %v601
        %639 = vadd.xlane.f32.xlu0 %v638
        %v640 = vpop.xlane.xlu0 %639
        %v641 = vadd.f32 %v602, %v603
        %642 = vadd.xlane.f32.xlu0 %v641
        %v643 = vpop.xlane.xlu0 %642
        %v644 = vadd.f32 %v604, %v605
        %645 = vadd.xlane.f32.xlu0 %v644
        %v646 = vpop.xlane.xlu0 %645
        %v647 = vadd.f32 %v606, %v607
        %648 = vadd.xlane.f32.xlu0 %v647
        %v649 = vpop.xlane.xlu0 %648
        %v650 = vadd.f32 %v608, %v609
        %651 = vadd.xlane.f32.xlu0 %v650
        %v652 = vpop.xlane.xlu0 %651
        %v653 = vadd.f32 %v610, %v611
        %654 = vadd.xlane.f32.xlu0 %v653
        %v655 = vpop.xlane.xlu0 %654
        %v656 = vadd.f32 %v612, %v613
        %657 = vadd.xlane.f32.xlu0 %v656
        %v658 = vpop.xlane.xlu0 %657
        %v659 = vadd.f32 %v614, %v615
        %660 = vadd.xlane.f32.xlu0 %v659
        %v661 = vpop.xlane.xlu0 %660
        %v662 = vadd.f32 %v616, %v617
        %663 = vadd.xlane.f32.xlu0 %v662
        %v664 = vpop.xlane.xlu0 %663
        %v665 = vadd.f32 %v618, %v619
        %666 = vadd.xlane.f32.xlu0 %v665
        %v667 = vpop.xlane.xlu0 %666
        %v668 = vmul.f32 %v622, %v539
        %v669 = vmul.f32 %v625, %v539
        %v670 = vmul.f32 %v628, %v539
        %v671 = vmul.f32 %v631, %v539
        %v672 = vmul.f32 %v634, %v539
        %v673 = vmul.f32 %v637, %v539
        %v674 = vmul.f32 %v640, %v539
        %v675 = vmul.f32 %v643, %v539
        %v676 = vmul.f32 %v646, %v539
        %v677 = vmul.f32 %v649, %v539
        %v678 = vmul.f32 %v652, %v539
        %v679 = vmul.f32 %v655, %v539
        %v680 = vmul.f32 %v658, %v539
        %v681 = vmul.f32 %v661, %v539
        %v682 = vmul.f32 %v664, %v539
        %v683 = vmul.f32 %v667, %v539
        %v684 = vadd.f32 %v668, 1e-05
        %v685 = vadd.f32 %v669, 1e-05
        %v686 = vadd.f32 %v670, 1e-05
        %v687 = vadd.f32 %v671, 1e-05
        %v688 = vadd.f32 %v672, 1e-05
        %v689 = vadd.f32 %v673, 1e-05
        %v690 = vadd.f32 %v674, 1e-05
        %v691 = vadd.f32 %v675, 1e-05
        %v692 = vadd.f32 %v676, 1e-05
        %v693 = vadd.f32 %v677, 1e-05
        %v694 = vadd.f32 %v678, 1e-05
        %v695 = vadd.f32 %v679, 1e-05
        %v696 = vadd.f32 %v680, 1e-05
        %v697 = vadd.f32 %v681, 1e-05
        %v698 = vadd.f32 %v682, 1e-05
        %v699 = vadd.f32 %v683, 1e-05
        %v700 = vrsqrt.pop %v684
        %v701 = vrsqrt.pop %v685
        %v702 = vrsqrt.pop %v686
        %v703 = vrsqrt.pop %v687
        %v704 = vrsqrt.pop %v688
        %v705 = vrsqrt.pop %v689
        %v706 = vrsqrt.pop %v690
        %v707 = vrsqrt.pop %v691
        %v708 = vrsqrt.pop %v692
        %v709 = vrsqrt.pop %v693
        %v710 = vrsqrt.pop %v694
        %v711 = vrsqrt.pop %v695
        %v712 = vrsqrt.pop %v696
        %v713 = vrsqrt.pop %v697
        %v714 = vrsqrt.pop %v698
        %v715 = vrsqrt.pop %v699
        %v716 = vmul.f32 %v556, %v700
        %v717 = vmul.f32 %v557, %v700
        %v718 = vmul.f32 %v558, %v701
        %v719 = vmul.f32 %v559, %v701
        %v720 = vmul.f32 %v560, %v702
        %v721 = vmul.f32 %v561, %v702
        %v722 = vmul.f32 %v562, %v703
        %v723 = vmul.f32 %v563, %v703
        %v724 = vmul.f32 %v564, %v704
        %v725 = vmul.f32 %v565, %v704
        %v726 = vmul.f32 %v566, %v705
        %v727 = vmul.f32 %v567, %v705
        %v728 = vmul.f32 %v568, %v706
        %v729 = vmul.f32 %v569, %v706
        %v730 = vmul.f32 %v570, %v707
        %v731 = vmul.f32 %v571, %v707
        %v732 = vmul.f32 %v572, %v708
        %v733 = vmul.f32 %v573, %v708
        %v734 = vmul.f32 %v574, %v709
        %v735 = vmul.f32 %v575, %v709
        %v736 = vmul.f32 %v576, %v710
        %v737 = vmul.f32 %v577, %v710
        %v738 = vmul.f32 %v578, %v711
        %v739 = vmul.f32 %v579, %v711
        %v740 = vmul.f32 %v580, %v712
        %v741 = vmul.f32 %v581, %v712
        %v742 = vmul.f32 %v582, %v713
        %v743 = vmul.f32 %v583, %v713
        %v744 = vmul.f32 %v584, %v714
        %v745 = vmul.f32 %v585, %v714
        %v746 = vmul.f32 %v586, %v715
        %v747 = vmul.f32 %v587, %v715
        %v748 = vld [vmem:[%s1] sm:$0x3]
        %v750 = vlaneseq
        %v751 = vshrl.u32 %v750, 7
        %v752 = vsub.s32 0, %v751
        %v753 = vrot.slane %v748, %v752
        %v754 = vlaneseq
        %v755 = vshrl.u32 %v754, 7
        %v756 = vsub.s32 1, %v755
        %v757 = vrot.slane %v748, %v756
        %v760 = vmul.f32 %v716, %v753
        %v761 = vmul.f32 %v717, %v757
        %v762 = vmul.f32 %v718, %v753
        %v763 = vmul.f32 %v719, %v757
        %v764 = vmul.f32 %v720, %v753
        %v765 = vmul.f32 %v721, %v757
        %v766 = vmul.f32 %v722, %v753
        %v767 = vmul.f32 %v723, %v757
        %v768 = vmul.f32 %v724, %v753
        %v769 = vmul.f32 %v725, %v757
        %v770 = vmul.f32 %v726, %v753
        %v771 = vmul.f32 %v727, %v757
        %v772 = vmul.f32 %v728, %v753
        %v773 = vmul.f32 %v729, %v757
        %v774 = vmul.f32 %v730, %v753
        %v775 = vmul.f32 %v731, %v757
        %v776 = vmul.f32 %v732, %v753
        %v777 = vmul.f32 %v733, %v757
        %v778 = vmul.f32 %v734, %v753
        %v779 = vmul.f32 %v735, %v757
        %v780 = vmul.f32 %v736, %v753
        %v781 = vmul.f32 %v737, %v757
        %v782 = vmul.f32 %v738, %v753
        %v783 = vmul.f32 %v739, %v757
        %v784 = vmul.f32 %v740, %v753
        %v785 = vmul.f32 %v741, %v757
        %v786 = vmul.f32 %v742, %v753
        %v787 = vmul.f32 %v743, %v757
        %v788 = vmul.f32 %v744, %v753
        %v789 = vmul.f32 %v745, %v757
        %v790 = vmul.f32 %v746, %v753
        %v791 = vmul.f32 %v747, %v757
        %v792 = vld [vmem:[%s2] sm:$0x3]
        %v794 = vlaneseq
        %v795 = vshrl.u32 %v794, 7
        %v796 = vsub.s32 0, %v795
        %v797 = vrot.slane %v792, %v796
        %v798 = vlaneseq
        %v799 = vshrl.u32 %v798, 7
        %v800 = vsub.s32 1, %v799
        %v801 = vrot.slane %v792, %v800
        %v804 = vadd.f32 %v760, %v797
        %v805 = vadd.f32 %v761, %v801
        %v806 = vadd.f32 %v762, %v797
        %v807 = vadd.f32 %v763, %v801
        %v808 = vadd.f32 %v764, %v797
        %v809 = vadd.f32 %v765, %v801
        %v810 = vadd.f32 %v766, %v797
        %v811 = vadd.f32 %v767, %v801
        %v812 = vadd.f32 %v768, %v797
        %v813 = vadd.f32 %v769, %v801
        %v814 = vadd.f32 %v770, %v797
        %v815 = vadd.f32 %v771, %v801
        %v816 = vadd.f32 %v772, %v797
        %v817 = vadd.f32 %v773, %v801
        %v818 = vadd.f32 %v774, %v797
        %v819 = vadd.f32 %v775, %v801
        %v820 = vadd.f32 %v776, %v797
        %v821 = vadd.f32 %v777, %v801
        %v822 = vadd.f32 %v778, %v797
        %v823 = vadd.f32 %v779, %v801
        %v824 = vadd.f32 %v780, %v797
        %v825 = vadd.f32 %v781, %v801
        %v826 = vadd.f32 %v782, %v797
        %v827 = vadd.f32 %v783, %v801
        %v828 = vadd.f32 %v784, %v797
        %v829 = vadd.f32 %v785, %v801
        %v830 = vadd.f32 %v786, %v797
        %v831 = vadd.f32 %v787, %v801
        %v832 = vadd.f32 %v788, %v797
        %v833 = vadd.f32 %v789, %v801
        %v834 = vadd.f32 %v790, %v797
        %v835 = vadd.f32 %v791, %v801
        %v836 = vpack.c.bf16 %v806, %v804
        %v837 = vpack.c.bf16 %v807, %v805
        %v838 = vpack.c.bf16 %v810, %v808
        %v839 = vpack.c.bf16 %v811, %v809
        %v840 = vpack.c.bf16 %v814, %v812
        %v841 = vpack.c.bf16 %v815, %v813
        %v842 = vpack.c.bf16 %v818, %v816
        %v843 = vpack.c.bf16 %v819, %v817
        %v844 = vpack.c.bf16 %v822, %v820
        %v845 = vpack.c.bf16 %v823, %v821
        %v846 = vpack.c.bf16 %v826, %v824
        %v847 = vpack.c.bf16 %v827, %v825
        %v848 = vpack.c.bf16 %v830, %v828
        %v849 = vpack.c.bf16 %v831, %v829
        %v850 = vpack.c.bf16 %v834, %v832
        %v851 = vpack.c.bf16 %v835, %v833
        %v852 = vld [vmem:[%s393] sm:$0xff]
        %v853 = vld [vmem:[%s393 + $0x8] sm:$0xff]
        %v854 = vld [vmem:[%s393 + $0x10] sm:$0xff]
        %v855 = vld [vmem:[%s393 + $0x18] sm:$0xff]
        %v856 = vld [vmem:[%s393 + $0x20] sm:$0xff]
        %v857 = vld [vmem:[%s393 + $0x28] sm:$0xff]
        %v858 = vld [vmem:[%s393 + $0x30] sm:$0xff]
        %v859 = vld [vmem:[%s393 + $0x38] sm:$0xff]
        %v860 = vld [vmem:[%s393 + $0x40] sm:$0xff]
        %v861 = vld [vmem:[%s393 + $0x48] sm:$0xff]
        %v862 = vld [vmem:[%s393 + $0x50] sm:$0xff]
        %v863 = vld [vmem:[%s393 + $0x58] sm:$0xff]
        %v864 = vld [vmem:[%s393 + $0x60] sm:$0xff]
        %v865 = vld [vmem:[%s393 + $0x68] sm:$0xff]
        %v866 = vld [vmem:[%s393 + $0x70] sm:$0xff]
        %v867 = vld [vmem:[%s393 + $0x78] sm:$0xff]
        %v868 = vld [vmem:[%s393 + $0x80] sm:$0xff]
        %v869 = vld [vmem:[%s393 + $0x88] sm:$0xff]
        %v870 = vld [vmem:[%s393 + $0x90] sm:$0xff]
        %v871 = vld [vmem:[%s393 + $0x98] sm:$0xff]
        %v872 = vld [vmem:[%s393 + $0xa0] sm:$0xff]
        %v873 = vld [vmem:[%s393 + $0xa8] sm:$0xff]
        %v874 = vld [vmem:[%s393 + $0xb0] sm:$0xff]
        %v875 = vld [vmem:[%s393 + $0xb8] sm:$0xff]
        %v876 = vld [vmem:[%s393 + $0xc0] sm:$0xff]
        %v877 = vld [vmem:[%s393 + $0xc8] sm:$0xff]
        %v878 = vld [vmem:[%s393 + $0xd0] sm:$0xff]
        %v879 = vld [vmem:[%s393 + $0xd8] sm:$0xff]
        %v880 = vld [vmem:[%s393 + $0xe0] sm:$0xff]
        %v881 = vld [vmem:[%s393 + $0xe8] sm:$0xff]
        %v882 = vld [vmem:[%s393 + $0xf0] sm:$0xff]
        %v883 = vld [vmem:[%s393 + $0xf8] sm:$0xff]
        %v884 = vld [vmem:[%s439] sm:$0x3]
        %v886 = vlaneseq
        %v887 = vshrl.u32 %v886, 7
        %v888 = vsub.s32 0, %v887
        %v889 = vrot.slane %v884, %v888
        %v890 = vlaneseq
        %v891 = vshrl.u32 %v890, 7
        %v892 = vsub.s32 1, %v891
        %v893 = vrot.slane %v884, %v892
        %v928 = vunpack.c.l.b16 %v852
        %v929 = vunpack.c.h.b16 %v852
        %v930 = vunpack.c.l.b16 %v853
        %v931 = vunpack.c.h.b16 %v853
        %v932 = vunpack.c.l.b16 %v854
        %v933 = vunpack.c.h.b16 %v854
        %v934 = vunpack.c.l.b16 %v855
        %v935 = vunpack.c.h.b16 %v855
        %v936 = vunpack.c.l.b16 %v856
        %v937 = vunpack.c.h.b16 %v856
        %v938 = vunpack.c.l.b16 %v857
        %v939 = vunpack.c.h.b16 %v857
        %v940 = vunpack.c.l.b16 %v858
        %v941 = vunpack.c.h.b16 %v858
        %v942 = vunpack.c.l.b16 %v859
        %v943 = vunpack.c.h.b16 %v859
        %v944 = vunpack.c.l.b16 %v860
        %v945 = vunpack.c.h.b16 %v860
        %v946 = vunpack.c.l.b16 %v861
        %v947 = vunpack.c.h.b16 %v861
        %v948 = vunpack.c.l.b16 %v862
        %v949 = vunpack.c.h.b16 %v862
        %v950 = vunpack.c.l.b16 %v863
        %v951 = vunpack.c.h.b16 %v863
        %v952 = vunpack.c.l.b16 %v864
        %v953 = vunpack.c.h.b16 %v864
        %v954 = vunpack.c.l.b16 %v865
        %v955 = vunpack.c.h.b16 %v865
        %v956 = vunpack.c.l.b16 %v866
        %v957 = vunpack.c.h.b16 %v866
        %v958 = vunpack.c.l.b16 %v867
        %v959 = vunpack.c.h.b16 %v867
        %v960 = vunpack.c.l.b16 %v868
        %v961 = vunpack.c.h.b16 %v868
        %v962 = vunpack.c.l.b16 %v869
        %v963 = vunpack.c.h.b16 %v869
        %v964 = vunpack.c.l.b16 %v870
        %v965 = vunpack.c.h.b16 %v870
        %v966 = vunpack.c.l.b16 %v871
        %v967 = vunpack.c.h.b16 %v871
        %v968 = vunpack.c.l.b16 %v872
        %v969 = vunpack.c.h.b16 %v872
        %v970 = vunpack.c.l.b16 %v873
        %v971 = vunpack.c.h.b16 %v873
        %v972 = vunpack.c.l.b16 %v874
        %v973 = vunpack.c.h.b16 %v874
        %v974 = vunpack.c.l.b16 %v875
        %v975 = vunpack.c.h.b16 %v875
        %v976 = vunpack.c.l.b16 %v876
        %v977 = vunpack.c.h.b16 %v876
        %v978 = vunpack.c.l.b16 %v877
        %v979 = vunpack.c.h.b16 %v877
        %v980 = vunpack.c.l.b16 %v878
        %v981 = vunpack.c.h.b16 %v878
        %v982 = vunpack.c.l.b16 %v879
        %v983 = vunpack.c.h.b16 %v879
        %v984 = vunpack.c.l.b16 %v880
        %v985 = vunpack.c.h.b16 %v880
        %v986 = vunpack.c.l.b16 %v881
        %v987 = vunpack.c.h.b16 %v881
        %v988 = vunpack.c.l.b16 %v882
        %v989 = vunpack.c.h.b16 %v882
        %v990 = vunpack.c.l.b16 %v883
        %v991 = vunpack.c.h.b16 %v883
        %v992 = vpack.c.b16 %v930, %v928
        %v993 = vpack.c.b16 %v931, %v929
        %v994 = vpack.c.b16 %v934, %v932
        %v995 = vpack.c.b16 %v935, %v933
        %v996 = vpack.c.b16 %v938, %v936
        %v997 = vpack.c.b16 %v939, %v937
        %v998 = vpack.c.b16 %v942, %v940
        %v999 = vpack.c.b16 %v943, %v941
        %v1000 = vpack.c.b16 %v946, %v944
        %v1001 = vpack.c.b16 %v947, %v945
        %v1002 = vpack.c.b16 %v950, %v948
        %v1003 = vpack.c.b16 %v951, %v949
        %v1004 = vpack.c.b16 %v954, %v952
        %v1005 = vpack.c.b16 %v955, %v953
        %v1006 = vpack.c.b16 %v958, %v956
        %v1007 = vpack.c.b16 %v959, %v957
        %v1008 = vpack.c.b16 %v962, %v960
        %v1009 = vpack.c.b16 %v963, %v961
        %v1010 = vpack.c.b16 %v966, %v964
        %v1011 = vpack.c.b16 %v967, %v965
        %v1012 = vpack.c.b16 %v970, %v968
        %v1013 = vpack.c.b16 %v971, %v969
        %v1014 = vpack.c.b16 %v974, %v972
        %v1015 = vpack.c.b16 %v975, %v973
        %v1016 = vpack.c.b16 %v978, %v976
        %v1017 = vpack.c.b16 %v979, %v977
        %v1018 = vpack.c.b16 %v982, %v980
        %v1019 = vpack.c.b16 %v983, %v981
        %v1020 = vpack.c.b16 %v986, %v984
        %v1021 = vpack.c.b16 %v987, %v985
        %v1022 = vpack.c.b16 %v990, %v988
        %v1023 = vpack.c.b16 %v991, %v989
        %1056 = vmatprep.subr.bf16.mxu0 %v993
        %1057 = vmatpush1.bf16.msra.mxu0 %v992
        %1058 = vmatprep.subr.bf16.mxu0 %v995
        %1059 = vmatpush1.bf16.msra.mxu0 %v994
        %1060 = vmatprep.subr.bf16.mxu0 %v997
        %1061 = vmatpush1.bf16.msra.mxu0 %v996
        %1062 = vmatprep.subr.bf16.mxu0 %v999
        %1063 = vmatpush1.bf16.msra.mxu0 %v998
        %1064 = vmatprep.subr.bf16.mxu0 %v1001
        %1065 = vmatpush1.bf16.msra.mxu0 %v1000
        %1066 = vmatprep.subr.bf16.mxu0 %v1003
        %1067 = vmatpush1.bf16.msra.mxu0 %v1002
        %1068 = vmatprep.subr.bf16.mxu0 %v1005
        %1069 = vmatpush1.bf16.msra.mxu0 %v1004
        %1070 = vmatprep.subr.bf16.mxu0 %v1007
        %1071 = vmatpush1.bf16.msra.mxu0 %v1006
        %1072 = vmatprep.subr.bf16.mxu0 %v1009
        %1073 = vmatpush1.bf16.msra.mxu0 %v1008
        %1074 = vmatprep.subr.bf16.mxu0 %v1011
        %1075 = vmatpush1.bf16.msra.mxu0 %v1010
        %1076 = vmatprep.subr.bf16.mxu0 %v1013
        %1077 = vmatpush1.bf16.msra.mxu0 %v1012
        %1078 = vmatprep.subr.bf16.mxu0 %v1015
        %1079 = vmatpush1.bf16.msra.mxu0 %v1014
        %1080 = vmatprep.subr.bf16.mxu0 %v1017
        %1081 = vmatpush1.bf16.msra.mxu0 %v1016
        %1082 = vmatprep.subr.bf16.mxu0 %v1019
        %1083 = vmatpush1.bf16.msra.mxu0 %v1018
        %1084 = vmatprep.subr.bf16.mxu0 %v1021
        %1085 = vmatpush1.bf16.msra.mxu0 %v1020
        %1086 = vmatprep.subr.bf16.mxu0 %v1023
        %1087 = vmatpush1.bf16.msra.mxu0 %v1022
        %1088 = vmatprep.mubr.bf16.mxu0 %v837
        %1089 = vmatmul.mubr.bf16.gmra.mrb[0].mxu0 %v836
        %v1090 = vpop.f32.mrb[0].mxu0
        %v1091 = vadd.f32 %v889, %v1090
        %v1092 = vpop.f32.mrb[0].mxu0
        %v1093 = vadd.f32 %v893, %v1092
        %v1094 = vpop.f32.mrb[0].mxu0
        %v1095 = vadd.f32 %v889, %v1094
        %v1096 = vpop.f32.mrb[0].mxu0
        %v1097 = vadd.f32 %v893, %v1096
        %1098 = vmatprep.mubr.bf16.mxu0 %v839
        %1099 = vmatmul.mubr.bf16.gmra.mrb[0].mxu0 %v838
        %v1100 = vpop.f32.mrb[0].mxu0
        %v1101 = vadd.f32 %v889, %v1100
        %v1102 = vpop.f32.mrb[0].mxu0
        %v1103 = vadd.f32 %v893, %v1102
        %v1104 = vpop.f32.mrb[0].mxu0
        %v1105 = vadd.f32 %v889, %v1104
        %v1106 = vpop.f32.mrb[0].mxu0
        %v1107 = vadd.f32 %v893, %v1106
        %1108 = vmatprep.mubr.bf16.mxu0 %v841
        %1109 = vmatmul.mubr.bf16.gmra.mrb[0].mxu0 %v840
        %v1110 = vpop.f32.mrb[0].mxu0
        %v1111 = vadd.f32 %v889, %v1110
        %v1112 = vpop.f32.mrb[0].mxu0
        %v1113 = vadd.f32 %v893, %v1112
        %v1114 = vpop.f32.mrb[0].mxu0
        %v1115 = vadd.f32 %v889, %v1114
        %v1116 = vpop.f32.mrb[0].mxu0
        %v1117 = vadd.f32 %v893, %v1116
        %1118 = vmatprep.mubr.bf16.mxu0 %v843
        %1119 = vmatmul.mubr.bf16.gmra.mrb[0].mxu0 %v842
        %v1120 = vpop.f32.mrb[0].mxu0
        %v1121 = vadd.f32 %v889, %v1120
        %v1122 = vpop.f32.mrb[0].mxu0
        %v1123 = vadd.f32 %v893, %v1122
        %v1124 = vpop.f32.mrb[0].mxu0
        %v1125 = vadd.f32 %v889, %v1124
        %v1126 = vpop.f32.mrb[0].mxu0
        %v1127 = vadd.f32 %v893, %v1126
        %1128 = vmatprep.mubr.bf16.mxu0 %v845
        %1129 = vmatmul.mubr.bf16.gmra.mrb[0].mxu0 %v844
        %v1130 = vpop.f32.mrb[0].mxu0
        %v1131 = vadd.f32 %v889, %v1130
        %v1132 = vpop.f32.mrb[0].mxu0
        %v1133 = vadd.f32 %v893, %v1132
        %v1134 = vpop.f32.mrb[0].mxu0
        %v1135 = vadd.f32 %v889, %v1134
        %v1136 = vpop.f32.mrb[0].mxu0
        %v1137 = vadd.f32 %v893, %v1136
        %1138 = vmatprep.mubr.bf16.mxu0 %v847
        %1139 = vmatmul.mubr.bf16.gmra.mrb[0].mxu0 %v846
        %v1140 = vpop.f32.mrb[0].mxu0
        %v1141 = vadd.f32 %v889, %v1140
        %v1142 = vpop.f32.mrb[0].mxu0
        %v1143 = vadd.f32 %v893, %v1142
        %v1144 = vpop.f32.mrb[0].mxu0
        %v1145 = vadd.f32 %v889, %v1144
        %v1146 = vpop.f32.mrb[0].mxu0
        %v1147 = vadd.f32 %v893, %v1146
        %1148 = vmatprep.mubr.bf16.mxu0 %v849
        %1149 = vmatmul.mubr.bf16.gmra.mrb[0].mxu0 %v848
        %v1150 = vpop.f32.mrb[0].mxu0
        %v1151 = vadd.f32 %v889, %v1150
        %v1152 = vpop.f32.mrb[0].mxu0
        %v1153 = vadd.f32 %v893, %v1152
        %v1154 = vpop.f32.mrb[0].mxu0
        %v1155 = vadd.f32 %v889, %v1154
        %v1156 = vpop.f32.mrb[0].mxu0
        %v1157 = vadd.f32 %v893, %v1156
        %1158 = vmatprep.mubr.bf16.mxu0 %v851
        %1159 = vmatmul.mubr.bf16.gmra.mrb[0].mxu0 %v850
        %v1160 = vpop.f32.mrb[0].mxu0
        %v1161 = vadd.f32 %v889, %v1160
        %v1162 = vpop.f32.mrb[0].mxu0
        %v1163 = vadd.f32 %v893, %v1162
        %v1164 = vpop.f32.mrb[0].mxu0
        %v1165 = vadd.f32 %v889, %v1164
        %v1166 = vpop.f32.mrb[0].mxu0
        %v1167 = vadd.f32 %v893, %v1166
        %1168 = vdwg.mxu0
        %1169 = vst [vmem:[%s427] sm:$0xff] %v1091
        %1170 = vst [vmem:[%s427 + $0x8] sm:$0xff] %v1093
        %1171 = vst [vmem:[%s427 + $0x10] sm:$0xff] %v1095
        %1172 = vst [vmem:[%s427 + $0x18] sm:$0xff] %v1097
        %1173 = vst [vmem:[%s427 + $0x20] sm:$0xff] %v1101
        %1174 = vst [vmem:[%s427 + $0x28] sm:$0xff] %v1103
        %1175 = vst [vmem:[%s427 + $0x30] sm:$0xff] %v1105
        %1176 = vst [vmem:[%s427 + $0x38] sm:$0xff] %v1107
        %1177 = vst [vmem:[%s427 + $0x40] sm:$0xff] %v1111
        %1178 = vst [vmem:[%s427 + $0x48] sm:$0xff] %v1113
        %1179 = vst [vmem:[%s427 + $0x50] sm:$0xff] %v1115
        %1180 = vst [vmem:[%s427 + $0x58] sm:$0xff] %v1117
        %1181 = vst [vmem:[%s427 + $0x60] sm:$0xff] %v1121
        %1182 = vst [vmem:[%s427 + $0x68] sm:$0xff] %v1123
        %1183 = vst [vmem:[%s427 + $0x70] sm:$0xff] %v1125
        %1184 = vst [vmem:[%s427 + $0x78] sm:$0xff] %v1127
        %1185 = vst [vmem:[%s427 + $0x80] sm:$0xff] %v1131
        %1186 = vst [vmem:[%s427 + $0x88] sm:$0xff] %v1133
        %1187 = vst [vmem:[%s427 + $0x90] sm:$0xff] %v1135
        %1188 = vst [vmem:[%s427 + $0x98] sm:$0xff] %v1137
        %1189 = vst [vmem:[%s427 + $0xa0] sm:$0xff] %v1141
        %1190 = vst [vmem:[%s427 + $0xa8] sm:$0xff] %v1143
        %1191 = vst [vmem:[%s427 + $0xb0] sm:$0xff] %v1145
        %1192 = vst [vmem:[%s427 + $0xb8] sm:$0xff] %v1147
        %1193 = vst [vmem:[%s427 + $0xc0] sm:$0xff] %v1151
        %1194 = vst [vmem:[%s427 + $0xc8] sm:$0xff] %v1153
        %1195 = vst [vmem:[%s427 + $0xd0] sm:$0xff] %v1155
        %1196 = vst [vmem:[%s427 + $0xd8] sm:$0xff] %v1157
        %1197 = vst [vmem:[%s427 + $0xe0] sm:$0xff] %v1161
        %1198 = vst [vmem:[%s427 + $0xe8] sm:$0xff] %v1163
        %1199 = vst [vmem:[%s427 + $0xf0] sm:$0xff] %v1165
        %1200 = vst [vmem:[%s427 + $0xf8] sm:$0xff] %v1167
        %s1201 = sand.u32 %s161, 1
        %s1202 = scalar_lea.sflag [#allocation4], %s1201
        %s1203 = sand.u32 %s161, 1
        %s1204 = smul.addr %s1203, 256
        %s1205 = scalar_lea.vmem [#allocation3], %s1204
        // Predicated region
        $region79: #{mindvault_forward.17} parent=73 // pred_check
          %p1206 = pneg %p171
        $region80: #{mindvault_forward.17} parent=73 // pred_check_branch
          %1208 = sbr.rel (%p1206) target = $region82
        $region81: #{mindvault_forward.17} parent=73 // pred_region
          %s1209 = smul.u32 16, %s23
          %s1210 = smul.u32 2, %s24
          %s1212 = ssub.s32 4096, 4096
          %1213 = vsyncadd %s1202, %s1212
          %s1214 = smul.addr %s1209, 4
          %s1215 = sadd.s32 %s1210, %s1214
          %s1216 = smul.addr %s1215, 128
          %s1217 = scalar_lea.hbm %s5, %s1216
          %s1218 = sshll.u32 %s1205, 4
          %s1219 = int_to_ptr.vmem [resolvable:$true] %s1218
          %1224 = dma.vmem_to_hbm [thread:$0]  %s1219, 4096, %s1217, %s1202, 256, 512, 16
        $region82: #{mindvault_forward.17} parent=73 // pred_fallthru
          _
      $region74: #{mindvault_forward.17} parent=5 // pred_fallthru
        _
      %p1225 = scmp.le.s32.totalorder 2, %s14
      // Predicated region
      $region83: #{mindvault_forward.17} parent=5 // pred_check
        %p1226 = pneg %p1225
      $region84: #{mindvault_forward.17} parent=5 // pred_check_branch
        %1228 = sbr.rel (%p1226) target = $region86
      $region85: #{mindvault_forward.17} parent=5 // pred_region
        %s1229 = ssub.s32 %s14, 2
        // Predicated region
        $region87: #{mindvault_forward.17} parent=85 // pred_check
          %p1230 = pneg %p177
        $region88: #{mindvault_forward.17} parent=85 // pred_check_branch
          %1232 = sbr.rel (%p1230) target = $region90
        $region89: #{mindvault_forward.17} parent=85 // pred_region
          %s1233 = sand.u32 %s162, 1
          %s1234 = scalar_lea.sflag [#allocation4], %s1233
          %s1235 = sand.u32 %s162, 1
          %s1236 = smul.addr %s1235, 256
          %s1237 = scalar_lea.vmem [#allocation3], %s1236
          %1238 = dma.done %s1234, 4096
        $region90: #{mindvault_forward.17} parent=85 // pred_fallthru
          _
      $region86: #{mindvault_forward.17} parent=5 // pred_fallthru
        _
    $region6: #{mindvault_forward.17} parent=1 // loop_footer
      %s18 = sadd.s32 1, %s14
    $region7: #{mindvault_forward.17} parent=1 // loop_footer_branch
      %13 = sbr.rel target = $region3
    $region8: #{mindvault_forward.17} parent=1 // loop_exit
      _
    %1239 = vsyncpa [#allocation4], 1
    %s1240 = scalar_lea.sflag [#allocation4], 1
    %1241 = vsyncpa %s1240, 1

// kernel: mindvault_forward.12
$region0: #{mindvault_forward.12}
  #allocation0 [shape = 'u32[]', space=smem, size = 0x4, offset = 0x4, fixed_abs, tag = 'smem constant byte address 0x4 - core index']
  #allocation1 [shape = 'u32[144,128]{1,0:T(1,128)}', space=vmem, size = 0x12000, scoped, tag = 'internal scratch']
  %s0 = inlined_call_operand.vmem [shape: bf16[256,256], index: 0, kind: input, shape index: {}]
  %s1 = inlined_call_operand.vmem [shape: f32[1,256], index: 1, kind: input, shape index: {}]
  %s2 = inlined_call_operand.vmem [shape: f32[1,256], index: 2, kind: input, shape index: {}]
  %s3 = inlined_call_operand.vmem [shape: bf16[256,1024], index: 3, kind: input, shape index: {}]
  %s4 = inlined_call_operand.vmem [shape: f32[1,1024], index: 4, kind: input, shape index: {}]
  %s5 = inlined_call_operand.vmem [shape: bf16[1024,256], index: 5, kind: input, shape index: {}]
  %s6 = inlined_call_operand.vmem [shape: f32[1,256], index: 6, kind: input, shape index: {}]
  %s7 = inlined_call_operand.vmem [shape: bf16[256,256], index: 7, kind: output, shape index: {}]
  %s8 = sld [smem:[#allocation0]]
  $region61: #{mindvault_forward.12} parent=0
    _
  %s10 = ssub.s32 1, %s8
  %s11 = scalar_select 0, %s10, %s8
  loop: start=0, step=1, limit=4
  $region2: #{mindvault_forward.12} parent=0 // loop_pre_header
    _
  $region3: #{mindvault_forward.12} parent=0 // loop_header
    %s13 = sphi 0, %s17
    %p14 = scmp.ge.s32.totalorder %s13, 4
    %s23 = sphi 0, %s25
    %s26 = sphi 0, %s23
    %s27 = sphi 0, %s26
    %s43 = sphi 0, %s27
    %s47 = sphi 0, %s47
    %s49 = sphi 0, %s47
    %s50 = sphi 0, %s49
    %s64 = sphi 0, %s50
    %s68 = sphi 0, %s68
    %s70 = sphi 0, %s68
    %s71 = sphi 0, %s70
    %s85 = sphi 0, %s71
    %s89 = sphi 0, %s89
    %s91 = sphi 0, %s89
    %s92 = sphi 0, %s91
    %s106 = sphi 0, %s92
    %s110 = sphi 0, %s110
    %s112 = sphi 0, %s110
    %s113 = sphi 0, %s112
    %s127 = sphi 0, %s113
    %s131 = sphi 0, %s131
    %s133 = sphi 0, %s131
    %s134 = sphi 0, %s133
    %s148 = sphi 0, %s134
    %s152 = sphi 0, %s152
    %s154 = sphi 0, %s152
    %s155 = sphi 0, %s154
    %s169 = sphi 0, %s155
    %s175 = sphi 0, %s177
    %s178 = sphi 0, %s175
    %s179 = sphi 0, %s178
    %s195 = sphi 0, %s179
  $region4: #{mindvault_forward.12} parent=0 // loop_header_branch
    %16 = sbr.rel (%p14) target = $region8
  $region5: #{mindvault_forward.12} parent=0 // loop_body
    %s18 = ssub.s32 %s13, 1
    %s19 = ssub.s32 %s13, 2
    %s20 = sadd.s32 %s13, 1
    %s21 = ssub.s32 %s13, %s20
    %p22 = scmp.eq.s32.totalorder %s21, 0
    %s24 = sadd.s32 %s23, 1
    %s25 = scalar_select %p22, %s23, %s24
    %p28 = pneg %p22
    %p29 = scmp.eq.s32.totalorder %s13, 1
    %p30 = por %p28, %p29
    %p31 = scmp.ne.s32.totalorder %s23, %s26
    %p32 = scmp.eq.s32.totalorder %s13, 0
    %p33 = por %p31, %p32
    %p34 = scmp.ne.s32.totalorder %s23, %s26
    %p35 = scmp.eq.s32.totalorder %s18, 1
    %p36 = por %p34, %p35
    %p37 = scmp.ne.s32.totalorder %s26, %s27
    %p38 = scmp.eq.s32.totalorder %s18, 0
    %p39 = por %p37, %p38
    %p40 = scmp.ne.s32.totalorder %s26, %s27
    %p41 = scmp.eq.s32.totalorder %s19, 1
    %p42 = por %p40, %p41
    %p44 = scmp.ne.s32.totalorder %s27, %s43
    %p45 = scmp.eq.s32.totalorder %s19, 0
    %p46 = por %p44, %p45
    %s48 = sadd.s32 %s47, 1
    %p51 = scmp.eq.s32.totalorder %s13, 1
    %p52 = scmp.ne.s32.totalorder %s47, %s49
    %p53 = scmp.eq.s32.totalorder %s13, 0
    %p54 = por %p52, %p53
    %p55 = scmp.ne.s32.totalorder %s47, %s49
    %p56 = scmp.eq.s32.totalorder %s18, 1
    %p57 = por %p55, %p56
    %p58 = scmp.ne.s32.totalorder %s49, %s50
    %p59 = scmp.eq.s32.totalorder %s18, 0
    %p60 = por %p58, %p59
    %p61 = scmp.ne.s32.totalorder %s49, %s50
    %p62 = scmp.eq.s32.totalorder %s19, 1
    %p63 = por %p61, %p62
    %p65 = scmp.ne.s32.totalorder %s50, %s64
    %p66 = scmp.eq.s32.totalorder %s19, 0
    %p67 = por %p65, %p66
    %s69 = sadd.s32 %s68, 1
    %p72 = scmp.eq.s32.totalorder %s13, 1
    %p73 = scmp.ne.s32.totalorder %s68, %s70
    %p74 = scmp.eq.s32.totalorder %s13, 0
    %p75 = por %p73, %p74
    %p76 = scmp.ne.s32.totalorder %s68, %s70
    %p77 = scmp.eq.s32.totalorder %s18, 1
    %p78 = por %p76, %p77
    %p79 = scmp.ne.s32.totalorder %s70, %s71
    %p80 = scmp.eq.s32.totalorder %s18, 0
    %p81 = por %p79, %p80
    %p82 = scmp.ne.s32.totalorder %s70, %s71
    %p83 = scmp.eq.s32.totalorder %s19, 1
    %p84 = por %p82, %p83
    %p86 = scmp.ne.s32.totalorder %s71, %s85
    %p87 = scmp.eq.s32.totalorder %s19, 0
    %p88 = por %p86, %p87
    %s90 = sadd.s32 %s89, 1
    %p93 = scmp.eq.s32.totalorder %s13, 1
    %p94 = scmp.ne.s32.totalorder %s89, %s91
    %p95 = scmp.eq.s32.totalorder %s13, 0
    %p96 = por %p94, %p95
    %p97 = scmp.ne.s32.totalorder %s89, %s91
    %p98 = scmp.eq.s32.totalorder %s18, 1
    %p99 = por %p97, %p98
    %p100 = scmp.ne.s32.totalorder %s91, %s92
    %p101 = scmp.eq.s32.totalorder %s18, 0
    %p102 = por %p100, %p101
    %p103 = scmp.ne.s32.totalorder %s91, %s92
    %p104 = scmp.eq.s32.totalorder %s19, 1
    %p105 = por %p103, %p104
    %p107 = scmp.ne.s32.totalorder %s92, %s106
    %p108 = scmp.eq.s32.totalorder %s19, 0
    %p109 = por %p107, %p108
    %s111 = sadd.s32 %s110, 1
    %p114 = scmp.eq.s32.totalorder %s13, 1
    %p115 = scmp.ne.s32.totalorder %s110, %s112
    %p116 = scmp.eq.s32.totalorder %s13, 0
    %p117 = por %p115, %p116
    %p118 = scmp.ne.s32.totalorder %s110, %s112
    %p119 = scmp.eq.s32.totalorder %s18, 1
    %p120 = por %p118, %p119
    %p121 = scmp.ne.s32.totalorder %s112, %s113
    %p122 = scmp.eq.s32.totalorder %s18, 0
    %p123 = por %p121, %p122
    %p124 = scmp.ne.s32.totalorder %s112, %s113
    %p125 = scmp.eq.s32.totalorder %s19, 1
    %p126 = por %p124, %p125
    %p128 = scmp.ne.s32.totalorder %s113, %s127
    %p129 = scmp.eq.s32.totalorder %s19, 0
    %p130 = por %p128, %p129
    %s132 = sadd.s32 %s131, 1
    %p135 = scmp.eq.s32.totalorder %s13, 1
    %p136 = scmp.ne.s32.totalorder %s131, %s133
    %p137 = scmp.eq.s32.totalorder %s13, 0
    %p138 = por %p136, %p137
    %p139 = scmp.ne.s32.totalorder %s131, %s133
    %p140 = scmp.eq.s32.totalorder %s18, 1
    %p141 = por %p139, %p140
    %p142 = scmp.ne.s32.totalorder %s133, %s134
    %p143 = scmp.eq.s32.totalorder %s18, 0
    %p144 = por %p142, %p143
    %p145 = scmp.ne.s32.totalorder %s133, %s134
    %p146 = scmp.eq.s32.totalorder %s19, 1
    %p147 = por %p145, %p146
    %p149 = scmp.ne.s32.totalorder %s134, %s148
    %p150 = scmp.eq.s32.totalorder %s19, 0
    %p151 = por %p149, %p150
    %s153 = sadd.s32 %s152, 1
    %p156 = scmp.eq.s32.totalorder %s13, 1
    %p157 = scmp.ne.s32.totalorder %s152, %s154
    %p158 = scmp.eq.s32.totalorder %s13, 0
    %p159 = por %p157, %p158
    %p160 = scmp.ne.s32.totalorder %s152, %s154
    %p161 = scmp.eq.s32.totalorder %s18, 1
    %p162 = por %p160, %p161
    %p163 = scmp.ne.s32.totalorder %s154, %s155
    %p164 = scmp.eq.s32.totalorder %s18, 0
    %p165 = por %p163, %p164
    %p166 = scmp.ne.s32.totalorder %s154, %s155
    %p167 = scmp.eq.s32.totalorder %s19, 1
    %p168 = por %p166, %p167
    %p170 = scmp.ne.s32.totalorder %s155, %s169
    %p171 = scmp.eq.s32.totalorder %s19, 0
    %p172 = por %p170, %p171
    %s173 = ssub.s32 %s13, %s20
    %p174 = scmp.eq.s32.totalorder %s173, 0
    %s176 = sadd.s32 %s175, 1
    %s177 = scalar_select %p174, %s175, %s176
    %p180 = pneg %p174
    %p181 = scmp.eq.s32.totalorder %s13, 1
    %p182 = por %p180, %p181
    %p183 = scmp.ne.s32.totalorder %s175, %s178
    %p184 = scmp.eq.s32.totalorder %s13, 0
    %p185 = por %p183, %p184
    %p186 = scmp.ne.s32.totalorder %s175, %s178
    %p187 = scmp.eq.s32.totalorder %s18, 1
    %p188 = por %p186, %p187
    %p189 = scmp.ne.s32.totalorder %s178, %s179
    %p190 = scmp.eq.s32.totalorder %s18, 0
    %p191 = por %p189, %p190
    %p192 = scmp.ne.s32.totalorder %s178, %s179
    %p193 = scmp.eq.s32.totalorder %s19, 1
    %p194 = por %p192, %p193
    %p196 = scmp.ne.s32.totalorder %s179, %s195
    %p197 = scmp.eq.s32.totalorder %s19, 0
    %p198 = por %p196, %p197
    %p199 = scmp.le.s32.totalorder 1, %s13
    %p200 = scmp.lt.s32.totalorder %s13, 3
    %p201 = pnand %p199, %p200
    %p202 = pneg %p201
    // Predicated region
    $region9: #{mindvault_forward.12} parent=5 // pred_check
      _
    $region10: #{mindvault_forward.12} parent=5 // pred_check_branch
      %204 = sbr.rel (%p201) target = $region12
    $region11: #{mindvault_forward.12} parent=5 // pred_region
      %s205 = ssub.s32 %s13, 1
      // Predicated region
      $region13: #{mindvault_forward.12} parent=11 // pred_check
        %p206 = pneg %p60
      $region14: #{mindvault_forward.12} parent=11 // pred_check_branch
        %208 = sbr.rel (%p206) target = $region16
      $region15: #{mindvault_forward.12} parent=11 // pred_region
        _
      $region16: #{mindvault_forward.12} parent=11 // pred_fallthru
        _
      // Predicated region
      $region17: #{mindvault_forward.12} parent=11 // pred_check
        %p209 = pneg %p81
      $region18: #{mindvault_forward.12} parent=11 // pred_check_branch
        %211 = sbr.rel (%p209) target = $region20
      $region19: #{mindvault_forward.12} parent=11 // pred_region
        _
      $region20: #{mindvault_forward.12} parent=11 // pred_fallthru
        _
      // Predicated region
      $region21: #{mindvault_forward.12} parent=11 // pred_check
        %p212 = pneg %p102
      $region22: #{mindvault_forward.12} parent=11 // pred_check_branch
        %214 = sbr.rel (%p212) target = $region24
      $region23: #{mindvault_forward.12} parent=11 // pred_region
        _
      $region24: #{mindvault_forward.12} parent=11 // pred_fallthru
        _
      // Predicated region
      $region25: #{mindvault_forward.12} parent=11 // pred_check
        %p215 = pneg %p123
      $region26: #{mindvault_forward.12} parent=11 // pred_check_branch
        %217 = sbr.rel (%p215) target = $region28
      $region27: #{mindvault_forward.12} parent=11 // pred_region
        _
      $region28: #{mindvault_forward.12} parent=11 // pred_fallthru
        _
      // Predicated region
      $region29: #{mindvault_forward.12} parent=11 // pred_check
        %p218 = pneg %p144
      $region30: #{mindvault_forward.12} parent=11 // pred_check_branch
        %220 = sbr.rel (%p218) target = $region32
      $region31: #{mindvault_forward.12} parent=11 // pred_region
        _
      $region32: #{mindvault_forward.12} parent=11 // pred_fallthru
        _
      // Predicated region
      $region33: #{mindvault_forward.12} parent=11 // pred_check
        %p221 = pneg %p165
      $region34: #{mindvault_forward.12} parent=11 // pred_check_branch
        %223 = sbr.rel (%p221) target = $region36
      $region35: #{mindvault_forward.12} parent=11 // pred_region
        _
      $region36: #{mindvault_forward.12} parent=11 // pred_fallthru
        _
    $region12: #{mindvault_forward.12} parent=5 // pred_fallthru
      _
    %p224 = scmp.lt.s32.totalorder %s13, 2
    // Predicated region
    $region37: #{mindvault_forward.12} parent=5 // pred_check
      %p225 = pneg %p224
    $region38: #{mindvault_forward.12} parent=5 // pred_check_branch
      %227 = sbr.rel (%p225) target = $region40
    $region39: #{mindvault_forward.12} parent=5 // pred_region
      // Predicated region
      $region41: #{mindvault_forward.12} parent=39 // pred_check
        %p228 = pneg %p33
      $region42: #{mindvault_forward.12} parent=39 // pred_check_branch
        %230 = sbr.rel (%p228) target = $region44
      $region43: #{mindvault_forward.12} parent=39 // pred_region
        %s231 = smul.u32 16, %s13
        %p232 = scmp.lt.s32.totalorder %s231, 31
        %s233 = scalar_select %p232, %s231, 31
        %s234 = smul.addr %s233, 2
        %s235 = smul.addr %s234, 4
        %s236 = scalar_lea.vmem %s0, %s235
        %s237 = smul.u32 16, %s13
      $region44: #{mindvault_forward.12} parent=39 // pred_fallthru
        _
    $region40: #{mindvault_forward.12} parent=5 // pred_fallthru
      _
    %p238 = scmp.le.s32.totalorder 1, %s13
    %p239 = scmp.lt.s32.totalorder %s13, 3
    %p240 = pnand %p238, %p239
    %p241 = pneg %p240
    // Predicated region
    $region45: #{mindvault_forward.12} parent=5 // pred_check
      _
    $region46: #{mindvault_forward.12} parent=5 // pred_check_branch
      %243 = sbr.rel (%p240) target = $region48
    $region47: #{mindvault_forward.12} parent=5 // pred_region
      %s244 = ssub.s32 %s13, 1
      %s245 = smul.u32 16, %s18
      %p246 = scmp.lt.s32.totalorder %s245, 31
      %s247 = scalar_select %p246, %s245, 31
      %s248 = smul.addr %s247, 2
      %s249 = smul.addr %s248, 4
      %s250 = scalar_lea.vmem %s0, %s249
      %p251 = pneg %p39
      %p252 = pneg %p36
      %p253 = pneg %p60
      %p254 = pneg %p57
      %p255 = pneg %p81
      %p256 = pneg %p78
      %p257 = pneg %p102
      %p258 = pneg %p99
      %p259 = pneg %p123
      %p260 = pneg %p120
      %p261 = pneg %p144
      %p262 = pneg %p141
      %p263 = pneg %p165
      %p264 = pneg %p162
      %p265 = pneg %p191
      %p266 = pneg %p188
      %s267 = smul.u32 16, %s18
      %p268 = scmp.lt.s32.totalorder %s267, 31
      %s269 = scalar_select %p268, %s267, 31
      %s270 = smul.addr %s269, 2
      %s271 = smul.addr %s270, 4
      %s272 = scalar_lea.vmem %s7, %s271
      %s273 = smul.u32 16, %s18
      %p274 = scmp.lt.s32.totalorder %s273, 31
      %s275 = scalar_select %p274, %s273, 31
      %s276 = smul.addr %s275, 2
      %s277 = smul.addr %s276, 4
      %s278 = scalar_lea.vmem %s0, %s277
      %s279 = smul.u32 16, %s18
      %s280 = smul.u32 16, %s18
      %p281 = scmp.lt.s32.totalorder %s280, 31
      %s282 = scalar_select %p281, %s280, 31
      %s283 = smul.addr %s282, 2
      %s284 = smul.addr %s283, 4
      %s285 = scalar_lea.vmem %s7, %s284
      %s286 = smul.u32 16, %s18
      %v287 = vld [vmem:[%s278] sm:$0xff]
      %v288 = vld [vmem:[%s278 + $0x8] sm:$0xff]
      %v289 = vld [vmem:[%s278 + $0x10] sm:$0xff]
      %v290 = vld [vmem:[%s278 + $0x18] sm:$0xff]
      %v291 = vld [vmem:[%s278 + $0x20] sm:$0xff]
      %v292 = vld [vmem:[%s278 + $0x28] sm:$0xff]
      %v293 = vld [vmem:[%s278 + $0x30] sm:$0xff]
      %v294 = vld [vmem:[%s278 + $0x38] sm:$0xff]
      %v295 = vld [vmem:[%s278 + $0x40] sm:$0xff]
      %v296 = vld [vmem:[%s278 + $0x48] sm:$0xff]
      %v297 = vld [vmem:[%s278 + $0x50] sm:$0xff]
      %v298 = vld [vmem:[%s278 + $0x58] sm:$0xff]
      %v299 = vld [vmem:[%s278 + $0x60] sm:$0xff]
      %v300 = vld [vmem:[%s278 + $0x68] sm:$0xff]
      %v301 = vld [vmem:[%s278 + $0x70] sm:$0xff]
      %v302 = vld [vmem:[%s278 + $0x78] sm:$0xff]
      %v303 = vunpack.c.l.bf16 %v287
      %v304 = vunpack.c.h.bf16 %v287
      %v305 = vunpack.c.l.bf16 %v288
      %v306 = vunpack.c.h.bf16 %v288
      %v307 = vunpack.c.l.bf16 %v289
      %v308 = vunpack.c.h.bf16 %v289
      %v309 = vunpack.c.l.bf16 %v290
      %v310 = vunpack.c.h.bf16 %v290
      %v311 = vunpack.c.l.bf16 %v291
      %v312 = vunpack.c.h.bf16 %v291
      %v313 = vunpack.c.l.bf16 %v292
      %v314 = vunpack.c.h.bf16 %v292
      %v315 = vunpack.c.l.bf16 %v293
      %v316 = vunpack.c.h.bf16 %v293
      %v317 = vunpack.c.l.bf16 %v294
      %v318 = vunpack.c.h.bf16 %v294
      %v319 = vunpack.c.l.bf16 %v295
      %v320 = vunpack.c.h.bf16 %v295
      %v321 = vunpack.c.l.bf16 %v296
      %v322 = vunpack.c.h.bf16 %v296
      %v323 = vunpack.c.l.bf16 %v297
      %v324 = vunpack.c.h.bf16 %v297
      %v325 = vunpack.c.l.bf16 %v298
      %v326 = vunpack.c.h.bf16 %v298
      %v327 = vunpack.c.l.bf16 %v299
      %v328 = vunpack.c.h.bf16 %v299
      %v329 = vunpack.c.l.bf16 %v300
      %v330 = vunpack.c.h.bf16 %v300
      %v331 = vunpack.c.l.bf16 %v301
      %v332 = vunpack.c.h.bf16 %v301
      %v333 = vunpack.c.l.bf16 %v302
      %v334 = vunpack.c.h.bf16 %v302
      %v335 = vadd.f32 %v303, %v304
      %336 = vadd.xlane.f32.xlu0 %v335
      %v337 = vpop.xlane.xlu0 %336
      %v338 = vadd.f32 %v305, %v306
      %339 = vadd.xlane.f32.xlu0 %v338
      %v340 = vpop.xlane.xlu0 %339
      %v341 = vadd.f32 %v307, %v308
      %342 = vadd.xlane.f32.xlu0 %v341
      %v343 = vpop.xlane.xlu0 %342
      %v344 = vadd.f32 %v309, %v310
      %345 = vadd.xlane.f32.xlu0 %v344
      %v346 = vpop.xlane.xlu0 %345
      %v347 = vadd.f32 %v311, %v312
      %348 = vadd.xlane.f32.xlu0 %v347
      %v349 = vpop.xlane.xlu0 %348
      %v350 = vadd.f32 %v313, %v314
      %351 = vadd.xlane.f32.xlu0 %v350
      %v352 = vpop.xlane.xlu0 %351
      %v353 = vadd.f32 %v315, %v316
      %354 = vadd.xlane.f32.xlu0 %v353
      %v355 = vpop.xlane.xlu0 %354
      %v356 = vadd.f32 %v317, %v318
      %357 = vadd.xlane.f32.xlu0 %v356
      %v358 = vpop.xlane.xlu0 %357
      %v359 = vadd.f32 %v319, %v320
      %360 = vadd.xlane.f32.xlu0 %v359
      %v361 = vpop.xlane.xlu0 %360
      %v362 = vadd.f32 %v321, %v322
      %363 = vadd.xlane.f32.xlu0 %v362
      %v364 = vpop.xlane.xlu0 %363
      %v365 = vadd.f32 %v323, %v324
      %366 = vadd.xlane.f32.xlu0 %v365
      %v367 = vpop.xlane.xlu0 %366
      %v368 = vadd.f32 %v325, %v326
      %369 = vadd.xlane.f32.xlu0 %v368
      %v370 = vpop.xlane.xlu0 %369
      %v371 = vadd.f32 %v327, %v328
      %372 = vadd.xlane.f32.xlu0 %v371
      %v373 = vpop.xlane.xlu0 %372
      %v374 = vadd.f32 %v329, %v330
      %375 = vadd.xlane.f32.xlu0 %v374
      %v376 = vpop.xlane.xlu0 %375
      %v377 = vadd.f32 %v331, %v332
      %378 = vadd.xlane.f32.xlu0 %v377
      %v379 = vpop.xlane.xlu0 %378
      %v380 = vadd.f32 %v333, %v334
      %381 = vadd.xlane.f32.xlu0 %v380
      %v382 = vpop.xlane.xlu0 %381
      %v383 = vrcp.pop 256.0
      %v384 = vmul.f32 %v337, %v383
      %v385 = vmul.f32 %v340, %v383
      %v386 = vmul.f32 %v343, %v383
      %v387 = vmul.f32 %v346, %v383
      %v388 = vmul.f32 %v349, %v383
      %v389 = vmul.f32 %v352, %v383
      %v390 = vmul.f32 %v355, %v383
      %v391 = vmul.f32 %v358, %v383
      %v392 = vmul.f32 %v361, %v383
      %v393 = vmul.f32 %v364, %v383
      %v394 = vmul.f32 %v367, %v383
      %v395 = vmul.f32 %v370, %v383
      %v396 = vmul.f32 %v373, %v383
      %v397 = vmul.f32 %v376, %v383
      %v398 = vmul.f32 %v379, %v383
      %v399 = vmul.f32 %v382, %v383
      %v400 = vsub.f32 %v303, %v384
      %v401 = vsub.f32 %v304, %v384
      %v402 = vsub.f32 %v305, %v385
      %v403 = vsub.f32 %v306, %v385
      %v404 = vsub.f32 %v307, %v386
      %v405 = vsub.f32 %v308, %v386
      %v406 = vsub.f32 %v309, %v387
      %v407 = vsub.f32 %v310, %v387
      %v408 = vsub.f32 %v311, %v388
      %v409 = vsub.f32 %v312, %v388
      %v410 = vsub.f32 %v313, %v389
      %v411 = vsub.f32 %v314, %v389
      %v412 = vsub.f32 %v315, %v390
      %v413 = vsub.f32 %v316, %v390
      %v414 = vsub.f32 %v317, %v391
      %v415 = vsub.f32 %v318, %v391
      %v416 = vsub.f32 %v319, %v392
      %v417 = vsub.f32 %v320, %v392
      %v418 = vsub.f32 %v321, %v393
      %v419 = vsub.f32 %v322, %v393
      %v420 = vsub.f32 %v323, %v394
      %v421 = vsub.f32 %v324, %v394
      %v422 = vsub.f32 %v325, %v395
      %v423 = vsub.f32 %v326, %v395
      %v424 = vsub.f32 %v327, %v396
      %v425 = vsub.f32 %v328, %v396
      %v426 = vsub.f32 %v329, %v397
      %v427 = vsub.f32 %v330, %v397
      %v428 = vsub.f32 %v331, %v398
      %v429 = vsub.f32 %v332, %v398
      %v430 = vsub.f32 %v333, %v399
      %v431 = vsub.f32 %v334, %v399
      %v432 = vmul.f32 %v400, %v400
      %v433 = vmul.f32 %v401, %v401
      %v434 = vmul.f32 %v402, %v402
      %v435 = vmul.f32 %v403, %v403
      %v436 = vmul.f32 %v404, %v404
      %v437 = vmul.f32 %v405, %v405
      %v438 = vmul.f32 %v406, %v406
      %v439 = vmul.f32 %v407, %v407
      %v440 = vmul.f32 %v408, %v408
      %v441 = vmul.f32 %v409, %v409
      %v442 = vmul.f32 %v410, %v410
      %v443 = vmul.f32 %v411, %v411
      %v444 = vmul.f32 %v412, %v412
      %v445 = vmul.f32 %v413, %v413
      %v446 = vmul.f32 %v414, %v414
      %v447 = vmul.f32 %v415, %v415
      %v448 = vmul.f32 %v416, %v416
      %v449 = vmul.f32 %v417, %v417
      %v450 = vmul.f32 %v418, %v418
      %v451 = vmul.f32 %v419, %v419
      %v452 = vmul.f32 %v420, %v420
      %v453 = vmul.f32 %v421, %v421
      %v454 = vmul.f32 %v422, %v422
      %v455 = vmul.f32 %v423, %v423
      %v456 = vmul.f32 %v424, %v424
      %v457 = vmul.f32 %v425, %v425
      %v458 = vmul.f32 %v426, %v426
      %v459 = vmul.f32 %v427, %v427
      %v460 = vmul.f32 %v428, %v428
      %v461 = vmul.f32 %v429, %v429
      %v462 = vmul.f32 %v430, %v430
      %v463 = vmul.f32 %v431, %v431
      %v464 = vadd.f32 %v432, %v433
      %465 = vadd.xlane.f32.xlu0 %v464
      %v466 = vpop.xlane.xlu0 %465
      %v467 = vadd.f32 %v434, %v435
      %468 = vadd.xlane.f32.xlu0 %v467
      %v469 = vpop.xlane.xlu0 %468
      %v470 = vadd.f32 %v436, %v437
      %471 = vadd.xlane.f32.xlu0 %v470
      %v472 = vpop.xlane.xlu0 %471
      %v473 = vadd.f32 %v438, %v439
      %474 = vadd.xlane.f32.xlu0 %v473
      %v475 = vpop.xlane.xlu0 %474
      %v476 = vadd.f32 %v440, %v441
      %477 = vadd.xlane.f32.xlu0 %v476
      %v478 = vpop.xlane.xlu0 %477
      %v479 = vadd.f32 %v442, %v443
      %480 = vadd.xlane.f32.xlu0 %v479
      %v481 = vpop.xlane.xlu0 %480
      %v482 = vadd.f32 %v444, %v445
      %483 = vadd.xlane.f32.xlu0 %v482
      %v484 = vpop.xlane.xlu0 %483
      %v485 = vadd.f32 %v446, %v447
      %486 = vadd.xlane.f32.xlu0 %v485
      %v487 = vpop.xlane.xlu0 %486
      %v488 = vadd.f32 %v448, %v449
      %489 = vadd.xlane.f32.xlu0 %v488
      %v490 = vpop.xlane.xlu0 %489
      %v491 = vadd.f32 %v450, %v451
      %492 = vadd.xlane.f32.xlu0 %v491
      %v493 = vpop.xlane.xlu0 %492
      %v494 = vadd.f32 %v452, %v453
      %495 = vadd.xlane.f32.xlu0 %v494
      %v496 = vpop.xlane.xlu0 %495
      %v497 = vadd.f32 %v454, %v455
      %498 = vadd.xlane.f32.xlu0 %v497
      %v499 = vpop.xlane.xlu0 %498
      %v500 = vadd.f32 %v456, %v457
      %501 = vadd.xlane.f32.xlu0 %v500
      %v502 = vpop.xlane.xlu0 %501
      %v503 = vadd.f32 %v458, %v459
      %504 = vadd.xlane.f32.xlu0 %v503
      %v505 = vpop.xlane.xlu0 %504
      %v506 = vadd.f32 %v460, %v461
      %507 = vadd.xlane.f32.xlu0 %v506
      %v508 = vpop.xlane.xlu0 %507
      %v509 = vadd.f32 %v462, %v463
      %510 = vadd.xlane.f32.xlu0 %v509
      %v511 = vpop.xlane.xlu0 %510
      %v512 = vmul.f32 %v466, %v383
      %v513 = vmul.f32 %v469, %v383
      %v514 = vmul.f32 %v472, %v383
      %v515 = vmul.f32 %v475, %v383
      %v516 = vmul.f32 %v478, %v383
      %v517 = vmul.f32 %v481, %v383
      %v518 = vmul.f32 %v484, %v383
      %v519 = vmul.f32 %v487, %v383
      %v520 = vmul.f32 %v490, %v383
      %v521 = vmul.f32 %v493, %v383
      %v522 = vmul.f32 %v496, %v383
      %v523 = vmul.f32 %v499, %v383
      %v524 = vmul.f32 %v502, %v383
      %v525 = vmul.f32 %v505, %v383
      %v526 = vmul.f32 %v508, %v383
      %v527 = vmul.f32 %v511, %v383
      %v528 = vadd.f32 %v512, 1e-05
      %v529 = vadd.f32 %v513, 1e-05
      %v530 = vadd.f32 %v514, 1e-05
      %v531 = vadd.f32 %v515, 1e-05
      %v532 = vadd.f32 %v516, 1e-05
      %v533 = vadd.f32 %v517, 1e-05
      %v534 = vadd.f32 %v518, 1e-05
      %v535 = vadd.f32 %v519, 1e-05
      %v536 = vadd.f32 %v520, 1e-05
      %v537 = vadd.f32 %v521, 1e-05
      %v538 = vadd.f32 %v522, 1e-05
      %v539 = vadd.f32 %v523, 1e-05
      %v540 = vadd.f32 %v524, 1e-05
      %v541 = vadd.f32 %v525, 1e-05
      %v542 = vadd.f32 %v526, 1e-05
      %v543 = vadd.f32 %v527, 1e-05
      %v544 = vrsqrt.pop %v528
      %v545 = vrsqrt.pop %v529
      %v546 = vrsqrt.pop %v530
      %v547 = vrsqrt.pop %v531
      %v548 = vrsqrt.pop %v532
      %v549 = vrsqrt.pop %v533
      %v550 = vrsqrt.pop %v534
      %v551 = vrsqrt.pop %v535
      %v552 = vrsqrt.pop %v536
      %v553 = vrsqrt.pop %v537
      %v554 = vrsqrt.pop %v538
      %v555 = vrsqrt.pop %v539
      %v556 = vrsqrt.pop %v540
      %v557 = vrsqrt.pop %v541
      %v558 = vrsqrt.pop %v542
      %v559 = vrsqrt.pop %v543
      %v560 = vmul.f32 %v400, %v544
      %v561 = vmul.f32 %v401, %v544
      %v562 = vmul.f32 %v402, %v545
      %v563 = vmul.f32 %v403, %v545
      %v564 = vmul.f32 %v404, %v546
      %v565 = vmul.f32 %v405, %v546
      %v566 = vmul.f32 %v406, %v547
      %v567 = vmul.f32 %v407, %v547
      %v568 = vmul.f32 %v408, %v548
      %v569 = vmul.f32 %v409, %v548
      %v570 = vmul.f32 %v410, %v549
      %v571 = vmul.f32 %v411, %v549
      %v572 = vmul.f32 %v412, %v550
      %v573 = vmul.f32 %v413, %v550
      %v574 = vmul.f32 %v414, %v551
      %v575 = vmul.f32 %v415, %v551
      %v576 = vmul.f32 %v416, %v552
      %v577 = vmul.f32 %v417, %v552
      %v578 = vmul.f32 %v418, %v553
      %v579 = vmul.f32 %v419, %v553
      %v580 = vmul.f32 %v420, %v554
      %v581 = vmul.f32 %v421, %v554
      %v582 = vmul.f32 %v422, %v555
      %v583 = vmul.f32 %v423, %v555
      %v584 = vmul.f32 %v424, %v556
      %v585 = vmul.f32 %v425, %v556
      %v586 = vmul.f32 %v426, %v557
      %v587 = vmul.f32 %v427, %v557
      %v588 = vmul.f32 %v428, %v558
      %v589 = vmul.f32 %v429, %v558
      %v590 = vmul.f32 %v430, %v559
      %v591 = vmul.f32 %v431, %v559
      %v592 = vld [vmem:[%s1] sm:$0x3]
      %v594 = vlaneseq
      %v595 = vshrl.u32 %v594, 7
      %v596 = vsub.s32 0, %v595
      %v597 = vrot.slane %v592, %v596
      %v598 = vlaneseq
      %v599 = vshrl.u32 %v598, 7
      %v600 = vsub.s32 1, %v599
      %v601 = vrot.slane %v592, %v600
      %v604 = vmul.f32 %v560, %v597
      %v605 = vmul.f32 %v561, %v601
      %v606 = vmul.f32 %v562, %v597
      %v607 = vmul.f32 %v563, %v601
      %v608 = vmul.f32 %v564, %v597
      %v609 = vmul.f32 %v565, %v601
      %v610 = vmul.f32 %v566, %v597
      %v611 = vmul.f32 %v567, %v601
      %v612 = vmul.f32 %v568, %v597
      %v613 = vmul.f32 %v569, %v601
      %v614 = vmul.f32 %v570, %v597
      %v615 = vmul.f32 %v571, %v601
      %v616 = vmul.f32 %v572, %v597
      %v617 = vmul.f32 %v573, %v601
      %v618 = vmul.f32 %v574, %v597
      %v619 = vmul.f32 %v575, %v601
      %v620 = vmul.f32 %v576, %v597
      %v621 = vmul.f32 %v577, %v601
      %v622 = vmul.f32 %v578, %v597
      %v623 = vmul.f32 %v579, %v601
      %v624 = vmul.f32 %v580, %v597
      %v625 = vmul.f32 %v581, %v601
      %v626 = vmul.f32 %v582, %v597
      %v627 = vmul.f32 %v583, %v601
      %v628 = vmul.f32 %v584, %v597
      %v629 = vmul.f32 %v585, %v601
      %v630 = vmul.f32 %v586, %v597
      %v631 = vmul.f32 %v587, %v601
      %v632 = vmul.f32 %v588, %v597
      %v633 = vmul.f32 %v589, %v601
      %v634 = vmul.f32 %v590, %v597
      %v635 = vmul.f32 %v591, %v601
      %v636 = vld [vmem:[%s2] sm:$0x3]
      %v638 = vlaneseq
      %v639 = vshrl.u32 %v638, 7
      %v640 = vsub.s32 0, %v639
      %v641 = vrot.slane %v636, %v640
      %v642 = vlaneseq
      %v643 = vshrl.u32 %v642, 7
      %v644 = vsub.s32 1, %v643
      %v645 = vrot.slane %v636, %v644
      %v648 = vadd.f32 %v604, %v641
      %v649 = vadd.f32 %v605, %v645
      %v650 = vadd.f32 %v606, %v641
      %v651 = vadd.f32 %v607, %v645
      %v652 = vadd.f32 %v608, %v641
      %v653 = vadd.f32 %v609, %v645
      %v654 = vadd.f32 %v610, %v641
      %v655 = vadd.f32 %v611, %v645
      %v656 = vadd.f32 %v612, %v641
      %v657 = vadd.f32 %v613, %v645
      %v658 = vadd.f32 %v614, %v641
      %v659 = vadd.f32 %v615, %v645
      %v660 = vadd.f32 %v616, %v641
      %v661 = vadd.f32 %v617, %v645
      %v662 = vadd.f32 %v618, %v641
      %v663 = vadd.f32 %v619, %v645
      %v664 = vadd.f32 %v620, %v641
      %v665 = vadd.f32 %v621, %v645
      %v666 = vadd.f32 %v622, %v641
      %v667 = vadd.f32 %v623, %v645
      %v668 = vadd.f32 %v624, %v641
      %v669 = vadd.f32 %v625, %v645
      %v670 = vadd.f32 %v626, %v641
      %v671 = vadd.f32 %v627, %v645
      %v672 = vadd.f32 %v628, %v641
      %v673 = vadd.f32 %v629, %v645
      %v674 = vadd.f32 %v630, %v641
      %v675 = vadd.f32 %v631, %v645
      %v676 = vadd.f32 %v632, %v641
      %v677 = vadd.f32 %v633, %v645
      %v678 = vadd.f32 %v634, %v641
      %v679 = vadd.f32 %v635, %v645
      %v680 = vpack.c.bf16 %v650, %v648
      %v681 = vpack.c.bf16 %v651, %v649
      %v682 = vpack.c.bf16 %v654, %v652
      %v683 = vpack.c.bf16 %v655, %v653
      %v684 = vpack.c.bf16 %v658, %v656
      %v685 = vpack.c.bf16 %v659, %v657
      %v686 = vpack.c.bf16 %v662, %v660
      %v687 = vpack.c.bf16 %v663, %v661
      %v688 = vpack.c.bf16 %v666, %v664
      %v689 = vpack.c.bf16 %v667, %v665
      %v690 = vpack.c.bf16 %v670, %v668
      %v691 = vpack.c.bf16 %v671, %v669
      %v692 = vpack.c.bf16 %v674, %v672
      %v693 = vpack.c.bf16 %v675, %v673
      %v694 = vpack.c.bf16 %v678, %v676
      %v695 = vpack.c.bf16 %v679, %v677
      %v696 = vld [vmem:[%s3] sm:$0xff]
      %v697 = vld [vmem:[%s3 + $0x8] sm:$0xff]
      %v698 = vld [vmem:[%s3 + $0x10] sm:$0xff]
      %v699 = vld [vmem:[%s3 + $0x18] sm:$0xff]
      %v700 = vld [vmem:[%s3 + $0x20] sm:$0xff]
      %v701 = vld [vmem:[%s3 + $0x28] sm:$0xff]
      %v702 = vld [vmem:[%s3 + $0x30] sm:$0xff]
      %v703 = vld [vmem:[%s3 + $0x38] sm:$0xff]
      %v704 = vld [vmem:[%s3 + $0x40] sm:$0xff]
      %v705 = vld [vmem:[%s3 + $0x48] sm:$0xff]
      %v706 = vld [vmem:[%s3 + $0x50] sm:$0xff]
      %v707 = vld [vmem:[%s3 + $0x58] sm:$0xff]
      %v708 = vld [vmem:[%s3 + $0x60] sm:$0xff]
      %v709 = vld [vmem:[%s3 + $0x68] sm:$0xff]
      %v710 = vld [vmem:[%s3 + $0x70] sm:$0xff]
      %v711 = vld [vmem:[%s3 + $0x78] sm:$0xff]
      %v712 = vld [vmem:[%s3 + $0x80] sm:$0xff]
      %v713 = vld [vmem:[%s3 + $0x88] sm:$0xff]
      %v714 = vld [vmem:[%s3 + $0x90] sm:$0xff]
      %v715 = vld [vmem:[%s3 + $0x98] sm:$0xff]
      %v716 = vld [vmem:[%s3 + $0xa0] sm:$0xff]
      %v717 = vld [vmem:[%s3 + $0xa8] sm:$0xff]
      %v718 = vld [vmem:[%s3 + $0xb0] sm:$0xff]
      %v719 = vld [vmem:[%s3 + $0xb8] sm:$0xff]
      %v720 = vld [vmem:[%s3 + $0xc0] sm:$0xff]
      %v721 = vld [vmem:[%s3 + $0xc8] sm:$0xff]
      %v722 = vld [vmem:[%s3 + $0xd0] sm:$0xff]
      %v723 = vld [vmem:[%s3 + $0xd8] sm:$0xff]
      %v724 = vld [vmem:[%s3 + $0xe0] sm:$0xff]
      %v725 = vld [vmem:[%s3 + $0xe8] sm:$0xff]
      %v726 = vld [vmem:[%s3 + $0xf0] sm:$0xff]
      %v727 = vld [vmem:[%s3 + $0xf8] sm:$0xff]
      %v728 = vld [vmem:[%s3 + $0x100] sm:$0xff]
      %v729 = vld [vmem:[%s3 + $0x108] sm:$0xff]
      %v730 = vld [vmem:[%s3 + $0x110] sm:$0xff]
      %v731 = vld [vmem:[%s3 + $0x118] sm:$0xff]
      %v732 = vld [vmem:[%s3 + $0x120] sm:$0xff]
      %v733 = vld [vmem:[%s3 + $0x128] sm:$0xff]
      %v734 = vld [vmem:[%s3 + $0x130] sm:$0xff]
      %v735 = vld [vmem:[%s3 + $0x138] sm:$0xff]
      %v736 = vld [vmem:[%s3 + $0x140] sm:$0xff]
      %v737 = vld [vmem:[%s3 + $0x148] sm:$0xff]
      %v738 = vld [vmem:[%s3 + $0x150] sm:$0xff]
      %v739 = vld [vmem:[%s3 + $0x158] sm:$0xff]
      %v740 = vld [vmem:[%s3 + $0x160] sm:$0xff]
      %v741 = vld [vmem:[%s3 + $0x168] sm:$0xff]
      %v742 = vld [vmem:[%s3 + $0x170] sm:$0xff]
      %v743 = vld [vmem:[%s3 + $0x178] sm:$0xff]
      %v744 = vld [vmem:[%s3 + $0x180] sm:$0xff]
      %v745 = vld [vmem:[%s3 + $0x188] sm:$0xff]
      %v746 = vld [vmem:[%s3 + $0x190] sm:$0xff]
      %v747 = vld [vmem:[%s3 + $0x198] sm:$0xff]
      %v748 = vld [vmem:[%s3 + $0x1a0] sm:$0xff]
      %v749 = vld [vmem:[%s3 + $0x1a8] sm:$0xff]
      %v750 = vld [vmem:[%s3 + $0x1b0] sm:$0xff]
      %v751 = vld [vmem:[%s3 + $0x1b8] sm:$0xff]
      %v752 = vld [vmem:[%s3 + $0x1c0] sm:$0xff]
      %v753 = vld [vmem:[%s3 + $0x1c8] sm:$0xff]
      %v754 = vld [vmem:[%s3 + $0x1d0] sm:$0xff]
      %v755 = vld [vmem:[%s3 + $0x1d8] sm:$0xff]
      %v756 = vld [vmem:[%s3 + $0x1e0] sm:$0xff]
      %v757 = vld [vmem:[%s3 + $0x1e8] sm:$0xff]
      %v758 = vld [vmem:[%s3 + $0x1f0] sm:$0xff]
      %v759 = vld [vmem:[%s3 + $0x1f8] sm:$0xff]
      %v760 = vld [vmem:[%s3 + $0x200] sm:$0xff]
      %v761 = vld [vmem:[%s3 + $0x208] sm:$0xff]
      %v762 = vld [vmem:[%s3 + $0x210] sm:$0xff]
      %v763 = vld [vmem:[%s3 + $0x218] sm:$0xff]
      %v764 = vld [vmem:[%s3 + $0x220] sm:$0xff]
      %v765 = vld [vmem:[%s3 + $0x228] sm:$0xff]
      %v766 = vld [vmem:[%s3 + $0x230] sm:$0xff]
      %v767 = vld [vmem:[%s3 + $0x238] sm:$0xff]
      %v768 = vld [vmem:[%s3 + $0x240] sm:$0xff]
      %v769 = vld [vmem:[%s3 + $0x248] sm:$0xff]
      %v770 = vld [vmem:[%s3 + $0x250] sm:$0xff]
      %v771 = vld [vmem:[%s3 + $0x258] sm:$0xff]
      %v772 = vld [vmem:[%s3 + $0x260] sm:$0xff]
      %v773 = vld [vmem:[%s3 + $0x268] sm:$0xff]
      %v774 = vld [vmem:[%s3 + $0x270] sm:$0xff]
      %v775 = vld [vmem:[%s3 + $0x278] sm:$0xff]
      %v776 = vld [vmem:[%s3 + $0x280] sm:$0xff]
      %v777 = vld [vmem:[%s3 + $0x288] sm:$0xff]
      %v778 = vld [vmem:[%s3 + $0x290] sm:$0xff]
      %v779 = vld [vmem:[%s3 + $0x298] sm:$0xff]
      %v780 = vld [vmem:[%s3 + $0x2a0] sm:$0xff]
      %v781 = vld [vmem:[%s3 + $0x2a8] sm:$0xff]
      %v782 = vld [vmem:[%s3 + $0x2b0] sm:$0xff]
      %v783 = vld [vmem:[%s3 + $0x2b8] sm:$0xff]
      %v784 = vld [vmem:[%s3 + $0x2c0] sm:$0xff]
      %v785 = vld [vmem:[%s3 + $0x2c8] sm:$0xff]
      %v786 = vld [vmem:[%s3 + $0x2d0] sm:$0xff]
      %v787 = vld [vmem:[%s3 + $0x2d8] sm:$0xff]
      %v788 = vld [vmem:[%s3 + $0x2e0] sm:$0xff]
      %v789 = vld [vmem:[%s3 + $0x2e8] sm:$0xff]
      %v790 = vld [vmem:[%s3 + $0x2f0] sm:$0xff]
      %v791 = vld [vmem:[%s3 + $0x2f8] sm:$0xff]
      %v792 = vld [vmem:[%s3 + $0x300] sm:$0xff]
      %v793 = vld [vmem:[%s3 + $0x308] sm:$0xff]
      %v794 = vld [vmem:[%s3 + $0x310] sm:$0xff]
      %v795 = vld [vmem:[%s3 + $0x318] sm:$0xff]
      %v796 = vld [vmem:[%s3 + $0x320] sm:$0xff]
      %v797 = vld [vmem:[%s3 + $0x328] sm:$0xff]
      %v798 = vld [vmem:[%s3 + $0x330] sm:$0xff]
      %v799 = vld [vmem:[%s3 + $0x338] sm:$0xff]
      %v800 = vld [vmem:[%s3 + $0x340] sm:$0xff]
      %v801 = vld [vmem:[%s3 + $0x348] sm:$0xff]
      %v802 = vld [vmem:[%s3 + $0x350] sm:$0xff]
      %v803 = vld [vmem:[%s3 + $0x358] sm:$0xff]
      %v804 = vld [vmem:[%s3 + $0x360] sm:$0xff]
      %v805 = vld [vmem:[%s3 + $0x368] sm:$0xff]
      %v806 = vld [vmem:[%s3 + $0x370] sm:$0xff]
      %v807 = vld [vmem:[%s3 + $0x378] sm:$0xff]
      %v808 = vld [vmem:[%s3 + $0x380] sm:$0xff]
      %v809 = vld [vmem:[%s3 + $0x388] sm:$0xff]
      %v810 = vld [vmem:[%s3 + $0x390] sm:$0xff]
      %v811 = vld [vmem:[%s3 + $0x398] sm:$0xff]
      %v812 = vld [vmem:[%s3 + $0x3a0] sm:$0xff]
      %v813 = vld [vmem:[%s3 + $0x3a8] sm:$0xff]
      %v814 = vld [vmem:[%s3 + $0x3b0] sm:$0xff]
      %v815 = vld [vmem:[%s3 + $0x3b8] sm:$0xff]
      %v816 = vld [vmem:[%s3 + $0x3c0] sm:$0xff]
      %v817 = vld [vmem:[%s3 + $0x3c8] sm:$0xff]
      %v818 = vld [vmem:[%s3 + $0x3d0] sm:$0xff]
      %v819 = vld [vmem:[%s3 + $0x3d8] sm:$0xff]
      %v820 = vld [vmem:[%s3 + $0x3e0] sm:$0xff]
      %v821 = vld [vmem:[%s3 + $0x3e8] sm:$0xff]
      %v822 = vld [vmem:[%s3 + $0x3f0] sm:$0xff]
      %v823 = vld [vmem:[%s3 + $0x3f8] sm:$0xff]
      %v824 = vld [vmem:[%s4] sm:$0xff]
      %v826 = vlaneseq
      %v827 = vshrl.u32 %v826, 7
      %v828 = vsub.s32 0, %v827
      %v829 = vrot.slane %v824, %v828
      %v830 = vlaneseq
      %v831 = vshrl.u32 %v830, 7
      %v832 = vsub.s32 1, %v831
      %v833 = vrot.slane %v824, %v832
      %v834 = vlaneseq
      %v835 = vshrl.u32 %v834, 7
      %v836 = vsub.s32 2, %v835
      %v837 = vrot.slane %v824, %v836
      %v838 = vlaneseq
      %v839 = vshrl.u32 %v838, 7
      %v840 = vsub.s32 3, %v839
      %v841 = vrot.slane %v824, %v840
      %v842 = vlaneseq
      %v843 = vshrl.u32 %v842, 7
      %v844 = vsub.s32 4, %v843
      %v845 = vrot.slane %v824, %v844
      %v846 = vlaneseq
      %v847 = vshrl.u32 %v846, 7
      %v848 = vsub.s32 5, %v847
      %v849 = vrot.slane %v824, %v848
      %v850 = vlaneseq
      %v851 = vshrl.u32 %v850, 7
      %v852 = vsub.s32 6, %v851
      %v853 = vrot.slane %v824, %v852
      %v854 = vlaneseq
      %v855 = vshrl.u32 %v854, 7
      %v856 = vsub.s32 7, %v855
      %v857 = vrot.slane %v824, %v856
      %v994 = vunpack.c.l.b16 %v696
      %v995 = vunpack.c.h.b16 %v696
      %v996 = vunpack.c.l.b16 %v697
      %v997 = vunpack.c.h.b16 %v697
      %v998 = vunpack.c.l.b16 %v698
      %v999 = vunpack.c.h.b16 %v698
      %v1000 = vunpack.c.l.b16 %v699
      %v1001 = vunpack.c.h.b16 %v699
      %v1002 = vunpack.c.l.b16 %v700
      %v1003 = vunpack.c.h.b16 %v700
      %v1004 = vunpack.c.l.b16 %v701
      %v1005 = vunpack.c.h.b16 %v701
      %v1006 = vunpack.c.l.b16 %v702
      %v1007 = vunpack.c.h.b16 %v702
      %v1008 = vunpack.c.l.b16 %v703
      %v1009 = vunpack.c.h.b16 %v703
      %v1010 = vunpack.c.l.b16 %v704
      %v1011 = vunpack.c.h.b16 %v704
      %v1012 = vunpack.c.l.b16 %v705
      %v1013 = vunpack.c.h.b16 %v705
      %v1014 = vunpack.c.l.b16 %v706
      %v1015 = vunpack.c.h.b16 %v706
      %v1016 = vunpack.c.l.b16 %v707
      %v1017 = vunpack.c.h.b16 %v707
      %v1018 = vunpack.c.l.b16 %v708
      %v1019 = vunpack.c.h.b16 %v708
      %v1020 = vunpack.c.l.b16 %v709
      %v1021 = vunpack.c.h.b16 %v709
      %v1022 = vunpack.c.l.b16 %v710
      %v1023 = vunpack.c.h.b16 %v710
      %v1024 = vunpack.c.l.b16 %v711
      %v1025 = vunpack.c.h.b16 %v711
      %v1026 = vunpack.c.l.b16 %v712
      %v1027 = vunpack.c.h.b16 %v712
      %v1028 = vunpack.c.l.b16 %v713
      %v1029 = vunpack.c.h.b16 %v713
      %v1030 = vunpack.c.l.b16 %v714
      %v1031 = vunpack.c.h.b16 %v714
      %v1032 = vunpack.c.l.b16 %v715
      %v1033 = vunpack.c.h.b16 %v715
      %v1034 = vunpack.c.l.b16 %v716
      %v1035 = vunpack.c.h.b16 %v716
      %v1036 = vunpack.c.l.b16 %v717
      %v1037 = vunpack.c.h.b16 %v717
      %v1038 = vunpack.c.l.b16 %v718
      %v1039 = vunpack.c.h.b16 %v718
      %v1040 = vunpack.c.l.b16 %v719
      %v1041 = vunpack.c.h.b16 %v719
      %v1042 = vunpack.c.l.b16 %v720
      %v1043 = vunpack.c.h.b16 %v720
      %v1044 = vunpack.c.l.b16 %v721
      %v1045 = vunpack.c.h.b16 %v721
      %v1046 = vunpack.c.l.b16 %v722
      %v1047 = vunpack.c.h.b16 %v722
      %v1048 = vunpack.c.l.b16 %v723
      %v1049 = vunpack.c.h.b16 %v723
      %v1050 = vunpack.c.l.b16 %v724
      %v1051 = vunpack.c.h.b16 %v724
      %v1052 = vunpack.c.l.b16 %v725
      %v1053 = vunpack.c.h.b16 %v725
      %v1054 = vunpack.c.l.b16 %v726
      %v1055 = vunpack.c.h.b16 %v726
      %v1056 = vunpack.c.l.b16 %v727
      %v1057 = vunpack.c.h.b16 %v727
      %v1058 = vunpack.c.l.b16 %v728
      %v1059 = vunpack.c.h.b16 %v728
      %v1060 = vunpack.c.l.b16 %v729
      %v1061 = vunpack.c.h.b16 %v729
      %v1062 = vunpack.c.l.b16 %v730
      %v1063 = vunpack.c.h.b16 %v730
      %v1064 = vunpack.c.l.b16 %v731
      %v1065 = vunpack.c.h.b16 %v731
      %v1066 = vunpack.c.l.b16 %v732
      %v1067 = vunpack.c.h.b16 %v732
      %v1068 = vunpack.c.l.b16 %v733
      %v1069 = vunpack.c.h.b16 %v733
      %v1070 = vunpack.c.l.b16 %v734
      %v1071 = vunpack.c.h.b16 %v734
      %v1072 = vunpack.c.l.b16 %v735
      %v1073 = vunpack.c.h.b16 %v735
      %v1074 = vunpack.c.l.b16 %v736
      %v1075 = vunpack.c.h.b16 %v736
      %v1076 = vunpack.c.l.b16 %v737
      %v1077 = vunpack.c.h.b16 %v737
      %v1078 = vunpack.c.l.b16 %v738
      %v1079 = vunpack.c.h.b16 %v738
      %v1080 = vunpack.c.l.b16 %v739
      %v1081 = vunpack.c.h.b16 %v739
      %v1082 = vunpack.c.l.b16 %v740
      %v1083 = vunpack.c.h.b16 %v740
      %v1084 = vunpack.c.l.b16 %v741
      %v1085 = vunpack.c.h.b16 %v741
      %v1086 = vunpack.c.l.b16 %v742
      %v1087 = vunpack.c.h.b16 %v742
      %v1088 = vunpack.c.l.b16 %v743
      %v1089 = vunpack.c.h.b16 %v743
      %v1090 = vunpack.c.l.b16 %v744
      %v1091 = vunpack.c.h.b16 %v744
      %v1092 = vunpack.c.l.b16 %v745
      %v1093 = vunpack.c.h.b16 %v745
      %v1094 = vunpack.c.l.b16 %v746
      %v1095 = vunpack.c.h.b16 %v746
      %v1096 = vunpack.c.l.b16 %v747
      %v1097 = vunpack.c.h.b16 %v747
      %v1098 = vunpack.c.l.b16 %v748
      %v1099 = vunpack.c.h.b16 %v748
      %v1100 = vunpack.c.l.b16 %v749
      %v1101 = vunpack.c.h.b16 %v749
      %v1102 = vunpack.c.l.b16 %v750
      %v1103 = vunpack.c.h.b16 %v750
      %v1104 = vunpack.c.l.b16 %v751
      %v1105 = vunpack.c.h.b16 %v751
      %v1106 = vunpack.c.l.b16 %v752
      %v1107 = vunpack.c.h.b16 %v752
      %v1108 = vunpack.c.l.b16 %v753
      %v1109 = vunpack.c.h.b16 %v753
      %v1110 = vunpack.c.l.b16 %v754
      %v1111 = vunpack.c.h.b16 %v754
      %v1112 = vunpack.c.l.b16 %v755
      %v1113 = vunpack.c.h.b16 %v755
      %v1114 = vunpack.c.l.b16 %v756
      %v1115 = vunpack.c.h.b16 %v756
      %v1116 = vunpack.c.l.b16 %v757
      %v1117 = vunpack.c.h.b16 %v757
      %v1118 = vunpack.c.l.b16 %v758
      %v1119 = vunpack.c.h.b16 %v758
      %v1120 = vunpack.c.l.b16 %v759
      %v1121 = vunpack.c.h.b16 %v759
      %v1122 = vunpack.c.l.b16 %v760
      %v1123 = vunpack.c.h.b16 %v760
      %v1124 = vunpack.c.l.b16 %v761
      %v1125 = vunpack.c.h.b16 %v761
      %v1126 = vunpack.c.l.b16 %v762
      %v1127 = vunpack.c.h.b16 %v762
      %v1128 = vunpack.c.l.b16 %v763
      %v1129 = vunpack.c.h.b16 %v763
      %v1130 = vunpack.c.l.b16 %v764
      %v1131 = vunpack.c.h.b16 %v764
      %v1132 = vunpack.c.l.b16 %v765
      %v1133 = vunpack.c.h.b16 %v765
      %v1134 = vunpack.c.l.b16 %v766
      %v1135 = vunpack.c.h.b16 %v766
      %v1136 = vunpack.c.l.b16 %v767
      %v1137 = vunpack.c.h.b16 %v767
      %v1138 = vunpack.c.l.b16 %v768
      %v1139 = vunpack.c.h.b16 %v768
      %v1140 = vunpack.c.l.b16 %v769
      %v1141 = vunpack.c.h.b16 %v769
      %v1142 = vunpack.c.l.b16 %v770
      %v1143 = vunpack.c.h.b16 %v770
      %v1144 = vunpack.c.l.b16 %v771
      %v1145 = vunpack.c.h.b16 %v771
      %v1146 = vunpack.c.l.b16 %v772
      %v1147 = vunpack.c.h.b16 %v772
      %v1148 = vunpack.c.l.b16 %v773
      %v1149 = vunpack.c.h.b16 %v773
      %v1150 = vunpack.c.l.b16 %v774
      %v1151 = vunpack.c.h.b16 %v774
      %v1152 = vunpack.c.l.b16 %v775
      %v1153 = vunpack.c.h.b16 %v775
      %v1154 = vunpack.c.l.b16 %v776
      %v1155 = vunpack.c.h.b16 %v776
      %v1156 = vunpack.c.l.b16 %v777
      %v1157 = vunpack.c.h.b16 %v777
      %v1158 = vunpack.c.l.b16 %v778
      %v1159 = vunpack.c.h.b16 %v778
      %v1160 = vunpack.c.l.b16 %v779
      %v1161 = vunpack.c.h.b16 %v779
      %v1162 = vunpack.c.l.b16 %v780
      %v1163 = vunpack.c.h.b16 %v780
      %v1164 = vunpack.c.l.b16 %v781
      %v1165 = vunpack.c.h.b16 %v781
      %v1166 = vunpack.c.l.b16 %v782
      %v1167 = vunpack.c.h.b16 %v782
      %v1168 = vunpack.c.l.b16 %v783
      %v1169 = vunpack.c.h.b16 %v783
      %v1170 = vunpack.c.l.b16 %v784
      %v1171 = vunpack.c.h.b16 %v784
      %v1172 = vunpack.c.l.b16 %v785
      %v1173 = vunpack.c.h.b16 %v785
      %v1174 = vunpack.c.l.b16 %v786
      %v1175 = vunpack.c.h.b16 %v786
      %v1176 = vunpack.c.l.b16 %v787
      %v1177 = vunpack.c.h.b16 %v787
      %v1178 = vunpack.c.l.b16 %v788
      %v1179 = vunpack.c.h.b16 %v788
      %v1180 = vunpack.c.l.b16 %v789
      %v1181 = vunpack.c.h.b16 %v789
      %v1182 = vunpack.c.l.b16 %v790
      %v1183 = vunpack.c.h.b16 %v790
      %v1184 = vunpack.c.l.b16 %v791
      %v1185 = vunpack.c.h.b16 %v791
      %v1186 = vunpack.c.l.b16 %v792
      %v1187 = vunpack.c.h.b16 %v792
      %v1188 = vunpack.c.l.b16 %v793
      %v1189 = vunpack.c.h.b16 %v793
      %v1190 = vunpack.c.l.b16 %v794
      %v1191 = vunpack.c.h.b16 %v794
      %v1192 = vunpack.c.l.b16 %v795
      %v1193 = vunpack.c.h.b16 %v795
      %v1194 = vunpack.c.l.b16 %v796
      %v1195 = vunpack.c.h.b16 %v796
      %v1196 = vunpack.c.l.b16 %v797
      %v1197 = vunpack.c.h.b16 %v797
      %v1198 = vunpack.c.l.b16 %v798
      %v1199 = vunpack.c.h.b16 %v798
      %v1200 = vunpack.c.l.b16 %v799
      %v1201 = vunpack.c.h.b16 %v799
      %v1202 = vunpack.c.l.b16 %v800
      %v1203 = vunpack.c.h.b16 %v800
      %v1204 = vunpack.c.l.b16 %v801
      %v1205 = vunpack.c.h.b16 %v801
      %v1206 = vunpack.c.l.b16 %v802
      %v1207 = vunpack.c.h.b16 %v802
      %v1208 = vunpack.c.l.b16 %v803
      %v1209 = vunpack.c.h.b16 %v803
      %v1210 = vunpack.c.l.b16 %v804
      %v1211 = vunpack.c.h.b16 %v804
      %v1212 = vunpack.c.l.b16 %v805
      %v1213 = vunpack.c.h.b16 %v805
      %v1214 = vunpack.c.l.b16 %v806
      %v1215 = vunpack.c.h.b16 %v806
      %v1216 = vunpack.c.l.b16 %v807
      %v1217 = vunpack.c.h.b16 %v807
      %v1218 = vunpack.c.l.b16 %v808
      %v1219 = vunpack.c.h.b16 %v808
      %v1220 = vunpack.c.l.b16 %v809
      %v1221 = vunpack.c.h.b16 %v809
      %v1222 = vunpack.c.l.b16 %v810
      %v1223 = vunpack.c.h.b16 %v810
      %v1224 = vunpack.c.l.b16 %v811
      %v1225 = vunpack.c.h.b16 %v811
      %v1226 = vunpack.c.l.b16 %v812
      %v1227 = vunpack.c.h.b16 %v812
      %v1228 = vunpack.c.l.b16 %v813
      %v1229 = vunpack.c.h.b16 %v813
      %v1230 = vunpack.c.l.b16 %v814
      %v1231 = vunpack.c.h.b16 %v814
      %v1232 = vunpack.c.l.b16 %v815
      %v1233 = vunpack.c.h.b16 %v815
      %v1234 = vunpack.c.l.b16 %v816
      %v1235 = vunpack.c.h.b16 %v816
      %v1236 = vunpack.c.l.b16 %v817
      %v1237 = vunpack.c.h.b16 %v817
      %v1238 = vunpack.c.l.b16 %v818
      %v1239 = vunpack.c.h.b16 %v818
      %v1240 = vunpack.c.l.b16 %v819
      %v1241 = vunpack.c.h.b16 %v819
      %v1242 = vunpack.c.l.b16 %v820
      %v1243 = vunpack.c.h.b16 %v820
      %v1244 = vunpack.c.l.b16 %v821
      %v1245 = vunpack.c.h.b16 %v821
      %v1246 = vunpack.c.l.b16 %v822
      %v1247 = vunpack.c.h.b16 %v822
      %v1248 = vunpack.c.l.b16 %v823
      %v1249 = vunpack.c.h.b16 %v823
      %v1250 = vpack.c.b16 %v1002, %v994
      %v1251 = vpack.c.b16 %v1003, %v995
      %v1252 = vpack.c.b16 %v1004, %v996
      %v1253 = vpack.c.b16 %v1005, %v997
      %v1254 = vpack.c.b16 %v1006, %v998
      %v1255 = vpack.c.b16 %v1007, %v999
      %v1256 = vpack.c.b16 %v1008, %v1000
      %v1257 = vpack.c.b16 %v1009, %v1001
      %v1258 = vpack.c.b16 %v1018, %v1010
      %v1259 = vpack.c.b16 %v1019, %v1011
      %v1260 = vpack.c.b16 %v1020, %v1012
      %v1261 = vpack.c.b16 %v1021, %v1013
      %v1262 = vpack.c.b16 %v1022, %v1014
      %v1263 = vpack.c.b16 %v1023, %v1015
      %v1264 = vpack.c.b16 %v1024, %v1016
      %v1265 = vpack.c.b16 %v1025, %v1017
      %v1266 = vpack.c.b16 %v1034, %v1026
      %v1267 = vpack.c.b16 %v1035, %v1027
      %v1268 = vpack.c.b16 %v1036, %v1028
      %v1269 = vpack.c.b16 %v1037, %v1029
      %v1270 = vpack.c.b16 %v1038, %v1030
      %v1271 = vpack.c.b16 %v1039, %v1031
      %v1272 = vpack.c.b16 %v1040, %v1032
      %v1273 = vpack.c.b16 %v1041, %v1033
      %v1274 = vpack.c.b16 %v1050, %v1042
      %v1275 = vpack.c.b16 %v1051, %v1043
      %v1276 = vpack.c.b16 %v1052, %v1044
      %v1277 = vpack.c.b16 %v1053, %v1045
      %v1278 = vpack.c.b16 %v1054, %v1046
      %v1279 = vpack.c.b16 %v1055, %v1047
      %v1280 = vpack.c.b16 %v1056, %v1048
      %v1281 = vpack.c.b16 %v1057, %v1049
      %v1282 = vpack.c.b16 %v1066, %v1058
      %v1283 = vpack.c.b16 %v1067, %v1059
      %v1284 = vpack.c.b16 %v1068, %v1060
      %v1285 = vpack.c.b16 %v1069, %v1061
      %v1286 = vpack.c.b16 %v1070, %v1062
      %v1287 = vpack.c.b16 %v1071, %v1063
      %v1288 = vpack.c.b16 %v1072, %v1064
      %v1289 = vpack.c.b16 %v1073, %v1065
      %v1290 = vpack.c.b16 %v1082, %v1074
      %v1291 = vpack.c.b16 %v1083, %v1075
      %v1292 = vpack.c.b16 %v1084, %v1076
      %v1293 = vpack.c.b16 %v1085, %v1077
      %v1294 = vpack.c.b16 %v1086, %v1078
      %v1295 = vpack.c.b16 %v1087, %v1079
      %v1296 = vpack.c.b16 %v1088, %v1080
      %v1297 = vpack.c.b16 %v1089, %v1081
      %v1298 = vpack.c.b16 %v1098, %v1090
      %v1299 = vpack.c.b16 %v1099, %v1091
      %v1300 = vpack.c.b16 %v1100, %v1092
      %v1301 = vpack.c.b16 %v1101, %v1093
      %v1302 = vpack.c.b16 %v1102, %v1094
      %v1303 = vpack.c.b16 %v1103, %v1095
      %v1304 = vpack.c.b16 %v1104, %v1096
      %v1305 = vpack.c.b16 %v1105, %v1097
      %v1306 = vpack.c.b16 %v1114, %v1106
      %v1307 = vpack.c.b16 %v1115, %v1107
      %v1308 = vpack.c.b16 %v1116, %v1108
      %v1309 = vpack.c.b16 %v1117, %v1109
      %v1310 = vpack.c.b16 %v1118, %v1110
      %v1311 = vpack.c.b16 %v1119, %v1111
      %v1312 = vpack.c.b16 %v1120, %v1112
      %v1313 = vpack.c.b16 %v1121, %v1113
      %v1314 = vpack.c.b16 %v1130, %v1122
      %v1315 = vpack.c.b16 %v1131, %v1123
      %v1316 = vpack.c.b16 %v1132, %v1124
      %v1317 = vpack.c.b16 %v1133, %v1125
      %v1318 = vpack.c.b16 %v1134, %v1126
      %v1319 = vpack.c.b16 %v1135, %v1127
      %v1320 = vpack.c.b16 %v1136, %v1128
      %v1321 = vpack.c.b16 %v1137, %v1129
      %v1322 = vpack.c.b16 %v1146, %v1138
      %v1323 = vpack.c.b16 %v1147, %v1139
      %v1324 = vpack.c.b16 %v1148, %v1140
      %v1325 = vpack.c.b16 %v1149, %v1141
      %v1326 = vpack.c.b16 %v1150, %v1142
      %v1327 = vpack.c.b16 %v1151, %v1143
      %v1328 = vpack.c.b16 %v1152, %v1144
      %v1329 = vpack.c.b16 %v1153, %v1145
      %v1330 = vpack.c.b16 %v1162, %v1154
      %v1331 = vpack.c.b16 %v1163, %v1155
      %v1332 = vpack.c.b16 %v1164, %v1156
      %v1333 = vpack.c.b16 %v1165, %v1157
      %v1334 = vpack.c.b16 %v1166, %v1158
      %v1335 = vpack.c.b16 %v1167, %v1159
      %v1336 = vpack.c.b16 %v1168, %v1160
      %v1337 = vpack.c.b16 %v1169, %v1161
      %v1338 = vpack.c.b16 %v1178, %v1170
      %v1339 = vpack.c.b16 %v1179, %v1171
      %v1340 = vpack.c.b16 %v1180, %v1172
      %v1341 = vpack.c.b16 %v1181, %v1173
      %v1342 = vpack.c.b16 %v1182, %v1174
      %v1343 = vpack.c.b16 %v1183, %v1175
      %v1344 = vpack.c.b16 %v1184, %v1176
      %v1345 = vpack.c.b16 %v1185, %v1177
      %v1346 = vpack.c.b16 %v1194, %v1186
      %v1347 = vpack.c.b16 %v1195, %v1187
      %v1348 = vpack.c.b16 %v1196, %v1188
      %v1349 = vpack.c.b16 %v1197, %v1189
      %v1350 = vpack.c.b16 %v1198, %v1190
      %v1351 = vpack.c.b16 %v1199, %v1191
      %v1352 = vpack.c.b16 %v1200, %v1192
      %v1353 = vpack.c.b16 %v1201, %v1193
      %v1354 = vpack.c.b16 %v1210, %v1202
      %v1355 = vpack.c.b16 %v1211, %v1203
      %v1356 = vpack.c.b16 %v1212, %v1204
      %v1357 = vpack.c.b16 %v1213, %v1205
      %v1358 = vpack.c.b16 %v1214, %v1206
      %v1359 = vpack.c.b16 %v1215, %v1207
      %v1360 = vpack.c.b16 %v1216, %v1208
      %v1361 = vpack.c.b16 %v1217, %v1209
      %v1362 = vpack.c.b16 %v1226, %v1218
      %v1363 = vpack.c.b16 %v1227, %v1219
      %v1364 = vpack.c.b16 %v1228, %v1220
      %v1365 = vpack.c.b16 %v1229, %v1221
      %v1366 = vpack.c.b16 %v1230, %v1222
      %v1367 = vpack.c.b16 %v1231, %v1223
      %v1368 = vpack.c.b16 %v1232, %v1224
      %v1369 = vpack.c.b16 %v1233, %v1225
      %v1370 = vpack.c.b16 %v1242, %v1234
      %v1371 = vpack.c.b16 %v1243, %v1235
      %v1372 = vpack.c.b16 %v1244, %v1236
      %v1373 = vpack.c.b16 %v1245, %v1237
      %v1374 = vpack.c.b16 %v1246, %v1238
      %v1375 = vpack.c.b16 %v1247, %v1239
      %v1376 = vpack.c.b16 %v1248, %v1240
      %v1377 = vpack.c.b16 %v1249, %v1241
      %1506 = vmatprep.subr.bf16.mxu0 %v1251
      %1507 = vmatpush1.bf16.msra.mxu0 %v1250
      %1508 = vmatprep.subr.bf16.mxu0 %v1259
      %1509 = vmatpush1.bf16.msra.mxu0 %v1258
      %1510 = vmatprep.subr.bf16.mxu0 %v1267
      %1511 = vmatpush1.bf16.msra.mxu0 %v1266
      %1512 = vmatprep.subr.bf16.mxu0 %v1275
      %1513 = vmatpush1.bf16.msra.mxu0 %v1274
      %1514 = vmatprep.subr.bf16.mxu0 %v1283
      %1515 = vmatpush1.bf16.msra.mxu0 %v1282
      %1516 = vmatprep.subr.bf16.mxu0 %v1291
      %1517 = vmatpush1.bf16.msra.mxu0 %v1290
      %1518 = vmatprep.subr.bf16.mxu0 %v1299
      %1519 = vmatpush1.bf16.msra.mxu0 %v1298
      %1520 = vmatprep.subr.bf16.mxu0 %v1307
      %1521 = vmatpush1.bf16.msra.mxu0 %v1306
      %1522 = vmatprep.subr.bf16.mxu0 %v1315
      %1523 = vmatpush1.bf16.msra.mxu0 %v1314
      %1524 = vmatprep.subr.bf16.mxu0 %v1323
      %1525 = vmatpush1.bf16.msra.mxu0 %v1322
      %1526 = vmatprep.subr.bf16.mxu0 %v1331
      %1527 = vmatpush1.bf16.msra.mxu0 %v1330
      %1528 = vmatprep.subr.bf16.mxu0 %v1339
      %1529 = vmatpush1.bf16.msra.mxu0 %v1338
      %1530 = vmatprep.subr.bf16.mxu0 %v1347
      %1531 = vmatpush1.bf16.msra.mxu0 %v1346
      %1532 = vmatprep.subr.bf16.mxu0 %v1355
      %1533 = vmatpush1.bf16.msra.mxu0 %v1354
      %1534 = vmatprep.subr.bf16.mxu0 %v1363
      %1535 = vmatpush1.bf16.msra.mxu0 %v1362
      %1536 = vmatprep.subr.bf16.mxu0 %v1371
      %1537 = vmatpush1.bf16.msra.mxu0 %v1370
      %1538 = vmatprep.mubr.bf16.mxu0 %v681
      %1539 = vmatmul.mubr.bf16.gmra.mrb[0].mxu0 %v680
      %v1540 = vpop.f32.mrb[0].mxu0
      %v1541 = vadd.f32 %v829, %v1540
      %v1542 = vpop.f32.mrb[0].mxu0
      %v1543 = vadd.f32 %v833, %v1542
      %v1544 = vpop.f32.mrb[0].mxu0
      %v1545 = vadd.f32 %v829, %v1544
      %v1546 = vpop.f32.mrb[0].mxu0
      %v1547 = vadd.f32 %v833, %v1546
      %1548 = vmatprep.mubr.bf16.mxu0 %v683
      %1549 = vmatmul.mubr.bf16.gmra.mrb[0].mxu0 %v682
      %v1550 = vpop.f32.mrb[0].mxu0
      %v1551 = vadd.f32 %v829, %v1550
      %v1552 = vpop.f32.mrb[0].mxu0
      %v1553 = vadd.f32 %v833, %v1552
      %v1554 = vpop.f32.mrb[0].mxu0
      %v1555 = vadd.f32 %v829, %v1554
      %v1556 = vpop.f32.mrb[0].mxu0
      %v1557 = vadd.f32 %v833, %v1556
      %1558 = vmatprep.mubr.bf16.mxu0 %v685
      %1559 = vmatmul.mubr.bf16.gmra.mrb[0].mxu0 %v684
      %v1560 = vpop.f32.mrb[0].mxu0
      %v1561 = vadd.f32 %v829, %v1560
      %v1562 = vpop.f32.mrb[0].mxu0
      %v1563 = vadd.f32 %v833, %v1562
      %v1564 = vpop.f32.mrb[0].mxu0
      %v1565 = vadd.f32 %v829, %v1564
      %v1566 = vpop.f32.mrb[0].mxu0
      %v1567 = vadd.f32 %v833, %v1566
      %1568 = vmatprep.mubr.bf16.mxu0 %v687
      %1569 = vmatmul.mubr.bf16.gmra.mrb[0].mxu0 %v686
      %v1570 = vpop.f32.mrb[0].mxu0
      %v1571 = vadd.f32 %v829, %v1570
      %v1572 = vpop.f32.mrb[0].mxu0
      %v1573 = vadd.f32 %v833, %v1572
      %v1574 = vpop.f32.mrb[0].mxu0
      %v1575 = vadd.f32 %v829, %v1574
      %v1576 = vpop.f32.mrb[0].mxu0
      %v1577 = vadd.f32 %v833, %v1576
      %1578 = vmatprep.mubr.bf16.mxu0 %v689
      %1579 = vmatmul.mubr.bf16.gmra.mrb[0].mxu0 %v688
      %v1580 = vpop.f32.mrb[0].mxu0
      %v1581 = vadd.f32 %v829, %v1580
      %v1582 = vpop.f32.mrb[0].mxu0
      %v1583 = vadd.f32 %v833, %v1582
      %v1584 = vpop.f32.mrb[0].mxu0
      %v1585 = vadd.f32 %v829, %v1584
      %v1586 = vpop.f32.mrb[0].mxu0
      %v1587 = vadd.f32 %v833, %v1586
      %1588 = vmatprep.mubr.bf16.mxu0 %v691
      %1589 = vmatmul.mubr.bf16.gmra.mrb[0].mxu0 %v690
      %v1590 = vpop.f32.mrb[0].mxu0
      %v1591 = vadd.f32 %v829, %v1590
      %v1592 = vpop.f32.mrb[0].mxu0
      %v1593 = vadd.f32 %v833, %v1592
      %v1594 = vpop.f32.mrb[0].mxu0
      %v1595 = vadd.f32 %v829, %v1594
      %v1596 = vpop.f32.mrb[0].mxu0
      %v1597 = vadd.f32 %v833, %v1596
      %1598 = vmatprep.mubr.bf16.mxu0 %v693
      %1599 = vmatmul.mubr.bf16.gmra.mrb[0].mxu0 %v692
      %v1600 = vpop.f32.mrb[0].mxu0
      %v1601 = vadd.f32 %v829, %v1600
      %v1602 = vpop.f32.mrb[0].mxu0
      %v1603 = vadd.f32 %v833, %v1602
      %v1604 = vpop.f32.mrb[0].mxu0
      %v1605 = vadd.f32 %v829, %v1604
      %v1606 = vpop.f32.mrb[0].mxu0
      %v1607 = vadd.f32 %v833, %v1606
      %1608 = vmatprep.mubr.bf16.mxu0 %v695
      %1609 = vmatmul.mubr.bf16.gmra.mrb[0].mxu0 %v694
      %v1610 = vpop.f32.mrb[0].mxu0
      %v1611 = vadd.f32 %v829, %v1610
      %v1612 = vpop.f32.mrb[0].mxu0
      %v1613 = vadd.f32 %v833, %v1612
      %v1614 = vpop.f32.mrb[0].mxu0
      %v1615 = vadd.f32 %v829, %v1614
      %v1616 = vpop.f32.mrb[0].mxu0
      %v1617 = vadd.f32 %v833, %v1616
      %1618 = vdwg.mxu0
      %1619 = vmatprep.subr.bf16.mxu0 %v1253
      %1620 = vmatpush1.bf16.msra.mxu0 %v1252
      %1621 = vmatprep.subr.bf16.mxu0 %v1261
      %1622 = vmatpush1.bf16.msra.mxu0 %v1260
      %1623 = vmatprep.subr.bf16.mxu0 %v1269
      %1624 = vmatpush1.bf16.msra.mxu0 %v1268
      %1625 = vmatprep.subr.bf16.mxu0 %v1277
      %1626 = vmatpush1.bf16.msra.mxu0 %v1276
      %1627 = vmatprep.subr.bf16.mxu0 %v1285
      %1628 = vmatpush1.bf16.msra.mxu0 %v1284
      %1629 = vmatprep.subr.bf16.mxu0 %v1293
      %1630 = vmatpush1.bf16.msra.mxu0 %v1292
      %1631 = vmatprep.subr.bf16.mxu0 %v1301
      %1632 = vmatpush1.bf16.msra.mxu0 %v1300
      %1633 = vmatprep.subr.bf16.mxu0 %v1309
      %1634 = vmatpush1.bf16.msra.mxu0 %v1308
      %1635 = vmatprep.subr.bf16.mxu0 %v1317
      %1636 = vmatpush1.bf16.msra.mxu0 %v1316
      %1637 = vmatprep.subr.bf16.mxu0 %v1325
      %1638 = vmatpush1.bf16.msra.mxu0 %v1324
      %1639 = vmatprep.subr.bf16.mxu0 %v1333
      %1640 = vmatpush1.bf16.msra.mxu0 %v1332
      %1641 = vmatprep.subr.bf16.mxu0 %v1341
      %1642 = vmatpush1.bf16.msra.mxu0 %v1340
      %1643 = vmatprep.subr.bf16.mxu0 %v1349
      %1644 = vmatpush1.bf16.msra.mxu0 %v1348
      %1645 = vmatprep.subr.bf16.mxu0 %v1357
      %1646 = vmatpush1.bf16.msra.mxu0 %v1356
      %1647 = vmatprep.subr.bf16.mxu0 %v1365
      %1648 = vmatpush1.bf16.msra.mxu0 %v1364
      %1649 = vmatprep.subr.bf16.mxu0 %v1373
      %1650 = vmatpush1.bf16.msra.mxu0 %v1372
      %1651 = vmatprep.mubr.bf16.mxu0 %v681
      %1652 = vmatmul.mubr.bf16.gmra.mrb[0].mxu0 %v680
      %v1653 = vpop.f32.mrb[0].mxu0
      %v1654 = vadd.f32 %v837, %v1653
      %v1655 = vpop.f32.mrb[0].mxu0
      %v1656 = vadd.f32 %v841, %v1655
      %v1657 = vpop.f32.mrb[0].mxu0
      %v1658 = vadd.f32 %v837, %v1657
      %v1659 = vpop.f32.mrb[0].mxu0
      %v1660 = vadd.f32 %v841, %v1659
      %1661 = vmatprep.mubr.bf16.mxu0 %v683
      %1662 = vmatmul.mubr.bf16.gmra.mrb[0].mxu0 %v682
      %v1663 = vpop.f32.mrb[0].mxu0
      %v1664 = vadd.f32 %v837, %v1663
      %v1665 = vpop.f32.mrb[0].mxu0
      %v1666 = vadd.f32 %v841, %v1665
      %v1667 = vpop.f32.mrb[0].mxu0
      %v1668 = vadd.f32 %v837, %v1667
      %v1669 = vpop.f32.mrb[0].mxu0
      %v1670 = vadd.f32 %v841, %v1669
      %1671 = vmatprep.mubr.bf16.mxu0 %v685
      %1672 = vmatmul.mubr.bf16.gmra.mrb[0].mxu0 %v684
      %v1673 = vpop.f32.mrb[0].mxu0
      %v1674 = vadd.f32 %v837, %v1673
      %v1675 = vpop.f32.mrb[0].mxu0
      %v1676 = vadd.f32 %v841, %v1675
      %v1677 = vpop.f32.mrb[0].mxu0
      %v1678 = vadd.f32 %v837, %v1677
      %v1679 = vpop.f32.mrb[0].mxu0
      %v1680 = vadd.f32 %v841, %v1679
      %1681 = vmatprep.mubr.bf16.mxu0 %v687
      %1682 = vmatmul.mubr.bf16.gmra.mrb[0].mxu0 %v686
      %v1683 = vpop.f32.mrb[0].mxu0
      %v1684 = vadd.f32 %v837, %v1683
      %v1685 = vpop.f32.mrb[0].mxu0
      %v1686 = vadd.f32 %v841, %v1685
      %v1687 = vpop.f32.mrb[0].mxu0
      %v1688 = vadd.f32 %v837, %v1687
      %v1689 = vpop.f32.mrb[0].mxu0
      %v1690 = vadd.f32 %v841, %v1689
      %1691 = vmatprep.mubr.bf16.mxu0 %v689
      %1692 = vmatmul.mubr.bf16.gmra.mrb[0].mxu0 %v688
      %v1693 = vpop.f32.mrb[0].mxu0
      %v1694 = vadd.f32 %v837, %v1693
      %v1695 = vpop.f32.mrb[0].mxu0
      %v1696 = vadd.f32 %v841, %v1695
      %v1697 = vpop.f32.mrb[0].mxu0
      %v1698 = vadd.f32 %v837, %v1697
      %v1699 = vpop.f32.mrb[0].mxu0
      %v1700 = vadd.f32 %v841, %v1699
      %1701 = vmatprep.mubr.bf16.mxu0 %v691
      %1702 = vmatmul.mubr.bf16.gmra.mrb[0].mxu0 %v690
      %v1703 = vpop.f32.mrb[0].mxu0
      %v1704 = vadd.f32 %v837, %v1703
      %v1705 = vpop.f32.mrb[0].mxu0
      %v1706 = vadd.f32 %v841, %v1705
      %v1707 = vpop.f32.mrb[0].mxu0
      %v1708 = vadd.f32 %v837, %v1707
      %v1709 = vpop.f32.mrb[0].mxu0
      %v1710 = vadd.f32 %v841, %v1709
      %1711 = vmatprep.mubr.bf16.mxu0 %v693
      %1712 = vmatmul.mubr.bf16.gmra.mrb[0].mxu0 %v692
      %v1713 = vpop.f32.mrb[0].mxu0
      %v1714 = vadd.f32 %v837, %v1713
      %v1715 = vpop.f32.mrb[0].mxu0
      %v1716 = vadd.f32 %v841, %v1715
      %v1717 = vpop.f32.mrb[0].mxu0
      %v1718 = vadd.f32 %v837, %v1717
      %v1719 = vpop.f32.mrb[0].mxu0
      %v1720 = vadd.f32 %v841, %v1719
      %1721 = vmatprep.mubr.bf16.mxu0 %v695
      %1722 = vmatmul.mubr.bf16.gmra.mrb[0].mxu0 %v694
      %v1723 = vpop.f32.mrb[0].mxu0
      %v1724 = vadd.f32 %v837, %v1723
      %v1725 = vpop.f32.mrb[0].mxu0
      %v1726 = vadd.f32 %v841, %v1725
      %v1727 = vpop.f32.mrb[0].mxu0
      %v1728 = vadd.f32 %v837, %v1727
      %v1729 = vpop.f32.mrb[0].mxu0
      %v1730 = vadd.f32 %v841, %v1729
      %1731 = vdwg.mxu0
      %1732 = vmatprep.subr.bf16.mxu0 %v1255
      %1733 = vmatpush1.bf16.msra.mxu0 %v1254
      %1734 = vmatprep.subr.bf16.mxu0 %v1263
      %1735 = vmatpush1.bf16.msra.mxu0 %v1262
      %1736 = vmatprep.subr.bf16.mxu0 %v1271
      %1737 = vmatpush1.bf16.msra.mxu0 %v1270
      %1738 = vmatprep.subr.bf16.mxu0 %v1279
      %1739 = vmatpush1.bf16.msra.mxu0 %v1278
      %1740 = vmatprep.subr.bf16.mxu0 %v1287
      %1741 = vmatpush1.bf16.msra.mxu0 %v1286
      %1742 = vmatprep.subr.bf16.mxu0 %v1295
      %1743 = vmatpush1.bf16.msra.mxu0 %v1294
      %1744 = vmatprep.subr.bf16.mxu0 %v1303
      %1745 = vmatpush1.bf16.msra.mxu0 %v1302
      %1746 = vmatprep.subr.bf16.mxu0 %v1311
      %1747 = vmatpush1.bf16.msra.mxu0 %v1310
      %1748 = vmatprep.subr.bf16.mxu0 %v1319
      %1749 = vmatpush1.bf16.msra.mxu0 %v1318
      %1750 = vmatprep.subr.bf16.mxu0 %v1327
      %1751 = vmatpush1.bf16.msra.mxu0 %v1326
      %1752 = vmatprep.subr.bf16.mxu0 %v1335
      %1753 = vmatpush1.bf16.msra.mxu0 %v1334
      %1754 = vmatprep.subr.bf16.mxu0 %v1343
      %1755 = vmatpush1.bf16.msra.mxu0 %v1342
      %1756 = vmatprep.subr.bf16.mxu0 %v1351
      %1757 = vmatpush1.bf16.msra.mxu0 %v1350
      %1758 = vmatprep.subr.bf16.mxu0 %v1359
      %1759 = vmatpush1.bf16.msra.mxu0 %v1358
      %1760 = vmatprep.subr.bf16.mxu0 %v1367
      %1761 = vmatpush1.bf16.msra.mxu0 %v1366
      %1762 = vmatprep.subr.bf16.mxu0 %v1375
      %1763 = vmatpush1.bf16.msra.mxu0 %v1374
      %1764 = vmatprep.mubr.bf16.mxu0 %v681
      %1765 = vmatmul.mubr.bf16.gmra.mrb[0].mxu0 %v680
      %v1766 = vpop.f32.mrb[0].mxu0
      %v1767 = vadd.f32 %v845, %v1766
      %v1768 = vpop.f32.mrb[0].mxu0
      %v1769 = vadd.f32 %v849, %v1768
      %v1770 = vpop.f32.mrb[0].mxu0
      %v1771 = vadd.f32 %v845, %v1770
      %v1772 = vpop.f32.mrb[0].mxu0
      %v1773 = vadd.f32 %v849, %v1772
      %1774 = vmatprep.mubr.bf16.mxu0 %v683
      %1775 = vmatmul.mubr.bf16.gmra.mrb[0].mxu0 %v682
      %v1776 = vpop.f32.mrb[0].mxu0
      %v1777 = vadd.f32 %v845, %v1776
      %v1778 = vpop.f32.mrb[0].mxu0
      %v1779 = vadd.f32 %v849, %v1778
      %v1780 = vpop.f32.mrb[0].mxu0
      %v1781 = vadd.f32 %v845, %v1780
      %v1782 = vpop.f32.mrb[0].mxu0
      %v1783 = vadd.f32 %v849, %v1782
      %1784 = vmatprep.mubr.bf16.mxu0 %v685
      %1785 = vmatmul.mubr.bf16.gmra.mrb[0].mxu0 %v684
      %v1786 = vpop.f32.mrb[0].mxu0
      %v1787 = vadd.f32 %v845, %v1786
      %v1788 = vpop.f32.mrb[0].mxu0
      %v1789 = vadd.f32 %v849, %v1788
      %v1790 = vpop.f32.mrb[0].mxu0
      %v1791 = vadd.f32 %v845, %v1790
      %v1792 = vpop.f32.mrb[0].mxu0
      %v1793 = vadd.f32 %v849, %v1792
      %1794 = vmatprep.mubr.bf16.mxu0 %v687
      %1795 = vmatmul.mubr.bf16.gmra.mrb[0].mxu0 %v686
      %v1796 = vpop.f32.mrb[0].mxu0
      %v1797 = vadd.f32 %v845, %v1796
      %v1798 = vpop.f32.mrb[0].mxu0
      %v1799 = vadd.f32 %v849, %v1798
      %v1800 = vpop.f32.mrb[0].mxu0
      %v1801 = vadd.f32 %v845, %v1800
      %v1802 = vpop.f32.mrb[0].mxu0
      %v1803 = vadd.f32 %v849, %v1802
      %1804 = vmatprep.mubr.bf16.mxu0 %v689
      %1805 = vmatmul.mubr.bf16.gmra.mrb[0].mxu0 %v688
      %v1806 = vpop.f32.mrb[0].mxu0
      %v1807 = vadd.f32 %v845, %v1806
      %v1808 = vpop.f32.mrb[0].mxu0
      %v1809 = vadd.f32 %v849, %v1808
      %v1810 = vpop.f32.mrb[0].mxu0
      %v1811 = vadd.f32 %v845, %v1810
      %v1812 = vpop.f32.mrb[0].mxu0
      %v1813 = vadd.f32 %v849, %v1812
      %1814 = vmatprep.mubr.bf16.mxu0 %v691
      %1815 = vmatmul.mubr.bf16.gmra.mrb[0].mxu0 %v690
      %v1816 = vpop.f32.mrb[0].mxu0
      %v1817 = vadd.f32 %v845, %v1816
      %v1818 = vpop.f32.mrb[0].mxu0
      %v1819 = vadd.f32 %v849, %v1818
      %v1820 = vpop.f32.mrb[0].mxu0
      %v1821 = vadd.f32 %v845, %v1820
      %v1822 = vpop.f32.mrb[0].mxu0
      %v1823 = vadd.f32 %v849, %v1822
      %1824 = vmatprep.mubr.bf16.mxu0 %v693
      %1825 = vmatmul.mubr.bf16.gmra.mrb[0].mxu0 %v692
      %v1826 = vpop.f32.mrb[0].mxu0
      %v1827 = vadd.f32 %v845, %v1826
      %v1828 = vpop.f32.mrb[0].mxu0
      %v1829 = vadd.f32 %v849, %v1828
      %v1830 = vpop.f32.mrb[0].mxu0
      %v1831 = vadd.f32 %v845, %v1830
      %v1832 = vpop.f32.mrb[0].mxu0
      %v1833 = vadd.f32 %v849, %v1832
      %1834 = vmatprep.mubr.bf16.mxu0 %v695
      %1835 = vmatmul.mubr.bf16.gmra.mrb[0].mxu0 %v694
      %v1836 = vpop.f32.mrb[0].mxu0
      %v1837 = vadd.f32 %v845, %v1836
      %v1838 = vpop.f32.mrb[0].mxu0
      %v1839 = vadd.f32 %v849, %v1838
      %v1840 = vpop.f32.mrb[0].mxu0
      %v1841 = vadd.f32 %v845, %v1840
      %v1842 = vpop.f32.mrb[0].mxu0
      %v1843 = vadd.f32 %v849, %v1842
      %1844 = vdwg.mxu0
      %1845 = vmatprep.subr.bf16.mxu0 %v1257
      %1846 = vmatpush1.bf16.msra.mxu0 %v1256
      %1847 = vmatprep.subr.bf16.mxu0 %v1265
      %1848 = vmatpush1.bf16.msra.mxu0 %v1264
      %1849 = vmatprep.subr.bf16.mxu0 %v1273
      %1850 = vmatpush1.bf16.msra.mxu0 %v1272
      %1851 = vmatprep.subr.bf16.mxu0 %v1281
      %1852 = vmatpush1.bf16.msra.mxu0 %v1280
      %1853 = vmatprep.subr.bf16.mxu0 %v1289
      %1854 = vmatpush1.bf16.msra.mxu0 %v1288
      %1855 = vmatprep.subr.bf16.mxu0 %v1297
      %1856 = vmatpush1.bf16.msra.mxu0 %v1296
      %1857 = vmatprep.subr.bf16.mxu0 %v1305
      %1858 = vmatpush1.bf16.msra.mxu0 %v1304
      %1859 = vmatprep.subr.bf16.mxu0 %v1313
      %1860 = vmatpush1.bf16.msra.mxu0 %v1312
      %1861 = vmatprep.subr.bf16.mxu0 %v1321
      %1862 = vmatpush1.bf16.msra.mxu0 %v1320
      %1863 = vmatprep.subr.bf16.mxu0 %v1329
      %1864 = vmatpush1.bf16.msra.mxu0 %v1328
      %1865 = vmatprep.subr.bf16.mxu0 %v1337
      %1866 = vmatpush1.bf16.msra.mxu0 %v1336
      %1867 = vmatprep.subr.bf16.mxu0 %v1345
      %1868 = vmatpush1.bf16.msra.mxu0 %v1344
      %1869 = vmatprep.subr.bf16.mxu0 %v1353
      %1870 = vmatpush1.bf16.msra.mxu0 %v1352
      %1871 = vmatprep.subr.bf16.mxu0 %v1361
      %1872 = vmatpush1.bf16.msra.mxu0 %v1360
      %1873 = vmatprep.subr.bf16.mxu0 %v1369
      %1874 = vmatpush1.bf16.msra.mxu0 %v1368
      %1875 = vmatprep.subr.bf16.mxu0 %v1377
      %1876 = vmatpush1.bf16.msra.mxu0 %v1376
      %1877 = vmatprep.mubr.bf16.mxu0 %v681
      %1878 = vmatmul.mubr.bf16.gmra.mrb[0].mxu0 %v680
      %v1879 = vpop.f32.mrb[0].mxu0
      %v1880 = vadd.f32 %v853, %v1879
      %v1881 = vpop.f32.mrb[0].mxu0
      %v1882 = vadd.f32 %v857, %v1881
      %v1883 = vpop.f32.mrb[0].mxu0
      %v1884 = vadd.f32 %v853, %v1883
      %v1885 = vpop.f32.mrb[0].mxu0
      %v1886 = vadd.f32 %v857, %v1885
      %1887 = vmatprep.mubr.bf16.mxu0 %v683
      %1888 = vmatmul.mubr.bf16.gmra.mrb[0].mxu0 %v682
      %v1889 = vpop.f32.mrb[0].mxu0
      %v1890 = vadd.f32 %v853, %v1889
      %v1891 = vpop.f32.mrb[0].mxu0
      %v1892 = vadd.f32 %v857, %v1891
      %v1893 = vpop.f32.mrb[0].mxu0
      %v1894 = vadd.f32 %v853, %v1893
      %v1895 = vpop.f32.mrb[0].mxu0
      %v1896 = vadd.f32 %v857, %v1895
      %1897 = vmatprep.mubr.bf16.mxu0 %v685
      %1898 = vmatmul.mubr.bf16.gmra.mrb[0].mxu0 %v684
      %v1899 = vpop.f32.mrb[0].mxu0
      %v1900 = vadd.f32 %v853, %v1899
      %v1901 = vpop.f32.mrb[0].mxu0
      %v1902 = vadd.f32 %v857, %v1901
      %v1903 = vpop.f32.mrb[0].mxu0
      %v1904 = vadd.f32 %v853, %v1903
      %v1905 = vpop.f32.mrb[0].mxu0
      %v1906 = vadd.f32 %v857, %v1905
      %1907 = vmatprep.mubr.bf16.mxu0 %v687
      %1908 = vmatmul.mubr.bf16.gmra.mrb[0].mxu0 %v686
      %v1909 = vpop.f32.mrb[0].mxu0
      %v1910 = vadd.f32 %v853, %v1909
      %v1911 = vpop.f32.mrb[0].mxu0
      %v1912 = vadd.f32 %v857, %v1911
      %v1913 = vpop.f32.mrb[0].mxu0
      %v1914 = vadd.f32 %v853, %v1913
      %v1915 = vpop.f32.mrb[0].mxu0
      %v1916 = vadd.f32 %v857, %v1915
      %1917 = vmatprep.mubr.bf16.mxu0 %v689
      %1918 = vmatmul.mubr.bf16.gmra.mrb[0].mxu0 %v688
      %v1919 = vpop.f32.mrb[0].mxu0
      %v1920 = vadd.f32 %v853, %v1919
      %v1921 = vpop.f32.mrb[0].mxu0
      %v1922 = vadd.f32 %v857, %v1921
      %v1923 = vpop.f32.mrb[0].mxu0
      %v1924 = vadd.f32 %v853, %v1923
      %v1925 = vpop.f32.mrb[0].mxu0
      %v1926 = vadd.f32 %v857, %v1925
      %1927 = vmatprep.mubr.bf16.mxu0 %v691
      %1928 = vmatmul.mubr.bf16.gmra.mrb[0].mxu0 %v690
      %v1929 = vpop.f32.mrb[0].mxu0
      %v1930 = vadd.f32 %v853, %v1929
      %v1931 = vpop.f32.mrb[0].mxu0
      %v1932 = vadd.f32 %v857, %v1931
      %v1933 = vpop.f32.mrb[0].mxu0
      %v1934 = vadd.f32 %v853, %v1933
      %v1935 = vpop.f32.mrb[0].mxu0
      %v1936 = vadd.f32 %v857, %v1935
      %1937 = vmatprep.mubr.bf16.mxu0 %v693
      %1938 = vmatmul.mubr.bf16.gmra.mrb[0].mxu0 %v692
      %v1939 = vpop.f32.mrb[0].mxu0
      %v1940 = vadd.f32 %v853, %v1939
      %v1941 = vpop.f32.mrb[0].mxu0
      %v1942 = vadd.f32 %v857, %v1941
      %v1943 = vpop.f32.mrb[0].mxu0
      %v1944 = vadd.f32 %v853, %v1943
      %v1945 = vpop.f32.mrb[0].mxu0
      %v1946 = vadd.f32 %v857, %v1945
      %1947 = vmatprep.mubr.bf16.mxu0 %v695
      %1948 = vmatmul.mubr.bf16.gmra.mrb[0].mxu0 %v694
      %v1949 = vpop.f32.mrb[0].mxu0
      %v1950 = vadd.f32 %v853, %v1949
      %v1951 = vpop.f32.mrb[0].mxu0
      %v1952 = vadd.f32 %v857, %v1951
      %v1953 = vpop.f32.mrb[0].mxu0
      %v1954 = vadd.f32 %v853, %v1953
      %v1955 = vpop.f32.mrb[0].mxu0
      %v1956 = vadd.f32 %v857, %v1955
      %1957 = vdwg.mxu0
      %v1958 = vmax.f32 %v1541, 0.0
      %v1959 = vmax.f32 %v1543, 0.0
      %v1960 = vmax.f32 %v1654, 0.0
      %v1961 = vmax.f32 %v1656, 0.0
      %v1962 = vmax.f32 %v1767, 0.0
      %v1963 = vmax.f32 %v1769, 0.0
      %v1964 = vmax.f32 %v1880, 0.0
      %v1965 = vmax.f32 %v1882, 0.0
      %v1966 = vmax.f32 %v1545, 0.0
      %v1967 = vmax.f32 %v1547, 0.0
      %v1968 = vmax.f32 %v1658, 0.0
      %v1969 = vmax.f32 %v1660, 0.0
      %v1970 = vmax.f32 %v1771, 0.0
      %v1971 = vmax.f32 %v1773, 0.0
      %v1972 = vmax.f32 %v1884, 0.0
      %v1973 = vmax.f32 %v1886, 0.0
      %v1974 = vmax.f32 %v1551, 0.0
      %v1975 = vmax.f32 %v1553, 0.0
      %v1976 = vmax.f32 %v1664, 0.0
      %v1977 = vmax.f32 %v1666, 0.0
      %v1978 = vmax.f32 %v1777, 0.0
      %v1979 = vmax.f32 %v1779, 0.0
      %v1980 = vmax.f32 %v1890, 0.0
      %v1981 = vmax.f32 %v1892, 0.0
      %v1982 = vmax.f32 %v1555, 0.0
      %v1983 = vmax.f32 %v1557, 0.0
      %v1984 = vmax.f32 %v1668, 0.0
      %v1985 = vmax.f32 %v1670, 0.0
      %v1986 = vmax.f32 %v1781, 0.0
      %v1987 = vmax.f32 %v1783, 0.0
      %v1988 = vmax.f32 %v1894, 0.0
      %v1989 = vmax.f32 %v1896, 0.0
      %v1990 = vmax.f32 %v1561, 0.0
      %v1991 = vmax.f32 %v1563, 0.0
      %v1992 = vmax.f32 %v1674, 0.0
      %v1993 = vmax.f32 %v1676, 0.0
      %v1994 = vmax.f32 %v1787, 0.0
      %v1995 = vmax.f32 %v1789, 0.0
      %v1996 = vmax.f32 %v1900, 0.0
      %v1997 = vmax.f32 %v1902, 0.0
      %v1998 = vmax.f32 %v1565, 0.0
      %v1999 = vmax.f32 %v1567, 0.0
      %v2000 = vmax.f32 %v1678, 0.0
      %v2001 = vmax.f32 %v1680, 0.0
      %v2002 = vmax.f32 %v1791, 0.0
      %v2003 = vmax.f32 %v1793, 0.0
      %v2004 = vmax.f32 %v1904, 0.0
      %v2005 = vmax.f32 %v1906, 0.0
      %v2006 = vmax.f32 %v1571, 0.0
      %v2007 = vmax.f32 %v1573, 0.0
      %v2008 = vmax.f32 %v1684, 0.0
      %v2009 = vmax.f32 %v1686, 0.0
      %v2010 = vmax.f32 %v1797, 0.0
      %v2011 = vmax.f32 %v1799, 0.0
      %v2012 = vmax.f32 %v1910, 0.0
      %v2013 = vmax.f32 %v1912, 0.0
      %v2014 = vmax.f32 %v1575, 0.0
      %v2015 = vmax.f32 %v1577, 0.0
      %v2016 = vmax.f32 %v1688, 0.0
      %v2017 = vmax.f32 %v1690, 0.0
      %v2018 = vmax.f32 %v1801, 0.0
      %v2019 = vmax.f32 %v1803, 0.0
      %v2020 = vmax.f32 %v1914, 0.0
      %v2021 = vmax.f32 %v1916, 0.0
      %v2022 = vmax.f32 %v1581, 0.0
      %v2023 = vmax.f32 %v1583, 0.0
      %v2024 = vmax.f32 %v1694, 0.0
      %v2025 = vmax.f32 %v1696, 0.0
      %v2026 = vmax.f32 %v1807, 0.0
      %v2027 = vmax.f32 %v1809, 0.0
      %v2028 = vmax.f32 %v1920, 0.0
      %v2029 = vmax.f32 %v1922, 0.0
      %v2030 = vmax.f32 %v1585, 0.0
      %v2031 = vmax.f32 %v1587, 0.0
      %v2032 = vmax.f32 %v1698, 0.0
      %v2033 = vmax.f32 %v1700, 0.0
      %v2034 = vmax.f32 %v1811, 0.0
      %v2035 = vmax.f32 %v1813, 0.0
      %v2036 = vmax.f32 %v1924, 0.0
      %v2037 = vmax.f32 %v1926, 0.0
      %v2038 = vmax.f32 %v1591, 0.0
      %v2039 = vmax.f32 %v1593, 0.0
      %v2040 = vmax.f32 %v1704, 0.0
      %v2041 = vmax.f32 %v1706, 0.0
      %v2042 = vmax.f32 %v1817, 0.0
      %v2043 = vmax.f32 %v1819, 0.0
      %v2044 = vmax.f32 %v1930, 0.0
      %v2045 = vmax.f32 %v1932, 0.0
      %v2046 = vmax.f32 %v1595, 0.0
      %v2047 = vmax.f32 %v1597, 0.0
      %v2048 = vmax.f32 %v1708, 0.0
      %v2049 = vmax.f32 %v1710, 0.0
      %v2050 = vmax.f32 %v1821, 0.0
      %v2051 = vmax.f32 %v1823, 0.0
      %v2052 = vmax.f32 %v1934, 0.0
      %v2053 = vmax.f32 %v1936, 0.0
      %v2054 = vmax.f32 %v1601, 0.0
      %v2055 = vmax.f32 %v1603, 0.0
      %v2056 = vmax.f32 %v1714, 0.0
      %v2057 = vmax.f32 %v1716, 0.0
      %v2058 = vmax.f32 %v1827, 0.0
      %v2059 = vmax.f32 %v1829, 0.0
      %v2060 = vmax.f32 %v1940, 0.0
      %v2061 = vmax.f32 %v1942, 0.0
      %v2062 = vmax.f32 %v1605, 0.0
      %v2063 = vmax.f32 %v1607, 0.0
      %v2064 = vmax.f32 %v1718, 0.0
      %v2065 = vmax.f32 %v1720, 0.0
      %v2066 = vmax.f32 %v1831, 0.0
      %v2067 = vmax.f32 %v1833, 0.0
      %v2068 = vmax.f32 %v1944, 0.0
      %v2069 = vmax.f32 %v1946, 0.0
      %v2070 = vmax.f32 %v1611, 0.0
      %v2071 = vmax.f32 %v1613, 0.0
      %v2072 = vmax.f32 %v1724, 0.0
      %v2073 = vmax.f32 %v1726, 0.0
      %v2074 = vmax.f32 %v1837, 0.0
      %v2075 = vmax.f32 %v1839, 0.0
      %v2076 = vmax.f32 %v1950, 0.0
      %v2077 = vmax.f32 %v1952, 0.0
      %v2078 = vmax.f32 %v1615, 0.0
      %v2079 = vmax.f32 %v1617, 0.0
      %v2080 = vmax.f32 %v1728, 0.0
      %v2081 = vmax.f32 %v1730, 0.0
      %v2082 = vmax.f32 %v1841, 0.0
      %v2083 = vmax.f32 %v1843, 0.0
      %v2084 = vmax.f32 %v1954, 0.0
      %v2085 = vmax.f32 %v1956, 0.0
      %v2086 = vpack.c.bf16 %v1966, %v1958
      %v2087 = vpack.c.bf16 %v1967, %v1959
      %v2088 = vpack.c.bf16 %v1968, %v1960
      %v2089 = vpack.c.bf16 %v1969, %v1961
      %v2090 = vpack.c.bf16 %v1970, %v1962
      %v2091 = vpack.c.bf16 %v1971, %v1963
      %v2092 = vpack.c.bf16 %v1972, %v1964
      %v2093 = vpack.c.bf16 %v1973, %v1965
      %v2094 = vpack.c.bf16 %v1982, %v1974
      %v2095 = vpack.c.bf16 %v1983, %v1975
      %v2096 = vpack.c.bf16 %v1984, %v1976
      %v2097 = vpack.c.bf16 %v1985, %v1977
      %v2098 = vpack.c.bf16 %v1986, %v1978
      %v2099 = vpack.c.bf16 %v1987, %v1979
      %v2100 = vpack.c.bf16 %v1988, %v1980
      %v2101 = vpack.c.bf16 %v1989, %v1981
      %v2102 = vpack.c.bf16 %v1998, %v1990
      %v2103 = vpack.c.bf16 %v1999, %v1991
      %v2104 = vpack.c.bf16 %v2000, %v1992
      %v2105 = vpack.c.bf16 %v2001, %v1993
      %v2106 = vpack.c.bf16 %v2002, %v1994
      %v2107 = vpack.c.bf16 %v2003, %v1995
      %v2108 = vpack.c.bf16 %v2004, %v1996
      %v2109 = vpack.c.bf16 %v2005, %v1997
      %v2110 = vpack.c.bf16 %v2014, %v2006
      %v2111 = vpack.c.bf16 %v2015, %v2007
      %v2112 = vpack.c.bf16 %v2016, %v2008
      %v2113 = vpack.c.bf16 %v2017, %v2009
      %v2114 = vpack.c.bf16 %v2018, %v2010
      %v2115 = vpack.c.bf16 %v2019, %v2011
      %v2116 = vpack.c.bf16 %v2020, %v2012
      %v2117 = vpack.c.bf16 %v2021, %v2013
      %v2118 = vpack.c.bf16 %v2030, %v2022
      %v2119 = vpack.c.bf16 %v2031, %v2023
      %v2120 = vpack.c.bf16 %v2032, %v2024
      %v2121 = vpack.c.bf16 %v2033, %v2025
      %v2122 = vpack.c.bf16 %v2034, %v2026
      %v2123 = vpack.c.bf16 %v2035, %v2027
      %v2124 = vpack.c.bf16 %v2036, %v2028
      %v2125 = vpack.c.bf16 %v2037, %v2029
      %v2126 = vpack.c.bf16 %v2046, %v2038
      %v2127 = vpack.c.bf16 %v2047, %v2039
      %v2128 = vpack.c.bf16 %v2048, %v2040
      %v2129 = vpack.c.bf16 %v2049, %v2041
      %v2130 = vpack.c.bf16 %v2050, %v2042
      %v2131 = vpack.c.bf16 %v2051, %v2043
      %v2132 = vpack.c.bf16 %v2052, %v2044
      %v2133 = vpack.c.bf16 %v2053, %v2045
      %v2134 = vpack.c.bf16 %v2062, %v2054
      %v2135 = vpack.c.bf16 %v2063, %v2055
      %v2136 = vpack.c.bf16 %v2064, %v2056
      %v2137 = vpack.c.bf16 %v2065, %v2057
      %v2138 = vpack.c.bf16 %v2066, %v2058
      %v2139 = vpack.c.bf16 %v2067, %v2059
      %v2140 = vpack.c.bf16 %v2068, %v2060
      %v2141 = vpack.c.bf16 %v2069, %v2061
      %v2142 = vpack.c.bf16 %v2078, %v2070
      %v2143 = vpack.c.bf16 %v2079, %v2071
      %v2144 = vpack.c.bf16 %v2080, %v2072
      %v2145 = vpack.c.bf16 %v2081, %v2073
      %v2146 = vpack.c.bf16 %v2082, %v2074
      %v2147 = vpack.c.bf16 %v2083, %v2075
      %v2148 = vpack.c.bf16 %v2084, %v2076
      %v2149 = vpack.c.bf16 %v2085, %v2077
      %v2150 = vld [vmem:[%s5] sm:$0xff]
      %v2151 = vld [vmem:[%s5 + $0x8] sm:$0xff]
      %v2152 = vld [vmem:[%s5 + $0x10] sm:$0xff]
      %v2153 = vld [vmem:[%s5 + $0x18] sm:$0xff]
      %v2154 = vld [vmem:[%s5 + $0x20] sm:$0xff]
      %v2155 = vld [vmem:[%s5 + $0x28] sm:$0xff]
      %v2156 = vld [vmem:[%s5 + $0x30] sm:$0xff]
      %v2157 = vld [vmem:[%s5 + $0x38] sm:$0xff]
      %v2158 = vld [vmem:[%s5 + $0x40] sm:$0xff]
      %v2159 = vld [vmem:[%s5 + $0x48] sm:$0xff]
      %v2160 = vld [vmem:[%s5 + $0x50] sm:$0xff]
      %v2161 = vld [vmem:[%s5 + $0x58] sm:$0xff]
      %v2162 = vld [vmem:[%s5 + $0x60] sm:$0xff]
      %v2163 = vld [vmem:[%s5 + $0x68] sm:$0xff]
      %v2164 = vld [vmem:[%s5 + $0x70] sm:$0xff]
      %v2165 = vld [vmem:[%s5 + $0x78] sm:$0xff]
      %v2166 = vld [vmem:[%s5 + $0x80] sm:$0xff]
      %v2167 = vld [vmem:[%s5 + $0x88] sm:$0xff]
      %v2168 = vld [vmem:[%s5 + $0x90] sm:$0xff]
      %v2169 = vld [vmem:[%s5 + $0x98] sm:$0xff]
      %v2170 = vld [vmem:[%s5 + $0xa0] sm:$0xff]
      %v2171 = vld [vmem:[%s5 + $0xa8] sm:$0xff]
      %v2172 = vld [vmem:[%s5 + $0xb0] sm:$0xff]
      %v2173 = vld [vmem:[%s5 + $0xb8] sm:$0xff]
      %v2174 = vld [vmem:[%s5 + $0xc0] sm:$0xff]
      %v2175 = vld [vmem:[%s5 + $0xc8] sm:$0xff]
      %v2176 = vld [vmem:[%s5 + $0xd0] sm:$0xff]
      %v2177 = vld [vmem:[%s5 + $0xd8] sm:$0xff]
      %v2178 = vld [vmem:[%s5 + $0xe0] sm:$0xff]
      %v2179 = vld [vmem:[%s5 + $0xe8] sm:$0xff]
      %v2180 = vld [vmem:[%s5 + $0xf0] sm:$0xff]
      %v2181 = vld [vmem:[%s5 + $0xf8] sm:$0xff]
      %v2182 = vld [vmem:[%s5 + $0x100] sm:$0xff]
      %v2183 = vld [vmem:[%s5 + $0x108] sm:$0xff]
      %v2184 = vld [vmem:[%s5 + $0x110] sm:$0xff]
      %v2185 = vld [vmem:[%s5 + $0x118] sm:$0xff]
      %v2186 = vld [vmem:[%s5 + $0x120] sm:$0xff]
      %v2187 = vld [vmem:[%s5 + $0x128] sm:$0xff]
      %v2188 = vld [vmem:[%s5 + $0x130] sm:$0xff]
      %v2189 = vld [vmem:[%s5 + $0x138] sm:$0xff]
      %v2190 = vld [vmem:[%s5 + $0x140] sm:$0xff]
      %v2191 = vld [vmem:[%s5 + $0x148] sm:$0xff]
      %v2192 = vld [vmem:[%s5 + $0x150] sm:$0xff]
      %v2193 = vld [vmem:[%s5 + $0x158] sm:$0xff]
      %v2194 = vld [vmem:[%s5 + $0x160] sm:$0xff]
      %v2195 = vld [vmem:[%s5 + $0x168] sm:$0xff]
      %v2196 = vld [vmem:[%s5 + $0x170] sm:$0xff]
      %v2197 = vld [vmem:[%s5 + $0x178] sm:$0xff]
      %v2198 = vld [vmem:[%s5 + $0x180] sm:$0xff]
      %v2199 = vld [vmem:[%s5 + $0x188] sm:$0xff]
      %v2200 = vld [vmem:[%s5 + $0x190] sm:$0xff]
      %v2201 = vld [vmem:[%s5 + $0x198] sm:$0xff]
      %v2202 = vld [vmem:[%s5 + $0x1a0] sm:$0xff]
      %v2203 = vld [vmem:[%s5 + $0x1a8] sm:$0xff]
      %v2204 = vld [vmem:[%s5 + $0x1b0] sm:$0xff]
      %v2205 = vld [vmem:[%s5 + $0x1b8] sm:$0xff]
      %v2206 = vld [vmem:[%s5 + $0x1c0] sm:$0xff]
      %v2207 = vld [vmem:[%s5 + $0x1c8] sm:$0xff]
      %v2208 = vld [vmem:[%s5 + $0x1d0] sm:$0xff]
      %v2209 = vld [vmem:[%s5 + $0x1d8] sm:$0xff]
      %v2210 = vld [vmem:[%s5 + $0x1e0] sm:$0xff]
      %v2211 = vld [vmem:[%s5 + $0x1e8] sm:$0xff]
      %v2212 = vld [vmem:[%s5 + $0x1f0] sm:$0xff]
      %v2213 = vld [vmem:[%s5 + $0x1f8] sm:$0xff]
      %v2214 = vld [vmem:[%s5 + $0x200] sm:$0xff]
      %v2215 = vld [vmem:[%s5 + $0x208] sm:$0xff]
      %v2216 = vld [vmem:[%s5 + $0x210] sm:$0xff]
      %v2217 = vld [vmem:[%s5 + $0x218] sm:$0xff]
      %v2218 = vld [vmem:[%s5 + $0x220] sm:$0xff]
      %v2219 = vld [vmem:[%s5 + $0x228] sm:$0xff]
      %v2220 = vld [vmem:[%s5 + $0x230] sm:$0xff]
      %v2221 = vld [vmem:[%s5 + $0x238] sm:$0xff]
      %v2222 = vld [vmem:[%s5 + $0x240] sm:$0xff]
      %v2223 = vld [vmem:[%s5 + $0x248] sm:$0xff]
      %v2224 = vld [vmem:[%s5 + $0x250] sm:$0xff]
      %v2225 = vld [vmem:[%s5 + $0x258] sm:$0xff]
      %v2226 = vld [vmem:[%s5 + $0x260] sm:$0xff]
      %v2227 = vld [vmem:[%s5 + $0x268] sm:$0xff]
      %v2228 = vld [vmem:[%s5 + $0x270] sm:$0xff]
      %v2229 = vld [vmem:[%s5 + $0x278] sm:$0xff]
      %v2230 = vld [vmem:[%s5 + $0x280] sm:$0xff]
      %v2231 = vld [vmem:[%s5 + $0x288] sm:$0xff]
      %v2232 = vld [vmem:[%s5 + $0x290] sm:$0xff]
      %v2233 = vld [vmem:[%s5 + $0x298] sm:$0xff]
      %v2234 = vld [vmem:[%s5 + $0x2a0] sm:$0xff]
      %v2235 = vld [vmem:[%s5 + $0x2a8] sm:$0xff]
      %v2236 = vld [vmem:[%s5 + $0x2b0] sm:$0xff]
      %v2237 = vld [vmem:[%s5 + $0x2b8] sm:$0xff]
      %v2238 = vld [vmem:[%s5 + $0x2c0] sm:$0xff]
      %v2239 = vld [vmem:[%s5 + $0x2c8] sm:$0xff]
      %v2240 = vld [vmem:[%s5 + $0x2d0] sm:$0xff]
      %v2241 = vld [vmem:[%s5 + $0x2d8] sm:$0xff]
      %v2242 = vld [vmem:[%s5 + $0x2e0] sm:$0xff]
      %v2243 = vld [vmem:[%s5 + $0x2e8] sm:$0xff]
      %v2244 = vld [vmem:[%s5 + $0x2f0] sm:$0xff]
      %v2245 = vld [vmem:[%s5 + $0x2f8] sm:$0xff]
      %v2246 = vld [vmem:[%s5 + $0x300] sm:$0xff]
      %v2247 = vld [vmem:[%s5 + $0x308] sm:$0xff]
      %v2248 = vld [vmem:[%s5 + $0x310] sm:$0xff]
      %v2249 = vld [vmem:[%s5 + $0x318] sm:$0xff]
      %v2250 = vld [vmem:[%s5 + $0x320] sm:$0xff]
      %v2251 = vld [vmem:[%s5 + $0x328] sm:$0xff]
      %v2252 = vld [vmem:[%s5 + $0x330] sm:$0xff]
      %v2253 = vld [vmem:[%s5 + $0x338] sm:$0xff]
      %v2254 = vld [vmem:[%s5 + $0x340] sm:$0xff]
      %v2255 = vld [vmem:[%s5 + $0x348] sm:$0xff]
      %v2256 = vld [vmem:[%s5 + $0x350] sm:$0xff]
      %v2257 = vld [vmem:[%s5 + $0x358] sm:$0xff]
      %v2258 = vld [vmem:[%s5 + $0x360] sm:$0xff]
      %v2259 = vld [vmem:[%s5 + $0x368] sm:$0xff]
      %v2260 = vld [vmem:[%s5 + $0x370] sm:$0xff]
      %v2261 = vld [vmem:[%s5 + $0x378] sm:$0xff]
      %v2262 = vld [vmem:[%s5 + $0x380] sm:$0xff]
      %v2263 = vld [vmem:[%s5 + $0x388] sm:$0xff]
      %v2264 = vld [vmem:[%s5 + $0x390] sm:$0xff]
      %v2265 = vld [vmem:[%s5 + $0x398] sm:$0xff]
      %v2266 = vld [vmem:[%s5 + $0x3a0] sm:$0xff]
      %v2267 = vld [vmem:[%s5 + $0x3a8] sm:$0xff]
      %v2268 = vld [vmem:[%s5 + $0x3b0] sm:$0xff]
      %v2269 = vld [vmem:[%s5 + $0x3b8] sm:$0xff]
      %v2270 = vld [vmem:[%s5 + $0x3c0] sm:$0xff]
      %v2271 = vld [vmem:[%s5 + $0x3c8] sm:$0xff]
      %v2272 = vld [vmem:[%s5 + $0x3d0] sm:$0xff]
      %v2273 = vld [vmem:[%s5 + $0x3d8] sm:$0xff]
      %v2274 = vld [vmem:[%s5 + $0x3e0] sm:$0xff]
      %v2275 = vld [vmem:[%s5 + $0x3e8] sm:$0xff]
      %v2276 = vld [vmem:[%s5 + $0x3f0] sm:$0xff]
      %v2277 = vld [vmem:[%s5 + $0x3f8] sm:$0xff]
      %v2278 = vld [vmem:[%s6] sm:$0x3]
      %v2280 = vlaneseq
      %v2281 = vshrl.u32 %v2280, 7
      %v2282 = vsub.s32 0, %v2281
      %v2283 = vrot.slane %v2278, %v2282
      %v2284 = vlaneseq
      %v2285 = vshrl.u32 %v2284, 7
      %v2286 = vsub.s32 1, %v2285
      %v2287 = vrot.slane %v2278, %v2286
      %v2418 = vunpack.c.l.b16 %v2150
      %v2419 = vunpack.c.h.b16 %v2150
      %v2420 = vunpack.c.l.b16 %v2151
      %v2421 = vunpack.c.h.b16 %v2151
      %v2422 = vunpack.c.l.b16 %v2152
      %v2423 = vunpack.c.h.b16 %v2152
      %v2424 = vunpack.c.l.b16 %v2153
      %v2425 = vunpack.c.h.b16 %v2153
      %v2426 = vunpack.c.l.b16 %v2154
      %v2427 = vunpack.c.h.b16 %v2154
      %v2428 = vunpack.c.l.b16 %v2155
      %v2429 = vunpack.c.h.b16 %v2155
      %v2430 = vunpack.c.l.b16 %v2156
      %v2431 = vunpack.c.h.b16 %v2156
      %v2432 = vunpack.c.l.b16 %v2157
      %v2433 = vunpack.c.h.b16 %v2157
      %v2434 = vunpack.c.l.b16 %v2158
      %v2435 = vunpack.c.h.b16 %v2158
      %v2436 = vunpack.c.l.b16 %v2159
      %v2437 = vunpack.c.h.b16 %v2159
      %v2438 = vunpack.c.l.b16 %v2160
      %v2439 = vunpack.c.h.b16 %v2160
      %v2440 = vunpack.c.l.b16 %v2161
      %v2441 = vunpack.c.h.b16 %v2161
      %v2442 = vunpack.c.l.b16 %v2162
      %v2443 = vunpack.c.h.b16 %v2162
      %v2444 = vunpack.c.l.b16 %v2163
      %v2445 = vunpack.c.h.b16 %v2163
      %v2446 = vunpack.c.l.b16 %v2164
      %v2447 = vunpack.c.h.b16 %v2164
      %v2448 = vunpack.c.l.b16 %v2165
      %v2449 = vunpack.c.h.b16 %v2165
      %v2450 = vunpack.c.l.b16 %v2166
      %v2451 = vunpack.c.h.b16 %v2166
      %v2452 = vunpack.c.l.b16 %v2167
      %v2453 = vunpack.c.h.b16 %v2167
      %v2454 = vunpack.c.l.b16 %v2168
      %v2455 = vunpack.c.h.b16 %v2168
      %v2456 = vunpack.c.l.b16 %v2169
      %v2457 = vunpack.c.h.b16 %v2169
      %v2458 = vunpack.c.l.b16 %v2170
      %v2459 = vunpack.c.h.b16 %v2170
      %v2460 = vunpack.c.l.b16 %v2171
      %v2461 = vunpack.c.h.b16 %v2171
      %v2462 = vunpack.c.l.b16 %v2172
      %v2463 = vunpack.c.h.b16 %v2172
      %v2464 = vunpack.c.l.b16 %v2173
      %v2465 = vunpack.c.h.b16 %v2173
      %v2466 = vunpack.c.l.b16 %v2174
      %v2467 = vunpack.c.h.b16 %v2174
      %v2468 = vunpack.c.l.b16 %v2175
      %v2469 = vunpack.c.h.b16 %v2175
      %v2470 = vunpack.c.l.b16 %v2176
      %v2471 = vunpack.c.h.b16 %v2176
      %v2472 = vunpack.c.l.b16 %v2177
      %v2473 = vunpack.c.h.b16 %v2177
      %v2474 = vunpack.c.l.b16 %v2178
      %v2475 = vunpack.c.h.b16 %v2178
      %v2476 = vunpack.c.l.b16 %v2179
      %v2477 = vunpack.c.h.b16 %v2179
      %v2478 = vunpack.c.l.b16 %v2180
      %v2479 = vunpack.c.h.b16 %v2180
      %v2480 = vunpack.c.l.b16 %v2181
      %v2481 = vunpack.c.h.b16 %v2181
      %v2482 = vunpack.c.l.b16 %v2182
      %v2483 = vunpack.c.h.b16 %v2182
      %v2484 = vunpack.c.l.b16 %v2183
      %v2485 = vunpack.c.h.b16 %v2183
      %v2486 = vunpack.c.l.b16 %v2184
      %v2487 = vunpack.c.h.b16 %v2184
      %v2488 = vunpack.c.l.b16 %v2185
      %v2489 = vunpack.c.h.b16 %v2185
      %v2490 = vunpack.c.l.b16 %v2186
      %v2491 = vunpack.c.h.b16 %v2186
      %v2492 = vunpack.c.l.b16 %v2187
      %v2493 = vunpack.c.h.b16 %v2187
      %v2494 = vunpack.c.l.b16 %v2188
      %v2495 = vunpack.c.h.b16 %v2188
      %v2496 = vunpack.c.l.b16 %v2189
      %v2497 = vunpack.c.h.b16 %v2189
      %v2498 = vunpack.c.l.b16 %v2190
      %v2499 = vunpack.c.h.b16 %v2190
      %v2500 = vunpack.c.l.b16 %v2191
      %v2501 = vunpack.c.h.b16 %v2191
      %v2502 = vunpack.c.l.b16 %v2192
      %v2503 = vunpack.c.h.b16 %v2192
      %v2504 = vunpack.c.l.b16 %v2193
      %v2505 = vunpack.c.h.b16 %v2193
      %v2506 = vunpack.c.l.b16 %v2194
      %v2507 = vunpack.c.h.b16 %v2194
      %v2508 = vunpack.c.l.b16 %v2195
      %v2509 = vunpack.c.h.b16 %v2195
      %v2510 = vunpack.c.l.b16 %v2196
      %v2511 = vunpack.c.h.b16 %v2196
      %v2512 = vunpack.c.l.b16 %v2197
      %v2513 = vunpack.c.h.b16 %v2197
      %v2514 = vunpack.c.l.b16 %v2198
      %v2515 = vunpack.c.h.b16 %v2198
      %v2516 = vunpack.c.l.b16 %v2199
      %v2517 = vunpack.c.h.b16 %v2199
      %v2518 = vunpack.c.l.b16 %v2200
      %v2519 = vunpack.c.h.b16 %v2200
      %v2520 = vunpack.c.l.b16 %v2201
      %v2521 = vunpack.c.h.b16 %v2201
      %v2522 = vunpack.c.l.b16 %v2202
      %v2523 = vunpack.c.h.b16 %v2202
      %v2524 = vunpack.c.l.b16 %v2203
      %v2525 = vunpack.c.h.b16 %v2203
      %v2526 = vunpack.c.l.b16 %v2204
      %v2527 = vunpack.c.h.b16 %v2204
      %v2528 = vunpack.c.l.b16 %v2205
      %v2529 = vunpack.c.h.b16 %v2205
      %v2530 = vunpack.c.l.b16 %v2206
      %v2531 = vunpack.c.h.b16 %v2206
      %v2532 = vunpack.c.l.b16 %v2207
      %v2533 = vunpack.c.h.b16 %v2207
      %v2534 = vunpack.c.l.b16 %v2208
      %v2535 = vunpack.c.h.b16 %v2208
      %v2536 = vunpack.c.l.b16 %v2209
      %v2537 = vunpack.c.h.b16 %v2209
      %v2538 = vunpack.c.l.b16 %v2210
      %v2539 = vunpack.c.h.b16 %v2210
      %v2540 = vunpack.c.l.b16 %v2211
      %v2541 = vunpack.c.h.b16 %v2211
      %v2542 = vunpack.c.l.b16 %v2212
      %v2543 = vunpack.c.h.b16 %v2212
      %v2544 = vunpack.c.l.b16 %v2213
      %v2545 = vunpack.c.h.b16 %v2213
      %v2546 = vunpack.c.l.b16 %v2214
      %v2547 = vunpack.c.h.b16 %v2214
      %v2548 = vunpack.c.l.b16 %v2215
      %v2549 = vunpack.c.h.b16 %v2215
      %v2550 = vunpack.c.l.b16 %v2216
      %v2551 = vunpack.c.h.b16 %v2216
      %v2552 = vunpack.c.l.b16 %v2217
      %v2553 = vunpack.c.h.b16 %v2217
      %v2554 = vunpack.c.l.b16 %v2218
      %v2555 = vunpack.c.h.b16 %v2218
      %v2556 = vunpack.c.l.b16 %v2219
      %v2557 = vunpack.c.h.b16 %v2219
      %v2558 = vunpack.c.l.b16 %v2220
      %v2559 = vunpack.c.h.b16 %v2220
      %v2560 = vunpack.c.l.b16 %v2221
      %v2561 = vunpack.c.h.b16 %v2221
      %v2562 = vunpack.c.l.b16 %v2222
      %v2563 = vunpack.c.h.b16 %v2222
      %v2564 = vunpack.c.l.b16 %v2223
      %v2565 = vunpack.c.h.b16 %v2223
      %v2566 = vunpack.c.l.b16 %v2224
      %v2567 = vunpack.c.h.b16 %v2224
      %v2568 = vunpack.c.l.b16 %v2225
      %v2569 = vunpack.c.h.b16 %v2225
      %v2570 = vunpack.c.l.b16 %v2226
      %v2571 = vunpack.c.h.b16 %v2226
      %v2572 = vunpack.c.l.b16 %v2227
      %v2573 = vunpack.c.h.b16 %v2227
      %v2574 = vunpack.c.l.b16 %v2228
      %v2575 = vunpack.c.h.b16 %v2228
      %v2576 = vunpack.c.l.b16 %v2229
      %v2577 = vunpack.c.h.b16 %v2229
      %v2578 = vunpack.c.l.b16 %v2230
      %v2579 = vunpack.c.h.b16 %v2230
      %v2580 = vunpack.c.l.b16 %v2231
      %v2581 = vunpack.c.h.b16 %v2231
      %v2582 = vunpack.c.l.b16 %v2232
      %v2583 = vunpack.c.h.b16 %v2232
      %v2584 = vunpack.c.l.b16 %v2233
      %v2585 = vunpack.c.h.b16 %v2233
      %v2586 = vunpack.c.l.b16 %v2234
      %v2587 = vunpack.c.h.b16 %v2234
      %v2588 = vunpack.c.l.b16 %v2235
      %v2589 = vunpack.c.h.b16 %v2235
      %v2590 = vunpack.c.l.b16 %v2236
      %v2591 = vunpack.c.h.b16 %v2236
      %v2592 = vunpack.c.l.b16 %v2237
      %v2593 = vunpack.c.h.b16 %v2237
      %v2594 = vunpack.c.l.b16 %v2238
      %v2595 = vunpack.c.h.b16 %v2238
      %v2596 = vunpack.c.l.b16 %v2239
      %v2597 = vunpack.c.h.b16 %v2239
      %v2598 = vunpack.c.l.b16 %v2240
      %v2599 = vunpack.c.h.b16 %v2240
      %v2600 = vunpack.c.l.b16 %v2241
      %v2601 = vunpack.c.h.b16 %v2241
      %v2602 = vunpack.c.l.b16 %v2242
      %v2603 = vunpack.c.h.b16 %v2242
      %v2604 = vunpack.c.l.b16 %v2243
      %v2605 = vunpack.c.h.b16 %v2243
      %v2606 = vunpack.c.l.b16 %v2244
      %v2607 = vunpack.c.h.b16 %v2244
      %v2608 = vunpack.c.l.b16 %v2245
      %v2609 = vunpack.c.h.b16 %v2245
      %v2610 = vunpack.c.l.b16 %v2246
      %v2611 = vunpack.c.h.b16 %v2246
      %v2612 = vunpack.c.l.b16 %v2247
      %v2613 = vunpack.c.h.b16 %v2247
      %v2614 = vunpack.c.l.b16 %v2248
      %v2615 = vunpack.c.h.b16 %v2248
      %v2616 = vunpack.c.l.b16 %v2249
      %v2617 = vunpack.c.h.b16 %v2249
      %v2618 = vunpack.c.l.b16 %v2250
      %v2619 = vunpack.c.h.b16 %v2250
      %v2620 = vunpack.c.l.b16 %v2251
      %v2621 = vunpack.c.h.b16 %v2251
      %v2622 = vunpack.c.l.b16 %v2252
      %v2623 = vunpack.c.h.b16 %v2252
      %v2624 = vunpack.c.l.b16 %v2253
      %v2625 = vunpack.c.h.b16 %v2253
      %v2626 = vunpack.c.l.b16 %v2254
      %v2627 = vunpack.c.h.b16 %v2254
      %v2628 = vunpack.c.l.b16 %v2255
      %v2629 = vunpack.c.h.b16 %v2255
      %v2630 = vunpack.c.l.b16 %v2256
      %v2631 = vunpack.c.h.b16 %v2256
      %v2632 = vunpack.c.l.b16 %v2257
      %v2633 = vunpack.c.h.b16 %v2257
      %v2634 = vunpack.c.l.b16 %v2258
      %v2635 = vunpack.c.h.b16 %v2258
      %v2636 = vunpack.c.l.b16 %v2259
      %v2637 = vunpack.c.h.b16 %v2259
      %v2638 = vunpack.c.l.b16 %v2260
      %v2639 = vunpack.c.h.b16 %v2260
      %v2640 = vunpack.c.l.b16 %v2261
      %v2641 = vunpack.c.h.b16 %v2261
      %v2642 = vunpack.c.l.b16 %v2262
      %v2643 = vunpack.c.h.b16 %v2262
      %v2644 = vunpack.c.l.b16 %v2263
      %v2645 = vunpack.c.h.b16 %v2263
      %v2646 = vunpack.c.l.b16 %v2264
      %v2647 = vunpack.c.h.b16 %v2264
      %v2648 = vunpack.c.l.b16 %v2265
      %v2649 = vunpack.c.h.b16 %v2265
      %v2650 = vunpack.c.l.b16 %v2266
      %v2651 = vunpack.c.h.b16 %v2266
      %v2652 = vunpack.c.l.b16 %v2267
      %v2653 = vunpack.c.h.b16 %v2267
      %v2654 = vunpack.c.l.b16 %v2268
      %v2655 = vunpack.c.h.b16 %v2268
      %v2656 = vunpack.c.l.b16 %v2269
      %v2657 = vunpack.c.h.b16 %v2269
      %v2658 = vunpack.c.l.b16 %v2270
      %v2659 = vunpack.c.h.b16 %v2270
      %v2660 = vunpack.c.l.b16 %v2271
      %v2661 = vunpack.c.h.b16 %v2271
      %v2662 = vunpack.c.l.b16 %v2272
      %v2663 = vunpack.c.h.b16 %v2272
      %v2664 = vunpack.c.l.b16 %v2273
      %v2665 = vunpack.c.h.b16 %v2273
      %v2666 = vunpack.c.l.b16 %v2274
      %v2667 = vunpack.c.h.b16 %v2274
      %v2668 = vunpack.c.l.b16 %v2275
      %v2669 = vunpack.c.h.b16 %v2275
      %v2670 = vunpack.c.l.b16 %v2276
      %v2671 = vunpack.c.h.b16 %v2276
      %v2672 = vunpack.c.l.b16 %v2277
      %v2673 = vunpack.c.h.b16 %v2277
      %v2674 = vpack.c.b16 %v2420, %v2418
      %v2675 = vpack.c.b16 %v2421, %v2419
      %v2676 = vpack.c.b16 %v2424, %v2422
      %v2677 = vpack.c.b16 %v2425, %v2423
      %v2678 = vpack.c.b16 %v2428, %v2426
      %v2679 = vpack.c.b16 %v2429, %v2427
      %v2680 = vpack.c.b16 %v2432, %v2430
      %v2681 = vpack.c.b16 %v2433, %v2431
      %v2682 = vpack.c.b16 %v2436, %v2434
      %v2683 = vpack.c.b16 %v2437, %v2435
      %v2684 = vpack.c.b16 %v2440, %v2438
      %v2685 = vpack.c.b16 %v2441, %v2439
      %v2686 = vpack.c.b16 %v2444, %v2442
      %v2687 = vpack.c.b16 %v2445, %v2443
      %v2688 = vpack.c.b16 %v2448, %v2446
      %v2689 = vpack.c.b16 %v2449, %v2447
      %v2690 = vpack.c.b16 %v2452, %v2450
      %v2691 = vpack.c.b16 %v2453, %v2451
      %v2692 = vpack.c.b16 %v2456, %v2454
      %v2693 = vpack.c.b16 %v2457, %v2455
      %v2694 = vpack.c.b16 %v2460, %v2458
      %v2695 = vpack.c.b16 %v2461, %v2459
      %v2696 = vpack.c.b16 %v2464, %v2462
      %v2697 = vpack.c.b16 %v2465, %v2463
      %v2698 = vpack.c.b16 %v2468, %v2466
      %v2699 = vpack.c.b16 %v2469, %v2467
      %v2700 = vpack.c.b16 %v2472, %v2470
      %v2701 = vpack.c.b16 %v2473, %v2471
      %v2702 = vpack.c.b16 %v2476, %v2474
      %v2703 = vpack.c.b16 %v2477, %v2475
      %v2704 = vpack.c.b16 %v2480, %v2478
      %v2705 = vpack.c.b16 %v2481, %v2479
      %v2706 = vpack.c.b16 %v2484, %v2482
      %v2707 = vpack.c.b16 %v2485, %v2483
      %v2708 = vpack.c.b16 %v2488, %v2486
      %v2709 = vpack.c.b16 %v2489, %v2487
      %v2710 = vpack.c.b16 %v2492, %v2490
      %v2711 = vpack.c.b16 %v2493, %v2491
      %v2712 = vpack.c.b16 %v2496, %v2494
      %v2713 = vpack.c.b16 %v2497, %v2495
      %v2714 = vpack.c.b16 %v2500, %v2498
      %v2715 = vpack.c.b16 %v2501, %v2499
      %v2716 = vpack.c.b16 %v2504, %v2502
      %v2717 = vpack.c.b16 %v2505, %v2503
      %v2718 = vpack.c.b16 %v2508, %v2506
      %v2719 = vpack.c.b16 %v2509, %v2507
      %v2720 = vpack.c.b16 %v2512, %v2510
      %v2721 = vpack.c.b16 %v2513, %v2511
      %v2722 = vpack.c.b16 %v2516, %v2514
      %v2723 = vpack.c.b16 %v2517, %v2515
      %v2724 = vpack.c.b16 %v2520, %v2518
      %v2725 = vpack.c.b16 %v2521, %v2519
      %v2726 = vpack.c.b16 %v2524, %v2522
      %v2727 = vpack.c.b16 %v2525, %v2523
      %v2728 = vpack.c.b16 %v2528, %v2526
      %v2729 = vpack.c.b16 %v2529, %v2527
      %v2730 = vpack.c.b16 %v2532, %v2530
      %v2731 = vpack.c.b16 %v2533, %v2531
      %v2732 = vpack.c.b16 %v2536, %v2534
      %v2733 = vpack.c.b16 %v2537, %v2535
      %v2734 = vpack.c.b16 %v2540, %v2538
      %v2735 = vpack.c.b16 %v2541, %v2539
      %v2736 = vpack.c.b16 %v2544, %v2542
      %v2737 = vpack.c.b16 %v2545, %v2543
      %v2738 = vpack.c.b16 %v2548, %v2546
      %v2739 = vpack.c.b16 %v2549, %v2547
      %v2740 = vpack.c.b16 %v2552, %v2550
      %v2741 = vpack.c.b16 %v2553, %v2551
      %v2742 = vpack.c.b16 %v2556, %v2554
      %v2743 = vpack.c.b16 %v2557, %v2555
      %v2744 = vpack.c.b16 %v2560, %v2558
      %v2745 = vpack.c.b16 %v2561, %v2559
      %v2746 = vpack.c.b16 %v2564, %v2562
      %v2747 = vpack.c.b16 %v2565, %v2563
      %v2748 = vpack.c.b16 %v2568, %v2566
      %v2749 = vpack.c.b16 %v2569, %v2567
      %v2750 = vpack.c.b16 %v2572, %v2570
      %v2751 = vpack.c.b16 %v2573, %v2571
      %v2752 = vpack.c.b16 %v2576, %v2574
      %v2753 = vpack.c.b16 %v2577, %v2575
      %v2754 = vpack.c.b16 %v2580, %v2578
      %v2755 = vpack.c.b16 %v2581, %v2579
      %v2756 = vpack.c.b16 %v2584, %v2582
      %v2757 = vpack.c.b16 %v2585, %v2583
      %v2758 = vpack.c.b16 %v2588, %v2586
      %v2759 = vpack.c.b16 %v2589, %v2587
      %v2760 = vpack.c.b16 %v2592, %v2590
      %v2761 = vpack.c.b16 %v2593, %v2591
      %v2762 = vpack.c.b16 %v2596, %v2594
      %v2763 = vpack.c.b16 %v2597, %v2595
      %v2764 = vpack.c.b16 %v2600, %v2598
      %v2765 = vpack.c.b16 %v2601, %v2599
      %v2766 = vpack.c.b16 %v2604, %v2602
      %v2767 = vpack.c.b16 %v2605, %v2603
      %v2768 = vpack.c.b16 %v2608, %v2606
      %v2769 = vpack.c.b16 %v2609, %v2607
      %v2770 = vpack.c.b16 %v2612, %v2610
      %v2771 = vpack.c.b16 %v2613, %v2611
      %v2772 = vpack.c.b16 %v2616, %v2614
      %v2773 = vpack.c.b16 %v2617, %v2615
      %v2774 = vpack.c.b16 %v2620, %v2618
      %v2775 = vpack.c.b16 %v2621, %v2619
      %v2776 = vpack.c.b16 %v2624, %v2622
      %v2777 = vpack.c.b16 %v2625, %v2623
      %v2778 = vpack.c.b16 %v2628, %v2626
      %v2779 = vpack.c.b16 %v2629, %v2627
      %v2780 = vpack.c.b16 %v2632, %v2630
      %v2781 = vpack.c.b16 %v2633, %v2631
      %v2782 = vpack.c.b16 %v2636, %v2634
      %v2783 = vpack.c.b16 %v2637, %v2635
      %v2784 = vpack.c.b16 %v2640, %v2638
      %v2785 = vpack.c.b16 %v2641, %v2639
      %v2786 = vpack.c.b16 %v2644, %v2642
      %v2787 = vpack.c.b16 %v2645, %v2643
      %v2788 = vpack.c.b16 %v2648, %v2646
      %v2789 = vpack.c.b16 %v2649, %v2647
      %v2790 = vpack.c.b16 %v2652, %v2650
      %v2791 = vpack.c.b16 %v2653, %v2651
      %v2792 = vpack.c.b16 %v2656, %v2654
      %v2793 = vpack.c.b16 %v2657, %v2655
      %v2794 = vpack.c.b16 %v2660, %v2658
      %v2795 = vpack.c.b16 %v2661, %v2659
      %v2796 = vpack.c.b16 %v2664, %v2662
      %v2797 = vpack.c.b16 %v2665, %v2663
      %v2798 = vpack.c.b16 %v2668, %v2666
      %v2799 = vpack.c.b16 %v2669, %v2667
      %v2800 = vpack.c.b16 %v2672, %v2670
      %v2801 = vpack.c.b16 %v2673, %v2671
      %2930 = vmatprep.subr.bf16.mxu0 %v2675
      %2931 = vmatpush1.bf16.msra.mxu0 %v2674
      %2932 = vmatprep.subr.bf16.mxu0 %v2677
      %2933 = vmatpush1.bf16.msra.mxu0 %v2676
      %2934 = vmatprep.subr.bf16.mxu0 %v2679
      %2935 = vmatpush1.bf16.msra.mxu0 %v2678
      %2936 = vmatprep.subr.bf16.mxu0 %v2681
      %2937 = vmatpush1.bf16.msra.mxu0 %v2680
      %2938 = vmatprep.subr.bf16.mxu0 %v2683
      %2939 = vmatpush1.bf16.msra.mxu0 %v2682
      %2940 = vmatprep.subr.bf16.mxu0 %v2685
      %2941 = vmatpush1.bf16.msra.mxu0 %v2684
      %2942 = vmatprep.subr.bf16.mxu0 %v2687
      %2943 = vmatpush1.bf16.msra.mxu0 %v2686
      %2944 = vmatprep.subr.bf16.mxu0 %v2689
      %2945 = vmatpush1.bf16.msra.mxu0 %v2688
      %2946 = vmatprep.subr.bf16.mxu0 %v2691
      %2947 = vmatpush1.bf16.msra.mxu0 %v2690
      %2948 = vmatprep.subr.bf16.mxu0 %v2693
      %2949 = vmatpush1.bf16.msra.mxu0 %v2692
      %2950 = vmatprep.subr.bf16.mxu0 %v2695
      %2951 = vmatpush1.bf16.msra.mxu0 %v2694
      %2952 = vmatprep.subr.bf16.mxu0 %v2697
      %2953 = vmatpush1.bf16.msra.mxu0 %v2696
      %2954 = vmatprep.subr.bf16.mxu0 %v2699
      %2955 = vmatpush1.bf16.msra.mxu0 %v2698
      %2956 = vmatprep.subr.bf16.mxu0 %v2701
      %2957 = vmatpush1.bf16.msra.mxu0 %v2700
      %2958 = vmatprep.subr.bf16.mxu0 %v2703
      %2959 = vmatpush1.bf16.msra.mxu0 %v2702
      %2960 = vmatprep.subr.bf16.mxu0 %v2705
      %2961 = vmatpush1.bf16.msra.mxu0 %v2704
      %2962 = vmatprep.mubr.bf16.mxu0 %v2087
      %2963 = vmatmul.mubr.bf16.gmra.mrb[0].mxu0 %v2086
      %v2964 = vpop.f32.mrb[0].mxu0
      %v2965 = vadd.f32 %v2283, %v2964
      %v2966 = vpop.f32.mrb[0].mxu0
      %v2967 = vadd.f32 %v2287, %v2966
      %v2968 = vpop.f32.mrb[0].mxu0
      %v2969 = vadd.f32 %v2283, %v2968
      %v2970 = vpop.f32.mrb[0].mxu0
      %v2971 = vadd.f32 %v2287, %v2970
      %2972 = vmatprep.mubr.bf16.mxu0 %v2095
      %2973 = vmatmul.mubr.bf16.gmra.mrb[0].mxu0 %v2094
      %v2974 = vpop.f32.mrb[0].mxu0
      %v2975 = vadd.f32 %v2283, %v2974
      %v2976 = vpop.f32.mrb[0].mxu0
      %v2977 = vadd.f32 %v2287, %v2976
      %v2978 = vpop.f32.mrb[0].mxu0
      %v2979 = vadd.f32 %v2283, %v2978
      %v2980 = vpop.f32.mrb[0].mxu0
      %v2981 = vadd.f32 %v2287, %v2980
      %2982 = vmatprep.mubr.bf16.mxu0 %v2103
      %2983 = vmatmul.mubr.bf16.gmra.mrb[0].mxu0 %v2102
      %v2984 = vpop.f32.mrb[0].mxu0
      %v2985 = vadd.f32 %v2283, %v2984
      %v2986 = vpop.f32.mrb[0].mxu0
      %v2987 = vadd.f32 %v2287, %v2986
      %v2988 = vpop.f32.mrb[0].mxu0
      %v2989 = vadd.f32 %v2283, %v2988
      %v2990 = vpop.f32.mrb[0].mxu0
      %v2991 = vadd.f32 %v2287, %v2990
      %2992 = vmatprep.mubr.bf16.mxu0 %v2111
      %2993 = vmatmul.mubr.bf16.gmra.mrb[0].mxu0 %v2110
      %v2994 = vpop.f32.mrb[0].mxu0
      %v2995 = vadd.f32 %v2283, %v2994
      %v2996 = vpop.f32.mrb[0].mxu0
      %v2997 = vadd.f32 %v2287, %v2996
      %v2998 = vpop.f32.mrb[0].mxu0
      %v2999 = vadd.f32 %v2283, %v2998
      %v3000 = vpop.f32.mrb[0].mxu0
      %v3001 = vadd.f32 %v2287, %v3000
      %3002 = vmatprep.mubr.bf16.mxu0 %v2119
      %3003 = vmatmul.mubr.bf16.gmra.mrb[0].mxu0 %v2118
      %v3004 = vpop.f32.mrb[0].mxu0
      %v3005 = vadd.f32 %v2283, %v3004
      %v3006 = vpop.f32.mrb[0].mxu0
      %v3007 = vadd.f32 %v2287, %v3006
      %v3008 = vpop.f32.mrb[0].mxu0
      %v3009 = vadd.f32 %v2283, %v3008
      %v3010 = vpop.f32.mrb[0].mxu0
      %v3011 = vadd.f32 %v2287, %v3010
      %3012 = vmatprep.mubr.bf16.mxu0 %v2127
      %3013 = vmatmul.mubr.bf16.gmra.mrb[0].mxu0 %v2126
      %v3014 = vpop.f32.mrb[0].mxu0
      %v3015 = vadd.f32 %v2283, %v3014
      %v3016 = vpop.f32.mrb[0].mxu0
      %v3017 = vadd.f32 %v2287, %v3016
      %v3018 = vpop.f32.mrb[0].mxu0
      %v3019 = vadd.f32 %v2283, %v3018
      %v3020 = vpop.f32.mrb[0].mxu0
      %v3021 = vadd.f32 %v2287, %v3020
      %3022 = vmatprep.mubr.bf16.mxu0 %v2135
      %3023 = vmatmul.mubr.bf16.gmra.mrb[0].mxu0 %v2134
      %v3024 = vpop.f32.mrb[0].mxu0
      %v3025 = vadd.f32 %v2283, %v3024
      %v3026 = vpop.f32.mrb[0].mxu0
      %v3027 = vadd.f32 %v2287, %v3026
      %v3028 = vpop.f32.mrb[0].mxu0
      %v3029 = vadd.f32 %v2283, %v3028
      %v3030 = vpop.f32.mrb[0].mxu0
      %v3031 = vadd.f32 %v2287, %v3030
      %3032 = vmatprep.mubr.bf16.mxu0 %v2143
      %3033 = vmatmul.mubr.bf16.gmra.mrb[0].mxu0 %v2142
      %v3034 = vpop.f32.mrb[0].mxu0
      %v3035 = vadd.f32 %v2283, %v3034
      %v3036 = vpop.f32.mrb[0].mxu0
      %v3037 = vadd.f32 %v2287, %v3036
      %v3038 = vpop.f32.mrb[0].mxu0
      %v3039 = vadd.f32 %v2283, %v3038
      %v3040 = vpop.f32.mrb[0].mxu0
      %v3041 = vadd.f32 %v2287, %v3040
      %3042 = vdwg.mxu0
      %3043 = vmatprep.subr.bf16.mxu0 %v2707
      %3044 = vmatpush1.bf16.msra.mxu0 %v2706
      %3045 = vmatprep.subr.bf16.mxu0 %v2709
      %3046 = vmatpush1.bf16.msra.mxu0 %v2708
      %3047 = vmatprep.subr.bf16.mxu0 %v2711
      %3048 = vmatpush1.bf16.msra.mxu0 %v2710
      %3049 = vmatprep.subr.bf16.mxu0 %v2713
      %3050 = vmatpush1.bf16.msra.mxu0 %v2712
      %3051 = vmatprep.subr.bf16.mxu0 %v2715
      %3052 = vmatpush1.bf16.msra.mxu0 %v2714
      %3053 = vmatprep.subr.bf16.mxu0 %v2717
      %3054 = vmatpush1.bf16.msra.mxu0 %v2716
      %3055 = vmatprep.subr.bf16.mxu0 %v2719
      %3056 = vmatpush1.bf16.msra.mxu0 %v2718
      %3057 = vmatprep.subr.bf16.mxu0 %v2721
      %3058 = vmatpush1.bf16.msra.mxu0 %v2720
      %3059 = vmatprep.subr.bf16.mxu0 %v2723
      %3060 = vmatpush1.bf16.msra.mxu0 %v2722
      %3061 = vmatprep.subr.bf16.mxu0 %v2725
      %3062 = vmatpush1.bf16.msra.mxu0 %v2724
      %3063 = vmatprep.subr.bf16.mxu0 %v2727
      %3064 = vmatpush1.bf16.msra.mxu0 %v2726
      %3065 = vmatprep.subr.bf16.mxu0 %v2729
      %3066 = vmatpush1.bf16.msra.mxu0 %v2728
      %3067 = vmatprep.subr.bf16.mxu0 %v2731
      %3068 = vmatpush1.bf16.msra.mxu0 %v2730
      %3069 = vmatprep.subr.bf16.mxu0 %v2733
      %3070 = vmatpush1.bf16.msra.mxu0 %v2732
      %3071 = vmatprep.subr.bf16.mxu0 %v2735
      %3072 = vmatpush1.bf16.msra.mxu0 %v2734
      %3073 = vmatprep.subr.bf16.mxu0 %v2737
      %3074 = vmatpush1.bf16.msra.mxu0 %v2736
      %3075 = vmatprep.mubr.bf16.mxu0 %v2089
      %3076 = vmatmul.mubr.bf16.gmra.mrb[0].mxu0 %v2088
      %v3077 = vpop.f32.mrb[0].mxu0
      %v3078 = vadd.f32 %v2965, %v3077
      %v3079 = vpop.f32.mrb[0].mxu0
      %v3080 = vadd.f32 %v2967, %v3079
      %v3081 = vpop.f32.mrb[0].mxu0
      %v3082 = vadd.f32 %v2969, %v3081
      %v3083 = vpop.f32.mrb[0].mxu0
      %v3084 = vadd.f32 %v2971, %v3083
      %3085 = vmatprep.mubr.bf16.mxu0 %v2097
      %3086 = vmatmul.mubr.bf16.gmra.mrb[0].mxu0 %v2096
      %v3087 = vpop.f32.mrb[0].mxu0
      %v3088 = vadd.f32 %v2975, %v3087
      %v3089 = vpop.f32.mrb[0].mxu0
      %v3090 = vadd.f32 %v2977, %v3089
      %v3091 = vpop.f32.mrb[0].mxu0
      %v3092 = vadd.f32 %v2979, %v3091
      %v3093 = vpop.f32.mrb[0].mxu0
      %v3094 = vadd.f32 %v2981, %v3093
      %3095 = vmatprep.mubr.bf16.mxu0 %v2105
      %3096 = vmatmul.mubr.bf16.gmra.mrb[0].mxu0 %v2104
      %v3097 = vpop.f32.mrb[0].mxu0
      %v3098 = vadd.f32 %v2985, %v3097
      %v3099 = vpop.f32.mrb[0].mxu0
      %v3100 = vadd.f32 %v2987, %v3099
      %v3101 = vpop.f32.mrb[0].mxu0
      %v3102 = vadd.f32 %v2989, %v3101
      %v3103 = vpop.f32.mrb[0].mxu0
      %v3104 = vadd.f32 %v2991, %v3103
      %3105 = vmatprep.mubr.bf16.mxu0 %v2113
      %3106 = vmatmul.mubr.bf16.gmra.mrb[0].mxu0 %v2112
      %v3107 = vpop.f32.mrb[0].mxu0
      %v3108 = vadd.f32 %v2995, %v3107
      %v3109 = vpop.f32.mrb[0].mxu0
      %v3110 = vadd.f32 %v2997, %v3109
      %v3111 = vpop.f32.mrb[0].mxu0
      %v3112 = vadd.f32 %v2999, %v3111
      %v3113 = vpop.f32.mrb[0].mxu0
      %v3114 = vadd.f32 %v3001, %v3113
      %3115 = vmatprep.mubr.bf16.mxu0 %v2121
      %3116 = vmatmul.mubr.bf16.gmra.mrb[0].mxu0 %v2120
      %v3117 = vpop.f32.mrb[0].mxu0
      %v3118 = vadd.f32 %v3005, %v3117
      %v3119 = vpop.f32.mrb[0].mxu0
      %v3120 = vadd.f32 %v3007, %v3119
      %v3121 = vpop.f32.mrb[0].mxu0
      %v3122 = vadd.f32 %v3009, %v3121
      %v3123 = vpop.f32.mrb[0].mxu0
      %v3124 = vadd.f32 %v3011, %v3123
      %3125 = vmatprep.mubr.bf16.mxu0 %v2129
      %3126 = vmatmul.mubr.bf16.gmra.mrb[0].mxu0 %v2128
      %v3127 = vpop.f32.mrb[0].mxu0
      %v3128 = vadd.f32 %v3015, %v3127
      %v3129 = vpop.f32.mrb[0].mxu0
      %v3130 = vadd.f32 %v3017, %v3129
      %v3131 = vpop.f32.mrb[0].mxu0
      %v3132 = vadd.f32 %v3019, %v3131
      %v3133 = vpop.f32.mrb[0].mxu0
      %v3134 = vadd.f32 %v3021, %v3133
      %3135 = vmatprep.mubr.bf16.mxu0 %v2137
      %3136 = vmatmul.mubr.bf16.gmra.mrb[0].mxu0 %v2136
      %v3137 = vpop.f32.mrb[0].mxu0
      %v3138 = vadd.f32 %v3025, %v3137
      %v3139 = vpop.f32.mrb[0].mxu0
      %v3140 = vadd.f32 %v3027, %v3139
      %v3141 = vpop.f32.mrb[0].mxu0
      %v3142 = vadd.f32 %v3029, %v3141
      %v3143 = vpop.f32.mrb[0].mxu0
      %v3144 = vadd.f32 %v3031, %v3143
      %3145 = vmatprep.mubr.bf16.mxu0 %v2145
      %3146 = vmatmul.mubr.bf16.gmra.mrb[0].mxu0 %v2144
      %v3147 = vpop.f32.mrb[0].mxu0
      %v3148 = vadd.f32 %v3035, %v3147
      %v3149 = vpop.f32.mrb[0].mxu0
      %v3150 = vadd.f32 %v3037, %v3149
      %v3151 = vpop.f32.mrb[0].mxu0
      %v3152 = vadd.f32 %v3039, %v3151
      %v3153 = vpop.f32.mrb[0].mxu0
      %v3154 = vadd.f32 %v3041, %v3153
      %3155 = vdwg.mxu0
      %3156 = vmatprep.subr.bf16.mxu0 %v2739
      %3157 = vmatpush1.bf16.msra.mxu0 %v2738
      %3158 = vmatprep.subr.bf16.mxu0 %v2741
      %3159 = vmatpush1.bf16.msra.mxu0 %v2740
      %3160 = vmatprep.subr.bf16.mxu0 %v2743
      %3161 = vmatpush1.bf16.msra.mxu0 %v2742
      %3162 = vmatprep.subr.bf16.mxu0 %v2745
      %3163 = vmatpush1.bf16.msra.mxu0 %v2744
      %3164 = vmatprep.subr.bf16.mxu0 %v2747
      %3165 = vmatpush1.bf16.msra.mxu0 %v2746
      %3166 = vmatprep.subr.bf16.mxu0 %v2749
      %3167 = vmatpush1.bf16.msra.mxu0 %v2748
      %3168 = vmatprep.subr.bf16.mxu0 %v2751
      %3169 = vmatpush1.bf16.msra.mxu0 %v2750
      %3170 = vmatprep.subr.bf16.mxu0 %v2753
      %3171 = vmatpush1.bf16.msra.mxu0 %v2752
      %3172 = vmatprep.subr.bf16.mxu0 %v2755
      %3173 = vmatpush1.bf16.msra.mxu0 %v2754
      %3174 = vmatprep.subr.bf16.mxu0 %v2757
      %3175 = vmatpush1.bf16.msra.mxu0 %v2756
      %3176 = vmatprep.subr.bf16.mxu0 %v2759
      %3177 = vmatpush1.bf16.msra.mxu0 %v2758
      %3178 = vmatprep.subr.bf16.mxu0 %v2761
      %3179 = vmatpush1.bf16.msra.mxu0 %v2760
      %3180 = vmatprep.subr.bf16.mxu0 %v2763
      %3181 = vmatpush1.bf16.msra.mxu0 %v2762
      %3182 = vmatprep.subr.bf16.mxu0 %v2765
      %3183 = vmatpush1.bf16.msra.mxu0 %v2764
      %3184 = vmatprep.subr.bf16.mxu0 %v2767
      %3185 = vmatpush1.bf16.msra.mxu0 %v2766
      %3186 = vmatprep.subr.bf16.mxu0 %v2769
      %3187 = vmatpush1.bf16.msra.mxu0 %v2768
      %3188 = vmatprep.mubr.bf16.mxu0 %v2091
      %3189 = vmatmul.mubr.bf16.gmra.mrb[0].mxu0 %v2090
      %v3190 = vpop.f32.mrb[0].mxu0
      %v3191 = vadd.f32 %v3078, %v3190
      %v3192 = vpop.f32.mrb[0].mxu0
      %v3193 = vadd.f32 %v3080, %v3192
      %v3194 = vpop.f32.mrb[0].mxu0
      %v3195 = vadd.f32 %v3082, %v3194
      %v3196 = vpop.f32.mrb[0].mxu0
      %v3197 = vadd.f32 %v3084, %v3196
      %3198 = vmatprep.mubr.bf16.mxu0 %v2099
      %3199 = vmatmul.mubr.bf16.gmra.mrb[0].mxu0 %v2098
      %v3200 = vpop.f32.mrb[0].mxu0
      %v3201 = vadd.f32 %v3088, %v3200
      %v3202 = vpop.f32.mrb[0].mxu0
      %v3203 = vadd.f32 %v3090, %v3202
      %v3204 = vpop.f32.mrb[0].mxu0
      %v3205 = vadd.f32 %v3092, %v3204
      %v3206 = vpop.f32.mrb[0].mxu0
      %v3207 = vadd.f32 %v3094, %v3206
      %3208 = vmatprep.mubr.bf16.mxu0 %v2107
      %3209 = vmatmul.mubr.bf16.gmra.mrb[0].mxu0 %v2106
      %v3210 = vpop.f32.mrb[0].mxu0
      %v3211 = vadd.f32 %v3098, %v3210
      %v3212 = vpop.f32.mrb[0].mxu0
      %v3213 = vadd.f32 %v3100, %v3212
      %v3214 = vpop.f32.mrb[0].mxu0
      %v3215 = vadd.f32 %v3102, %v3214
      %v3216 = vpop.f32.mrb[0].mxu0
      %v3217 = vadd.f32 %v3104, %v3216
      %3218 = vmatprep.mubr.bf16.mxu0 %v2115
      %3219 = vmatmul.mubr.bf16.gmra.mrb[0].mxu0 %v2114
      %v3220 = vpop.f32.mrb[0].mxu0
      %v3221 = vadd.f32 %v3108, %v3220
      %v3222 = vpop.f32.mrb[0].mxu0
      %v3223 = vadd.f32 %v3110, %v3222
      %v3224 = vpop.f32.mrb[0].mxu0
      %v3225 = vadd.f32 %v3112, %v3224
      %v3226 = vpop.f32.mrb[0].mxu0
      %v3227 = vadd.f32 %v3114, %v3226
      %3228 = vmatprep.mubr.bf16.mxu0 %v2123
      %3229 = vmatmul.mubr.bf16.gmra.mrb[0].mxu0 %v2122
      %v3230 = vpop.f32.mrb[0].mxu0
      %v3231 = vadd.f32 %v3118, %v3230
      %v3232 = vpop.f32.mrb[0].mxu0
      %v3233 = vadd.f32 %v3120, %v3232
      %v3234 = vpop.f32.mrb[0].mxu0
      %v3235 = vadd.f32 %v3122, %v3234
      %v3236 = vpop.f32.mrb[0].mxu0
      %v3237 = vadd.f32 %v3124, %v3236
      %3238 = vmatprep.mubr.bf16.mxu0 %v2131
      %3239 = vmatmul.mubr.bf16.gmra.mrb[0].mxu0 %v2130
      %v3240 = vpop.f32.mrb[0].mxu0
      %v3241 = vadd.f32 %v3128, %v3240
      %v3242 = vpop.f32.mrb[0].mxu0
      %v3243 = vadd.f32 %v3130, %v3242
      %v3244 = vpop.f32.mrb[0].mxu0
      %v3245 = vadd.f32 %v3132, %v3244
      %v3246 = vpop.f32.mrb[0].mxu0
      %v3247 = vadd.f32 %v3134, %v3246
      %3248 = vmatprep.mubr.bf16.mxu0 %v2139
      %3249 = vmatmul.mubr.bf16.gmra.mrb[0].mxu0 %v2138
      %v3250 = vpop.f32.mrb[0].mxu0
      %v3251 = vadd.f32 %v3138, %v3250
      %v3252 = vpop.f32.mrb[0].mxu0
      %v3253 = vadd.f32 %v3140, %v3252
      %v3254 = vpop.f32.mrb[0].mxu0
      %v3255 = vadd.f32 %v3142, %v3254
      %v3256 = vpop.f32.mrb[0].mxu0
      %v3257 = vadd.f32 %v3144, %v3256
      %3258 = vmatprep.mubr.bf16.mxu0 %v2147
      %3259 = vmatmul.mubr.bf16.gmra.mrb[0].mxu0 %v2146
      %v3260 = vpop.f32.mrb[0].mxu0
      %v3261 = vadd.f32 %v3148, %v3260
      %v3262 = vpop.f32.mrb[0].mxu0
      %v3263 = vadd.f32 %v3150, %v3262
      %v3264 = vpop.f32.mrb[0].mxu0
      %v3265 = vadd.f32 %v3152, %v3264
      %v3266 = vpop.f32.mrb[0].mxu0
      %v3267 = vadd.f32 %v3154, %v3266
      %3268 = vdwg.mxu0
      %3269 = vmatprep.subr.bf16.mxu0 %v2771
      %3270 = vmatpush1.bf16.msra.mxu0 %v2770
      %3271 = vmatprep.subr.bf16.mxu0 %v2773
      %3272 = vmatpush1.bf16.msra.mxu0 %v2772
      %3273 = vmatprep.subr.bf16.mxu0 %v2775
      %3274 = vmatpush1.bf16.msra.mxu0 %v2774
      %3275 = vmatprep.subr.bf16.mxu0 %v2777
      %3276 = vmatpush1.bf16.msra.mxu0 %v2776
      %3277 = vmatprep.subr.bf16.mxu0 %v2779
      %3278 = vmatpush1.bf16.msra.mxu0 %v2778
      %3279 = vmatprep.subr.bf16.mxu0 %v2781
      %3280 = vmatpush1.bf16.msra.mxu0 %v2780
      %3281 = vmatprep.subr.bf16.mxu0 %v2783
      %3282 = vmatpush1.bf16.msra.mxu0 %v2782
      %3283 = vmatprep.subr.bf16.mxu0 %v2785
      %3284 = vmatpush1.bf16.msra.mxu0 %v2784
      %3285 = vmatprep.subr.bf16.mxu0 %v2787
      %3286 = vmatpush1.bf16.msra.mxu0 %v2786
      %3287 = vmatprep.subr.bf16.mxu0 %v2789
      %3288 = vmatpush1.bf16.msra.mxu0 %v2788
      %3289 = vmatprep.subr.bf16.mxu0 %v2791
      %3290 = vmatpush1.bf16.msra.mxu0 %v2790
      %3291 = vmatprep.subr.bf16.mxu0 %v2793
      %3292 = vmatpush1.bf16.msra.mxu0 %v2792
      %3293 = vmatprep.subr.bf16.mxu0 %v2795
      %3294 = vmatpush1.bf16.msra.mxu0 %v2794
      %3295 = vmatprep.subr.bf16.mxu0 %v2797
      %3296 = vmatpush1.bf16.msra.mxu0 %v2796
      %3297 = vmatprep.subr.bf16.mxu0 %v2799
      %3298 = vmatpush1.bf16.msra.mxu0 %v2798
      %3299 = vmatprep.subr.bf16.mxu0 %v2801
      %3300 = vmatpush1.bf16.msra.mxu0 %v2800
      %3301 = vmatprep.mubr.bf16.mxu0 %v2093
      %3302 = vmatmul.mubr.bf16.gmra.mrb[0].mxu0 %v2092
      %v3303 = vpop.f32.mrb[0].mxu0
      %v3304 = vadd.f32 %v3191, %v3303
      %v3305 = vpop.f32.mrb[0].mxu0
      %v3306 = vadd.f32 %v3193, %v3305
      %v3307 = vpop.f32.mrb[0].mxu0
      %v3308 = vadd.f32 %v3195, %v3307
      %v3309 = vpop.f32.mrb[0].mxu0
      %v3310 = vadd.f32 %v3197, %v3309
      %3311 = vmatprep.mubr.bf16.mxu0 %v2101
      %3312 = vmatmul.mubr.bf16.gmra.mrb[0].mxu0 %v2100
      %v3313 = vpop.f32.mrb[0].mxu0
      %v3314 = vadd.f32 %v3201, %v3313
      %v3315 = vpop.f32.mrb[0].mxu0
      %v3316 = vadd.f32 %v3203, %v3315
      %v3317 = vpop.f32.mrb[0].mxu0
      %v3318 = vadd.f32 %v3205, %v3317
      %v3319 = vpop.f32.mrb[0].mxu0
      %v3320 = vadd.f32 %v3207, %v3319
      %3321 = vmatprep.mubr.bf16.mxu0 %v2109
      %3322 = vmatmul.mubr.bf16.gmra.mrb[0].mxu0 %v2108
      %v3323 = vpop.f32.mrb[0].mxu0
      %v3324 = vadd.f32 %v3211, %v3323
      %v3325 = vpop.f32.mrb[0].mxu0
      %v3326 = vadd.f32 %v3213, %v3325
      %v3327 = vpop.f32.mrb[0].mxu0
      %v3328 = vadd.f32 %v3215, %v3327
      %v3329 = vpop.f32.mrb[0].mxu0
      %v3330 = vadd.f32 %v3217, %v3329
      %3331 = vmatprep.mubr.bf16.mxu0 %v2117
      %3332 = vmatmul.mubr.bf16.gmra.mrb[0].mxu0 %v2116
      %v3333 = vpop.f32.mrb[0].mxu0
      %v3334 = vadd.f32 %v3221, %v3333
      %v3335 = vpop.f32.mrb[0].mxu0
      %v3336 = vadd.f32 %v3223, %v3335
      %v3337 = vpop.f32.mrb[0].mxu0
      %v3338 = vadd.f32 %v3225, %v3337
      %v3339 = vpop.f32.mrb[0].mxu0
      %v3340 = vadd.f32 %v3227, %v3339
      %3341 = vmatprep.mubr.bf16.mxu0 %v2125
      %3342 = vmatmul.mubr.bf16.gmra.mrb[0].mxu0 %v2124
      %v3343 = vpop.f32.mrb[0].mxu0
      %v3344 = vadd.f32 %v3231, %v3343
      %v3345 = vpop.f32.mrb[0].mxu0
      %v3346 = vadd.f32 %v3233, %v3345
      %v3347 = vpop.f32.mrb[0].mxu0
      %v3348 = vadd.f32 %v3235, %v3347
      %v3349 = vpop.f32.mrb[0].mxu0
      %v3350 = vadd.f32 %v3237, %v3349
      %3351 = vmatprep.mubr.bf16.mxu0 %v2133
      %3352 = vmatmul.mubr.bf16.gmra.mrb[0].mxu0 %v2132
      %v3353 = vpop.f32.mrb[0].mxu0
      %v3354 = vadd.f32 %v3241, %v3353
      %v3355 = vpop.f32.mrb[0].mxu0
      %v3356 = vadd.f32 %v3243, %v3355
      %v3357 = vpop.f32.mrb[0].mxu0
      %v3358 = vadd.f32 %v3245, %v3357
      %v3359 = vpop.f32.mrb[0].mxu0
      %v3360 = vadd.f32 %v3247, %v3359
      %3361 = vmatprep.mubr.bf16.mxu0 %v2141
      %3362 = vmatmul.mubr.bf16.gmra.mrb[0].mxu0 %v2140
      %v3363 = vpop.f32.mrb[0].mxu0
      %v3364 = vadd.f32 %v3251, %v3363
      %v3365 = vpop.f32.mrb[0].mxu0
      %v3366 = vadd.f32 %v3253, %v3365
      %v3367 = vpop.f32.mrb[0].mxu0
      %v3368 = vadd.f32 %v3255, %v3367
      %v3369 = vpop.f32.mrb[0].mxu0
      %v3370 = vadd.f32 %v3257, %v3369
      %3371 = vmatprep.mubr.bf16.mxu0 %v2149
      %3372 = vmatmul.mubr.bf16.gmra.mrb[0].mxu0 %v2148
      %v3373 = vpop.f32.mrb[0].mxu0
      %v3374 = vadd.f32 %v3261, %v3373
      %v3375 = vpop.f32.mrb[0].mxu0
      %v3376 = vadd.f32 %v3263, %v3375
      %v3377 = vpop.f32.mrb[0].mxu0
      %v3378 = vadd.f32 %v3265, %v3377
      %v3379 = vpop.f32.mrb[0].mxu0
      %v3380 = vadd.f32 %v3267, %v3379
      %3381 = vdwg.mxu0
      %v3382 = vadd.f32 %v3304, %v303
      %v3383 = vadd.f32 %v3306, %v304
      %v3384 = vadd.f32 %v3308, %v305
      %v3385 = vadd.f32 %v3310, %v306
      %v3386 = vadd.f32 %v3314, %v307
      %v3387 = vadd.f32 %v3316, %v308
      %v3388 = vadd.f32 %v3318, %v309
      %v3389 = vadd.f32 %v3320, %v310
      %v3390 = vadd.f32 %v3324, %v311
      %v3391 = vadd.f32 %v3326, %v312
      %v3392 = vadd.f32 %v3328, %v313
      %v3393 = vadd.f32 %v3330, %v314
      %v3394 = vadd.f32 %v3334, %v315
      %v3395 = vadd.f32 %v3336, %v316
      %v3396 = vadd.f32 %v3338, %v317
      %v3397 = vadd.f32 %v3340, %v318
      %v3398 = vadd.f32 %v3344, %v319
      %v3399 = vadd.f32 %v3346, %v320
      %v3400 = vadd.f32 %v3348, %v321
      %v3401 = vadd.f32 %v3350, %v322
      %v3402 = vadd.f32 %v3354, %v323
      %v3403 = vadd.f32 %v3356, %v324
      %v3404 = vadd.f32 %v3358, %v325
      %v3405 = vadd.f32 %v3360, %v326
      %v3406 = vadd.f32 %v3364, %v327
      %v3407 = vadd.f32 %v3366, %v328
      %v3408 = vadd.f32 %v3368, %v329
      %v3409 = vadd.f32 %v3370, %v330
      %v3410 = vadd.f32 %v3374, %v331
      %v3411 = vadd.f32 %v3376, %v332
      %v3412 = vadd.f32 %v3378, %v333
      %v3413 = vadd.f32 %v3380, %v334
      %v3414 = vpack.c.bf16 %v3384, %v3382
      %v3415 = vpack.c.bf16 %v3385, %v3383
      %v3416 = vpack.c.bf16 %v3388, %v3386
      %v3417 = vpack.c.bf16 %v3389, %v3387
      %v3418 = vpack.c.bf16 %v3392, %v3390
      %v3419 = vpack.c.bf16 %v3393, %v3391
      %v3420 = vpack.c.bf16 %v3396, %v3394
      %v3421 = vpack.c.bf16 %v3397, %v3395
      %v3422 = vpack.c.bf16 %v3400, %v3398
      %v3423 = vpack.c.bf16 %v3401, %v3399
      %v3424 = vpack.c.bf16 %v3404, %v3402
      %v3425 = vpack.c.bf16 %v3405, %v3403
      %v3426 = vpack.c.bf16 %v3408, %v3406
      %v3427 = vpack.c.bf16 %v3409, %v3407
      %v3428 = vpack.c.bf16 %v3412, %v3410
      %v3429 = vpack.c.bf16 %v3413, %v3411
      %v3446 = vunpack.c.l.b16 %v3414
      %v3447 = vunpack.c.l.b16 %v3415
      %v3448 = vunpack.c.h.b16 %v3414
      %v3449 = vunpack.c.h.b16 %v3415
      %v3450 = vunpack.c.l.b16 %v3416
      %v3451 = vunpack.c.l.b16 %v3417
      %v3452 = vunpack.c.h.b16 %v3416
      %v3453 = vunpack.c.h.b16 %v3417
      %v3454 = vunpack.c.l.b16 %v3418
      %v3455 = vunpack.c.l.b16 %v3419
      %v3456 = vunpack.c.h.b16 %v3418
      %v3457 = vunpack.c.h.b16 %v3419
      %v3458 = vunpack.c.l.b16 %v3420
      %v3459 = vunpack.c.l.b16 %v3421
      %v3460 = vunpack.c.h.b16 %v3420
      %v3461 = vunpack.c.h.b16 %v3421
      %v3462 = vunpack.c.l.b16 %v3422
      %v3463 = vunpack.c.l.b16 %v3423
      %v3464 = vunpack.c.h.b16 %v3422
      %v3465 = vunpack.c.h.b16 %v3423
      %v3466 = vunpack.c.l.b16 %v3424
      %v3467 = vunpack.c.l.b16 %v3425
      %v3468 = vunpack.c.h.b16 %v3424
      %v3469 = vunpack.c.h.b16 %v3425
      %v3470 = vunpack.c.l.b16 %v3426
      %v3471 = vunpack.c.l.b16 %v3427
      %v3472 = vunpack.c.h.b16 %v3426
      %v3473 = vunpack.c.h.b16 %v3427
      %v3474 = vunpack.c.l.b16 %v3428
      %v3475 = vunpack.c.l.b16 %v3429
      %v3476 = vunpack.c.h.b16 %v3428
      %v3477 = vunpack.c.h.b16 %v3429
      %v3478 = vpack.c.b16 %v3447, %v3446
      %v3479 = vpack.c.b16 %v3449, %v3448
      %v3480 = vpack.c.b16 %v3451, %v3450
      %v3481 = vpack.c.b16 %v3453, %v3452
      %v3482 = vpack.c.b16 %v3455, %v3454
      %v3483 = vpack.c.b16 %v3457, %v3456
      %v3484 = vpack.c.b16 %v3459, %v3458
      %v3485 = vpack.c.b16 %v3461, %v3460
      %v3486 = vpack.c.b16 %v3463, %v3462
      %v3487 = vpack.c.b16 %v3465, %v3464
      %v3488 = vpack.c.b16 %v3467, %v3466
      %v3489 = vpack.c.b16 %v3469, %v3468
      %v3490 = vpack.c.b16 %v3471, %v3470
      %v3491 = vpack.c.b16 %v3473, %v3472
      %v3492 = vpack.c.b16 %v3475, %v3474
      %v3493 = vpack.c.b16 %v3477, %v3476
      %3510 = vst [vmem:[%s285] sm:$0xff] %v3478
      %3511 = vst [vmem:[%s285 + $0x8] sm:$0xff] %v3479
      %3512 = vst [vmem:[%s285 + $0x10] sm:$0xff] %v3480
      %3513 = vst [vmem:[%s285 + $0x18] sm:$0xff] %v3481
      %3514 = vst [vmem:[%s285 + $0x20] sm:$0xff] %v3482
      %3515 = vst [vmem:[%s285 + $0x28] sm:$0xff] %v3483
      %3516 = vst [vmem:[%s285 + $0x30] sm:$0xff] %v3484
      %3517 = vst [vmem:[%s285 + $0x38] sm:$0xff] %v3485
      %3518 = vst [vmem:[%s285 + $0x40] sm:$0xff] %v3486
      %3519 = vst [vmem:[%s285 + $0x48] sm:$0xff] %v3487
      %3520 = vst [vmem:[%s285 + $0x50] sm:$0xff] %v3488
      %3521 = vst [vmem:[%s285 + $0x58] sm:$0xff] %v3489
      %3522 = vst [vmem:[%s285 + $0x60] sm:$0xff] %v3490
      %3523 = vst [vmem:[%s285 + $0x68] sm:$0xff] %v3491
      %3524 = vst [vmem:[%s285 + $0x70] sm:$0xff] %v3492
      %3525 = vst [vmem:[%s285 + $0x78] sm:$0xff] %v3493
      %s3526 = smul.u32 16, %s18
      %p3527 = scmp.lt.s32.totalorder %s3526, 31
      %s3528 = scalar_select %p3527, %s3526, 31
      %s3529 = smul.addr %s3528, 2
      %s3530 = smul.addr %s3529, 4
      %s3531 = scalar_lea.vmem %s7, %s3530
      // Predicated region
      $region49: #{mindvault_forward.12} parent=47 // pred_check
        %p3532 = pneg %p188
      $region50: #{mindvault_forward.12} parent=47 // pred_check_branch
        %3534 = sbr.rel (%p3532) target = $region52
      $region51: #{mindvault_forward.12} parent=47 // pred_region
        %s3535 = smul.u32 16, %s18
      $region52: #{mindvault_forward.12} parent=47 // pred_fallthru
        _
    $region48: #{mindvault_forward.12} parent=5 // pred_fallthru
      _
    %p3536 = scmp.le.s32.totalorder 2, %s13
    // Predicated region
    $region53: #{mindvault_forward.12} parent=5 // pred_check
      %p3537 = pneg %p3536
    $region54: #{mindvault_forward.12} parent=5 // pred_check_branch
      %3539 = sbr.rel (%p3537) target = $region56
    $region55: #{mindvault_forward.12} parent=5 // pred_region
      %s3540 = ssub.s32 %s13, 2
      // Predicated region
      $region57: #{mindvault_forward.12} parent=55 // pred_check
        %p3541 = pneg %p194
      $region58: #{mindvault_forward.12} parent=55 // pred_check_branch
        %3543 = sbr.rel (%p3541) target = $region60
      $region59: #{mindvault_forward.12} parent=55 // pred_region
        %s3544 = smul.u32 16, %s19
        %p3545 = scmp.lt.s32.totalorder %s3544, 31
        %s3546 = scalar_select %p3545, %s3544, 31
        %s3547 = smul.addr %s3546, 2
        %s3548 = smul.addr %s3547, 4
        %s3549 = scalar_lea.vmem %s7, %s3548
      $region60: #{mindvault_forward.12} parent=55 // pred_fallthru
        _
    $region56: #{mindvault_forward.12} parent=5 // pred_fallthru
      _
  $region6: #{mindvault_forward.12} parent=0 // loop_footer
    %s17 = sadd.s32 1, %s13
  $region7: #{mindvault_forward.12} parent=0 // loop_footer_branch
    %12 = sbr.rel target = $region3
  $region8: #{mindvault_forward.12} parent=0 // loop_exit
    _

</llo_original>
